<compile_context>
chip_gen: v7x
topology: tpu7x:2x2x1
jax: 0.10.0
libtpu: 0.0.40
codegen_flags: <defaults>
</compile_context>

<pallas_src>
import functools

import jax
import jax.numpy as jnp
from jax.experimental import pallas as pl
from jax.experimental.pallas import tpu as pltpu

NUM_CLASSES = 21
CP = 128            # padded output-channel width (lane-dense HBM stores)
BR = 64             # ASPP branch width / last_conv hidden width
TM = 128            # row tile for the strided backbone conv kernel
ASPP_DILS = (6, 12, 18)
ASPP_PAD = max(ASPP_DILS)


# ----------------------------------------------------------------------------
# Kernel 1: strided conv as a single matmul + folded BN (+ReLU) per row tile
# ----------------------------------------------------------------------------
def _matmul_bn_kernel(a_ref, w_ref, shift_ref, o_ref, *, relu):
    y = jnp.dot(a_ref[...], w_ref[...], preferred_element_type=jnp.float32)
    y = y + shift_ref[...]
    if relu:
        y = jnp.maximum(y, 0.0)
    o_ref[...] = y.astype(o_ref.dtype)


def conv_strided(x, w_flat, shift, *, k, stride, padding, relu, out_dtype):
    """k x k strided conv + folded-BN + ReLU.  Host-side im2col (strided taps
    concatenated along channels) feeds one MXU matmul per 128-row tile; output
    is CP(=128)-lane dense with padded channels exactly zero."""
    N, H, W, Cin = x.shape
    Ho = (H + 2 * padding - k) // stride + 1
    Wo = (W + 2 * padding - k) // stride + 1
    xp = jnp.pad(x, ((0, 0), (padding, padding), (padding, padding), (0, 0)))
    taps = [xp[:, i:i + stride * Ho:stride, j:j + stride * Wo:stride, :]
            for i in range(k) for j in range(k)]
    M = N * Ho * Wo
    K = k * k * Cin
    a = jnp.concatenate(taps, axis=-1).reshape(M, K).astype(jnp.bfloat16)
    tm = TM if M % TM == 0 else M

    out = pl.pallas_call(
        functools.partial(_matmul_bn_kernel, relu=relu),
        out_shape=jax.ShapeDtypeStruct((M, CP), out_dtype),
        grid=(M // tm,),
        in_specs=[
            pl.BlockSpec((tm, K), lambda m: (m, 0)),
            pl.BlockSpec((K, CP), lambda m: (0, 0)),
            pl.BlockSpec((1, CP), lambda m: (0, 0)),
        ],
        out_specs=pl.BlockSpec((tm, CP), lambda m: (m, 0)),
        compiler_params=pltpu.CompilerParams(dimension_semantics=("parallel",)),
    )(a, w_flat, shift)
    return out.reshape(N, Ho, Wo, CP)


# ----------------------------------------------------------------------------
# Kernel 2: fully fused ASPP (5 branches + GAP + projection) per batch element
# ----------------------------------------------------------------------------
def _aspp_kernel(xp_ref, w1x1_ref, wdil_ref, shifts_ref, wproj_ref, sproj_ref,
                 o_ref, *, Ho, Wo, pad, dils):
    M = Ho * Wo
    Cf = xp_ref.shape[-1]

    # original (unpadded) feature window, flattened to (M, Cf)
    center = xp_ref[0, pad:pad + Ho, pad:pad + Wo, :].reshape(M, Cf)
    center_bf = center.astype(jnp.bfloat16)

    # branch 1: 1x1 conv + BN + ReLU, folded straight into the projection acc
    b = jnp.dot(center_bf, w1x1_ref[0], preferred_element_type=jnp.float32)
    b = jnp.maximum(b + shifts_ref[0:1, :], 0.0)
    acc = jnp.dot(b.astype(jnp.bfloat16), wproj_ref[0],
                  preferred_element_type=jnp.float32)

    # branches 2..4: dilated 3x3 convs, im2col done by VMEM window slices
    for bi, d in enumerate(dils):
        bsum = jnp.zeros((M, w1x1_ref.shape[-1]), jnp.float32)
        for i in range(3):
            for j in range(3):
                i0 = pad + (i - 1) * d
                j0 = pad + (j - 1) * d
                win = xp_ref[0, i0:i0 + Ho, j0:j0 + Wo, :]
                win = win.reshape(M, Cf).astype(jnp.bfloat16)
                bsum += jnp.dot(win, wdil_ref[bi, i * 3 + j],
                                preferred_element_type=jnp.float32)
        b = jnp.maximum(bsum + shifts_ref[bi + 1:bi + 2, :], 0.0)
        acc += jnp.dot(b.astype(jnp.bfloat16), wproj_ref[bi + 1],
                       preferred_element_type=jnp.float32)

    # branch 5: global average pool -> 1x1 conv + BN + ReLU -> broadcast upsample
    pooled = jnp.mean(center, axis=0, keepdims=True)
    g = jnp.dot(pooled.astype(jnp.bfloat16), w1x1_ref[1],
                preferred_element_type=jnp.float32)
    g = jnp.maximum(g + shifts_ref[4:5, :], 0.0)
    acc = acc + jnp.dot(g.astype(jnp.bfloat16), wproj_ref[4],
                        preferred_element_type=jnp.float32)

    # projection BN + ReLU; Dropout(0.5) is identity in eval mode
    o_ref[0] = jnp.maximum(acc + sproj_ref[...], 0.0).astype(o_ref.dtype)


def aspp_fused(feat, p):
    N, H, W, Cf = feat.shape
    xp = jnp.pad(feat, ((0, 0), (ASPP_PAD, ASPP_PAD), (ASPP_PAD, ASPP_PAD), (0, 0)))
    Hp = H + 2 * ASPP_PAD
    Wp = W + 2 * ASPP_PAD
    M = H * W
    out = pl.pallas_call(
        functools.partial(_aspp_kernel, Ho=H, Wo=W, pad=ASPP_PAD, dils=ASPP_DILS),
        out_shape=jax.ShapeDtypeStruct((N, M, CP), jnp.bfloat16),
        grid=(N,),
        in_specs=[
            pl.BlockSpec((1, Hp, Wp, Cf), lambda n: (n, 0, 0, 0)),
            pl.BlockSpec((2, Cf, BR), lambda n: (0, 0, 0)),
            pl.BlockSpec((3, 9, Cf, BR), lambda n: (0, 0, 0, 0)),
            pl.BlockSpec((5, BR), lambda n: (0, 0)),
            pl.BlockSpec((5, BR, CP), lambda n: (0, 0, 0)),
            pl.BlockSpec((1, CP), lambda n: (0, 0)),
        ],
        out_specs=pl.BlockSpec((1, M, CP), lambda n: (n, 0, 0)),
        compiler_params=pltpu.CompilerParams(dimension_semantics=("parallel",)),
    )(xp, p['aspp_w1x1'], p['aspp_wdil'], p['aspp_shifts'],
      p['aspp_wproj'], p['aspp_sproj'])
    return out.reshape(N, H, W, CP)


# ----------------------------------------------------------------------------
# Kernel 3: fused last_conv head (3x3+BN+ReLU -> Dropout(id) -> 1x1 + bias)
# ----------------------------------------------------------------------------
def _head_kernel(x_ref, w1_ref, s1_ref, w2_ref, b2_ref, o_ref, *, Ho, Wo):
    M = Ho * Wo
    Cin = x_ref.shape[-1]
    acc = jnp.zeros((M, w1_ref.shape[-1]), jnp.float32)
    for i in range(3):
        for j in range(3):
            win = x_ref[0, i:i + Ho, j:j + Wo, :].reshape(M, Cin).astype(jnp.bfloat16)
            acc += jnp.dot(win, w1_ref[i * 3 + j], preferred_element_type=jnp.float32)
    y = jnp.maximum(acc + s1_ref[...], 0.0)          # BN + ReLU; Dropout(0.1) = id
    logits = jnp.dot(y.astype(jnp.bfloat16), w2_ref[...],
                     preferred_element_type=jnp.float32) + b2_ref[...]
    o_ref[0] = logits


def head_fused(x, p):
    N, H, W, Cf = x.shape
    xp = jnp.pad(x, ((0, 0), (1, 1), (1, 1), (0, 0)))
    M = H * W
    out = pl.pallas_call(
        functools.partial(_head_kernel, Ho=H, Wo=W),
        out_shape=jax.ShapeDtypeStruct((N, M, CP), jnp.float32),
        grid=(N,),
        in_specs=[
            pl.BlockSpec((1, H + 2, W + 2, Cf), lambda n: (n, 0, 0, 0)),
            pl.BlockSpec((9, Cf, BR), lambda n: (0, 0, 0)),
            pl.BlockSpec((1, BR), lambda n: (0, 0)),
            pl.BlockSpec((BR, CP), lambda n: (0, 0)),
            pl.BlockSpec((1, CP), lambda n: (0, 0)),
        ],
        out_specs=pl.BlockSpec((1, M, CP), lambda n: (n, 0, 0)),
        compiler_params=pltpu.CompilerParams(dimension_semantics=("parallel",)),
    )(xp, p['last1_w'], p['last1_shift'], p['last2_w'], p['last2_b'])
    return out.reshape(N, H, W, CP)


# ----------------------------------------------------------------------------
# Parameters (deterministic, synthetic); BN scale folded into weights, bf16.
# ----------------------------------------------------------------------------
def bn_fold(cout, eps=1e-5):
    """Eval-mode BN folded to (scale, shift): gamma=1, beta=0, mean=0, var=1."""
    gamma = jnp.ones((cout,), jnp.float32)
    beta = jnp.zeros((cout,), jnp.float32)
    mean = jnp.zeros((cout,), jnp.float32)
    var = jnp.ones((cout,), jnp.float32)
    scale = gamma / jnp.sqrt(var + eps)
    shift = beta - mean * scale
    return scale, shift


def _pad_to(a, axis, size):
    cfg = [(0, 0)] * a.ndim
    cfg[axis] = (0, size - a.shape[axis])
    return jnp.pad(a, cfg)


def init_params(key):
    ks = jax.random.split(key, 10)

    def conv_w(k, kh, kw, cin, cout, kaiming=False):
        fan_in = cin * kh * kw
        std = (2.0 / fan_in) ** 0.5 if kaiming else 0.05
        return jax.random.normal(k, (kh, kw, cin, cout), jnp.float32) * std

    p = {}

    # --- synthetic backbone: two stride-2 conv+BN+ReLU blocks (im2col weights) ---
    def backbone_block(k, cin, cin_pad, cout):
        scale, shift = bn_fold(cout)
        w = conv_w(k, 3, 3, cin, cout)                       # (3,3,cin,cout)
        w = _pad_to(w, 2, cin_pad)                           # pad input channels
        w = (w * scale).reshape(9 * cin_pad, cout)           # (9*cin_pad, cout)
        w = _pad_to(w, 1, CP).astype(jnp.bfloat16)           # pad outputs to CP
        return w, _pad_to(shift, 0, CP).reshape(1, CP)

    p['bb1_w'], p['bb1_shift'] = backbone_block(ks[0], 3, 3, 16)
    p['bb2_w'], p['bb2_shift'] = backbone_block(ks[1], 16, CP, 32)

    # --- ASPP (branch width BR, feature channels padded to CP) ---
    C_FEAT = 32

    def branch_1x1(k):
        scale, shift = bn_fold(BR)
        w = conv_w(k, 1, 1, C_FEAT, BR)[0, 0] * scale            # (C_FEAT, BR)
        return _pad_to(w, 0, CP).astype(jnp.bfloat16), shift

    w_a1, sh_a1 = branch_1x1(ks[2])
    w_gp, sh_gp = branch_1x1(ks[6])
    p['aspp_w1x1'] = jnp.stack([w_a1, w_gp], 0)                  # (2, CP, BR)

    dil_w, dil_sh = [], []
    for kk in (ks[3], ks[4], ks[5]):
        scale, shift = bn_fold(BR)
        w = (conv_w(kk, 3, 3, C_FEAT, BR) * scale).reshape(9, C_FEAT, BR)
        dil_w.append(_pad_to(w, 1, CP).astype(jnp.bfloat16))
        dil_sh.append(shift)
    p['aspp_wdil'] = jnp.stack(dil_w, 0)                         # (3, 9, CP, BR)
    p['aspp_shifts'] = jnp.stack([sh_a1] + dil_sh + [sh_gp], 0)  # (5, BR)

    scale, shift = bn_fold(BR)
    wproj = (conv_w(ks[7], 1, 1, 5 * BR, BR)[0, 0] * scale).reshape(5, BR, BR)
    p['aspp_wproj'] = _pad_to(wproj, 2, CP).astype(jnp.bfloat16)  # (5, BR, CP)
    p['aspp_sproj'] = _pad_to(shift, 0, CP).reshape(1, CP)

    # --- last_conv head (kaiming init per DeepLab._init_weight) ---
    scale, shift = bn_fold(BR)
    w1 = (conv_w(ks[8], 3, 3, BR, BR, kaiming=True) * scale).reshape(9, BR, BR)
    p['last1_w'] = _pad_to(w1, 1, CP).astype(jnp.bfloat16)        # (9, CP, BR)
    p['last1_shift'] = shift.reshape(1, BR)
    w2 = conv_w(ks[9], 1, 1, BR, NUM_CLASSES, kaiming=True)[0, 0]
    p['last2_w'] = _pad_to(w2, 1, CP).astype(jnp.bfloat16)        # (BR, CP)
    p['last2_b'] = jnp.zeros((1, CP), jnp.float32)

    # NOTE: link_conv (1x1, link_in->link_out) is built by __init__ but never
    # used in forward(); intentionally omitted.
    return p


# ----------------------------------------------------------------------------
# Forward (mirrors DeepLab.forward: backbone -> aspp -> last_conv, eval mode)
# ----------------------------------------------------------------------------
def deeplab_forward(params, x_nchw):
    x = jnp.transpose(x_nchw, (0, 2, 3, 1))                      # NCHW -> NHWC

    # backbone returns (feat, low_level_feat); low_level_feat is unused here.
    low_level = conv_strided(x, params['bb1_w'], params['bb1_shift'],
                             k=3, stride=2, padding=1, relu=True,
                             out_dtype=jnp.bfloat16)
    feat = conv_strided(low_level, params['bb2_w'], params['bb2_shift'],
                        k=3, stride=2, padding=1, relu=True,
                        out_dtype=jnp.float32)      # f32 so GAP mean stays precise

    aspp_out = aspp_fused(feat, params)          # (N, H, W, CP) bf16, real 64 ch
    logits = head_fused(aspp_out, params)        # (N, H, W, CP) f32, real 21 ch

    logits = logits[..., :NUM_CLASSES]
    return jnp.transpose(logits, (0, 3, 1, 2))                   # NHWC -> NCHW


# ----------------------------------------------------------------------------
if __name__ == "__main__":
    key = jax.random.PRNGKey(0)
    pkey, xkey = jax.random.split(key)
    params = init_params(pkey)
    x = jax.random.normal(xkey, (2, 3, 32, 32), jnp.float32)     # NCHW input

    fwd = jax.jit(deeplab_forward)
    out = jax.block_until_ready(fwd(params, x))

    assert out.shape == (2, NUM_CLASSES, 8, 8), out.shape
    assert out.dtype == jnp.float32
    assert bool(jnp.all(jnp.isfinite(out)))
    print("KERNEL_OK")
</pallas_src>

<mosaic_0001>
module attributes {stable_mosaic.version = 11 : i64} {
  func.func @_matmul_bn_kernel(%arg0: i32, %arg1: memref<128x27xbf16, #tpu.memory_space<vmem>>, %arg2: memref<27x128xbf16, #tpu.memory_space<vmem>>, %arg3: memref<1x128xf32, #tpu.memory_space<vmem>>, %arg4: memref<128x128xbf16, #tpu.memory_space<vmem>>) attributes {dimension_semantics = [#tpu.dimension_semantics<parallel>], iteration_bounds = array<i64: 4>, scalar_prefetch = 0 : i64, scratch_operands = 0 : i64, tpu.core_type = #tpu.core_type<tc>, window_params = [{transform_indices = @transform_0, window_bounds = array<i64: 128, 27>}, {pipeline_mode = #tpu.pipeline_mode<synchronous>, transform_indices = @transform_1, window_bounds = array<i64: 27, 128>}, {pipeline_mode = #tpu.pipeline_mode<synchronous>, transform_indices = @transform_2, window_bounds = array<i64: 1, 128>}, {transform_indices = @transform_3, window_bounds = array<i64: 128, 128>}]} {
    %c0 = arith.constant 0 : index
    %c0_0 = arith.constant 0 : index
    %0 = vector.load %arg1[%c0, %c0_0] : memref<128x27xbf16, #tpu.memory_space<vmem>>, vector<128x27xbf16>
    %c0_1 = arith.constant 0 : index
    %c0_2 = arith.constant 0 : index
    %1 = vector.load %arg2[%c0_1, %c0_2] : memref<27x128xbf16, #tpu.memory_space<vmem>>, vector<27x128xbf16>
    %cst = arith.constant dense<0.000000e+00> : vector<128x128xf32>
    %2 = tpu.matmul %0, %1, %cst {dimension_numbers = #tpu.dot_dimension_numbers<[1], [0], [0], [1], [0, 0, 1, 1], [], []>} : vector<128x27xbf16>, vector<27x128xbf16>, vector<128x128xf32> -> vector<128x128xf32>
    %c0_3 = arith.constant 0 : index
    %c0_4 = arith.constant 0 : index
    %3 = vector.load %arg3[%c0_3, %c0_4] : memref<1x128xf32, #tpu.memory_space<vmem>>, vector<1x128xf32>
    %4 = vector.broadcast %3 : vector<1x128xf32> to vector<128x128xf32>
    %5 = arith.addf %2, %4 : vector<128x128xf32>
    %cst_5 = arith.constant 0.000000e+00 : f32
    %6 = vector.broadcast %cst_5 : f32 to vector<128x128xf32>
    %7 = arith.maximumf %5, %6 : vector<128x128xf32>
    %8 = arith.truncf %7 : vector<128x128xf32> to vector<128x128xbf16>
    %c0_6 = arith.constant 0 : index
    %c0_7 = arith.constant 0 : index
    %9 = vector.load %arg4[%c0_6, %c0_7] : memref<128x128xbf16, #tpu.memory_space<vmem>>, vector<128x128xbf16>
    tpu.vector_store %arg4[%c0_6, %c0_7], %8 {strides = array<i32>} : memref<128x128xbf16, #tpu.memory_space<vmem>>, vector<128x128xbf16>,
    return
  }
  func.func @transform_0(%arg0: i32) -> (i32, i32) {
    %c0_i32 = arith.constant 0 : i32
    %c0_i32_0 = arith.constant 0 : i32
    return %arg0, %c0_i32 : i32, i32
  }
  func.func @transform_1(%arg0: i32) -> (i32, i32) {
    %c0_i32 = arith.constant 0 : i32
    %c0_i32_0 = arith.constant 0 : i32
    %c0_i32_1 = arith.constant 0 : i32
    return %c0_i32, %c0_i32_0 : i32, i32
  }
  func.func @transform_2(%arg0: i32) -> (i32, i32) {
    %c0_i32 = arith.constant 0 : i32
    %c0_i32_0 = arith.constant 0 : i32
    %c0_i32_1 = arith.constant 0 : i32
    return %c0_i32, %c0_i32_0 : i32, i32
  }
  func.func @transform_3(%arg0: i32) -> (i32, i32) {
    %c0_i32 = arith.constant 0 : i32
    %c0_i32_0 = arith.constant 0 : i32
    return %arg0, %c0_i32 : i32, i32
  }
}

module attributes {stable_mosaic.version = 11 : i64} {
  func.func @_matmul_bn_kernel(%arg0: i32, %arg1: memref<128x1152xbf16, #tpu.memory_space<vmem>>, %arg2: memref<1152x128xbf16, #tpu.memory_space<vmem>>, %arg3: memref<1x128xf32, #tpu.memory_space<vmem>>, %arg4: memref<128x128xf32, #tpu.memory_space<vmem>>) attributes {dimension_semantics = [#tpu.dimension_semantics<parallel>], iteration_bounds = array<i64: 1>, scalar_prefetch = 0 : i64, scratch_operands = 0 : i64, tpu.core_type = #tpu.core_type<tc>, window_params = [{transform_indices = @transform_0, window_bounds = array<i64: 128, 1152>}, {pipeline_mode = #tpu.pipeline_mode<synchronous>, transform_indices = @transform_1, window_bounds = array<i64: 1152, 128>}, {pipeline_mode = #tpu.pipeline_mode<synchronous>, transform_indices = @transform_2, window_bounds = array<i64: 1, 128>}, {transform_indices = @transform_3, window_bounds = array<i64: 128, 128>}]} {
    %c0 = arith.constant 0 : index
    %c0_0 = arith.constant 0 : index
    %0 = vector.load %arg1[%c0, %c0_0] : memref<128x1152xbf16, #tpu.memory_space<vmem>>, vector<128x1152xbf16>
    %c0_1 = arith.constant 0 : index
    %c0_2 = arith.constant 0 : index
    %1 = vector.load %arg2[%c0_1, %c0_2] : memref<1152x128xbf16, #tpu.memory_space<vmem>>, vector<1152x128xbf16>
    %cst = arith.constant dense<0.000000e+00> : vector<128x128xf32>
    %2 = tpu.matmul %0, %1, %cst {dimension_numbers = #tpu.dot_dimension_numbers<[1], [0], [0], [1], [0, 0, 1, 1], [], []>} : vector<128x1152xbf16>, vector<1152x128xbf16>, vector<128x128xf32> -> vector<128x128xf32>
    %c0_3 = arith.constant 0 : index
    %c0_4 = arith.constant 0 : index
    %3 = vector.load %arg3[%c0_3, %c0_4] : memref<1x128xf32, #tpu.memory_space<vmem>>, vector<1x128xf32>
    %4 = vector.broadcast %3 : vector<1x128xf32> to vector<128x128xf32>
    %5 = arith.addf %2, %4 : vector<128x128xf32>
    %cst_5 = arith.constant 0.000000e+00 : f32
    %6 = vector.broadcast %cst_5 : f32 to vector<128x128xf32>
    %7 = arith.maximumf %5, %6 : vector<128x128xf32>
    %c0_6 = arith.constant 0 : index
    %c0_7 = arith.constant 0 : index
    %8 = vector.load %arg4[%c0_6, %c0_7] : memref<128x128xf32, #tpu.memory_space<vmem>>, vector<128x128xf32>
    tpu.vector_store %arg4[%c0_6, %c0_7], %7 {strides = array<i32>} : memref<128x128xf32, #tpu.memory_space<vmem>>, vector<128x128xf32>,
    return
  }
  func.func @transform_0(%arg0: i32) -> (i32, i32) {
    %c0_i32 = arith.constant 0 : i32
    %c0_i32_0 = arith.constant 0 : i32
    return %arg0, %c0_i32 : i32, i32
  }
  func.func @transform_1(%arg0: i32) -> (i32, i32) {
    %c0_i32 = arith.constant 0 : i32
    %c0_i32_0 = arith.constant 0 : i32
    %c0_i32_1 = arith.constant 0 : i32
    return %c0_i32, %c0_i32_0 : i32, i32
  }
  func.func @transform_2(%arg0: i32) -> (i32, i32) {
    %c0_i32 = arith.constant 0 : i32
    %c0_i32_0 = arith.constant 0 : i32
    %c0_i32_1 = arith.constant 0 : i32
    return %c0_i32, %c0_i32_0 : i32, i32
  }
  func.func @transform_3(%arg0: i32) -> (i32, i32) {
    %c0_i32 = arith.constant 0 : i32
    %c0_i32_0 = arith.constant 0 : i32
    return %arg0, %c0_i32 : i32, i32
  }
}

module attributes {stable_mosaic.version = 11 : i64} {
  func.func @_aspp_kernel(%arg0: i32, %arg1: memref<1x44x44x128xf32, #tpu.memory_space<vmem>>, %arg2: memref<2x128x64xbf16, #tpu.memory_space<vmem>>, %arg3: memref<3x9x128x64xbf16, #tpu.memory_space<vmem>>, %arg4: memref<5x64xf32, #tpu.memory_space<vmem>>, %arg5: memref<5x64x128xbf16, #tpu.memory_space<vmem>>, %arg6: memref<1x128xf32, #tpu.memory_space<vmem>>, %arg7: memref<1x64x128xbf16, #tpu.memory_space<vmem>>) attributes {dimension_semantics = [#tpu.dimension_semantics<parallel>], iteration_bounds = array<i64: 2>, scalar_prefetch = 0 : i64, scratch_operands = 0 : i64, tpu.core_type = #tpu.core_type<tc>, window_params = [{transform_indices = @transform_0, window_bounds = array<i64: 1, 44, 44, 128>}, {pipeline_mode = #tpu.pipeline_mode<synchronous>, transform_indices = @transform_1, window_bounds = array<i64: 2, 128, 64>}, {pipeline_mode = #tpu.pipeline_mode<synchronous>, transform_indices = @transform_2, window_bounds = array<i64: 3, 9, 128, 64>}, {pipeline_mode = #tpu.pipeline_mode<synchronous>, transform_indices = @transform_3, window_bounds = array<i64: 5, 64>}, {pipeline_mode = #tpu.pipeline_mode<synchronous>, transform_indices = @transform_4, window_bounds = array<i64: 5, 64, 128>}, {pipeline_mode = #tpu.pipeline_mode<synchronous>, transform_indices = @transform_5, window_bounds = array<i64: 1, 128>}, {transform_indices = @transform_6, window_bounds = array<i64: 1, 64, 128>}]} {
    %c0 = arith.constant 0 : index
    %c18 = arith.constant 18 : index
    %c18_0 = arith.constant 18 : index
    %c0_1 = arith.constant 0 : index
    %0 = vector.load %arg1[%c0, %c18, %c18_0, %c0_1] : memref<1x44x44x128xf32, #tpu.memory_space<vmem>>, vector<1x8x8x128xf32>
    %1 = vector.shape_cast %0 : vector<1x8x8x128xf32> to vector<8x8x128xf32>
    %2 = vector.shape_cast %1 : vector<8x8x128xf32> to vector<64x128xf32>
    %3 = arith.truncf %2 : vector<64x128xf32> to vector<64x128xbf16>
    %c0_2 = arith.constant 0 : index
    %c0_3 = arith.constant 0 : index
    %c0_4 = arith.constant 0 : index
    %4 = vector.load %arg2[%c0_2, %c0_3, %c0_4] : memref<2x128x64xbf16, #tpu.memory_space<vmem>>, vector<1x128x64xbf16>
    %5 = vector.shape_cast %4 : vector<1x128x64xbf16> to vector<128x64xbf16>
    %cst = arith.constant dense<0.000000e+00> : vector<64x64xf32>
    %6 = tpu.matmul %3, %5, %cst {dimension_numbers = #tpu.dot_dimension_numbers<[1], [0], [0], [1], [0, 0, 1, 1], [], []>} : vector<64x128xbf16>, vector<128x64xbf16>, vector<64x64xf32> -> vector<64x64xf32>
    %c0_5 = arith.constant 0 : index
    %c0_6 = arith.constant 0 : index
    %7 = vector.load %arg4[%c0_5, %c0_6] : memref<5x64xf32, #tpu.memory_space<vmem>>, vector<1x64xf32>
    %8 = vector.broadcast %7 : vector<1x64xf32> to vector<64x64xf32>
    %9 = arith.addf %6, %8 : vector<64x64xf32>
    %cst_7 = arith.constant 0.000000e+00 : f32
    %10 = vector.broadcast %cst_7 : f32 to vector<64x64xf32>
    %11 = arith.maximumf %9, %10 : vector<64x64xf32>
    %12 = arith.truncf %11 : vector<64x64xf32> to vector<64x64xbf16>
    %c0_8 = arith.constant 0 : index
    %c0_9 = arith.constant 0 : index
    %c0_10 = arith.constant 0 : index
    %13 = vector.load %arg5[%c0_8, %c0_9, %c0_10] : memref<5x64x128xbf16, #tpu.memory_space<vmem>>, vector<1x64x128xbf16>
    %14 = vector.shape_cast %13 : vector<1x64x128xbf16> to vector<64x128xbf16>
    %cst_11 = arith.constant dense<0.000000e+00> : vector<64x128xf32>
    %15 = tpu.matmul %12, %14, %cst_11 {dimension_numbers = #tpu.dot_dimension_numbers<[1], [0], [0], [1], [0, 0, 1, 1], [], []>} : vector<64x64xbf16>, vector<64x128xbf16>, vector<64x128xf32> -> vector<64x128xf32>
    %cst_12 = arith.constant 0.000000e+00 : f32
    %16 = vector.broadcast %cst_12 : f32 to vector<64x64xf32>
    %c0_13 = arith.constant 0 : index
    %c12 = arith.constant 12 : index
    %c12_14 = arith.constant 12 : index
    %c0_15 = arith.constant 0 : index
    %17 = vector.load %arg1[%c0_13, %c12, %c12_14, %c0_15] : memref<1x44x44x128xf32, #tpu.memory_space<vmem>>, vector<1x8x8x128xf32>
    %18 = vector.shape_cast %17 : vector<1x8x8x128xf32> to vector<8x8x128xf32>
    %19 = vector.shape_cast %18 : vector<8x8x128xf32> to vector<64x128xf32>
    %20 = arith.truncf %19 : vector<64x128xf32> to vector<64x128xbf16>
    %c0_16 = arith.constant 0 : index
    %c0_17 = arith.constant 0 : index
    %c0_18 = arith.constant 0 : index
    %c0_19 = arith.constant 0 : index
    %21 = vector.load %arg3[%c0_16, %c0_17, %c0_18, %c0_19] : memref<3x9x128x64xbf16, #tpu.memory_space<vmem>>, vector<1x1x128x64xbf16>
    %22 = vector.shape_cast %21 : vector<1x1x128x64xbf16> to vector<128x64xbf16>
    %cst_20 = arith.constant dense<0.000000e+00> : vector<64x64xf32>
    %23 = tpu.matmul %20, %22, %cst_20 {dimension_numbers = #tpu.dot_dimension_numbers<[1], [0], [0], [1], [0, 0, 1, 1], [], []>} : vector<64x128xbf16>, vector<128x64xbf16>, vector<64x64xf32> -> vector<64x64xf32>
    %24 = arith.addf %16, %23 : vector<64x64xf32>
    %c0_21 = arith.constant 0 : index
    %c12_22 = arith.constant 12 : index
    %c18_23 = arith.constant 18 : index
    %c0_24 = arith.constant 0 : index
    %25 = vector.load %arg1[%c0_21, %c12_22, %c18_23, %c0_24] : memref<1x44x44x128xf32, #tpu.memory_space<vmem>>, vector<1x8x8x128xf32>
    %26 = vector.shape_cast %25 : vector<1x8x8x128xf32> to vector<8x8x128xf32>
    %27 = vector.shape_cast %26 : vector<8x8x128xf32> to vector<64x128xf32>
    %28 = arith.truncf %27 : vector<64x128xf32> to vector<64x128xbf16>
    %c0_25 = arith.constant 0 : index
    %c1 = arith.constant 1 : index
    %c0_26 = arith.constant 0 : index
    %c0_27 = arith.constant 0 : index
    %29 = vector.load %arg3[%c0_25, %c1, %c0_26, %c0_27] : memref<3x9x128x64xbf16, #tpu.memory_space<vmem>>, vector<1x1x128x64xbf16>
    %30 = vector.shape_cast %29 : vector<1x1x128x64xbf16> to vector<128x64xbf16>
    %cst_28 = arith.constant dense<0.000000e+00> : vector<64x64xf32>
    %31 = tpu.matmul %28, %30, %cst_28 {dimension_numbers = #tpu.dot_dimension_numbers<[1], [0], [0], [1], [0, 0, 1, 1], [], []>} : vector<64x128xbf16>, vector<128x64xbf16>, vector<64x64xf32> -> vector<64x64xf32>
    %32 = arith.addf %24, %31 : vector<64x64xf32>
    %c0_29 = arith.constant 0 : index
    %c12_30 = arith.constant 12 : index
    %c24 = arith.constant 24 : index
    %c0_31 = arith.constant 0 : index
    %33 = vector.load %arg1[%c0_29, %c12_30, %c24, %c0_31] : memref<1x44x44x128xf32, #tpu.memory_space<vmem>>, vector<1x8x8x128xf32>
    %34 = vector.shape_cast %33 : vector<1x8x8x128xf32> to vector<8x8x128xf32>
    %35 = vector.shape_cast %34 : vector<8x8x128xf32> to vector<64x128xf32>
    %36 = arith.truncf %35 : vector<64x128xf32> to vector<64x128xbf16>
    %c0_32 = arith.constant 0 : index
    %c2 = arith.constant 2 : index
    %c0_33 = arith.constant 0 : index
    %c0_34 = arith.constant 0 : index
    %37 = vector.load %arg3[%c0_32, %c2, %c0_33, %c0_34] : memref<3x9x128x64xbf16, #tpu.memory_space<vmem>>, vector<1x1x128x64xbf16>
    %38 = vector.shape_cast %37 : vector<1x1x128x64xbf16> to vector<128x64xbf16>
    %cst_35 = arith.constant dense<0.000000e+00> : vector<64x64xf32>
    %39 = tpu.matmul %36, %38, %cst_35 {dimension_numbers = #tpu.dot_dimension_numbers<[1], [0], [0], [1], [0, 0, 1, 1], [], []>} : vector<64x128xbf16>, vector<128x64xbf16>, vector<64x64xf32> -> vector<64x64xf32>
    %40 = arith.addf %32, %39 : vector<64x64xf32>
    %c0_36 = arith.constant 0 : index
    %c18_37 = arith.constant 18 : index
    %c12_38 = arith.constant 12 : index
    %c0_39 = arith.constant 0 : index
    %41 = vector.load %arg1[%c0_36, %c18_37, %c12_38, %c0_39] : memref<1x44x44x128xf32, #tpu.memory_space<vmem>>, vector<1x8x8x128xf32>
    %42 = vector.shape_cast %41 : vector<1x8x8x128xf32> to vector<8x8x128xf32>
    %43 = vector.shape_cast %42 : vector<8x8x128xf32> to vector<64x128xf32>
    %44 = arith.truncf %43 : vector<64x128xf32> to vector<64x128xbf16>
    %c0_40 = arith.constant 0 : index
    %c3 = arith.constant 3 : index
    %c0_41 = arith.constant 0 : index
    %c0_42 = arith.constant 0 : index
    %45 = vector.load %arg3[%c0_40, %c3, %c0_41, %c0_42] : memref<3x9x128x64xbf16, #tpu.memory_space<vmem>>, vector<1x1x128x64xbf16>
    %46 = vector.shape_cast %45 : vector<1x1x128x64xbf16> to vector<128x64xbf16>
    %cst_43 = arith.constant dense<0.000000e+00> : vector<64x64xf32>
    %47 = tpu.matmul %44, %46, %cst_43 {dimension_numbers = #tpu.dot_dimension_numbers<[1], [0], [0], [1], [0, 0, 1, 1], [], []>} : vector<64x128xbf16>, vector<128x64xbf16>, vector<64x64xf32> -> vector<64x64xf32>
    %48 = arith.addf %40, %47 : vector<64x64xf32>
    %c0_44 = arith.constant 0 : index
    %c18_45 = arith.constant 18 : index
    %c18_46 = arith.constant 18 : index
    %c0_47 = arith.constant 0 : index
    %49 = vector.load %arg1[%c0_44, %c18_45, %c18_46, %c0_47] : memref<1x44x44x128xf32, #tpu.memory_space<vmem>>, vector<1x8x8x128xf32>
    %50 = vector.shape_cast %49 : vector<1x8x8x128xf32> to vector<8x8x128xf32>
    %51 = vector.shape_cast %50 : vector<8x8x128xf32> to vector<64x128xf32>
    %52 = arith.truncf %51 : vector<64x128xf32> to vector<64x128xbf16>
    %c0_48 = arith.constant 0 : index
    %c4 = arith.constant 4 : index
    %c0_49 = arith.constant 0 : index
    %c0_50 = arith.constant 0 : index
    %53 = vector.load %arg3[%c0_48, %c4, %c0_49, %c0_50] : memref<3x9x128x64xbf16, #tpu.memory_space<vmem>>, vector<1x1x128x64xbf16>
    %54 = vector.shape_cast %53 : vector<1x1x128x64xbf16> to vector<128x64xbf16>
    %cst_51 = arith.constant dense<0.000000e+00> : vector<64x64xf32>
    %55 = tpu.matmul %52, %54, %cst_51 {dimension_numbers = #tpu.dot_dimension_numbers<[1], [0], [0], [1], [0, 0, 1, 1], [], []>} : vector<64x128xbf16>, vector<128x64xbf16>, vector<64x64xf32> -> vector<64x64xf32>
    %56 = arith.addf %48, %55 : vector<64x64xf32>
    %c0_52 = arith.constant 0 : index
    %c18_53 = arith.constant 18 : index
    %c24_54 = arith.constant 24 : index
    %c0_55 = arith.constant 0 : index
    %57 = vector.load %arg1[%c0_52, %c18_53, %c24_54, %c0_55] : memref<1x44x44x128xf32, #tpu.memory_space<vmem>>, vector<1x8x8x128xf32>
    %58 = vector.shape_cast %57 : vector<1x8x8x128xf32> to vector<8x8x128xf32>
    %59 = vector.shape_cast %58 : vector<8x8x128xf32> to vector<64x128xf32>
    %60 = arith.truncf %59 : vector<64x128xf32> to vector<64x128xbf16>
    %c0_56 = arith.constant 0 : index
    %c5 = arith.constant 5 : index
    %c0_57 = arith.constant 0 : index
    %c0_58 = arith.constant 0 : index
    %61 = vector.load %arg3[%c0_56, %c5, %c0_57, %c0_58] : memref<3x9x128x64xbf16, #tpu.memory_space<vmem>>, vector<1x1x128x64xbf16>
    %62 = vector.shape_cast %61 : vector<1x1x128x64xbf16> to vector<128x64xbf16>
    %cst_59 = arith.constant dense<0.000000e+00> : vector<64x64xf32>
    %63 = tpu.matmul %60, %62, %cst_59 {dimension_numbers = #tpu.dot_dimension_numbers<[1], [0], [0], [1], [0, 0, 1, 1], [], []>} : vector<64x128xbf16>, vector<128x64xbf16>, vector<64x64xf32> -> vector<64x64xf32>
    %64 = arith.addf %56, %63 : vector<64x64xf32>
    %c0_60 = arith.constant 0 : index
    %c24_61 = arith.constant 24 : index
    %c12_62 = arith.constant 12 : index
    %c0_63 = arith.constant 0 : index
    %65 = vector.load %arg1[%c0_60, %c24_61, %c12_62, %c0_63] : memref<1x44x44x128xf32, #tpu.memory_space<vmem>>, vector<1x8x8x128xf32>
    %66 = vector.shape_cast %65 : vector<1x8x8x128xf32> to vector<8x8x128xf32>
    %67 = vector.shape_cast %66 : vector<8x8x128xf32> to vector<64x128xf32>
    %68 = arith.truncf %67 : vector<64x128xf32> to vector<64x128xbf16>
    %c0_64 = arith.constant 0 : index
    %c6 = arith.constant 6 : index
    %c0_65 = arith.constant 0 : index
    %c0_66 = arith.constant 0 : index
    %69 = vector.load %arg3[%c0_64, %c6, %c0_65, %c0_66] : memref<3x9x128x64xbf16, #tpu.memory_space<vmem>>, vector<1x1x128x64xbf16>
    %70 = vector.shape_cast %69 : vector<1x1x128x64xbf16> to vector<128x64xbf16>
    %cst_67 = arith.constant dense<0.000000e+00> : vector<64x64xf32>
    %71 = tpu.matmul %68, %70, %cst_67 {dimension_numbers = #tpu.dot_dimension_numbers<[1], [0], [0], [1], [0, 0, 1, 1], [], []>} : vector<64x128xbf16>, vector<128x64xbf16>, vector<64x64xf32> -> vector<64x64xf32>
    %72 = arith.addf %64, %71 : vector<64x64xf32>
    %c0_68 = arith.constant 0 : index
    %c24_69 = arith.constant 24 : index
    %c18_70 = arith.constant 18 : index
    %c0_71 = arith.constant 0 : index
    %73 = vector.load %arg1[%c0_68, %c24_69, %c18_70, %c0_71] : memref<1x44x44x128xf32, #tpu.memory_space<vmem>>, vector<1x8x8x128xf32>
    %74 = vector.shape_cast %73 : vector<1x8x8x128xf32> to vector<8x8x128xf32>
    %75 = vector.shape_cast %74 : vector<8x8x128xf32> to vector<64x128xf32>
    %76 = arith.truncf %75 : vector<64x128xf32> to vector<64x128xbf16>
    %c0_72 = arith.constant 0 : index
    %c7 = arith.constant 7 : index
    %c0_73 = arith.constant 0 : index
    %c0_74 = arith.constant 0 : index
    %77 = vector.load %arg3[%c0_72, %c7, %c0_73, %c0_74] : memref<3x9x128x64xbf16, #tpu.memory_space<vmem>>, vector<1x1x128x64xbf16>
    %78 = vector.shape_cast %77 : vector<1x1x128x64xbf16> to vector<128x64xbf16>
    %cst_75 = arith.constant dense<0.000000e+00> : vector<64x64xf32>
    %79 = tpu.matmul %76, %78, %cst_75 {dimension_numbers = #tpu.dot_dimension_numbers<[1], [0], [0], [1], [0, 0, 1, 1], [], []>} : vector<64x128xbf16>, vector<128x64xbf16>, vector<64x64xf32> -> vector<64x64xf32>
    %80 = arith.addf %72, %79 : vector<64x64xf32>
    %c0_76 = arith.constant 0 : index
    %c24_77 = arith.constant 24 : index
    %c24_78 = arith.constant 24 : index
    %c0_79 = arith.constant 0 : index
    %81 = vector.load %arg1[%c0_76, %c24_77, %c24_78, %c0_79] : memref<1x44x44x128xf32, #tpu.memory_space<vmem>>, vector<1x8x8x128xf32>
    %82 = vector.shape_cast %81 : vector<1x8x8x128xf32> to vector<8x8x128xf32>
    %83 = vector.shape_cast %82 : vector<8x8x128xf32> to vector<64x128xf32>
    %84 = arith.truncf %83 : vector<64x128xf32> to vector<64x128xbf16>
    %c0_80 = arith.constant 0 : index
    %c8 = arith.constant 8 : index
    %c0_81 = arith.constant 0 : index
    %c0_82 = arith.constant 0 : index
    %85 = vector.load %arg3[%c0_80, %c8, %c0_81, %c0_82] : memref<3x9x128x64xbf16, #tpu.memory_space<vmem>>, vector<1x1x128x64xbf16>
    %86 = vector.shape_cast %85 : vector<1x1x128x64xbf16> to vector<128x64xbf16>
    %cst_83 = arith.constant dense<0.000000e+00> : vector<64x64xf32>
    %87 = tpu.matmul %84, %86, %cst_83 {dimension_numbers = #tpu.dot_dimension_numbers<[1], [0], [0], [1], [0, 0, 1, 1], [], []>} : vector<64x128xbf16>, vector<128x64xbf16>, vector<64x64xf32> -> vector<64x64xf32>
    %88 = arith.addf %80, %87 : vector<64x64xf32>
    %c1_84 = arith.constant 1 : index
    %c0_85 = arith.constant 0 : index
    %89 = vector.load %arg4[%c1_84, %c0_85] : memref<5x64xf32, #tpu.memory_space<vmem>>, vector<1x64xf32>
    %90 = vector.broadcast %89 : vector<1x64xf32> to vector<64x64xf32>
    %91 = arith.addf %88, %90 : vector<64x64xf32>
    %cst_86 = arith.constant 0.000000e+00 : f32
    %92 = vector.broadcast %cst_86 : f32 to vector<64x64xf32>
    %93 = arith.maximumf %91, %92 : vector<64x64xf32>
    %94 = arith.truncf %93 : vector<64x64xf32> to vector<64x64xbf16>
    %c1_87 = arith.constant 1 : index
    %c0_88 = arith.constant 0 : index
    %c0_89 = arith.constant 0 : index
    %95 = vector.load %arg5[%c1_87, %c0_88, %c0_89] : memref<5x64x128xbf16, #tpu.memory_space<vmem>>, vector<1x64x128xbf16>
    %96 = vector.shape_cast %95 : vector<1x64x128xbf16> to vector<64x128xbf16>
    %cst_90 = arith.constant dense<0.000000e+00> : vector<64x128xf32>
    %97 = tpu.matmul %94, %96, %cst_90 {dimension_numbers = #tpu.dot_dimension_numbers<[1], [0], [0], [1], [0, 0, 1, 1], [], []>} : vector<64x64xbf16>, vector<64x128xbf16>, vector<64x128xf32> -> vector<64x128xf32>
    %98 = arith.addf %15, %97 : vector<64x128xf32>
    %cst_91 = arith.constant 0.000000e+00 : f32
    %99 = vector.broadcast %cst_91 : f32 to vector<64x64xf32>
    %c0_92 = arith.constant 0 : index
    %c6_93 = arith.constant 6 : index
    %c6_94 = arith.constant 6 : index
    %c0_95 = arith.constant 0 : index
    %100 = vector.load %arg1[%c0_92, %c6_93, %c6_94, %c0_95] : memref<1x44x44x128xf32, #tpu.memory_space<vmem>>, vector<1x8x8x128xf32>
    %101 = vector.shape_cast %100 : vector<1x8x8x128xf32> to vector<8x8x128xf32>
    %102 = vector.shape_cast %101 : vector<8x8x128xf32> to vector<64x128xf32>
    %103 = arith.truncf %102 : vector<64x128xf32> to vector<64x128xbf16>
    %c1_96 = arith.constant 1 : index
    %c0_97 = arith.constant 0 : index
    %c0_98 = arith.constant 0 : index
    %c0_99 = arith.constant 0 : index
    %104 = vector.load %arg3[%c1_96, %c0_97, %c0_98, %c0_99] : memref<3x9x128x64xbf16, #tpu.memory_space<vmem>>, vector<1x1x128x64xbf16>
    %105 = vector.shape_cast %104 : vector<1x1x128x64xbf16> to vector<128x64xbf16>
    %cst_100 = arith.constant dense<0.000000e+00> : vector<64x64xf32>
    %106 = tpu.matmul %103, %105, %cst_100 {dimension_numbers = #tpu.dot_dimension_numbers<[1], [0], [0], [1], [0, 0, 1, 1], [], []>} : vector<64x128xbf16>, vector<128x64xbf16>, vector<64x64xf32> -> vector<64x64xf32>
    %107 = arith.addf %99, %106 : vector<64x64xf32>
    %c0_101 = arith.constant 0 : index
    %c6_102 = arith.constant 6 : index
    %c18_103 = arith.constant 18 : index
    %c0_104 = arith.constant 0 : index
    %108 = vector.load %arg1[%c0_101, %c6_102, %c18_103, %c0_104] : memref<1x44x44x128xf32, #tpu.memory_space<vmem>>, vector<1x8x8x128xf32>
    %109 = vector.shape_cast %108 : vector<1x8x8x128xf32> to vector<8x8x128xf32>
    %110 = vector.shape_cast %109 : vector<8x8x128xf32> to vector<64x128xf32>
    %111 = arith.truncf %110 : vector<64x128xf32> to vector<64x128xbf16>
    %c1_105 = arith.constant 1 : index
    %c1_106 = arith.constant 1 : index
    %c0_107 = arith.constant 0 : index
    %c0_108 = arith.constant 0 : index
    %112 = vector.load %arg3[%c1_105, %c1_106, %c0_107, %c0_108] : memref<3x9x128x64xbf16, #tpu.memory_space<vmem>>, vector<1x1x128x64xbf16>
    %113 = vector.shape_cast %112 : vector<1x1x128x64xbf16> to vector<128x64xbf16>
    %cst_109 = arith.constant dense<0.000000e+00> : vector<64x64xf32>
    %114 = tpu.matmul %111, %113, %cst_109 {dimension_numbers = #tpu.dot_dimension_numbers<[1], [0], [0], [1], [0, 0, 1, 1], [], []>} : vector<64x128xbf16>, vector<128x64xbf16>, vector<64x64xf32> -> vector<64x64xf32>
    %115 = arith.addf %107, %114 : vector<64x64xf32>
    %c0_110 = arith.constant 0 : index
    %c6_111 = arith.constant 6 : index
    %c30 = arith.constant 30 : index
    %c0_112 = arith.constant 0 : index
    %116 = vector.load %arg1[%c0_110, %c6_111, %c30, %c0_112] : memref<1x44x44x128xf32, #tpu.memory_space<vmem>>, vector<1x8x8x128xf32>
    %117 = vector.shape_cast %116 : vector<1x8x8x128xf32> to vector<8x8x128xf32>
    %118 = vector.shape_cast %117 : vector<8x8x128xf32> to vector<64x128xf32>
    %119 = arith.truncf %118 : vector<64x128xf32> to vector<64x128xbf16>
    %c1_113 = arith.constant 1 : index
    %c2_114 = arith.constant 2 : index
    %c0_115 = arith.constant 0 : index
    %c0_116 = arith.constant 0 : index
    %120 = vector.load %arg3[%c1_113, %c2_114, %c0_115, %c0_116] : memref<3x9x128x64xbf16, #tpu.memory_space<vmem>>, vector<1x1x128x64xbf16>
    %121 = vector.shape_cast %120 : vector<1x1x128x64xbf16> to vector<128x64xbf16>
    %cst_117 = arith.constant dense<0.000000e+00> : vector<64x64xf32>
    %122 = tpu.matmul %119, %121, %cst_117 {dimension_numbers = #tpu.dot_dimension_numbers<[1], [0], [0], [1], [0, 0, 1, 1], [], []>} : vector<64x128xbf16>, vector<128x64xbf16>, vector<64x64xf32> -> vector<64x64xf32>
    %123 = arith.addf %115, %122 : vector<64x64xf32>
    %c0_118 = arith.constant 0 : index
    %c18_119 = arith.constant 18 : index
    %c6_120 = arith.constant 6 : index
    %c0_121 = arith.constant 0 : index
    %124 = vector.load %arg1[%c0_118, %c18_119, %c6_120, %c0_121] : memref<1x44x44x128xf32, #tpu.memory_space<vmem>>, vector<1x8x8x128xf32>
    %125 = vector.shape_cast %124 : vector<1x8x8x128xf32> to vector<8x8x128xf32>
    %126 = vector.shape_cast %125 : vector<8x8x128xf32> to vector<64x128xf32>
    %127 = arith.truncf %126 : vector<64x128xf32> to vector<64x128xbf16>
    %c1_122 = arith.constant 1 : index
    %c3_123 = arith.constant 3 : index
    %c0_124 = arith.constant 0 : index
    %c0_125 = arith.constant 0 : index
    %128 = vector.load %arg3[%c1_122, %c3_123, %c0_124, %c0_125] : memref<3x9x128x64xbf16, #tpu.memory_space<vmem>>, vector<1x1x128x64xbf16>
    %129 = vector.shape_cast %128 : vector<1x1x128x64xbf16> to vector<128x64xbf16>
    %cst_126 = arith.constant dense<0.000000e+00> : vector<64x64xf32>
    %130 = tpu.matmul %127, %129, %cst_126 {dimension_numbers = #tpu.dot_dimension_numbers<[1], [0], [0], [1], [0, 0, 1, 1], [], []>} : vector<64x128xbf16>, vector<128x64xbf16>, vector<64x64xf32> -> vector<64x64xf32>
    %131 = arith.addf %123, %130 : vector<64x64xf32>
    %c0_127 = arith.constant 0 : index
    %c18_128 = arith.constant 18 : index
    %c18_129 = arith.constant 18 : index
    %c0_130 = arith.constant 0 : index
    %132 = vector.load %arg1[%c0_127, %c18_128, %c18_129, %c0_130] : memref<1x44x44x128xf32, #tpu.memory_space<vmem>>, vector<1x8x8x128xf32>
    %133 = vector.shape_cast %132 : vector<1x8x8x128xf32> to vector<8x8x128xf32>
    %134 = vector.shape_cast %133 : vector<8x8x128xf32> to vector<64x128xf32>
    %135 = arith.truncf %134 : vector<64x128xf32> to vector<64x128xbf16>
    %c1_131 = arith.constant 1 : index
    %c4_132 = arith.constant 4 : index
    %c0_133 = arith.constant 0 : index
    %c0_134 = arith.constant 0 : index
    %136 = vector.load %arg3[%c1_131, %c4_132, %c0_133, %c0_134] : memref<3x9x128x64xbf16, #tpu.memory_space<vmem>>, vector<1x1x128x64xbf16>
    %137 = vector.shape_cast %136 : vector<1x1x128x64xbf16> to vector<128x64xbf16>
    %cst_135 = arith.constant dense<0.000000e+00> : vector<64x64xf32>
    %138 = tpu.matmul %135, %137, %cst_135 {dimension_numbers = #tpu.dot_dimension_numbers<[1], [0], [0], [1], [0, 0, 1, 1], [], []>} : vector<64x128xbf16>, vector<128x64xbf16>, vector<64x64xf32> -> vector<64x64xf32>
    %139 = arith.addf %131, %138 : vector<64x64xf32>
    %c0_136 = arith.constant 0 : index
    %c18_137 = arith.constant 18 : index
    %c30_138 = arith.constant 30 : index
    %c0_139 = arith.constant 0 : index
    %140 = vector.load %arg1[%c0_136, %c18_137, %c30_138, %c0_139] : memref<1x44x44x128xf32, #tpu.memory_space<vmem>>, vector<1x8x8x128xf32>
    %141 = vector.shape_cast %140 : vector<1x8x8x128xf32> to vector<8x8x128xf32>
    %142 = vector.shape_cast %141 : vector<8x8x128xf32> to vector<64x128xf32>
    %143 = arith.truncf %142 : vector<64x128xf32> to vector<64x128xbf16>
    %c1_140 = arith.constant 1 : index
    %c5_141 = arith.constant 5 : index
    %c0_142 = arith.constant 0 : index
    %c0_143 = arith.constant 0 : index
    %144 = vector.load %arg3[%c1_140, %c5_141, %c0_142, %c0_143] : memref<3x9x128x64xbf16, #tpu.memory_space<vmem>>, vector<1x1x128x64xbf16>
    %145 = vector.shape_cast %144 : vector<1x1x128x64xbf16> to vector<128x64xbf16>
    %cst_144 = arith.constant dense<0.000000e+00> : vector<64x64xf32>
    %146 = tpu.matmul %143, %145, %cst_144 {dimension_numbers = #tpu.dot_dimension_numbers<[1], [0], [0], [1], [0, 0, 1, 1], [], []>} : vector<64x128xbf16>, vector<128x64xbf16>, vector<64x64xf32> -> vector<64x64xf32>
    %147 = arith.addf %139, %146 : vector<64x64xf32>
    %c0_145 = arith.constant 0 : index
    %c30_146 = arith.constant 30 : index
    %c6_147 = arith.constant 6 : index
    %c0_148 = arith.constant 0 : index
    %148 = vector.load %arg1[%c0_145, %c30_146, %c6_147, %c0_148] : memref<1x44x44x128xf32, #tpu.memory_space<vmem>>, vector<1x8x8x128xf32>
    %149 = vector.shape_cast %148 : vector<1x8x8x128xf32> to vector<8x8x128xf32>
    %150 = vector.shape_cast %149 : vector<8x8x128xf32> to vector<64x128xf32>
    %151 = arith.truncf %150 : vector<64x128xf32> to vector<64x128xbf16>
    %c1_149 = arith.constant 1 : index
    %c6_150 = arith.constant 6 : index
    %c0_151 = arith.constant 0 : index
    %c0_152 = arith.constant 0 : index
    %152 = vector.load %arg3[%c1_149, %c6_150, %c0_151, %c0_152] : memref<3x9x128x64xbf16, #tpu.memory_space<vmem>>, vector<1x1x128x64xbf16>
    %153 = vector.shape_cast %152 : vector<1x1x128x64xbf16> to vector<128x64xbf16>
    %cst_153 = arith.constant dense<0.000000e+00> : vector<64x64xf32>
    %154 = tpu.matmul %151, %153, %cst_153 {dimension_numbers = #tpu.dot_dimension_numbers<[1], [0], [0], [1], [0, 0, 1, 1], [], []>} : vector<64x128xbf16>, vector<128x64xbf16>, vector<64x64xf32> -> vector<64x64xf32>
    %155 = arith.addf %147, %154 : vector<64x64xf32>
    %c0_154 = arith.constant 0 : index
    %c30_155 = arith.constant 30 : index
    %c18_156 = arith.constant 18 : index
    %c0_157 = arith.constant 0 : index
    %156 = vector.load %arg1[%c0_154, %c30_155, %c18_156, %c0_157] : memref<1x44x44x128xf32, #tpu.memory_space<vmem>>, vector<1x8x8x128xf32>
    %157 = vector.shape_cast %156 : vector<1x8x8x128xf32> to vector<8x8x128xf32>
    %158 = vector.shape_cast %157 : vector<8x8x128xf32> to vector<64x128xf32>
    %159 = arith.truncf %158 : vector<64x128xf32> to vector<64x128xbf16>
    %c1_158 = arith.constant 1 : index
    %c7_159 = arith.constant 7 : index
    %c0_160 = arith.constant 0 : index
    %c0_161 = arith.constant 0 : index
    %160 = vector.load %arg3[%c1_158, %c7_159, %c0_160, %c0_161] : memref<3x9x128x64xbf16, #tpu.memory_space<vmem>>, vector<1x1x128x64xbf16>
    %161 = vector.shape_cast %160 : vector<1x1x128x64xbf16> to vector<128x64xbf16>
    %cst_162 = arith.constant dense<0.000000e+00> : vector<64x64xf32>
    %162 = tpu.matmul %159, %161, %cst_162 {dimension_numbers = #tpu.dot_dimension_numbers<[1], [0], [0], [1], [0, 0, 1, 1], [], []>} : vector<64x128xbf16>, vector<128x64xbf16>, vector<64x64xf32> -> vector<64x64xf32>
    %163 = arith.addf %155, %162 : vector<64x64xf32>
    %c0_163 = arith.constant 0 : index
    %c30_164 = arith.constant 30 : index
    %c30_165 = arith.constant 30 : index
    %c0_166 = arith.constant 0 : index
    %164 = vector.load %arg1[%c0_163, %c30_164, %c30_165, %c0_166] : memref<1x44x44x128xf32, #tpu.memory_space<vmem>>, vector<1x8x8x128xf32>
    %165 = vector.shape_cast %164 : vector<1x8x8x128xf32> to vector<8x8x128xf32>
    %166 = vector.shape_cast %165 : vector<8x8x128xf32> to vector<64x128xf32>
    %167 = arith.truncf %166 : vector<64x128xf32> to vector<64x128xbf16>
    %c1_167 = arith.constant 1 : index
    %c8_168 = arith.constant 8 : index
    %c0_169 = arith.constant 0 : index
    %c0_170 = arith.constant 0 : index
    %168 = vector.load %arg3[%c1_167, %c8_168, %c0_169, %c0_170] : memref<3x9x128x64xbf16, #tpu.memory_space<vmem>>, vector<1x1x128x64xbf16>
    %169 = vector.shape_cast %168 : vector<1x1x128x64xbf16> to vector<128x64xbf16>
    %cst_171 = arith.constant dense<0.000000e+00> : vector<64x64xf32>
    %170 = tpu.matmul %167, %169, %cst_171 {dimension_numbers = #tpu.dot_dimension_numbers<[1], [0], [0], [1], [0, 0, 1, 1], [], []>} : vector<64x128xbf16>, vector<128x64xbf16>, vector<64x64xf32> -> vector<64x64xf32>
    %171 = arith.addf %163, %170 : vector<64x64xf32>
    %c2_172 = arith.constant 2 : index
    %c0_173 = arith.constant 0 : index
    %172 = vector.load %arg4[%c2_172, %c0_173] : memref<5x64xf32, #tpu.memory_space<vmem>>, vector<1x64xf32>
    %173 = vector.broadcast %172 : vector<1x64xf32> to vector<64x64xf32>
    %174 = arith.addf %171, %173 : vector<64x64xf32>
    %cst_174 = arith.constant 0.000000e+00 : f32
    %175 = vector.broadcast %cst_174 : f32 to vector<64x64xf32>
    %176 = arith.maximumf %174, %175 : vector<64x64xf32>
    %177 = arith.truncf %176 : vector<64x64xf32> to vector<64x64xbf16>
    %c2_175 = arith.constant 2 : index
    %c0_176 = arith.constant 0 : index
    %c0_177 = arith.constant 0 : index
    %178 = vector.load %arg5[%c2_175, %c0_176, %c0_177] : memref<5x64x128xbf16, #tpu.memory_space<vmem>>, vector<1x64x128xbf16>
    %179 = vector.shape_cast %178 : vector<1x64x128xbf16> to vector<64x128xbf16>
    %cst_178 = arith.constant dense<0.000000e+00> : vector<64x128xf32>
    %180 = tpu.matmul %177, %179, %cst_178 {dimension_numbers = #tpu.dot_dimension_numbers<[1], [0], [0], [1], [0, 0, 1, 1], [], []>} : vector<64x64xbf16>, vector<64x128xbf16>, vector<64x128xf32> -> vector<64x128xf32>
    %181 = arith.addf %98, %180 : vector<64x128xf32>
    %cst_179 = arith.constant 0.000000e+00 : f32
    %182 = vector.broadcast %cst_179 : f32 to vector<64x64xf32>
    %c0_180 = arith.constant 0 : index
    %c0_181 = arith.constant 0 : index
    %c0_182 = arith.constant 0 : index
    %c0_183 = arith.constant 0 : index
    %183 = vector.load %arg1[%c0_180, %c0_181, %c0_182, %c0_183] : memref<1x44x44x128xf32, #tpu.memory_space<vmem>>, vector<1x8x8x128xf32>
    %184 = vector.shape_cast %183 : vector<1x8x8x128xf32> to vector<8x8x128xf32>
    %185 = vector.shape_cast %184 : vector<8x8x128xf32> to vector<64x128xf32>
    %186 = arith.truncf %185 : vector<64x128xf32> to vector<64x128xbf16>
    %c2_184 = arith.constant 2 : index
    %c0_185 = arith.constant 0 : index
    %c0_186 = arith.constant 0 : index
    %c0_187 = arith.constant 0 : index
    %187 = vector.load %arg3[%c2_184, %c0_185, %c0_186, %c0_187] : memref<3x9x128x64xbf16, #tpu.memory_space<vmem>>, vector<1x1x128x64xbf16>
    %188 = vector.shape_cast %187 : vector<1x1x128x64xbf16> to vector<128x64xbf16>
    %cst_188 = arith.constant dense<0.000000e+00> : vector<64x64xf32>
    %189 = tpu.matmul %186, %188, %cst_188 {dimension_numbers = #tpu.dot_dimension_numbers<[1], [0], [0], [1], [0, 0, 1, 1], [], []>} : vector<64x128xbf16>, vector<128x64xbf16>, vector<64x64xf32> -> vector<64x64xf32>
    %190 = arith.addf %182, %189 : vector<64x64xf32>
    %c0_189 = arith.constant 0 : index
    %c0_190 = arith.constant 0 : index
    %c18_191 = arith.constant 18 : index
    %c0_192 = arith.constant 0 : index
    %191 = vector.load %arg1[%c0_189, %c0_190, %c18_191, %c0_192] : memref<1x44x44x128xf32, #tpu.memory_space<vmem>>, vector<1x8x8x128xf32>
    %192 = vector.shape_cast %191 : vector<1x8x8x128xf32> to vector<8x8x128xf32>
    %193 = vector.shape_cast %192 : vector<8x8x128xf32> to vector<64x128xf32>
    %194 = arith.truncf %193 : vector<64x128xf32> to vector<64x128xbf16>
    %c2_193 = arith.constant 2 : index
    %c1_194 = arith.constant 1 : index
    %c0_195 = arith.constant 0 : index
    %c0_196 = arith.constant 0 : index
    %195 = vector.load %arg3[%c2_193, %c1_194, %c0_195, %c0_196] : memref<3x9x128x64xbf16, #tpu.memory_space<vmem>>, vector<1x1x128x64xbf16>
    %196 = vector.shape_cast %195 : vector<1x1x128x64xbf16> to vector<128x64xbf16>
    %cst_197 = arith.constant dense<0.000000e+00> : vector<64x64xf32>
    %197 = tpu.matmul %194, %196, %cst_197 {dimension_numbers = #tpu.dot_dimension_numbers<[1], [0], [0], [1], [0, 0, 1, 1], [], []>} : vector<64x128xbf16>, vector<128x64xbf16>, vector<64x64xf32> -> vector<64x64xf32>
    %198 = arith.addf %190, %197 : vector<64x64xf32>
    %c0_198 = arith.constant 0 : index
    %c0_199 = arith.constant 0 : index
    %c36 = arith.constant 36 : index
    %c0_200 = arith.constant 0 : index
    %199 = vector.load %arg1[%c0_198, %c0_199, %c36, %c0_200] : memref<1x44x44x128xf32, #tpu.memory_space<vmem>>, vector<1x8x8x128xf32>
    %200 = vector.shape_cast %199 : vector<1x8x8x128xf32> to vector<8x8x128xf32>
    %201 = vector.shape_cast %200 : vector<8x8x128xf32> to vector<64x128xf32>
    %202 = arith.truncf %201 : vector<64x128xf32> to vector<64x128xbf16>
    %c2_201 = arith.constant 2 : index
    %c2_202 = arith.constant 2 : index
    %c0_203 = arith.constant 0 : index
    %c0_204 = arith.constant 0 : index
    %203 = vector.load %arg3[%c2_201, %c2_202, %c0_203, %c0_204] : memref<3x9x128x64xbf16, #tpu.memory_space<vmem>>, vector<1x1x128x64xbf16>
    %204 = vector.shape_cast %203 : vector<1x1x128x64xbf16> to vector<128x64xbf16>
    %cst_205 = arith.constant dense<0.000000e+00> : vector<64x64xf32>
    %205 = tpu.matmul %202, %204, %cst_205 {dimension_numbers = #tpu.dot_dimension_numbers<[1], [0], [0], [1], [0, 0, 1, 1], [], []>} : vector<64x128xbf16>, vector<128x64xbf16>, vector<64x64xf32> -> vector<64x64xf32>
    %206 = arith.addf %198, %205 : vector<64x64xf32>
    %c0_206 = arith.constant 0 : index
    %c18_207 = arith.constant 18 : index
    %c0_208 = arith.constant 0 : index
    %c0_209 = arith.constant 0 : index
    %207 = vector.load %arg1[%c0_206, %c18_207, %c0_208, %c0_209] : memref<1x44x44x128xf32, #tpu.memory_space<vmem>>, vector<1x8x8x128xf32>
    %208 = vector.shape_cast %207 : vector<1x8x8x128xf32> to vector<8x8x128xf32>
    %209 = vector.shape_cast %208 : vector<8x8x128xf32> to vector<64x128xf32>
    %210 = arith.truncf %209 : vector<64x128xf32> to vector<64x128xbf16>
    %c2_210 = arith.constant 2 : index
    %c3_211 = arith.constant 3 : index
    %c0_212 = arith.constant 0 : index
    %c0_213 = arith.constant 0 : index
    %211 = vector.load %arg3[%c2_210, %c3_211, %c0_212, %c0_213] : memref<3x9x128x64xbf16, #tpu.memory_space<vmem>>, vector<1x1x128x64xbf16>
    %212 = vector.shape_cast %211 : vector<1x1x128x64xbf16> to vector<128x64xbf16>
    %cst_214 = arith.constant dense<0.000000e+00> : vector<64x64xf32>
    %213 = tpu.matmul %210, %212, %cst_214 {dimension_numbers = #tpu.dot_dimension_numbers<[1], [0], [0], [1], [0, 0, 1, 1], [], []>} : vector<64x128xbf16>, vector<128x64xbf16>, vector<64x64xf32> -> vector<64x64xf32>
    %214 = arith.addf %206, %213 : vector<64x64xf32>
    %c0_215 = arith.constant 0 : index
    %c18_216 = arith.constant 18 : index
    %c18_217 = arith.constant 18 : index
    %c0_218 = arith.constant 0 : index
    %215 = vector.load %arg1[%c0_215, %c18_216, %c18_217, %c0_218] : memref<1x44x44x128xf32, #tpu.memory_space<vmem>>, vector<1x8x8x128xf32>
    %216 = vector.shape_cast %215 : vector<1x8x8x128xf32> to vector<8x8x128xf32>
    %217 = vector.shape_cast %216 : vector<8x8x128xf32> to vector<64x128xf32>
    %218 = arith.truncf %217 : vector<64x128xf32> to vector<64x128xbf16>
    %c2_219 = arith.constant 2 : index
    %c4_220 = arith.constant 4 : index
    %c0_221 = arith.constant 0 : index
    %c0_222 = arith.constant 0 : index
    %219 = vector.load %arg3[%c2_219, %c4_220, %c0_221, %c0_222] : memref<3x9x128x64xbf16, #tpu.memory_space<vmem>>, vector<1x1x128x64xbf16>
    %220 = vector.shape_cast %219 : vector<1x1x128x64xbf16> to vector<128x64xbf16>
    %cst_223 = arith.constant dense<0.000000e+00> : vector<64x64xf32>
    %221 = tpu.matmul %218, %220, %cst_223 {dimension_numbers = #tpu.dot_dimension_numbers<[1], [0], [0], [1], [0, 0, 1, 1], [], []>} : vector<64x128xbf16>, vector<128x64xbf16>, vector<64x64xf32> -> vector<64x64xf32>
    %222 = arith.addf %214, %221 : vector<64x64xf32>
    %c0_224 = arith.constant 0 : index
    %c18_225 = arith.constant 18 : index
    %c36_226 = arith.constant 36 : index
    %c0_227 = arith.constant 0 : index
    %223 = vector.load %arg1[%c0_224, %c18_225, %c36_226, %c0_227] : memref<1x44x44x128xf32, #tpu.memory_space<vmem>>, vector<1x8x8x128xf32>
    %224 = vector.shape_cast %223 : vector<1x8x8x128xf32> to vector<8x8x128xf32>
    %225 = vector.shape_cast %224 : vector<8x8x128xf32> to vector<64x128xf32>
    %226 = arith.truncf %225 : vector<64x128xf32> to vector<64x128xbf16>
    %c2_228 = arith.constant 2 : index
    %c5_229 = arith.constant 5 : index
    %c0_230 = arith.constant 0 : index
    %c0_231 = arith.constant 0 : index
    %227 = vector.load %arg3[%c2_228, %c5_229, %c0_230, %c0_231] : memref<3x9x128x64xbf16, #tpu.memory_space<vmem>>, vector<1x1x128x64xbf16>
    %228 = vector.shape_cast %227 : vector<1x1x128x64xbf16> to vector<128x64xbf16>
    %cst_232 = arith.constant dense<0.000000e+00> : vector<64x64xf32>
    %229 = tpu.matmul %226, %228, %cst_232 {dimension_numbers = #tpu.dot_dimension_numbers<[1], [0], [0], [1], [0, 0, 1, 1], [], []>} : vector<64x128xbf16>, vector<128x64xbf16>, vector<64x64xf32> -> vector<64x64xf32>
    %230 = arith.addf %222, %229 : vector<64x64xf32>
    %c0_233 = arith.constant 0 : index
    %c36_234 = arith.constant 36 : index
    %c0_235 = arith.constant 0 : index
    %c0_236 = arith.constant 0 : index
    %231 = vector.load %arg1[%c0_233, %c36_234, %c0_235, %c0_236] : memref<1x44x44x128xf32, #tpu.memory_space<vmem>>, vector<1x8x8x128xf32>
    %232 = vector.shape_cast %231 : vector<1x8x8x128xf32> to vector<8x8x128xf32>
    %233 = vector.shape_cast %232 : vector<8x8x128xf32> to vector<64x128xf32>
    %234 = arith.truncf %233 : vector<64x128xf32> to vector<64x128xbf16>
    %c2_237 = arith.constant 2 : index
    %c6_238 = arith.constant 6 : index
    %c0_239 = arith.constant 0 : index
    %c0_240 = arith.constant 0 : index
    %235 = vector.load %arg3[%c2_237, %c6_238, %c0_239, %c0_240] : memref<3x9x128x64xbf16, #tpu.memory_space<vmem>>, vector<1x1x128x64xbf16>
    %236 = vector.shape_cast %235 : vector<1x1x128x64xbf16> to vector<128x64xbf16>
    %cst_241 = arith.constant dense<0.000000e+00> : vector<64x64xf32>
    %237 = tpu.matmul %234, %236, %cst_241 {dimension_numbers = #tpu.dot_dimension_numbers<[1], [0], [0], [1], [0, 0, 1, 1], [], []>} : vector<64x128xbf16>, vector<128x64xbf16>, vector<64x64xf32> -> vector<64x64xf32>
    %238 = arith.addf %230, %237 : vector<64x64xf32>
    %c0_242 = arith.constant 0 : index
    %c36_243 = arith.constant 36 : index
    %c18_244 = arith.constant 18 : index
    %c0_245 = arith.constant 0 : index
    %239 = vector.load %arg1[%c0_242, %c36_243, %c18_244, %c0_245] : memref<1x44x44x128xf32, #tpu.memory_space<vmem>>, vector<1x8x8x128xf32>
    %240 = vector.shape_cast %239 : vector<1x8x8x128xf32> to vector<8x8x128xf32>
    %241 = vector.shape_cast %240 : vector<8x8x128xf32> to vector<64x128xf32>
    %242 = arith.truncf %241 : vector<64x128xf32> to vector<64x128xbf16>
    %c2_246 = arith.constant 2 : index
    %c7_247 = arith.constant 7 : index
    %c0_248 = arith.constant 0 : index
    %c0_249 = arith.constant 0 : index
    %243 = vector.load %arg3[%c2_246, %c7_247, %c0_248, %c0_249] : memref<3x9x128x64xbf16, #tpu.memory_space<vmem>>, vector<1x1x128x64xbf16>
    %244 = vector.shape_cast %243 : vector<1x1x128x64xbf16> to vector<128x64xbf16>
    %cst_250 = arith.constant dense<0.000000e+00> : vector<64x64xf32>
    %245 = tpu.matmul %242, %244, %cst_250 {dimension_numbers = #tpu.dot_dimension_numbers<[1], [0], [0], [1], [0, 0, 1, 1], [], []>} : vector<64x128xbf16>, vector<128x64xbf16>, vector<64x64xf32> -> vector<64x64xf32>
    %246 = arith.addf %238, %245 : vector<64x64xf32>
    %c0_251 = arith.constant 0 : index
    %c36_252 = arith.constant 36 : index
    %c36_253 = arith.constant 36 : index
    %c0_254 = arith.constant 0 : index
    %247 = vector.load %arg1[%c0_251, %c36_252, %c36_253, %c0_254] : memref<1x44x44x128xf32, #tpu.memory_space<vmem>>, vector<1x8x8x128xf32>
    %248 = vector.shape_cast %247 : vector<1x8x8x128xf32> to vector<8x8x128xf32>
    %249 = vector.shape_cast %248 : vector<8x8x128xf32> to vector<64x128xf32>
    %250 = arith.truncf %249 : vector<64x128xf32> to vector<64x128xbf16>
    %c2_255 = arith.constant 2 : index
    %c8_256 = arith.constant 8 : index
    %c0_257 = arith.constant 0 : index
    %c0_258 = arith.constant 0 : index
    %251 = vector.load %arg3[%c2_255, %c8_256, %c0_257, %c0_258] : memref<3x9x128x64xbf16, #tpu.memory_space<vmem>>, vector<1x1x128x64xbf16>
    %252 = vector.shape_cast %251 : vector<1x1x128x64xbf16> to vector<128x64xbf16>
    %cst_259 = arith.constant dense<0.000000e+00> : vector<64x64xf32>
    %253 = tpu.matmul %250, %252, %cst_259 {dimension_numbers = #tpu.dot_dimension_numbers<[1], [0], [0], [1], [0, 0, 1, 1], [], []>} : vector<64x128xbf16>, vector<128x64xbf16>, vector<64x64xf32> -> vector<64x64xf32>
    %254 = arith.addf %246, %253 : vector<64x64xf32>
    %c3_260 = arith.constant 3 : index
    %c0_261 = arith.constant 0 : index
    %255 = vector.load %arg4[%c3_260, %c0_261] : memref<5x64xf32, #tpu.memory_space<vmem>>, vector<1x64xf32>
    %256 = vector.broadcast %255 : vector<1x64xf32> to vector<64x64xf32>
    %257 = arith.addf %254, %256 : vector<64x64xf32>
    %cst_262 = arith.constant 0.000000e+00 : f32
    %258 = vector.broadcast %cst_262 : f32 to vector<64x64xf32>
    %259 = arith.maximumf %257, %258 : vector<64x64xf32>
    %260 = arith.truncf %259 : vector<64x64xf32> to vector<64x64xbf16>
    %c3_263 = arith.constant 3 : index
    %c0_264 = arith.constant 0 : index
    %c0_265 = arith.constant 0 : index
    %261 = vector.load %arg5[%c3_263, %c0_264, %c0_265] : memref<5x64x128xbf16, #tpu.memory_space<vmem>>, vector<1x64x128xbf16>
    %262 = vector.shape_cast %261 : vector<1x64x128xbf16> to vector<64x128xbf16>
    %cst_266 = arith.constant dense<0.000000e+00> : vector<64x128xf32>
    %263 = tpu.matmul %260, %262, %cst_266 {dimension_numbers = #tpu.dot_dimension_numbers<[1], [0], [0], [1], [0, 0, 1, 1], [], []>} : vector<64x64xbf16>, vector<64x128xbf16>, vector<64x128xf32> -> vector<64x128xf32>
    %264 = arith.addf %181, %263 : vector<64x128xf32>
    %cst_267 = arith.constant dense<0.000000e+00> : vector<128xf32>
    %265 = vector.multi_reduction <add>, %2, %cst_267 [0] : vector<64x128xf32> to vector<128xf32>
    %266 = vector.shape_cast %265 : vector<128xf32> to vector<1x128xf32>
    %cst_268 = arith.constant 6.400000e+01 : f32
    %267 = vector.broadcast %cst_268 : f32 to vector<1x128xf32>
    %268 = arith.divf %266, %267 : vector<1x128xf32>
    %269 = arith.truncf %268 : vector<1x128xf32> to vector<1x128xbf16>
    %c1_269 = arith.constant 1 : index
    %c0_270 = arith.constant 0 : index
    %c0_271 = arith.constant 0 : index
    %270 = vector.load %arg2[%c1_269, %c0_270, %c0_271] : memref<2x128x64xbf16, #tpu.memory_space<vmem>>, vector<1x128x64xbf16>
    %271 = vector.shape_cast %270 : vector<1x128x64xbf16> to vector<128x64xbf16>
    %cst_272 = arith.constant dense<0.000000e+00> : vector<1x64xf32>
    %272 = tpu.matmul %269, %271, %cst_272 {dimension_numbers = #tpu.dot_dimension_numbers<[1], [0], [0], [1], [0, 0, 1, 1], [], []>} : vector<1x128xbf16>, vector<128x64xbf16>, vector<1x64xf32> -> vector<1x64xf32>
    %c4_273 = arith.constant 4 : index
    %c0_274 = arith.constant 0 : index
    %273 = vector.load %arg4[%c4_273, %c0_274] : memref<5x64xf32, #tpu.memory_space<vmem>>, vector<1x64xf32>
    %274 = arith.addf %272, %273 : vector<1x64xf32>
    %cst_275 = arith.constant 0.000000e+00 : f32
    %275 = vector.broadcast %cst_275 : f32 to vector<1x64xf32>
    %276 = arith.maximumf %274, %275 : vector<1x64xf32>
    %277 = arith.truncf %276 : vector<1x64xf32> to vector<1x64xbf16>
    %c4_276 = arith.constant 4 : index
    %c0_277 = arith.constant 0 : index
    %c0_278 = arith.constant 0 : index
    %278 = vector.load %arg5[%c4_276, %c0_277, %c0_278] : memref<5x64x128xbf16, #tpu.memory_space<vmem>>, vector<1x64x128xbf16>
    %279 = vector.shape_cast %278 : vector<1x64x128xbf16> to vector<64x128xbf16>
    %cst_279 = arith.constant dense<0.000000e+00> : vector<1x128xf32>
    %280 = tpu.matmul %277, %279, %cst_279 {dimension_numbers = #tpu.dot_dimension_numbers<[1], [0], [0], [1], [0, 0, 1, 1], [], []>} : vector<1x64xbf16>, vector<64x128xbf16>, vector<1x128xf32> -> vector<1x128xf32>
    %281 = vector.broadcast %280 : vector<1x128xf32> to vector<64x128xf32>
    %282 = arith.addf %264, %281 : vector<64x128xf32>
    %c0_280 = arith.constant 0 : index
    %c0_281 = arith.constant 0 : index
    %283 = vector.load %arg6[%c0_280, %c0_281] : memref<1x128xf32, #tpu.memory_space<vmem>>, vector<1x128xf32>
    %284 = vector.broadcast %283 : vector<1x128xf32> to vector<64x128xf32>
    %285 = arith.addf %282, %284 : vector<64x128xf32>
    %cst_282 = arith.constant 0.000000e+00 : f32
    %286 = vector.broadcast %cst_282 : f32 to vector<64x128xf32>
    %287 = arith.maximumf %285, %286 : vector<64x128xf32>
    %288 = arith.truncf %287 : vector<64x128xf32> to vector<64x128xbf16>
    %c0_283 = arith.constant 0 : index
    %c0_284 = arith.constant 0 : index
    %c0_285 = arith.constant 0 : index
    %289 = vector.load %arg7[%c0_283, %c0_284, %c0_285] : memref<1x64x128xbf16, #tpu.memory_space<vmem>>, vector<1x64x128xbf16>
    %290 = vector.shape_cast %289 : vector<1x64x128xbf16> to vector<64x128xbf16>
    %291 = vector.shape_cast %288 : vector<64x128xbf16> to vector<1x64x128xbf16>
    tpu.vector_store %arg7[%c0_283, %c0_284, %c0_285], %291 {strides = array<i32>} : memref<1x64x128xbf16, #tpu.memory_space<vmem>>, vector<1x64x128xbf16>,
    return
  }
  func.func @transform_0(%arg0: i32) -> (i32, i32, i32, i32) {
    %c0_i32 = arith.constant 0 : i32
    %c0_i32_0 = arith.constant 0 : i32
    %c0_i32_1 = arith.constant 0 : i32
    %c0_i32_2 = arith.constant 0 : i32
    return %arg0, %c0_i32, %c0_i32_0, %c0_i32_1 : i32, i32, i32, i32
  }
  func.func @transform_1(%arg0: i32) -> (i32, i32, i32) {
    %c0_i32 = arith.constant 0 : i32
    %c0_i32_0 = arith.constant 0 : i32
    %c0_i32_1 = arith.constant 0 : i32
    %c0_i32_2 = arith.constant 0 : i32
    return %c0_i32, %c0_i32_0, %c0_i32_1 : i32, i32, i32
  }
  func.func @transform_2(%arg0: i32) -> (i32, i32, i32, i32) {
    %c0_i32 = arith.constant 0 : i32
    %c0_i32_0 = arith.constant 0 : i32
    %c0_i32_1 = arith.constant 0 : i32
    %c0_i32_2 = arith.constant 0 : i32
    %c0_i32_3 = arith.constant 0 : i32
    return %c0_i32, %c0_i32_0, %c0_i32_1, %c0_i32_2 : i32, i32, i32, i32
  }
  func.func @transform_3(%arg0: i32) -> (i32, i32) {
    %c0_i32 = arith.constant 0 : i32
    %c0_i32_0 = arith.constant 0 : i32
    %c0_i32_1 = arith.constant 0 : i32
    return %c0_i32, %c0_i32_0 : i32, i32
  }
  func.func @transform_4(%arg0: i32) -> (i32, i32, i32) {
    %c0_i32 = arith.constant 0 : i32
    %c0_i32_0 = arith.constant 0 : i32
    %c0_i32_1 = arith.constant 0 : i32
    %c0_i32_2 = arith.constant 0 : i32
    return %c0_i32, %c0_i32_0, %c0_i32_1 : i32, i32, i32
  }
  func.func @transform_5(%arg0: i32) -> (i32, i32) {
    %c0_i32 = arith.constant 0 : i32
    %c0_i32_0 = arith.constant 0 : i32
    %c0_i32_1 = arith.constant 0 : i32
    return %c0_i32, %c0_i32_0 : i32, i32
  }
  func.func @transform_6(%arg0: i32) -> (i32, i32, i32) {
    %c0_i32 = arith.constant 0 : i32
    %c0_i32_0 = arith.constant 0 : i32
    %c0_i32_1 = arith.constant 0 : i32
    return %arg0, %c0_i32, %c0_i32_0 : i32, i32, i32
  }
}

module attributes {stable_mosaic.version = 11 : i64} {
  func.func @_head_kernel(%arg0: i32, %arg1: memref<1x10x10x128xbf16, #tpu.memory_space<vmem>>, %arg2: memref<9x128x64xbf16, #tpu.memory_space<vmem>>, %arg3: memref<1x64xf32, #tpu.memory_space<vmem>>, %arg4: memref<64x128xbf16, #tpu.memory_space<vmem>>, %arg5: memref<1x128xf32, #tpu.memory_space<vmem>>, %arg6: memref<1x64x128xf32, #tpu.memory_space<vmem>>) attributes {dimension_semantics = [#tpu.dimension_semantics<parallel>], iteration_bounds = array<i64: 2>, scalar_prefetch = 0 : i64, scratch_operands = 0 : i64, tpu.core_type = #tpu.core_type<tc>, window_params = [{transform_indices = @transform_0, window_bounds = array<i64: 1, 10, 10, 128>}, {pipeline_mode = #tpu.pipeline_mode<synchronous>, transform_indices = @transform_1, window_bounds = array<i64: 9, 128, 64>}, {pipeline_mode = #tpu.pipeline_mode<synchronous>, transform_indices = @transform_2, window_bounds = array<i64: 1, 64>}, {pipeline_mode = #tpu.pipeline_mode<synchronous>, transform_indices = @transform_3, window_bounds = array<i64: 64, 128>}, {pipeline_mode = #tpu.pipeline_mode<synchronous>, transform_indices = @transform_4, window_bounds = array<i64: 1, 128>}, {transform_indices = @transform_5, window_bounds = array<i64: 1, 64, 128>}]} {
    %cst = arith.constant 0.000000e+00 : f32
    %0 = vector.broadcast %cst : f32 to vector<64x64xf32>
    %c0 = arith.constant 0 : index
    %c0_0 = arith.constant 0 : index
    %c0_1 = arith.constant 0 : index
    %c0_2 = arith.constant 0 : index
    %1 = vector.load %arg1[%c0, %c0_0, %c0_1, %c0_2] : memref<1x10x10x128xbf16, #tpu.memory_space<vmem>>, vector<1x8x8x128xbf16>
    %2 = vector.shape_cast %1 : vector<1x8x8x128xbf16> to vector<8x8x128xbf16>
    %3 = vector.shape_cast %2 : vector<8x8x128xbf16> to vector<64x128xbf16>
    %c0_3 = arith.constant 0 : index
    %c0_4 = arith.constant 0 : index
    %c0_5 = arith.constant 0 : index
    %4 = vector.load %arg2[%c0_3, %c0_4, %c0_5] : memref<9x128x64xbf16, #tpu.memory_space<vmem>>, vector<1x128x64xbf16>
    %5 = vector.shape_cast %4 : vector<1x128x64xbf16> to vector<128x64xbf16>
    %cst_6 = arith.constant dense<0.000000e+00> : vector<64x64xf32>
    %6 = tpu.matmul %3, %5, %cst_6 {dimension_numbers = #tpu.dot_dimension_numbers<[1], [0], [0], [1], [0, 0, 1, 1], [], []>} : vector<64x128xbf16>, vector<128x64xbf16>, vector<64x64xf32> -> vector<64x64xf32>
    %7 = arith.addf %0, %6 : vector<64x64xf32>
    %c0_7 = arith.constant 0 : index
    %c0_8 = arith.constant 0 : index
    %c1 = arith.constant 1 : index
    %c0_9 = arith.constant 0 : index
    %8 = vector.load %arg1[%c0_7, %c0_8, %c1, %c0_9] : memref<1x10x10x128xbf16, #tpu.memory_space<vmem>>, vector<1x8x8x128xbf16>
    %9 = vector.shape_cast %8 : vector<1x8x8x128xbf16> to vector<8x8x128xbf16>
    %10 = vector.shape_cast %9 : vector<8x8x128xbf16> to vector<64x128xbf16>
    %c1_10 = arith.constant 1 : index
    %c0_11 = arith.constant 0 : index
    %c0_12 = arith.constant 0 : index
    %11 = vector.load %arg2[%c1_10, %c0_11, %c0_12] : memref<9x128x64xbf16, #tpu.memory_space<vmem>>, vector<1x128x64xbf16>
    %12 = vector.shape_cast %11 : vector<1x128x64xbf16> to vector<128x64xbf16>
    %cst_13 = arith.constant dense<0.000000e+00> : vector<64x64xf32>
    %13 = tpu.matmul %10, %12, %cst_13 {dimension_numbers = #tpu.dot_dimension_numbers<[1], [0], [0], [1], [0, 0, 1, 1], [], []>} : vector<64x128xbf16>, vector<128x64xbf16>, vector<64x64xf32> -> vector<64x64xf32>
    %14 = arith.addf %7, %13 : vector<64x64xf32>
    %c0_14 = arith.constant 0 : index
    %c0_15 = arith.constant 0 : index
    %c2 = arith.constant 2 : index
    %c0_16 = arith.constant 0 : index
    %15 = vector.load %arg1[%c0_14, %c0_15, %c2, %c0_16] : memref<1x10x10x128xbf16, #tpu.memory_space<vmem>>, vector<1x8x8x128xbf16>
    %16 = vector.shape_cast %15 : vector<1x8x8x128xbf16> to vector<8x8x128xbf16>
    %17 = vector.shape_cast %16 : vector<8x8x128xbf16> to vector<64x128xbf16>
    %c2_17 = arith.constant 2 : index
    %c0_18 = arith.constant 0 : index
    %c0_19 = arith.constant 0 : index
    %18 = vector.load %arg2[%c2_17, %c0_18, %c0_19] : memref<9x128x64xbf16, #tpu.memory_space<vmem>>, vector<1x128x64xbf16>
    %19 = vector.shape_cast %18 : vector<1x128x64xbf16> to vector<128x64xbf16>
    %cst_20 = arith.constant dense<0.000000e+00> : vector<64x64xf32>
    %20 = tpu.matmul %17, %19, %cst_20 {dimension_numbers = #tpu.dot_dimension_numbers<[1], [0], [0], [1], [0, 0, 1, 1], [], []>} : vector<64x128xbf16>, vector<128x64xbf16>, vector<64x64xf32> -> vector<64x64xf32>
    %21 = arith.addf %14, %20 : vector<64x64xf32>
    %c0_21 = arith.constant 0 : index
    %c1_22 = arith.constant 1 : index
    %c0_23 = arith.constant 0 : index
    %c0_24 = arith.constant 0 : index
    %22 = vector.load %arg1[%c0_21, %c1_22, %c0_23, %c0_24] : memref<1x10x10x128xbf16, #tpu.memory_space<vmem>>, vector<1x8x8x128xbf16>
    %23 = vector.shape_cast %22 : vector<1x8x8x128xbf16> to vector<8x8x128xbf16>
    %24 = vector.shape_cast %23 : vector<8x8x128xbf16> to vector<64x128xbf16>
    %c3 = arith.constant 3 : index
    %c0_25 = arith.constant 0 : index
    %c0_26 = arith.constant 0 : index
    %25 = vector.load %arg2[%c3, %c0_25, %c0_26] : memref<9x128x64xbf16, #tpu.memory_space<vmem>>, vector<1x128x64xbf16>
    %26 = vector.shape_cast %25 : vector<1x128x64xbf16> to vector<128x64xbf16>
    %cst_27 = arith.constant dense<0.000000e+00> : vector<64x64xf32>
    %27 = tpu.matmul %24, %26, %cst_27 {dimension_numbers = #tpu.dot_dimension_numbers<[1], [0], [0], [1], [0, 0, 1, 1], [], []>} : vector<64x128xbf16>, vector<128x64xbf16>, vector<64x64xf32> -> vector<64x64xf32>
    %28 = arith.addf %21, %27 : vector<64x64xf32>
    %c0_28 = arith.constant 0 : index
    %c1_29 = arith.constant 1 : index
    %c1_30 = arith.constant 1 : index
    %c0_31 = arith.constant 0 : index
    %29 = vector.load %arg1[%c0_28, %c1_29, %c1_30, %c0_31] : memref<1x10x10x128xbf16, #tpu.memory_space<vmem>>, vector<1x8x8x128xbf16>
    %30 = vector.shape_cast %29 : vector<1x8x8x128xbf16> to vector<8x8x128xbf16>
    %31 = vector.shape_cast %30 : vector<8x8x128xbf16> to vector<64x128xbf16>
    %c4 = arith.constant 4 : index
    %c0_32 = arith.constant 0 : index
    %c0_33 = arith.constant 0 : index
    %32 = vector.load %arg2[%c4, %c0_32, %c0_33] : memref<9x128x64xbf16, #tpu.memory_space<vmem>>, vector<1x128x64xbf16>
    %33 = vector.shape_cast %32 : vector<1x128x64xbf16> to vector<128x64xbf16>
    %cst_34 = arith.constant dense<0.000000e+00> : vector<64x64xf32>
    %34 = tpu.matmul %31, %33, %cst_34 {dimension_numbers = #tpu.dot_dimension_numbers<[1], [0], [0], [1], [0, 0, 1, 1], [], []>} : vector<64x128xbf16>, vector<128x64xbf16>, vector<64x64xf32> -> vector<64x64xf32>
    %35 = arith.addf %28, %34 : vector<64x64xf32>
    %c0_35 = arith.constant 0 : index
    %c1_36 = arith.constant 1 : index
    %c2_37 = arith.constant 2 : index
    %c0_38 = arith.constant 0 : index
    %36 = vector.load %arg1[%c0_35, %c1_36, %c2_37, %c0_38] : memref<1x10x10x128xbf16, #tpu.memory_space<vmem>>, vector<1x8x8x128xbf16>
    %37 = vector.shape_cast %36 : vector<1x8x8x128xbf16> to vector<8x8x128xbf16>
    %38 = vector.shape_cast %37 : vector<8x8x128xbf16> to vector<64x128xbf16>
    %c5 = arith.constant 5 : index
    %c0_39 = arith.constant 0 : index
    %c0_40 = arith.constant 0 : index
    %39 = vector.load %arg2[%c5, %c0_39, %c0_40] : memref<9x128x64xbf16, #tpu.memory_space<vmem>>, vector<1x128x64xbf16>
    %40 = vector.shape_cast %39 : vector<1x128x64xbf16> to vector<128x64xbf16>
    %cst_41 = arith.constant dense<0.000000e+00> : vector<64x64xf32>
    %41 = tpu.matmul %38, %40, %cst_41 {dimension_numbers = #tpu.dot_dimension_numbers<[1], [0], [0], [1], [0, 0, 1, 1], [], []>} : vector<64x128xbf16>, vector<128x64xbf16>, vector<64x64xf32> -> vector<64x64xf32>
    %42 = arith.addf %35, %41 : vector<64x64xf32>
    %c0_42 = arith.constant 0 : index
    %c2_43 = arith.constant 2 : index
    %c0_44 = arith.constant 0 : index
    %c0_45 = arith.constant 0 : index
    %43 = vector.load %arg1[%c0_42, %c2_43, %c0_44, %c0_45] : memref<1x10x10x128xbf16, #tpu.memory_space<vmem>>, vector<1x8x8x128xbf16>
    %44 = vector.shape_cast %43 : vector<1x8x8x128xbf16> to vector<8x8x128xbf16>
    %45 = vector.shape_cast %44 : vector<8x8x128xbf16> to vector<64x128xbf16>
    %c6 = arith.constant 6 : index
    %c0_46 = arith.constant 0 : index
    %c0_47 = arith.constant 0 : index
    %46 = vector.load %arg2[%c6, %c0_46, %c0_47] : memref<9x128x64xbf16, #tpu.memory_space<vmem>>, vector<1x128x64xbf16>
    %47 = vector.shape_cast %46 : vector<1x128x64xbf16> to vector<128x64xbf16>
    %cst_48 = arith.constant dense<0.000000e+00> : vector<64x64xf32>
    %48 = tpu.matmul %45, %47, %cst_48 {dimension_numbers = #tpu.dot_dimension_numbers<[1], [0], [0], [1], [0, 0, 1, 1], [], []>} : vector<64x128xbf16>, vector<128x64xbf16>, vector<64x64xf32> -> vector<64x64xf32>
    %49 = arith.addf %42, %48 : vector<64x64xf32>
    %c0_49 = arith.constant 0 : index
    %c2_50 = arith.constant 2 : index
    %c1_51 = arith.constant 1 : index
    %c0_52 = arith.constant 0 : index
    %50 = vector.load %arg1[%c0_49, %c2_50, %c1_51, %c0_52] : memref<1x10x10x128xbf16, #tpu.memory_space<vmem>>, vector<1x8x8x128xbf16>
    %51 = vector.shape_cast %50 : vector<1x8x8x128xbf16> to vector<8x8x128xbf16>
    %52 = vector.shape_cast %51 : vector<8x8x128xbf16> to vector<64x128xbf16>
    %c7 = arith.constant 7 : index
    %c0_53 = arith.constant 0 : index
    %c0_54 = arith.constant 0 : index
    %53 = vector.load %arg2[%c7, %c0_53, %c0_54] : memref<9x128x64xbf16, #tpu.memory_space<vmem>>, vector<1x128x64xbf16>
    %54 = vector.shape_cast %53 : vector<1x128x64xbf16> to vector<128x64xbf16>
    %cst_55 = arith.constant dense<0.000000e+00> : vector<64x64xf32>
    %55 = tpu.matmul %52, %54, %cst_55 {dimension_numbers = #tpu.dot_dimension_numbers<[1], [0], [0], [1], [0, 0, 1, 1], [], []>} : vector<64x128xbf16>, vector<128x64xbf16>, vector<64x64xf32> -> vector<64x64xf32>
    %56 = arith.addf %49, %55 : vector<64x64xf32>
    %c0_56 = arith.constant 0 : index
    %c2_57 = arith.constant 2 : index
    %c2_58 = arith.constant 2 : index
    %c0_59 = arith.constant 0 : index
    %57 = vector.load %arg1[%c0_56, %c2_57, %c2_58, %c0_59] : memref<1x10x10x128xbf16, #tpu.memory_space<vmem>>, vector<1x8x8x128xbf16>
    %58 = vector.shape_cast %57 : vector<1x8x8x128xbf16> to vector<8x8x128xbf16>
    %59 = vector.shape_cast %58 : vector<8x8x128xbf16> to vector<64x128xbf16>
    %c8 = arith.constant 8 : index
    %c0_60 = arith.constant 0 : index
    %c0_61 = arith.constant 0 : index
    %60 = vector.load %arg2[%c8, %c0_60, %c0_61] : memref<9x128x64xbf16, #tpu.memory_space<vmem>>, vector<1x128x64xbf16>
    %61 = vector.shape_cast %60 : vector<1x128x64xbf16> to vector<128x64xbf16>
    %cst_62 = arith.constant dense<0.000000e+00> : vector<64x64xf32>
    %62 = tpu.matmul %59, %61, %cst_62 {dimension_numbers = #tpu.dot_dimension_numbers<[1], [0], [0], [1], [0, 0, 1, 1], [], []>} : vector<64x128xbf16>, vector<128x64xbf16>, vector<64x64xf32> -> vector<64x64xf32>
    %63 = arith.addf %56, %62 : vector<64x64xf32>
    %c0_63 = arith.constant 0 : index
    %c0_64 = arith.constant 0 : index
    %64 = vector.load %arg3[%c0_63, %c0_64] : memref<1x64xf32, #tpu.memory_space<vmem>>, vector<1x64xf32>
    %65 = vector.broadcast %64 : vector<1x64xf32> to vector<64x64xf32>
    %66 = arith.addf %63, %65 : vector<64x64xf32>
    %cst_65 = arith.constant 0.000000e+00 : f32
    %67 = vector.broadcast %cst_65 : f32 to vector<64x64xf32>
    %68 = arith.maximumf %66, %67 : vector<64x64xf32>
    %69 = arith.truncf %68 : vector<64x64xf32> to vector<64x64xbf16>
    %c0_66 = arith.constant 0 : index
    %c0_67 = arith.constant 0 : index
    %70 = vector.load %arg4[%c0_66, %c0_67] : memref<64x128xbf16, #tpu.memory_space<vmem>>, vector<64x128xbf16>
    %cst_68 = arith.constant dense<0.000000e+00> : vector<64x128xf32>
    %71 = tpu.matmul %69, %70, %cst_68 {dimension_numbers = #tpu.dot_dimension_numbers<[1], [0], [0], [1], [0, 0, 1, 1], [], []>} : vector<64x64xbf16>, vector<64x128xbf16>, vector<64x128xf32> -> vector<64x128xf32>
    %c0_69 = arith.constant 0 : index
    %c0_70 = arith.constant 0 : index
    %72 = vector.load %arg5[%c0_69, %c0_70] : memref<1x128xf32, #tpu.memory_space<vmem>>, vector<1x128xf32>
    %73 = vector.broadcast %72 : vector<1x128xf32> to vector<64x128xf32>
    %74 = arith.addf %71, %73 : vector<64x128xf32>
    %c0_71 = arith.constant 0 : index
    %c0_72 = arith.constant 0 : index
    %c0_73 = arith.constant 0 : index
    %75 = vector.load %arg6[%c0_71, %c0_72, %c0_73] : memref<1x64x128xf32, #tpu.memory_space<vmem>>, vector<1x64x128xf32>
    %76 = vector.shape_cast %75 : vector<1x64x128xf32> to vector<64x128xf32>
    %77 = vector.shape_cast %74 : vector<64x128xf32> to vector<1x64x128xf32>
    tpu.vector_store %arg6[%c0_71, %c0_72, %c0_73], %77 {strides = array<i32>} : memref<1x64x128xf32, #tpu.memory_space<vmem>>, vector<1x64x128xf32>,
    return
  }
  func.func @transform_0(%arg0: i32) -> (i32, i32, i32, i32) {
    %c0_i32 = arith.constant 0 : i32
    %c0_i32_0 = arith.constant 0 : i32
    %c0_i32_1 = arith.constant 0 : i32
    %c0_i32_2 = arith.constant 0 : i32
    return %arg0, %c0_i32, %c0_i32_0, %c0_i32_1 : i32, i32, i32, i32
  }
  func.func @transform_1(%arg0: i32) -> (i32, i32, i32) {
    %c0_i32 = arith.constant 0 : i32
    %c0_i32_0 = arith.constant 0 : i32
    %c0_i32_1 = arith.constant 0 : i32
    %c0_i32_2 = arith.constant 0 : i32
    return %c0_i32, %c0_i32_0, %c0_i32_1 : i32, i32, i32
  }
  func.func @transform_2(%arg0: i32) -> (i32, i32) {
    %c0_i32 = arith.constant 0 : i32
    %c0_i32_0 = arith.constant 0 : i32
    %c0_i32_1 = arith.constant 0 : i32
    return %c0_i32, %c0_i32_0 : i32, i32
  }
  func.func @transform_3(%arg0: i32) -> (i32, i32) {
    %c0_i32 = arith.constant 0 : i32
    %c0_i32_0 = arith.constant 0 : i32
    %c0_i32_1 = arith.constant 0 : i32
    return %c0_i32, %c0_i32_0 : i32, i32
  }
  func.func @transform_4(%arg0: i32) -> (i32, i32) {
    %c0_i32 = arith.constant 0 : i32
    %c0_i32_0 = arith.constant 0 : i32
    %c0_i32_1 = arith.constant 0 : i32
    return %c0_i32, %c0_i32_0 : i32, i32
  }
  func.func @transform_5(%arg0: i32) -> (i32, i32, i32) {
    %c0_i32 = arith.constant 0 : i32
    %c0_i32_0 = arith.constant 0 : i32
    %c0_i32_1 = arith.constant 0 : i32
    return %arg0, %c0_i32, %c0_i32_0 : i32, i32, i32
  }
}

</mosaic_0001>

<llo_original>
// kernel: deeplab_forward.4
$region0: #{deeplab_forward.4}
  #allocation0 [shape = 'u32[]', space=smem, size = 0x4, offset = 0x4, fixed_abs, tag = 'smem constant byte address 0x4 - core index']
  #allocation1 [shape = 'u32[144,128]{1,0:T(1,128)}', space=vmem, size = 0x12000, scoped, tag = 'internal scratch']
  %s0 = inlined_call_operand.vmem [shape: bf16[512,27], index: 0, kind: input, shape index: {}]
  %s1 = inlined_call_operand.hbm [shape: bf16[27,128], index: 1, kind: input, shape index: {}]
  %s2 = inlined_call_operand.hbm [shape: f32[1,128], index: 2, kind: input, shape index: {}]
  %s3 = inlined_call_operand.vmem [shape: bf16[512,128], index: 3, kind: output, shape index: {}]
  %s4 = sld [smem:[#allocation0]]
  $region53: #{deeplab_forward.4} parent=0
    _
  %s6 = ssub.s32 1, %s4
  %s7 = scalar_select 0, %s6, %s4
  $region1: #{deeplab_forward.4} parent=0
    #allocation2 [shape = 'u8[8192]{0}', space=vmem, size = 0x2000, scoped, tag = 'input window, operand 1, single buffered']
    #allocation3 [shape = 's32[2]{0}', space=sflag, size = 0x8, scoped, tag = 'scoped memory for deeplab_forward.4']
    #allocation4 [shape = 'u8[512]{0}', space=vmem, size = 0x400, scoped, tag = 'input window, operand 2, single buffered']
    #allocation5 [shape = 's32[1]{0}', space=sflag, size = 0x4, scoped, tag = 'scoped memory for deeplab_forward.4']
    %8 = vsyncpa [#allocation3], 0
    %9 = vsyncpa [#allocation5], 0
    loop: start=0, step=1, limit=6
    $region2: #{deeplab_forward.4} parent=1 // loop_pre_header
      _
    $region3: #{deeplab_forward.4} parent=1 // loop_header
      %s11 = sphi 0, %s15
      %p12 = scmp.ge.s32.totalorder %s11, 6
      %s21 = sphi 0, %s23
      %s24 = sphi 0, %s21
      %s25 = sphi 0, %s24
      %s41 = sphi 0, %s25
      %s45 = sphi 0, %s45
      %s47 = sphi 0, %s45
      %s48 = sphi 0, %s47
      %s62 = sphi 0, %s48
      %s66 = sphi 0, %s66
      %s68 = sphi 0, %s66
      %s69 = sphi 0, %s68
      %s83 = sphi 0, %s69
      %s89 = sphi 0, %s91
      %s92 = sphi 0, %s89
      %s93 = sphi 0, %s92
      %s109 = sphi 0, %s93
    $region4: #{deeplab_forward.4} parent=1 // loop_header_branch
      %14 = sbr.rel (%p12) target = $region8
    $region5: #{deeplab_forward.4} parent=1 // loop_body
      %s16 = ssub.s32 %s11, 1
      %s17 = ssub.s32 %s11, 2
      %s18 = sadd.s32 %s11, 1
      %s19 = ssub.s32 %s11, %s18
      %p20 = scmp.eq.s32.totalorder %s19, 0
      %s22 = sadd.s32 %s21, 1
      %s23 = scalar_select %p20, %s21, %s22
      %p26 = pneg %p20
      %p27 = scmp.eq.s32.totalorder %s11, 3
      %p28 = por %p26, %p27
      %p29 = scmp.ne.s32.totalorder %s21, %s24
      %p30 = scmp.eq.s32.totalorder %s11, 0
      %p31 = por %p29, %p30
      %p32 = scmp.ne.s32.totalorder %s21, %s24
      %p33 = scmp.eq.s32.totalorder %s16, 3
      %p34 = por %p32, %p33
      %p35 = scmp.ne.s32.totalorder %s24, %s25
      %p36 = scmp.eq.s32.totalorder %s16, 0
      %p37 = por %p35, %p36
      %p38 = scmp.ne.s32.totalorder %s24, %s25
      %p39 = scmp.eq.s32.totalorder %s17, 3
      %p40 = por %p38, %p39
      %p42 = scmp.ne.s32.totalorder %s25, %s41
      %p43 = scmp.eq.s32.totalorder %s17, 0
      %p44 = por %p42, %p43
      %s46 = sadd.s32 %s45, 1
      %p49 = scmp.eq.s32.totalorder %s11, 3
      %p50 = scmp.ne.s32.totalorder %s45, %s47
      %p51 = scmp.eq.s32.totalorder %s11, 0
      %p52 = por %p50, %p51
      %p53 = scmp.ne.s32.totalorder %s45, %s47
      %p54 = scmp.eq.s32.totalorder %s16, 3
      %p55 = por %p53, %p54
      %p56 = scmp.ne.s32.totalorder %s47, %s48
      %p57 = scmp.eq.s32.totalorder %s16, 0
      %p58 = por %p56, %p57
      %p59 = scmp.ne.s32.totalorder %s47, %s48
      %p60 = scmp.eq.s32.totalorder %s17, 3
      %p61 = por %p59, %p60
      %p63 = scmp.ne.s32.totalorder %s48, %s62
      %p64 = scmp.eq.s32.totalorder %s17, 0
      %p65 = por %p63, %p64
      %s67 = sadd.s32 %s66, 1
      %p70 = scmp.eq.s32.totalorder %s11, 3
      %p71 = scmp.ne.s32.totalorder %s66, %s68
      %p72 = scmp.eq.s32.totalorder %s11, 0
      %p73 = por %p71, %p72
      %p74 = scmp.ne.s32.totalorder %s66, %s68
      %p75 = scmp.eq.s32.totalorder %s16, 3
      %p76 = por %p74, %p75
      %p77 = scmp.ne.s32.totalorder %s68, %s69
      %p78 = scmp.eq.s32.totalorder %s16, 0
      %p79 = por %p77, %p78
      %p80 = scmp.ne.s32.totalorder %s68, %s69
      %p81 = scmp.eq.s32.totalorder %s17, 3
      %p82 = por %p80, %p81
      %p84 = scmp.ne.s32.totalorder %s69, %s83
      %p85 = scmp.eq.s32.totalorder %s17, 0
      %p86 = por %p84, %p85
      %s87 = ssub.s32 %s11, %s18
      %p88 = scmp.eq.s32.totalorder %s87, 0
      %s90 = sadd.s32 %s89, 1
      %s91 = scalar_select %p88, %s89, %s90
      %p94 = pneg %p88
      %p95 = scmp.eq.s32.totalorder %s11, 3
      %p96 = por %p94, %p95
      %p97 = scmp.ne.s32.totalorder %s89, %s92
      %p98 = scmp.eq.s32.totalorder %s11, 0
      %p99 = por %p97, %p98
      %p100 = scmp.ne.s32.totalorder %s89, %s92
      %p101 = scmp.eq.s32.totalorder %s16, 3
      %p102 = por %p100, %p101
      %p103 = scmp.ne.s32.totalorder %s92, %s93
      %p104 = scmp.eq.s32.totalorder %s16, 0
      %p105 = por %p103, %p104
      %p106 = scmp.ne.s32.totalorder %s92, %s93
      %p107 = scmp.eq.s32.totalorder %s17, 3
      %p108 = por %p106, %p107
      %p110 = scmp.ne.s32.totalorder %s93, %s109
      %p111 = scmp.eq.s32.totalorder %s17, 0
      %p112 = por %p110, %p111
      %p113 = scmp.le.s32.totalorder 1, %s11
      %p114 = scmp.lt.s32.totalorder %s11, 5
      %p115 = pnand %p113, %p114
      %p116 = pneg %p115
      // Predicated region
      $region9: #{deeplab_forward.4} parent=5 // pred_check
        _
      $region10: #{deeplab_forward.4} parent=5 // pred_check_branch
        %118 = sbr.rel (%p115) target = $region12
      $region11: #{deeplab_forward.4} parent=5 // pred_region
        %s119 = ssub.s32 %s11, 1
        // Predicated region
        $region13: #{deeplab_forward.4} parent=11 // pred_check
          %p120 = pneg %p58
        $region14: #{deeplab_forward.4} parent=11 // pred_check_branch
          %122 = sbr.rel (%p120) target = $region16
        $region15: #{deeplab_forward.4} parent=11 // pred_region
          %s124 = ssub.s32 256, 256
          %125 = vsyncadd [#allocation3], %s124
          %s126 = sshll.u32 [#allocation2], 4
          %s127 = int_to_ptr.vmem [resolvable:$true] %s126
          %132 = dma.hbm_to_vmem [thread:$0]  %s1, 256, %s127, [#allocation3], 64, 64, 4
        $region16: #{deeplab_forward.4} parent=11 // pred_fallthru
          _
        // Predicated region
        $region17: #{deeplab_forward.4} parent=11 // pred_check
          %p133 = pneg %p79
        $region18: #{deeplab_forward.4} parent=11 // pred_check_branch
          %135 = sbr.rel (%p133) target = $region20
        $region19: #{deeplab_forward.4} parent=11 // pred_region
          %s137 = ssub.s32 16, 16
          %138 = vsyncadd [#allocation5], %s137
          %s140 = sshll.u32 [#allocation4], 4
          %s141 = int_to_ptr.vmem [resolvable:$true] %s140
          %143 = dma.hbm_to_vmem [thread:$0]  %s2, 16, %s141, [#allocation5]
        $region20: #{deeplab_forward.4} parent=11 // pred_fallthru
          _
      $region12: #{deeplab_forward.4} parent=5 // pred_fallthru
        _
      %p144 = scmp.lt.s32.totalorder %s11, 4
      // Predicated region
      $region21: #{deeplab_forward.4} parent=5 // pred_check
        %p145 = pneg %p144
      $region22: #{deeplab_forward.4} parent=5 // pred_check_branch
        %147 = sbr.rel (%p145) target = $region24
      $region23: #{deeplab_forward.4} parent=5 // pred_region
        // Predicated region
        $region25: #{deeplab_forward.4} parent=23 // pred_check
          %p148 = pneg %p31
        $region26: #{deeplab_forward.4} parent=23 // pred_check_branch
          %150 = sbr.rel (%p148) target = $region28
        $region27: #{deeplab_forward.4} parent=23 // pred_region
          %s151 = smul.u32 16, %s11
          %p152 = scmp.lt.s32.totalorder %s151, 63
          %s153 = scalar_select %p152, %s151, 63
          %s154 = smul.addr %s153, 4
          %s155 = scalar_lea.vmem %s0, %s154
          %s156 = smul.u32 16, %s11
        $region28: #{deeplab_forward.4} parent=23 // pred_fallthru
          _
      $region24: #{deeplab_forward.4} parent=5 // pred_fallthru
        _
      %p157 = scmp.le.s32.totalorder 1, %s11
      %p158 = scmp.lt.s32.totalorder %s11, 5
      %p159 = pnand %p157, %p158
      %p160 = pneg %p159
      // Predicated region
      $region29: #{deeplab_forward.4} parent=5 // pred_check
        _
      $region30: #{deeplab_forward.4} parent=5 // pred_check_branch
        %162 = sbr.rel (%p159) target = $region32
      $region31: #{deeplab_forward.4} parent=5 // pred_region
        %s163 = ssub.s32 %s11, 1
        // Predicated region
        $region33: #{deeplab_forward.4} parent=31 // pred_check
          %p164 = pneg %p58
        $region34: #{deeplab_forward.4} parent=31 // pred_check_branch
          %166 = sbr.rel (%p164) target = $region36
        $region35: #{deeplab_forward.4} parent=31 // pred_region
          %167 = dma.done [#allocation3], 256
        $region36: #{deeplab_forward.4} parent=31 // pred_fallthru
          _
        // Predicated region
        $region37: #{deeplab_forward.4} parent=31 // pred_check
          %p168 = pneg %p79
        $region38: #{deeplab_forward.4} parent=31 // pred_check_branch
          %170 = sbr.rel (%p168) target = $region40
        $region39: #{deeplab_forward.4} parent=31 // pred_region
          %171 = dma.done [#allocation5], 16
        $region40: #{deeplab_forward.4} parent=31 // pred_fallthru
          _
        %s172 = smul.u32 16, %s16
        %p173 = scmp.lt.s32.totalorder %s172, 63
        %s174 = scalar_select %p173, %s172, 63
        %s175 = smul.addr %s174, 4
        %s176 = scalar_lea.vmem %s0, %s175
        %p177 = pneg %p37
        %p178 = pneg %p34
        %p179 = pneg %p58
        %p180 = pneg %p55
        %p181 = pneg %p79
        %p182 = pneg %p76
        %p183 = pneg %p105
        %p184 = pneg %p102
        %s185 = smul.u32 16, %s16
        %p186 = scmp.lt.s32.totalorder %s185, 63
        %s187 = scalar_select %p186, %s185, 63
        %s188 = smul.addr %s187, 4
        %s189 = scalar_lea.vmem %s3, %s188
        %s190 = smul.u32 16, %s16
        %p191 = scmp.lt.s32.totalorder %s190, 63
        %s192 = scalar_select %p191, %s190, 63
        %s193 = smul.addr %s192, 4
        %s194 = scalar_lea.vmem %s0, %s193
        %s195 = smul.u32 16, %s16
        %s196 = smul.u32 16, %s16
        %p197 = scmp.lt.s32.totalorder %s196, 63
        %s198 = scalar_select %p197, %s196, 63
        %s199 = smul.addr %s198, 4
        %s200 = scalar_lea.vmem %s3, %s199
        %s201 = smul.u32 16, %s16
        %v203 = vld [vmem:[%s194] sm:$0xf]
        %v204 = vld [vmem:[%s194 + $0x4] sm:$0xf]
        %v205 = vld [vmem:[%s194 + $0x8] sm:$0xf]
        %v206 = vld [vmem:[%s194 + $0xc] sm:$0xf]
        %v207 = vld [vmem:[%s194 + $0x10] sm:$0xf]
        %v208 = vld [vmem:[%s194 + $0x14] sm:$0xf]
        %v209 = vld [vmem:[%s194 + $0x18] sm:$0xf]
        %v210 = vld [vmem:[%s194 + $0x1c] sm:$0xf]
        %v211 = vld [vmem:[%s194 + $0x20] sm:$0xf]
        %v212 = vld [vmem:[%s194 + $0x24] sm:$0xf]
        %v213 = vld [vmem:[%s194 + $0x28] sm:$0xf]
        %v214 = vld [vmem:[%s194 + $0x2c] sm:$0xf]
        %v215 = vld [vmem:[%s194 + $0x30] sm:$0xf]
        %v216 = vld [vmem:[%s194 + $0x34] sm:$0xf]
        %v217 = vld [vmem:[%s194 + $0x38] sm:$0xf]
        %v218 = vld [vmem:[%s194 + $0x3c] sm:$0xf]
        %v219 = vld [vmem:[#allocation2] sm:$0xf]
        %v220 = vld [vmem:[#allocation2 + $0x4] sm:$0xf]
        %v221 = vld [vmem:[#allocation2 + $0x8] sm:$0xf]
        %v222 = vld [vmem:[#allocation2 + $0xc] sm:$0x3]
        %v223 = vld [vmem:[#allocation4] sm:$0x1]
        %v225 = vlaneseq
        %v226 = vshrl.u32 %v225, 7
        %v227 = vsub.s32 0, %v226
        %v228 = vrot.slane %v223, %v227
        %v246 = vunpack.c.l.b16 %v203
        %v247 = vunpack.c.l.b16 %v204
        %v248 = vunpack.c.l.b16 %v205
        %v249 = vunpack.c.l.b16 %v206
        %v250 = vunpack.c.l.b16 %v207
        %v251 = vunpack.c.l.b16 %v208
        %v252 = vunpack.c.l.b16 %v209
        %v253 = vunpack.c.l.b16 %v210
        %v254 = vunpack.c.l.b16 %v211
        %v255 = vunpack.c.l.b16 %v212
        %v256 = vunpack.c.l.b16 %v213
        %v257 = vunpack.c.l.b16 %v214
        %v258 = vunpack.c.l.b16 %v215
        %v259 = vunpack.c.l.b16 %v216
        %v260 = vunpack.c.l.b16 %v217
        %v261 = vunpack.c.l.b16 %v218
        %v262 = vpack.c.b16 %v247, %v246
        %v263 = vpack.c.b16 %v249, %v248
        %v264 = vpack.c.b16 %v251, %v250
        %v265 = vpack.c.b16 %v253, %v252
        %v266 = vpack.c.b16 %v255, %v254
        %v267 = vpack.c.b16 %v257, %v256
        %v268 = vpack.c.b16 %v259, %v258
        %v269 = vpack.c.b16 %v261, %v260
        %v274 = vunpack.c.l.b16 %v219
        %v275 = vunpack.c.l.b16 %v220
        %v276 = vunpack.c.l.b16 %v221
        %v277 = vunpack.c.l.b16 %v222
        %v278 = vpack.c.b16 %v275, %v274
        %v279 = vpack.c.b16 %v277, %v276
        %vm281 = vcmask 220160
        %v283 = vsel %vm281, %v262, 0
        %v286 = vsel %vm281, %v263, 0
        %v289 = vsel %vm281, %v264, 0
        %v292 = vsel %vm281, %v265, 0
        %v295 = vsel %vm281, %v266, 0
        %v298 = vsel %vm281, %v267, 0
        %v301 = vsel %vm281, %v268, 0
        %v304 = vsel %vm281, %v269, 0
        %vm306 = vcmask 1044480
        %vm307 = vcmask 1045504
        %v308 = vsel %vm306, 4294967295, 65535
        %v309 = vsel %vm307, %v308, 0
        %v311 = vand.u32 %v279, %v309
        %313 = vmatprep.subr.bf16.mxu0 0
        %314 = vmatpush1.bf16.msra.mxu0 %v278
        %315 = vmatprep.subr.bf16.mxu0 0
        %316 = vmatpush1.bf16.msra.mxu0 %v311
        %317 = vmatprep.subr.bf16.mxu0 0
        %318 = vmatpush1.bf16.msra.mxu0 0
        %319 = vmatprep.subr.bf16.mxu0 0
        %320 = vmatpush1.bf16.msra.mxu0 0
        %321 = vmatprep.subr.bf16.mxu0 0
        %322 = vmatpush1.bf16.msra.mxu0 0
        %323 = vmatprep.subr.bf16.mxu0 0
        %324 = vmatpush1.bf16.msra.mxu0 0
        %325 = vmatprep.subr.bf16.mxu0 0
        %326 = vmatpush1.bf16.msra.mxu0 0
        %327 = vmatprep.subr.bf16.mxu0 0
        %328 = vmatpush1.bf16.msra.mxu0 0
        %329 = vmatprep.subr.bf16.mxu0 0
        %330 = vmatpush1.bf16.msra.mxu0 0
        %331 = vmatprep.subr.bf16.mxu0 0
        %332 = vmatpush1.bf16.msra.mxu0 0
        %333 = vmatprep.subr.bf16.mxu0 0
        %334 = vmatpush1.bf16.msra.mxu0 0
        %335 = vmatprep.subr.bf16.mxu0 0
        %336 = vmatpush1.bf16.msra.mxu0 0
        %337 = vmatprep.subr.bf16.mxu0 0
        %338 = vmatpush1.bf16.msra.mxu0 0
        %339 = vmatprep.subr.bf16.mxu0 0
        %340 = vmatpush1.bf16.msra.mxu0 0
        %341 = vmatprep.subr.bf16.mxu0 0
        %342 = vmatpush1.bf16.msra.mxu0 0
        %343 = vmatprep.subr.bf16.mxu0 0
        %344 = vmatpush1.bf16.msra.mxu0 0
        %345 = vmatprep.mubr.bf16.mxu0 0
        %346 = vmatmul.mubr.bf16.gmra.mrb[0].mxu0 %v283
        %v347 = vpop.f32.mrb[0].mxu0
        %v348 = vadd.f32 %v228, %v347
        %v349 = vpop.f32.mrb[0].mxu0
        %v350 = vpop.f32.mrb[0].mxu0
        %v351 = vadd.f32 %v228, %v350
        %v352 = vpop.f32.mrb[0].mxu0
        %353 = vmatprep.mubr.bf16.mxu0 0
        %354 = vmatmul.mubr.bf16.gmra.mrb[0].mxu0 %v286
        %v355 = vpop.f32.mrb[0].mxu0
        %v356 = vadd.f32 %v228, %v355
        %v357 = vpop.f32.mrb[0].mxu0
        %v358 = vpop.f32.mrb[0].mxu0
        %v359 = vadd.f32 %v228, %v358
        %v360 = vpop.f32.mrb[0].mxu0
        %361 = vmatprep.mubr.bf16.mxu0 0
        %362 = vmatmul.mubr.bf16.gmra.mrb[0].mxu0 %v289
        %v363 = vpop.f32.mrb[0].mxu0
        %v364 = vadd.f32 %v228, %v363
        %v365 = vpop.f32.mrb[0].mxu0
        %v366 = vpop.f32.mrb[0].mxu0
        %v367 = vadd.f32 %v228, %v366
        %v368 = vpop.f32.mrb[0].mxu0
        %369 = vmatprep.mubr.bf16.mxu0 0
        %370 = vmatmul.mubr.bf16.gmra.mrb[0].mxu0 %v292
        %v371 = vpop.f32.mrb[0].mxu0
        %v372 = vadd.f32 %v228, %v371
        %v373 = vpop.f32.mrb[0].mxu0
        %v374 = vpop.f32.mrb[0].mxu0
        %v375 = vadd.f32 %v228, %v374
        %v376 = vpop.f32.mrb[0].mxu0
        %377 = vmatprep.mubr.bf16.mxu0 0
        %378 = vmatmul.mubr.bf16.gmra.mrb[0].mxu0 %v295
        %v379 = vpop.f32.mrb[0].mxu0
        %v380 = vadd.f32 %v228, %v379
        %v381 = vpop.f32.mrb[0].mxu0
        %v382 = vpop.f32.mrb[0].mxu0
        %v383 = vadd.f32 %v228, %v382
        %v384 = vpop.f32.mrb[0].mxu0
        %385 = vmatprep.mubr.bf16.mxu0 0
        %386 = vmatmul.mubr.bf16.gmra.mrb[0].mxu0 %v298
        %v387 = vpop.f32.mrb[0].mxu0
        %v388 = vadd.f32 %v228, %v387
        %v389 = vpop.f32.mrb[0].mxu0
        %v390 = vpop.f32.mrb[0].mxu0
        %v391 = vadd.f32 %v228, %v390
        %v392 = vpop.f32.mrb[0].mxu0
        %393 = vmatprep.mubr.bf16.mxu0 0
        %394 = vmatmul.mubr.bf16.gmra.mrb[0].mxu0 %v301
        %v395 = vpop.f32.mrb[0].mxu0
        %v396 = vadd.f32 %v228, %v395
        %v397 = vpop.f32.mrb[0].mxu0
        %v398 = vpop.f32.mrb[0].mxu0
        %v399 = vadd.f32 %v228, %v398
        %v400 = vpop.f32.mrb[0].mxu0
        %401 = vmatprep.mubr.bf16.mxu0 0
        %402 = vmatmul.mubr.bf16.gmra.mrb[0].mxu0 %v304
        %v403 = vpop.f32.mrb[0].mxu0
        %v404 = vadd.f32 %v228, %v403
        %v405 = vpop.f32.mrb[0].mxu0
        %v406 = vpop.f32.mrb[0].mxu0
        %v407 = vadd.f32 %v228, %v406
        %v408 = vpop.f32.mrb[0].mxu0
        %409 = vdwg.mxu0
        %v410 = vmax.f32 %v348, 0.0
        %v411 = vmax.f32 %v351, 0.0
        %v412 = vmax.f32 %v356, 0.0
        %v413 = vmax.f32 %v359, 0.0
        %v414 = vmax.f32 %v364, 0.0
        %v415 = vmax.f32 %v367, 0.0
        %v416 = vmax.f32 %v372, 0.0
        %v417 = vmax.f32 %v375, 0.0
        %v418 = vmax.f32 %v380, 0.0
        %v419 = vmax.f32 %v383, 0.0
        %v420 = vmax.f32 %v388, 0.0
        %v421 = vmax.f32 %v391, 0.0
        %v422 = vmax.f32 %v396, 0.0
        %v423 = vmax.f32 %v399, 0.0
        %v424 = vmax.f32 %v404, 0.0
        %v425 = vmax.f32 %v407, 0.0
        %v426 = vpack.c.bf16 %v411, %v410
        %v427 = vpack.c.bf16 %v413, %v412
        %v428 = vpack.c.bf16 %v415, %v414
        %v429 = vpack.c.bf16 %v417, %v416
        %v430 = vpack.c.bf16 %v419, %v418
        %v431 = vpack.c.bf16 %v421, %v420
        %v432 = vpack.c.bf16 %v423, %v422
        %v433 = vpack.c.bf16 %v425, %v424
        %v442 = vunpack.c.l.b16 %v426
        %v443 = vunpack.c.h.b16 %v426
        %v444 = vunpack.c.l.b16 %v427
        %v445 = vunpack.c.h.b16 %v427
        %v446 = vunpack.c.l.b16 %v428
        %v447 = vunpack.c.h.b16 %v428
        %v448 = vunpack.c.l.b16 %v429
        %v449 = vunpack.c.h.b16 %v429
        %v450 = vunpack.c.l.b16 %v430
        %v451 = vunpack.c.h.b16 %v430
        %v452 = vunpack.c.l.b16 %v431
        %v453 = vunpack.c.h.b16 %v431
        %v454 = vunpack.c.l.b16 %v432
        %v455 = vunpack.c.h.b16 %v432
        %v456 = vunpack.c.l.b16 %v433
        %v457 = vunpack.c.h.b16 %v433
        %v458 = vpack.c.b16 %v442, %v442
        %v459 = vpack.c.b16 %v443, %v443
        %v460 = vpack.c.b16 %v444, %v444
        %v461 = vpack.c.b16 %v445, %v445
        %v462 = vpack.c.b16 %v446, %v446
        %v463 = vpack.c.b16 %v447, %v447
        %v464 = vpack.c.b16 %v448, %v448
        %v465 = vpack.c.b16 %v449, %v449
        %v466 = vpack.c.b16 %v450, %v450
        %v467 = vpack.c.b16 %v451, %v451
        %v468 = vpack.c.b16 %v452, %v452
        %v469 = vpack.c.b16 %v453, %v453
        %v470 = vpack.c.b16 %v454, %v454
        %v471 = vpack.c.b16 %v455, %v455
        %v472 = vpack.c.b16 %v456, %v456
        %v473 = vpack.c.b16 %v457, %v457
        %490 = vst [vmem:[%s200] sm:$0xf] %v458
        %491 = vst [vmem:[%s200 + $0x4] sm:$0xf] %v459
        %492 = vst [vmem:[%s200 + $0x8] sm:$0xf] %v460
        %493 = vst [vmem:[%s200 + $0xc] sm:$0xf] %v461
        %494 = vst [vmem:[%s200 + $0x10] sm:$0xf] %v462
        %495 = vst [vmem:[%s200 + $0x14] sm:$0xf] %v463
        %496 = vst [vmem:[%s200 + $0x18] sm:$0xf] %v464
        %497 = vst [vmem:[%s200 + $0x1c] sm:$0xf] %v465
        %498 = vst [vmem:[%s200 + $0x20] sm:$0xf] %v466
        %499 = vst [vmem:[%s200 + $0x24] sm:$0xf] %v467
        %500 = vst [vmem:[%s200 + $0x28] sm:$0xf] %v468
        %501 = vst [vmem:[%s200 + $0x2c] sm:$0xf] %v469
        %502 = vst [vmem:[%s200 + $0x30] sm:$0xf] %v470
        %503 = vst [vmem:[%s200 + $0x34] sm:$0xf] %v471
        %504 = vst [vmem:[%s200 + $0x38] sm:$0xf] %v472
        %505 = vst [vmem:[%s200 + $0x3c] sm:$0xf] %v473
        %s506 = smul.u32 16, %s16
        %p507 = scmp.lt.s32.totalorder %s506, 63
        %s508 = scalar_select %p507, %s506, 63
        %s509 = smul.addr %s508, 4
        %s510 = scalar_lea.vmem %s3, %s509
        // Predicated region
        $region41: #{deeplab_forward.4} parent=31 // pred_check
          %p511 = pneg %p102
        $region42: #{deeplab_forward.4} parent=31 // pred_check_branch
          %513 = sbr.rel (%p511) target = $region44
        $region43: #{deeplab_forward.4} parent=31 // pred_region
          %s514 = smul.u32 16, %s16
        $region44: #{deeplab_forward.4} parent=31 // pred_fallthru
          _
      $region32: #{deeplab_forward.4} parent=5 // pred_fallthru
        _
      %p515 = scmp.le.s32.totalorder 2, %s11
      // Predicated region
      $region45: #{deeplab_forward.4} parent=5 // pred_check
        %p516 = pneg %p515
      $region46: #{deeplab_forward.4} parent=5 // pred_check_branch
        %518 = sbr.rel (%p516) target = $region48
      $region47: #{deeplab_forward.4} parent=5 // pred_region
        %s519 = ssub.s32 %s11, 2
        // Predicated region
        $region49: #{deeplab_forward.4} parent=47 // pred_check
          %p520 = pneg %p108
        $region50: #{deeplab_forward.4} parent=47 // pred_check_branch
          %522 = sbr.rel (%p520) target = $region52
        $region51: #{deeplab_forward.4} parent=47 // pred_region
          %s523 = smul.u32 16, %s17
          %p524 = scmp.lt.s32.totalorder %s523, 63
          %s525 = scalar_select %p524, %s523, 63
          %s526 = smul.addr %s525, 4
          %s527 = scalar_lea.vmem %s3, %s526
        $region52: #{deeplab_forward.4} parent=47 // pred_fallthru
          _
      $region48: #{deeplab_forward.4} parent=5 // pred_fallthru
        _
    $region6: #{deeplab_forward.4} parent=1 // loop_footer
      %s15 = sadd.s32 1, %s11
    $region7: #{deeplab_forward.4} parent=1 // loop_footer_branch
      %10 = sbr.rel target = $region3
    $region8: #{deeplab_forward.4} parent=1 // loop_exit
      _
    %528 = vsyncpa [#allocation3], 1
    %s529 = scalar_lea.sflag [#allocation3], 1
    %530 = vsyncpa %s529, 1
    %531 = vsyncpa [#allocation5], 1

// kernel: deeplab_forward.5
$region0: #{deeplab_forward.5}
  #allocation0 [shape = 'u32[]', space=smem, size = 0x4, offset = 0x4, fixed_abs, tag = 'smem constant byte address 0x4 - core index']
  #allocation1 [shape = 'u32[144,128]{1,0:T(1,128)}', space=vmem, size = 0x12000, scoped, tag = 'internal scratch']
  %s0 = inlined_call_operand.vmem [shape: bf16[128,1152], index: 0, kind: input, shape index: {}]
  %s1 = inlined_call_operand.vmem [shape: bf16[1152,128], index: 1, kind: input, shape index: {}]
  %s2 = inlined_call_operand.vmem [shape: f32[1,128], index: 2, kind: input, shape index: {}]
  %s3 = inlined_call_operand.vmem [shape: f32[128,128], index: 3, kind: output, shape index: {}]
  %s4 = sld [smem:[#allocation0]]
  $region22: #{deeplab_forward.5} parent=0
    _
  %s6 = ssub.s32 1, %s4
  %s7 = scalar_select 0, %s6, %s4
  // Predicated region
  $region2: #{deeplab_forward.5} parent=0 // pred_check
    _
  $region3: #{deeplab_forward.5} parent=0 // pred_check_branch
    %9 = sbr.rel (0) target = $region5
  $region4: #{deeplab_forward.5} parent=0 // pred_region
    _
  $region5: #{deeplab_forward.5} parent=0 // pred_fallthru
    _
  // Predicated region
  $region6: #{deeplab_forward.5} parent=0 // pred_check
    _
  $region7: #{deeplab_forward.5} parent=0 // pred_check_branch
    %11 = sbr.rel (0) target = $region9
  $region8: #{deeplab_forward.5} parent=0 // pred_region
    _
  $region9: #{deeplab_forward.5} parent=0 // pred_fallthru
    _
  // Predicated region
  $region10: #{deeplab_forward.5} parent=0 // pred_check
    _
  $region11: #{deeplab_forward.5} parent=0 // pred_check_branch
    %13 = sbr.rel (0) target = $region13
  $region12: #{deeplab_forward.5} parent=0 // pred_region
    _
  $region13: #{deeplab_forward.5} parent=0 // pred_fallthru
    _
  %v15 = vld [vmem:[%s0] sm:$0xff]
  %v16 = vld [vmem:[%s0 + $0x8] sm:$0xff]
  %v17 = vld [vmem:[%s0 + $0x10] sm:$0xff]
  %v18 = vld [vmem:[%s0 + $0x18] sm:$0xff]
  %v19 = vld [vmem:[%s0 + $0x20] sm:$0xf]
  %v20 = vld [vmem:[%s0 + $0x24] sm:$0xff]
  %v21 = vld [vmem:[%s0 + $0x2c] sm:$0xff]
  %v22 = vld [vmem:[%s0 + $0x34] sm:$0xff]
  %v23 = vld [vmem:[%s0 + $0x3c] sm:$0xff]
  %v24 = vld [vmem:[%s0 + $0x44] sm:$0xf]
  %v25 = vld [vmem:[%s0 + $0x48] sm:$0xff]
  %v26 = vld [vmem:[%s0 + $0x50] sm:$0xff]
  %v27 = vld [vmem:[%s0 + $0x58] sm:$0xff]
  %v28 = vld [vmem:[%s0 + $0x60] sm:$0xff]
  %v29 = vld [vmem:[%s0 + $0x68] sm:$0xf]
  %v30 = vld [vmem:[%s0 + $0x6c] sm:$0xff]
  %v31 = vld [vmem:[%s0 + $0x74] sm:$0xff]
  %v32 = vld [vmem:[%s0 + $0x7c] sm:$0xff]
  %v33 = vld [vmem:[%s0 + $0x84] sm:$0xff]
  %v34 = vld [vmem:[%s0 + $0x8c] sm:$0xf]
  %v35 = vld [vmem:[%s0 + $0x90] sm:$0xff]
  %v36 = vld [vmem:[%s0 + $0x98] sm:$0xff]
  %v37 = vld [vmem:[%s0 + $0xa0] sm:$0xff]
  %v38 = vld [vmem:[%s0 + $0xa8] sm:$0xff]
  %v39 = vld [vmem:[%s0 + $0xb0] sm:$0xf]
  %v40 = vld [vmem:[%s0 + $0xb4] sm:$0xff]
  %v41 = vld [vmem:[%s0 + $0xbc] sm:$0xff]
  %v42 = vld [vmem:[%s0 + $0xc4] sm:$0xff]
  %v43 = vld [vmem:[%s0 + $0xcc] sm:$0xff]
  %v44 = vld [vmem:[%s0 + $0xd4] sm:$0xf]
  %v45 = vld [vmem:[%s0 + $0xd8] sm:$0xff]
  %v46 = vld [vmem:[%s0 + $0xe0] sm:$0xff]
  %v47 = vld [vmem:[%s0 + $0xe8] sm:$0xff]
  %v48 = vld [vmem:[%s0 + $0xf0] sm:$0xff]
  %v49 = vld [vmem:[%s0 + $0xf8] sm:$0xf]
  %v50 = vld [vmem:[%s0 + $0xfc] sm:$0xff]
  %v51 = vld [vmem:[%s0 + $0x104] sm:$0xff]
  %v52 = vld [vmem:[%s0 + $0x10c] sm:$0xff]
  %v53 = vld [vmem:[%s0 + $0x114] sm:$0xff]
  %v54 = vld [vmem:[%s0 + $0x11c] sm:$0xf]
  %v55 = vld [vmem:[%s0 + $0x120] sm:$0xff]
  %v56 = vld [vmem:[%s0 + $0x128] sm:$0xff]
  %v57 = vld [vmem:[%s0 + $0x130] sm:$0xff]
  %v58 = vld [vmem:[%s0 + $0x138] sm:$0xff]
  %v59 = vld [vmem:[%s0 + $0x140] sm:$0xf]
  %v60 = vld [vmem:[%s0 + $0x144] sm:$0xff]
  %v61 = vld [vmem:[%s0 + $0x14c] sm:$0xff]
  %v62 = vld [vmem:[%s0 + $0x154] sm:$0xff]
  %v63 = vld [vmem:[%s0 + $0x15c] sm:$0xff]
  %v64 = vld [vmem:[%s0 + $0x164] sm:$0xf]
  %v65 = vld [vmem:[%s0 + $0x168] sm:$0xff]
  %v66 = vld [vmem:[%s0 + $0x170] sm:$0xff]
  %v67 = vld [vmem:[%s0 + $0x178] sm:$0xff]
  %v68 = vld [vmem:[%s0 + $0x180] sm:$0xff]
  %v69 = vld [vmem:[%s0 + $0x188] sm:$0xf]
  %v70 = vld [vmem:[%s0 + $0x18c] sm:$0xff]
  %v71 = vld [vmem:[%s0 + $0x194] sm:$0xff]
  %v72 = vld [vmem:[%s0 + $0x19c] sm:$0xff]
  %v73 = vld [vmem:[%s0 + $0x1a4] sm:$0xff]
  %v74 = vld [vmem:[%s0 + $0x1ac] sm:$0xf]
  %v75 = vld [vmem:[%s0 + $0x1b0] sm:$0xff]
  %v76 = vld [vmem:[%s0 + $0x1b8] sm:$0xff]
  %v77 = vld [vmem:[%s0 + $0x1c0] sm:$0xff]
  %v78 = vld [vmem:[%s0 + $0x1c8] sm:$0xff]
  %v79 = vld [vmem:[%s0 + $0x1d0] sm:$0xf]
  %v80 = vld [vmem:[%s0 + $0x1d4] sm:$0xff]
  %v81 = vld [vmem:[%s0 + $0x1dc] sm:$0xff]
  %v82 = vld [vmem:[%s0 + $0x1e4] sm:$0xff]
  %v83 = vld [vmem:[%s0 + $0x1ec] sm:$0xff]
  %v84 = vld [vmem:[%s0 + $0x1f4] sm:$0xf]
  %v85 = vld [vmem:[%s0 + $0x1f8] sm:$0xff]
  %v86 = vld [vmem:[%s0 + $0x200] sm:$0xff]
  %v87 = vld [vmem:[%s0 + $0x208] sm:$0xff]
  %v88 = vld [vmem:[%s0 + $0x210] sm:$0xff]
  %v89 = vld [vmem:[%s0 + $0x218] sm:$0xf]
  %v90 = vld [vmem:[%s0 + $0x21c] sm:$0xff]
  %v91 = vld [vmem:[%s0 + $0x224] sm:$0xff]
  %v92 = vld [vmem:[%s0 + $0x22c] sm:$0xff]
  %v93 = vld [vmem:[%s0 + $0x234] sm:$0xff]
  %v94 = vld [vmem:[%s0 + $0x23c] sm:$0xf]
  %v95 = vld [vmem:[%s1] sm:$0xf]
  %v96 = vld [vmem:[%s1 + $0x4] sm:$0xf]
  %v97 = vld [vmem:[%s1 + $0x8] sm:$0xf]
  %v98 = vld [vmem:[%s1 + $0xc] sm:$0xf]
  %v99 = vld [vmem:[%s1 + $0x10] sm:$0xf]
  %v100 = vld [vmem:[%s1 + $0x14] sm:$0xf]
  %v101 = vld [vmem:[%s1 + $0x18] sm:$0xf]
  %v102 = vld [vmem:[%s1 + $0x1c] sm:$0xf]
  %v103 = vld [vmem:[%s1 + $0x20] sm:$0xf]
  %v104 = vld [vmem:[%s1 + $0x24] sm:$0xf]
  %v105 = vld [vmem:[%s1 + $0x28] sm:$0xf]
  %v106 = vld [vmem:[%s1 + $0x2c] sm:$0xf]
  %v107 = vld [vmem:[%s1 + $0x30] sm:$0xf]
  %v108 = vld [vmem:[%s1 + $0x34] sm:$0xf]
  %v109 = vld [vmem:[%s1 + $0x38] sm:$0xf]
  %v110 = vld [vmem:[%s1 + $0x3c] sm:$0xf]
  %v111 = vld [vmem:[%s1 + $0x40] sm:$0xf]
  %v112 = vld [vmem:[%s1 + $0x44] sm:$0xf]
  %v113 = vld [vmem:[%s1 + $0x48] sm:$0xf]
  %v114 = vld [vmem:[%s1 + $0x4c] sm:$0xf]
  %v115 = vld [vmem:[%s1 + $0x50] sm:$0xf]
  %v116 = vld [vmem:[%s1 + $0x54] sm:$0xf]
  %v117 = vld [vmem:[%s1 + $0x58] sm:$0xf]
  %v118 = vld [vmem:[%s1 + $0x5c] sm:$0xf]
  %v119 = vld [vmem:[%s1 + $0x60] sm:$0xf]
  %v120 = vld [vmem:[%s1 + $0x64] sm:$0xf]
  %v121 = vld [vmem:[%s1 + $0x68] sm:$0xf]
  %v122 = vld [vmem:[%s1 + $0x6c] sm:$0xf]
  %v123 = vld [vmem:[%s1 + $0x70] sm:$0xf]
  %v124 = vld [vmem:[%s1 + $0x74] sm:$0xf]
  %v125 = vld [vmem:[%s1 + $0x78] sm:$0xf]
  %v126 = vld [vmem:[%s1 + $0x7c] sm:$0xf]
  %v127 = vld [vmem:[%s1 + $0x80] sm:$0xf]
  %v128 = vld [vmem:[%s1 + $0x84] sm:$0xf]
  %v129 = vld [vmem:[%s1 + $0x88] sm:$0xf]
  %v130 = vld [vmem:[%s1 + $0x8c] sm:$0xf]
  %v131 = vld [vmem:[%s1 + $0x90] sm:$0xf]
  %v132 = vld [vmem:[%s1 + $0x94] sm:$0xf]
  %v133 = vld [vmem:[%s1 + $0x98] sm:$0xf]
  %v134 = vld [vmem:[%s1 + $0x9c] sm:$0xf]
  %v135 = vld [vmem:[%s1 + $0xa0] sm:$0xf]
  %v136 = vld [vmem:[%s1 + $0xa4] sm:$0xf]
  %v137 = vld [vmem:[%s1 + $0xa8] sm:$0xf]
  %v138 = vld [vmem:[%s1 + $0xac] sm:$0xf]
  %v139 = vld [vmem:[%s1 + $0xb0] sm:$0xf]
  %v140 = vld [vmem:[%s1 + $0xb4] sm:$0xf]
  %v141 = vld [vmem:[%s1 + $0xb8] sm:$0xf]
  %v142 = vld [vmem:[%s1 + $0xbc] sm:$0xf]
  %v143 = vld [vmem:[%s1 + $0xc0] sm:$0xf]
  %v144 = vld [vmem:[%s1 + $0xc4] sm:$0xf]
  %v145 = vld [vmem:[%s1 + $0xc8] sm:$0xf]
  %v146 = vld [vmem:[%s1 + $0xcc] sm:$0xf]
  %v147 = vld [vmem:[%s1 + $0xd0] sm:$0xf]
  %v148 = vld [vmem:[%s1 + $0xd4] sm:$0xf]
  %v149 = vld [vmem:[%s1 + $0xd8] sm:$0xf]
  %v150 = vld [vmem:[%s1 + $0xdc] sm:$0xf]
  %v151 = vld [vmem:[%s1 + $0xe0] sm:$0xf]
  %v152 = vld [vmem:[%s1 + $0xe4] sm:$0xf]
  %v153 = vld [vmem:[%s1 + $0xe8] sm:$0xf]
  %v154 = vld [vmem:[%s1 + $0xec] sm:$0xf]
  %v155 = vld [vmem:[%s1 + $0xf0] sm:$0xf]
  %v156 = vld [vmem:[%s1 + $0xf4] sm:$0xf]
  %v157 = vld [vmem:[%s1 + $0xf8] sm:$0xf]
  %v158 = vld [vmem:[%s1 + $0xfc] sm:$0xf]
  %v159 = vld [vmem:[%s1 + $0x100] sm:$0xf]
  %v160 = vld [vmem:[%s1 + $0x104] sm:$0xf]
  %v161 = vld [vmem:[%s1 + $0x108] sm:$0xf]
  %v162 = vld [vmem:[%s1 + $0x10c] sm:$0xf]
  %v163 = vld [vmem:[%s1 + $0x110] sm:$0xf]
  %v164 = vld [vmem:[%s1 + $0x114] sm:$0xf]
  %v165 = vld [vmem:[%s1 + $0x118] sm:$0xf]
  %v166 = vld [vmem:[%s1 + $0x11c] sm:$0xf]
  %v167 = vld [vmem:[%s1 + $0x120] sm:$0xf]
  %v168 = vld [vmem:[%s1 + $0x124] sm:$0xf]
  %v169 = vld [vmem:[%s1 + $0x128] sm:$0xf]
  %v170 = vld [vmem:[%s1 + $0x12c] sm:$0xf]
  %v171 = vld [vmem:[%s1 + $0x130] sm:$0xf]
  %v172 = vld [vmem:[%s1 + $0x134] sm:$0xf]
  %v173 = vld [vmem:[%s1 + $0x138] sm:$0xf]
  %v174 = vld [vmem:[%s1 + $0x13c] sm:$0xf]
  %v175 = vld [vmem:[%s1 + $0x140] sm:$0xf]
  %v176 = vld [vmem:[%s1 + $0x144] sm:$0xf]
  %v177 = vld [vmem:[%s1 + $0x148] sm:$0xf]
  %v178 = vld [vmem:[%s1 + $0x14c] sm:$0xf]
  %v179 = vld [vmem:[%s1 + $0x150] sm:$0xf]
  %v180 = vld [vmem:[%s1 + $0x154] sm:$0xf]
  %v181 = vld [vmem:[%s1 + $0x158] sm:$0xf]
  %v182 = vld [vmem:[%s1 + $0x15c] sm:$0xf]
  %v183 = vld [vmem:[%s1 + $0x160] sm:$0xf]
  %v184 = vld [vmem:[%s1 + $0x164] sm:$0xf]
  %v185 = vld [vmem:[%s1 + $0x168] sm:$0xf]
  %v186 = vld [vmem:[%s1 + $0x16c] sm:$0xf]
  %v187 = vld [vmem:[%s1 + $0x170] sm:$0xf]
  %v188 = vld [vmem:[%s1 + $0x174] sm:$0xf]
  %v189 = vld [vmem:[%s1 + $0x178] sm:$0xf]
  %v190 = vld [vmem:[%s1 + $0x17c] sm:$0xf]
  %v191 = vld [vmem:[%s1 + $0x180] sm:$0xf]
  %v192 = vld [vmem:[%s1 + $0x184] sm:$0xf]
  %v193 = vld [vmem:[%s1 + $0x188] sm:$0xf]
  %v194 = vld [vmem:[%s1 + $0x18c] sm:$0xf]
  %v195 = vld [vmem:[%s1 + $0x190] sm:$0xf]
  %v196 = vld [vmem:[%s1 + $0x194] sm:$0xf]
  %v197 = vld [vmem:[%s1 + $0x198] sm:$0xf]
  %v198 = vld [vmem:[%s1 + $0x19c] sm:$0xf]
  %v199 = vld [vmem:[%s1 + $0x1a0] sm:$0xf]
  %v200 = vld [vmem:[%s1 + $0x1a4] sm:$0xf]
  %v201 = vld [vmem:[%s1 + $0x1a8] sm:$0xf]
  %v202 = vld [vmem:[%s1 + $0x1ac] sm:$0xf]
  %v203 = vld [vmem:[%s1 + $0x1b0] sm:$0xf]
  %v204 = vld [vmem:[%s1 + $0x1b4] sm:$0xf]
  %v205 = vld [vmem:[%s1 + $0x1b8] sm:$0xf]
  %v206 = vld [vmem:[%s1 + $0x1bc] sm:$0xf]
  %v207 = vld [vmem:[%s1 + $0x1c0] sm:$0xf]
  %v208 = vld [vmem:[%s1 + $0x1c4] sm:$0xf]
  %v209 = vld [vmem:[%s1 + $0x1c8] sm:$0xf]
  %v210 = vld [vmem:[%s1 + $0x1cc] sm:$0xf]
  %v211 = vld [vmem:[%s1 + $0x1d0] sm:$0xf]
  %v212 = vld [vmem:[%s1 + $0x1d4] sm:$0xf]
  %v213 = vld [vmem:[%s1 + $0x1d8] sm:$0xf]
  %v214 = vld [vmem:[%s1 + $0x1dc] sm:$0xf]
  %v215 = vld [vmem:[%s1 + $0x1e0] sm:$0xf]
  %v216 = vld [vmem:[%s1 + $0x1e4] sm:$0xf]
  %v217 = vld [vmem:[%s1 + $0x1e8] sm:$0xf]
  %v218 = vld [vmem:[%s1 + $0x1ec] sm:$0xf]
  %v219 = vld [vmem:[%s1 + $0x1f0] sm:$0xf]
  %v220 = vld [vmem:[%s1 + $0x1f4] sm:$0xf]
  %v221 = vld [vmem:[%s1 + $0x1f8] sm:$0xf]
  %v222 = vld [vmem:[%s1 + $0x1fc] sm:$0xf]
  %v223 = vld [vmem:[%s1 + $0x200] sm:$0xf]
  %v224 = vld [vmem:[%s1 + $0x204] sm:$0xf]
  %v225 = vld [vmem:[%s1 + $0x208] sm:$0xf]
  %v226 = vld [vmem:[%s1 + $0x20c] sm:$0xf]
  %v227 = vld [vmem:[%s1 + $0x210] sm:$0xf]
  %v228 = vld [vmem:[%s1 + $0x214] sm:$0xf]
  %v229 = vld [vmem:[%s1 + $0x218] sm:$0xf]
  %v230 = vld [vmem:[%s1 + $0x21c] sm:$0xf]
  %v231 = vld [vmem:[%s1 + $0x220] sm:$0xf]
  %v232 = vld [vmem:[%s1 + $0x224] sm:$0xf]
  %v233 = vld [vmem:[%s1 + $0x228] sm:$0xf]
  %v234 = vld [vmem:[%s1 + $0x22c] sm:$0xf]
  %v235 = vld [vmem:[%s1 + $0x230] sm:$0xf]
  %v236 = vld [vmem:[%s1 + $0x234] sm:$0xf]
  %v237 = vld [vmem:[%s1 + $0x238] sm:$0xf]
  %v238 = vld [vmem:[%s1 + $0x23c] sm:$0xf]
  %v239 = vld [vmem:[%s2] sm:$0x1]
  %v241 = vlaneseq
  %v242 = vshrl.u32 %v241, 7
  %v243 = vsub.s32 0, %v242
  %v244 = vrot.slane %v239, %v243
  %v326 = vunpack.c.l.b16 %v15
  %v327 = vunpack.c.h.b16 %v15
  %v328 = vunpack.c.l.b16 %v16
  %v329 = vunpack.c.h.b16 %v16
  %v330 = vunpack.c.l.b16 %v17
  %v331 = vunpack.c.h.b16 %v17
  %v332 = vunpack.c.l.b16 %v18
  %v333 = vunpack.c.h.b16 %v18
  %v334 = vunpack.c.l.b16 %v19
  %v335 = vunpack.c.l.b16 %v20
  %v336 = vunpack.c.h.b16 %v20
  %v337 = vunpack.c.l.b16 %v21
  %v338 = vunpack.c.h.b16 %v21
  %v339 = vunpack.c.l.b16 %v22
  %v340 = vunpack.c.h.b16 %v22
  %v341 = vunpack.c.l.b16 %v23
  %v342 = vunpack.c.h.b16 %v23
  %v343 = vunpack.c.l.b16 %v24
  %v344 = vunpack.c.l.b16 %v25
  %v345 = vunpack.c.h.b16 %v25
  %v346 = vunpack.c.l.b16 %v26
  %v347 = vunpack.c.h.b16 %v26
  %v348 = vunpack.c.l.b16 %v27
  %v349 = vunpack.c.h.b16 %v27
  %v350 = vunpack.c.l.b16 %v28
  %v351 = vunpack.c.h.b16 %v28
  %v352 = vunpack.c.l.b16 %v29
  %v353 = vunpack.c.l.b16 %v30
  %v354 = vunpack.c.h.b16 %v30
  %v355 = vunpack.c.l.b16 %v31
  %v356 = vunpack.c.h.b16 %v31
  %v357 = vunpack.c.l.b16 %v32
  %v358 = vunpack.c.h.b16 %v32
  %v359 = vunpack.c.l.b16 %v33
  %v360 = vunpack.c.h.b16 %v33
  %v361 = vunpack.c.l.b16 %v34
  %v362 = vunpack.c.l.b16 %v35
  %v363 = vunpack.c.h.b16 %v35
  %v364 = vunpack.c.l.b16 %v36
  %v365 = vunpack.c.h.b16 %v36
  %v366 = vunpack.c.l.b16 %v37
  %v367 = vunpack.c.h.b16 %v37
  %v368 = vunpack.c.l.b16 %v38
  %v369 = vunpack.c.h.b16 %v38
  %v370 = vunpack.c.l.b16 %v39
  %v371 = vunpack.c.l.b16 %v40
  %v372 = vunpack.c.h.b16 %v40
  %v373 = vunpack.c.l.b16 %v41
  %v374 = vunpack.c.h.b16 %v41
  %v375 = vunpack.c.l.b16 %v42
  %v376 = vunpack.c.h.b16 %v42
  %v377 = vunpack.c.l.b16 %v43
  %v378 = vunpack.c.h.b16 %v43
  %v379 = vunpack.c.l.b16 %v44
  %v380 = vunpack.c.l.b16 %v45
  %v381 = vunpack.c.h.b16 %v45
  %v382 = vunpack.c.l.b16 %v46
  %v383 = vunpack.c.h.b16 %v46
  %v384 = vunpack.c.l.b16 %v47
  %v385 = vunpack.c.h.b16 %v47
  %v386 = vunpack.c.l.b16 %v48
  %v387 = vunpack.c.h.b16 %v48
  %v388 = vunpack.c.l.b16 %v49
  %v389 = vunpack.c.l.b16 %v50
  %v390 = vunpack.c.h.b16 %v50
  %v391 = vunpack.c.l.b16 %v51
  %v392 = vunpack.c.h.b16 %v51
  %v393 = vunpack.c.l.b16 %v52
  %v394 = vunpack.c.h.b16 %v52
  %v395 = vunpack.c.l.b16 %v53
  %v396 = vunpack.c.h.b16 %v53
  %v397 = vunpack.c.l.b16 %v54
  %v398 = vunpack.c.l.b16 %v55
  %v399 = vunpack.c.h.b16 %v55
  %v400 = vunpack.c.l.b16 %v56
  %v401 = vunpack.c.h.b16 %v56
  %v402 = vunpack.c.l.b16 %v57
  %v403 = vunpack.c.h.b16 %v57
  %v404 = vunpack.c.l.b16 %v58
  %v405 = vunpack.c.h.b16 %v58
  %v406 = vunpack.c.l.b16 %v59
  %v407 = vunpack.c.l.b16 %v60
  %v408 = vunpack.c.h.b16 %v60
  %v409 = vunpack.c.l.b16 %v61
  %v410 = vunpack.c.h.b16 %v61
  %v411 = vunpack.c.l.b16 %v62
  %v412 = vunpack.c.h.b16 %v62
  %v413 = vunpack.c.l.b16 %v63
  %v414 = vunpack.c.h.b16 %v63
  %v415 = vunpack.c.l.b16 %v64
  %v416 = vunpack.c.l.b16 %v65
  %v417 = vunpack.c.h.b16 %v65
  %v418 = vunpack.c.l.b16 %v66
  %v419 = vunpack.c.h.b16 %v66
  %v420 = vunpack.c.l.b16 %v67
  %v421 = vunpack.c.h.b16 %v67
  %v422 = vunpack.c.l.b16 %v68
  %v423 = vunpack.c.h.b16 %v68
  %v424 = vunpack.c.l.b16 %v69
  %v425 = vunpack.c.l.b16 %v70
  %v426 = vunpack.c.h.b16 %v70
  %v427 = vunpack.c.l.b16 %v71
  %v428 = vunpack.c.h.b16 %v71
  %v429 = vunpack.c.l.b16 %v72
  %v430 = vunpack.c.h.b16 %v72
  %v431 = vunpack.c.l.b16 %v73
  %v432 = vunpack.c.h.b16 %v73
  %v433 = vunpack.c.l.b16 %v74
  %v434 = vunpack.c.l.b16 %v75
  %v435 = vunpack.c.h.b16 %v75
  %v436 = vunpack.c.l.b16 %v76
  %v437 = vunpack.c.h.b16 %v76
  %v438 = vunpack.c.l.b16 %v77
  %v439 = vunpack.c.h.b16 %v77
  %v440 = vunpack.c.l.b16 %v78
  %v441 = vunpack.c.h.b16 %v78
  %v442 = vunpack.c.l.b16 %v79
  %v443 = vunpack.c.l.b16 %v80
  %v444 = vunpack.c.h.b16 %v80
  %v445 = vunpack.c.l.b16 %v81
  %v446 = vunpack.c.h.b16 %v81
  %v447 = vunpack.c.l.b16 %v82
  %v448 = vunpack.c.h.b16 %v82
  %v449 = vunpack.c.l.b16 %v83
  %v450 = vunpack.c.h.b16 %v83
  %v451 = vunpack.c.l.b16 %v84
  %v452 = vunpack.c.l.b16 %v85
  %v453 = vunpack.c.h.b16 %v85
  %v454 = vunpack.c.l.b16 %v86
  %v455 = vunpack.c.h.b16 %v86
  %v456 = vunpack.c.l.b16 %v87
  %v457 = vunpack.c.h.b16 %v87
  %v458 = vunpack.c.l.b16 %v88
  %v459 = vunpack.c.h.b16 %v88
  %v460 = vunpack.c.l.b16 %v89
  %v461 = vunpack.c.l.b16 %v90
  %v462 = vunpack.c.h.b16 %v90
  %v463 = vunpack.c.l.b16 %v91
  %v464 = vunpack.c.h.b16 %v91
  %v465 = vunpack.c.l.b16 %v92
  %v466 = vunpack.c.h.b16 %v92
  %v467 = vunpack.c.l.b16 %v93
  %v468 = vunpack.c.h.b16 %v93
  %v469 = vunpack.c.l.b16 %v94
  %v470 = vpack.c.b16 %v335, %v326
  %v471 = vpack.c.b16 %v336, %v327
  %v472 = vpack.c.b16 %v337, %v328
  %v473 = vpack.c.b16 %v338, %v329
  %v474 = vpack.c.b16 %v339, %v330
  %v475 = vpack.c.b16 %v340, %v331
  %v476 = vpack.c.b16 %v341, %v332
  %v477 = vpack.c.b16 %v342, %v333
  %v478 = vpack.c.b16 %v343, %v334
  %v479 = vpack.c.b16 %v353, %v344
  %v480 = vpack.c.b16 %v354, %v345
  %v481 = vpack.c.b16 %v355, %v346
  %v482 = vpack.c.b16 %v356, %v347
  %v483 = vpack.c.b16 %v357, %v348
  %v484 = vpack.c.b16 %v358, %v349
  %v485 = vpack.c.b16 %v359, %v350
  %v486 = vpack.c.b16 %v360, %v351
  %v487 = vpack.c.b16 %v361, %v352
  %v488 = vpack.c.b16 %v371, %v362
  %v489 = vpack.c.b16 %v372, %v363
  %v490 = vpack.c.b16 %v373, %v364
  %v491 = vpack.c.b16 %v374, %v365
  %v492 = vpack.c.b16 %v375, %v366
  %v493 = vpack.c.b16 %v376, %v367
  %v494 = vpack.c.b16 %v377, %v368
  %v495 = vpack.c.b16 %v378, %v369
  %v496 = vpack.c.b16 %v379, %v370
  %v497 = vpack.c.b16 %v389, %v380
  %v498 = vpack.c.b16 %v390, %v381
  %v499 = vpack.c.b16 %v391, %v382
  %v500 = vpack.c.b16 %v392, %v383
  %v501 = vpack.c.b16 %v393, %v384
  %v502 = vpack.c.b16 %v394, %v385
  %v503 = vpack.c.b16 %v395, %v386
  %v504 = vpack.c.b16 %v396, %v387
  %v505 = vpack.c.b16 %v397, %v388
  %v506 = vpack.c.b16 %v407, %v398
  %v507 = vpack.c.b16 %v408, %v399
  %v508 = vpack.c.b16 %v409, %v400
  %v509 = vpack.c.b16 %v410, %v401
  %v510 = vpack.c.b16 %v411, %v402
  %v511 = vpack.c.b16 %v412, %v403
  %v512 = vpack.c.b16 %v413, %v404
  %v513 = vpack.c.b16 %v414, %v405
  %v514 = vpack.c.b16 %v415, %v406
  %v515 = vpack.c.b16 %v425, %v416
  %v516 = vpack.c.b16 %v426, %v417
  %v517 = vpack.c.b16 %v427, %v418
  %v518 = vpack.c.b16 %v428, %v419
  %v519 = vpack.c.b16 %v429, %v420
  %v520 = vpack.c.b16 %v430, %v421
  %v521 = vpack.c.b16 %v431, %v422
  %v522 = vpack.c.b16 %v432, %v423
  %v523 = vpack.c.b16 %v433, %v424
  %v524 = vpack.c.b16 %v443, %v434
  %v525 = vpack.c.b16 %v444, %v435
  %v526 = vpack.c.b16 %v445, %v436
  %v527 = vpack.c.b16 %v446, %v437
  %v528 = vpack.c.b16 %v447, %v438
  %v529 = vpack.c.b16 %v448, %v439
  %v530 = vpack.c.b16 %v449, %v440
  %v531 = vpack.c.b16 %v450, %v441
  %v532 = vpack.c.b16 %v451, %v442
  %v533 = vpack.c.b16 %v461, %v452
  %v534 = vpack.c.b16 %v462, %v453
  %v535 = vpack.c.b16 %v463, %v454
  %v536 = vpack.c.b16 %v464, %v455
  %v537 = vpack.c.b16 %v465, %v456
  %v538 = vpack.c.b16 %v466, %v457
  %v539 = vpack.c.b16 %v467, %v458
  %v540 = vpack.c.b16 %v468, %v459
  %v541 = vpack.c.b16 %v469, %v460
  %v758 = vunpack.c.l.b16 %v95
  %v759 = vunpack.c.l.b16 %v96
  %v760 = vunpack.c.l.b16 %v97
  %v761 = vunpack.c.l.b16 %v98
  %v762 = vunpack.c.l.b16 %v99
  %v763 = vunpack.c.l.b16 %v100
  %v764 = vunpack.c.l.b16 %v101
  %v765 = vunpack.c.l.b16 %v102
  %v766 = vunpack.c.l.b16 %v103
  %v767 = vunpack.c.l.b16 %v104
  %v768 = vunpack.c.l.b16 %v105
  %v769 = vunpack.c.l.b16 %v106
  %v770 = vunpack.c.l.b16 %v107
  %v771 = vunpack.c.l.b16 %v108
  %v772 = vunpack.c.l.b16 %v109
  %v773 = vunpack.c.l.b16 %v110
  %v774 = vunpack.c.l.b16 %v111
  %v775 = vunpack.c.l.b16 %v112
  %v776 = vunpack.c.l.b16 %v113
  %v777 = vunpack.c.l.b16 %v114
  %v778 = vunpack.c.l.b16 %v115
  %v779 = vunpack.c.l.b16 %v116
  %v780 = vunpack.c.l.b16 %v117
  %v781 = vunpack.c.l.b16 %v118
  %v782 = vunpack.c.l.b16 %v119
  %v783 = vunpack.c.l.b16 %v120
  %v784 = vunpack.c.l.b16 %v121
  %v785 = vunpack.c.l.b16 %v122
  %v786 = vunpack.c.l.b16 %v123
  %v787 = vunpack.c.l.b16 %v124
  %v788 = vunpack.c.l.b16 %v125
  %v789 = vunpack.c.l.b16 %v126
  %v790 = vunpack.c.l.b16 %v127
  %v791 = vunpack.c.l.b16 %v128
  %v792 = vunpack.c.l.b16 %v129
  %v793 = vunpack.c.l.b16 %v130
  %v794 = vunpack.c.l.b16 %v131
  %v795 = vunpack.c.l.b16 %v132
  %v796 = vunpack.c.l.b16 %v133
  %v797 = vunpack.c.l.b16 %v134
  %v798 = vunpack.c.l.b16 %v135
  %v799 = vunpack.c.l.b16 %v136
  %v800 = vunpack.c.l.b16 %v137
  %v801 = vunpack.c.l.b16 %v138
  %v802 = vunpack.c.l.b16 %v139
  %v803 = vunpack.c.l.b16 %v140
  %v804 = vunpack.c.l.b16 %v141
  %v805 = vunpack.c.l.b16 %v142
  %v806 = vunpack.c.l.b16 %v143
  %v807 = vunpack.c.l.b16 %v144
  %v808 = vunpack.c.l.b16 %v145
  %v809 = vunpack.c.l.b16 %v146
  %v810 = vunpack.c.l.b16 %v147
  %v811 = vunpack.c.l.b16 %v148
  %v812 = vunpack.c.l.b16 %v149
  %v813 = vunpack.c.l.b16 %v150
  %v814 = vunpack.c.l.b16 %v151
  %v815 = vunpack.c.l.b16 %v152
  %v816 = vunpack.c.l.b16 %v153
  %v817 = vunpack.c.l.b16 %v154
  %v818 = vunpack.c.l.b16 %v155
  %v819 = vunpack.c.l.b16 %v156
  %v820 = vunpack.c.l.b16 %v157
  %v821 = vunpack.c.l.b16 %v158
  %v822 = vunpack.c.l.b16 %v159
  %v823 = vunpack.c.l.b16 %v160
  %v824 = vunpack.c.l.b16 %v161
  %v825 = vunpack.c.l.b16 %v162
  %v826 = vunpack.c.l.b16 %v163
  %v827 = vunpack.c.l.b16 %v164
  %v828 = vunpack.c.l.b16 %v165
  %v829 = vunpack.c.l.b16 %v166
  %v830 = vunpack.c.l.b16 %v167
  %v831 = vunpack.c.l.b16 %v168
  %v832 = vunpack.c.l.b16 %v169
  %v833 = vunpack.c.l.b16 %v170
  %v834 = vunpack.c.l.b16 %v171
  %v835 = vunpack.c.l.b16 %v172
  %v836 = vunpack.c.l.b16 %v173
  %v837 = vunpack.c.l.b16 %v174
  %v838 = vunpack.c.l.b16 %v175
  %v839 = vunpack.c.l.b16 %v176
  %v840 = vunpack.c.l.b16 %v177
  %v841 = vunpack.c.l.b16 %v178
  %v842 = vunpack.c.l.b16 %v179
  %v843 = vunpack.c.l.b16 %v180
  %v844 = vunpack.c.l.b16 %v181
  %v845 = vunpack.c.l.b16 %v182
  %v846 = vunpack.c.l.b16 %v183
  %v847 = vunpack.c.l.b16 %v184
  %v848 = vunpack.c.l.b16 %v185
  %v849 = vunpack.c.l.b16 %v186
  %v850 = vunpack.c.l.b16 %v187
  %v851 = vunpack.c.l.b16 %v188
  %v852 = vunpack.c.l.b16 %v189
  %v853 = vunpack.c.l.b16 %v190
  %v854 = vunpack.c.l.b16 %v191
  %v855 = vunpack.c.l.b16 %v192
  %v856 = vunpack.c.l.b16 %v193
  %v857 = vunpack.c.l.b16 %v194
  %v858 = vunpack.c.l.b16 %v195
  %v859 = vunpack.c.l.b16 %v196
  %v860 = vunpack.c.l.b16 %v197
  %v861 = vunpack.c.l.b16 %v198
  %v862 = vunpack.c.l.b16 %v199
  %v863 = vunpack.c.l.b16 %v200
  %v864 = vunpack.c.l.b16 %v201
  %v865 = vunpack.c.l.b16 %v202
  %v866 = vunpack.c.l.b16 %v203
  %v867 = vunpack.c.l.b16 %v204
  %v868 = vunpack.c.l.b16 %v205
  %v869 = vunpack.c.l.b16 %v206
  %v870 = vunpack.c.l.b16 %v207
  %v871 = vunpack.c.l.b16 %v208
  %v872 = vunpack.c.l.b16 %v209
  %v873 = vunpack.c.l.b16 %v210
  %v874 = vunpack.c.l.b16 %v211
  %v875 = vunpack.c.l.b16 %v212
  %v876 = vunpack.c.l.b16 %v213
  %v877 = vunpack.c.l.b16 %v214
  %v878 = vunpack.c.l.b16 %v215
  %v879 = vunpack.c.l.b16 %v216
  %v880 = vunpack.c.l.b16 %v217
  %v881 = vunpack.c.l.b16 %v218
  %v882 = vunpack.c.l.b16 %v219
  %v883 = vunpack.c.l.b16 %v220
  %v884 = vunpack.c.l.b16 %v221
  %v885 = vunpack.c.l.b16 %v222
  %v886 = vunpack.c.l.b16 %v223
  %v887 = vunpack.c.l.b16 %v224
  %v888 = vunpack.c.l.b16 %v225
  %v889 = vunpack.c.l.b16 %v226
  %v890 = vunpack.c.l.b16 %v227
  %v891 = vunpack.c.l.b16 %v228
  %v892 = vunpack.c.l.b16 %v229
  %v893 = vunpack.c.l.b16 %v230
  %v894 = vunpack.c.l.b16 %v231
  %v895 = vunpack.c.l.b16 %v232
  %v896 = vunpack.c.l.b16 %v233
  %v897 = vunpack.c.l.b16 %v234
  %v898 = vunpack.c.l.b16 %v235
  %v899 = vunpack.c.l.b16 %v236
  %v900 = vunpack.c.l.b16 %v237
  %v901 = vunpack.c.l.b16 %v238
  %v902 = vpack.c.b16 %v759, %v758
  %v903 = vpack.c.b16 %v761, %v760
  %v904 = vpack.c.b16 %v763, %v762
  %v905 = vpack.c.b16 %v765, %v764
  %v906 = vpack.c.b16 %v767, %v766
  %v907 = vpack.c.b16 %v769, %v768
  %v908 = vpack.c.b16 %v771, %v770
  %v909 = vpack.c.b16 %v773, %v772
  %v910 = vpack.c.b16 %v775, %v774
  %v911 = vpack.c.b16 %v777, %v776
  %v912 = vpack.c.b16 %v779, %v778
  %v913 = vpack.c.b16 %v781, %v780
  %v914 = vpack.c.b16 %v783, %v782
  %v915 = vpack.c.b16 %v785, %v784
  %v916 = vpack.c.b16 %v787, %v786
  %v917 = vpack.c.b16 %v789, %v788
  %v918 = vpack.c.b16 %v791, %v790
  %v919 = vpack.c.b16 %v793, %v792
  %v920 = vpack.c.b16 %v795, %v794
  %v921 = vpack.c.b16 %v797, %v796
  %v922 = vpack.c.b16 %v799, %v798
  %v923 = vpack.c.b16 %v801, %v800
  %v924 = vpack.c.b16 %v803, %v802
  %v925 = vpack.c.b16 %v805, %v804
  %v926 = vpack.c.b16 %v807, %v806
  %v927 = vpack.c.b16 %v809, %v808
  %v928 = vpack.c.b16 %v811, %v810
  %v929 = vpack.c.b16 %v813, %v812
  %v930 = vpack.c.b16 %v815, %v814
  %v931 = vpack.c.b16 %v817, %v816
  %v932 = vpack.c.b16 %v819, %v818
  %v933 = vpack.c.b16 %v821, %v820
  %v934 = vpack.c.b16 %v823, %v822
  %v935 = vpack.c.b16 %v825, %v824
  %v936 = vpack.c.b16 %v827, %v826
  %v937 = vpack.c.b16 %v829, %v828
  %v938 = vpack.c.b16 %v831, %v830
  %v939 = vpack.c.b16 %v833, %v832
  %v940 = vpack.c.b16 %v835, %v834
  %v941 = vpack.c.b16 %v837, %v836
  %v942 = vpack.c.b16 %v839, %v838
  %v943 = vpack.c.b16 %v841, %v840
  %v944 = vpack.c.b16 %v843, %v842
  %v945 = vpack.c.b16 %v845, %v844
  %v946 = vpack.c.b16 %v847, %v846
  %v947 = vpack.c.b16 %v849, %v848
  %v948 = vpack.c.b16 %v851, %v850
  %v949 = vpack.c.b16 %v853, %v852
  %v950 = vpack.c.b16 %v855, %v854
  %v951 = vpack.c.b16 %v857, %v856
  %v952 = vpack.c.b16 %v859, %v858
  %v953 = vpack.c.b16 %v861, %v860
  %v954 = vpack.c.b16 %v863, %v862
  %v955 = vpack.c.b16 %v865, %v864
  %v956 = vpack.c.b16 %v867, %v866
  %v957 = vpack.c.b16 %v869, %v868
  %v958 = vpack.c.b16 %v871, %v870
  %v959 = vpack.c.b16 %v873, %v872
  %v960 = vpack.c.b16 %v875, %v874
  %v961 = vpack.c.b16 %v877, %v876
  %v962 = vpack.c.b16 %v879, %v878
  %v963 = vpack.c.b16 %v881, %v880
  %v964 = vpack.c.b16 %v883, %v882
  %v965 = vpack.c.b16 %v885, %v884
  %v966 = vpack.c.b16 %v887, %v886
  %v967 = vpack.c.b16 %v889, %v888
  %v968 = vpack.c.b16 %v891, %v890
  %v969 = vpack.c.b16 %v893, %v892
  %v970 = vpack.c.b16 %v895, %v894
  %v971 = vpack.c.b16 %v897, %v896
  %v972 = vpack.c.b16 %v899, %v898
  %v973 = vpack.c.b16 %v901, %v900
  %1046 = vmatprep.subr.bf16.mxu0 0
  %1047 = vmatpush1.bf16.msra.mxu0 %v902
  %1048 = vmatprep.subr.bf16.mxu0 0
  %1049 = vmatpush1.bf16.msra.mxu0 %v903
  %1050 = vmatprep.subr.bf16.mxu0 0
  %1051 = vmatpush1.bf16.msra.mxu0 %v904
  %1052 = vmatprep.subr.bf16.mxu0 0
  %1053 = vmatpush1.bf16.msra.mxu0 %v905
  %1054 = vmatprep.subr.bf16.mxu0 0
  %1055 = vmatpush1.bf16.msra.mxu0 %v906
  %1056 = vmatprep.subr.bf16.mxu0 0
  %1057 = vmatpush1.bf16.msra.mxu0 %v907
  %1058 = vmatprep.subr.bf16.mxu0 0
  %1059 = vmatpush1.bf16.msra.mxu0 %v908
  %1060 = vmatprep.subr.bf16.mxu0 0
  %1061 = vmatpush1.bf16.msra.mxu0 %v909
  %1062 = vmatprep.subr.bf16.mxu0 0
  %1063 = vmatpush1.bf16.msra.mxu0 %v910
  %1064 = vmatprep.subr.bf16.mxu0 0
  %1065 = vmatpush1.bf16.msra.mxu0 %v911
  %1066 = vmatprep.subr.bf16.mxu0 0
  %1067 = vmatpush1.bf16.msra.mxu0 %v912
  %1068 = vmatprep.subr.bf16.mxu0 0
  %1069 = vmatpush1.bf16.msra.mxu0 %v913
  %1070 = vmatprep.subr.bf16.mxu0 0
  %1071 = vmatpush1.bf16.msra.mxu0 %v914
  %1072 = vmatprep.subr.bf16.mxu0 0
  %1073 = vmatpush1.bf16.msra.mxu0 %v915
  %1074 = vmatprep.subr.bf16.mxu0 0
  %1075 = vmatpush1.bf16.msra.mxu0 %v916
  %1076 = vmatprep.subr.bf16.mxu0 0
  %1077 = vmatpush1.bf16.msra.mxu0 %v917
  %1078 = vmatprep.mubr.bf16.mxu0 %v471
  %1079 = vmatmul.mubr.bf16.gmra.mrb[0].mxu0 %v470
  %v1080 = vpop.f32.mrb[0].mxu0
  %v1081 = vadd.f32 %v244, %v1080
  %v1082 = vpop.f32.mrb[0].mxu0
  %v1083 = vpop.f32.mrb[0].mxu0
  %v1084 = vadd.f32 %v244, %v1083
  %v1085 = vpop.f32.mrb[0].mxu0
  %1086 = vmatprep.mubr.bf16.mxu0 %v480
  %1087 = vmatmul.mubr.bf16.gmra.mrb[0].mxu0 %v479
  %v1088 = vpop.f32.mrb[0].mxu0
  %v1089 = vadd.f32 %v244, %v1088
  %v1090 = vpop.f32.mrb[0].mxu0
  %v1091 = vpop.f32.mrb[0].mxu0
  %v1092 = vadd.f32 %v244, %v1091
  %v1093 = vpop.f32.mrb[0].mxu0
  %1094 = vmatprep.mubr.bf16.mxu0 %v489
  %1095 = vmatmul.mubr.bf16.gmra.mrb[0].mxu0 %v488
  %v1096 = vpop.f32.mrb[0].mxu0
  %v1097 = vadd.f32 %v244, %v1096
  %v1098 = vpop.f32.mrb[0].mxu0
  %v1099 = vpop.f32.mrb[0].mxu0
  %v1100 = vadd.f32 %v244, %v1099
  %v1101 = vpop.f32.mrb[0].mxu0
  %1102 = vmatprep.mubr.bf16.mxu0 %v498
  %1103 = vmatmul.mubr.bf16.gmra.mrb[0].mxu0 %v497
  %v1104 = vpop.f32.mrb[0].mxu0
  %v1105 = vadd.f32 %v244, %v1104
  %v1106 = vpop.f32.mrb[0].mxu0
  %v1107 = vpop.f32.mrb[0].mxu0
  %v1108 = vadd.f32 %v244, %v1107
  %v1109 = vpop.f32.mrb[0].mxu0
  %1110 = vmatprep.mubr.bf16.mxu0 %v507
  %1111 = vmatmul.mubr.bf16.gmra.mrb[0].mxu0 %v506
  %v1112 = vpop.f32.mrb[0].mxu0
  %v1113 = vadd.f32 %v244, %v1112
  %v1114 = vpop.f32.mrb[0].mxu0
  %v1115 = vpop.f32.mrb[0].mxu0
  %v1116 = vadd.f32 %v244, %v1115
  %v1117 = vpop.f32.mrb[0].mxu0
  %1118 = vmatprep.mubr.bf16.mxu0 %v516
  %1119 = vmatmul.mubr.bf16.gmra.mrb[0].mxu0 %v515
  %v1120 = vpop.f32.mrb[0].mxu0
  %v1121 = vadd.f32 %v244, %v1120
  %v1122 = vpop.f32.mrb[0].mxu0
  %v1123 = vpop.f32.mrb[0].mxu0
  %v1124 = vadd.f32 %v244, %v1123
  %v1125 = vpop.f32.mrb[0].mxu0
  %1126 = vmatprep.mubr.bf16.mxu0 %v525
  %1127 = vmatmul.mubr.bf16.gmra.mrb[0].mxu0 %v524
  %v1128 = vpop.f32.mrb[0].mxu0
  %v1129 = vadd.f32 %v244, %v1128
  %v1130 = vpop.f32.mrb[0].mxu0
  %v1131 = vpop.f32.mrb[0].mxu0
  %v1132 = vadd.f32 %v244, %v1131
  %v1133 = vpop.f32.mrb[0].mxu0
  %1134 = vmatprep.mubr.bf16.mxu0 %v534
  %1135 = vmatmul.mubr.bf16.gmra.mrb[0].mxu0 %v533
  %v1136 = vpop.f32.mrb[0].mxu0
  %v1137 = vadd.f32 %v244, %v1136
  %v1138 = vpop.f32.mrb[0].mxu0
  %v1139 = vpop.f32.mrb[0].mxu0
  %v1140 = vadd.f32 %v244, %v1139
  %v1141 = vpop.f32.mrb[0].mxu0
  %1142 = vdwg.mxu0
  %1143 = vmatprep.subr.bf16.mxu0 0
  %1144 = vmatpush1.bf16.msra.mxu0 %v918
  %1145 = vmatprep.subr.bf16.mxu0 0
  %1146 = vmatpush1.bf16.msra.mxu0 %v919
  %1147 = vmatprep.subr.bf16.mxu0 0
  %1148 = vmatpush1.bf16.msra.mxu0 %v920
  %1149 = vmatprep.subr.bf16.mxu0 0
  %1150 = vmatpush1.bf16.msra.mxu0 %v921
  %1151 = vmatprep.subr.bf16.mxu0 0
  %1152 = vmatpush1.bf16.msra.mxu0 %v922
  %1153 = vmatprep.subr.bf16.mxu0 0
  %1154 = vmatpush1.bf16.msra.mxu0 %v923
  %1155 = vmatprep.subr.bf16.mxu0 0
  %1156 = vmatpush1.bf16.msra.mxu0 %v924
  %1157 = vmatprep.subr.bf16.mxu0 0
  %1158 = vmatpush1.bf16.msra.mxu0 %v925
  %1159 = vmatprep.subr.bf16.mxu0 0
  %1160 = vmatpush1.bf16.msra.mxu0 %v926
  %1161 = vmatprep.subr.bf16.mxu0 0
  %1162 = vmatpush1.bf16.msra.mxu0 %v927
  %1163 = vmatprep.subr.bf16.mxu0 0
  %1164 = vmatpush1.bf16.msra.mxu0 %v928
  %1165 = vmatprep.subr.bf16.mxu0 0
  %1166 = vmatpush1.bf16.msra.mxu0 %v929
  %1167 = vmatprep.subr.bf16.mxu0 0
  %1168 = vmatpush1.bf16.msra.mxu0 %v930
  %1169 = vmatprep.subr.bf16.mxu0 0
  %1170 = vmatpush1.bf16.msra.mxu0 %v931
  %1171 = vmatprep.subr.bf16.mxu0 0
  %1172 = vmatpush1.bf16.msra.mxu0 %v932
  %1173 = vmatprep.subr.bf16.mxu0 0
  %1174 = vmatpush1.bf16.msra.mxu0 %v933
  %1175 = vmatprep.mubr.bf16.mxu0 %v473
  %1176 = vmatmul.mubr.bf16.gmra.mrb[0].mxu0 %v472
  %v1177 = vpop.f32.mrb[0].mxu0
  %v1178 = vadd.f32 %v1081, %v1177
  %v1179 = vpop.f32.mrb[0].mxu0
  %v1180 = vpop.f32.mrb[0].mxu0
  %v1181 = vadd.f32 %v1084, %v1180
  %v1182 = vpop.f32.mrb[0].mxu0
  %1183 = vmatprep.mubr.bf16.mxu0 %v482
  %1184 = vmatmul.mubr.bf16.gmra.mrb[0].mxu0 %v481
  %v1185 = vpop.f32.mrb[0].mxu0
  %v1186 = vadd.f32 %v1089, %v1185
  %v1187 = vpop.f32.mrb[0].mxu0
  %v1188 = vpop.f32.mrb[0].mxu0
  %v1189 = vadd.f32 %v1092, %v1188
  %v1190 = vpop.f32.mrb[0].mxu0
  %1191 = vmatprep.mubr.bf16.mxu0 %v491
  %1192 = vmatmul.mubr.bf16.gmra.mrb[0].mxu0 %v490
  %v1193 = vpop.f32.mrb[0].mxu0
  %v1194 = vadd.f32 %v1097, %v1193
  %v1195 = vpop.f32.mrb[0].mxu0
  %v1196 = vpop.f32.mrb[0].mxu0
  %v1197 = vadd.f32 %v1100, %v1196
  %v1198 = vpop.f32.mrb[0].mxu0
  %1199 = vmatprep.mubr.bf16.mxu0 %v500
  %1200 = vmatmul.mubr.bf16.gmra.mrb[0].mxu0 %v499
  %v1201 = vpop.f32.mrb[0].mxu0
  %v1202 = vadd.f32 %v1105, %v1201
  %v1203 = vpop.f32.mrb[0].mxu0
  %v1204 = vpop.f32.mrb[0].mxu0
  %v1205 = vadd.f32 %v1108, %v1204
  %v1206 = vpop.f32.mrb[0].mxu0
  %1207 = vmatprep.mubr.bf16.mxu0 %v509
  %1208 = vmatmul.mubr.bf16.gmra.mrb[0].mxu0 %v508
  %v1209 = vpop.f32.mrb[0].mxu0
  %v1210 = vadd.f32 %v1113, %v1209
  %v1211 = vpop.f32.mrb[0].mxu0
  %v1212 = vpop.f32.mrb[0].mxu0
  %v1213 = vadd.f32 %v1116, %v1212
  %v1214 = vpop.f32.mrb[0].mxu0
  %1215 = vmatprep.mubr.bf16.mxu0 %v518
  %1216 = vmatmul.mubr.bf16.gmra.mrb[0].mxu0 %v517
  %v1217 = vpop.f32.mrb[0].mxu0
  %v1218 = vadd.f32 %v1121, %v1217
  %v1219 = vpop.f32.mrb[0].mxu0
  %v1220 = vpop.f32.mrb[0].mxu0
  %v1221 = vadd.f32 %v1124, %v1220
  %v1222 = vpop.f32.mrb[0].mxu0
  %1223 = vmatprep.mubr.bf16.mxu0 %v527
  %1224 = vmatmul.mubr.bf16.gmra.mrb[0].mxu0 %v526
  %v1225 = vpop.f32.mrb[0].mxu0
  %v1226 = vadd.f32 %v1129, %v1225
  %v1227 = vpop.f32.mrb[0].mxu0
  %v1228 = vpop.f32.mrb[0].mxu0
  %v1229 = vadd.f32 %v1132, %v1228
  %v1230 = vpop.f32.mrb[0].mxu0
  %1231 = vmatprep.mubr.bf16.mxu0 %v536
  %1232 = vmatmul.mubr.bf16.gmra.mrb[0].mxu0 %v535
  %v1233 = vpop.f32.mrb[0].mxu0
  %v1234 = vadd.f32 %v1137, %v1233
  %v1235 = vpop.f32.mrb[0].mxu0
  %v1236 = vpop.f32.mrb[0].mxu0
  %v1237 = vadd.f32 %v1140, %v1236
  %v1238 = vpop.f32.mrb[0].mxu0
  %1239 = vdwg.mxu0
  %1240 = vmatprep.subr.bf16.mxu0 0
  %1241 = vmatpush1.bf16.msra.mxu0 %v934
  %1242 = vmatprep.subr.bf16.mxu0 0
  %1243 = vmatpush1.bf16.msra.mxu0 %v935
  %1244 = vmatprep.subr.bf16.mxu0 0
  %1245 = vmatpush1.bf16.msra.mxu0 %v936
  %1246 = vmatprep.subr.bf16.mxu0 0
  %1247 = vmatpush1.bf16.msra.mxu0 %v937
  %1248 = vmatprep.subr.bf16.mxu0 0
  %1249 = vmatpush1.bf16.msra.mxu0 %v938
  %1250 = vmatprep.subr.bf16.mxu0 0
  %1251 = vmatpush1.bf16.msra.mxu0 %v939
  %1252 = vmatprep.subr.bf16.mxu0 0
  %1253 = vmatpush1.bf16.msra.mxu0 %v940
  %1254 = vmatprep.subr.bf16.mxu0 0
  %1255 = vmatpush1.bf16.msra.mxu0 %v941
  %1256 = vmatprep.subr.bf16.mxu0 0
  %1257 = vmatpush1.bf16.msra.mxu0 %v942
  %1258 = vmatprep.subr.bf16.mxu0 0
  %1259 = vmatpush1.bf16.msra.mxu0 %v943
  %1260 = vmatprep.subr.bf16.mxu0 0
  %1261 = vmatpush1.bf16.msra.mxu0 %v944
  %1262 = vmatprep.subr.bf16.mxu0 0
  %1263 = vmatpush1.bf16.msra.mxu0 %v945
  %1264 = vmatprep.subr.bf16.mxu0 0
  %1265 = vmatpush1.bf16.msra.mxu0 %v946
  %1266 = vmatprep.subr.bf16.mxu0 0
  %1267 = vmatpush1.bf16.msra.mxu0 %v947
  %1268 = vmatprep.subr.bf16.mxu0 0
  %1269 = vmatpush1.bf16.msra.mxu0 %v948
  %1270 = vmatprep.subr.bf16.mxu0 0
  %1271 = vmatpush1.bf16.msra.mxu0 %v949
  %1272 = vmatprep.mubr.bf16.mxu0 %v475
  %1273 = vmatmul.mubr.bf16.gmra.mrb[0].mxu0 %v474
  %v1274 = vpop.f32.mrb[0].mxu0
  %v1275 = vadd.f32 %v1178, %v1274
  %v1276 = vpop.f32.mrb[0].mxu0
  %v1277 = vpop.f32.mrb[0].mxu0
  %v1278 = vadd.f32 %v1181, %v1277
  %v1279 = vpop.f32.mrb[0].mxu0
  %1280 = vmatprep.mubr.bf16.mxu0 %v484
  %1281 = vmatmul.mubr.bf16.gmra.mrb[0].mxu0 %v483
  %v1282 = vpop.f32.mrb[0].mxu0
  %v1283 = vadd.f32 %v1186, %v1282
  %v1284 = vpop.f32.mrb[0].mxu0
  %v1285 = vpop.f32.mrb[0].mxu0
  %v1286 = vadd.f32 %v1189, %v1285
  %v1287 = vpop.f32.mrb[0].mxu0
  %1288 = vmatprep.mubr.bf16.mxu0 %v493
  %1289 = vmatmul.mubr.bf16.gmra.mrb[0].mxu0 %v492
  %v1290 = vpop.f32.mrb[0].mxu0
  %v1291 = vadd.f32 %v1194, %v1290
  %v1292 = vpop.f32.mrb[0].mxu0
  %v1293 = vpop.f32.mrb[0].mxu0
  %v1294 = vadd.f32 %v1197, %v1293
  %v1295 = vpop.f32.mrb[0].mxu0
  %1296 = vmatprep.mubr.bf16.mxu0 %v502
  %1297 = vmatmul.mubr.bf16.gmra.mrb[0].mxu0 %v501
  %v1298 = vpop.f32.mrb[0].mxu0
  %v1299 = vadd.f32 %v1202, %v1298
  %v1300 = vpop.f32.mrb[0].mxu0
  %v1301 = vpop.f32.mrb[0].mxu0
  %v1302 = vadd.f32 %v1205, %v1301
  %v1303 = vpop.f32.mrb[0].mxu0
  %1304 = vmatprep.mubr.bf16.mxu0 %v511
  %1305 = vmatmul.mubr.bf16.gmra.mrb[0].mxu0 %v510
  %v1306 = vpop.f32.mrb[0].mxu0
  %v1307 = vadd.f32 %v1210, %v1306
  %v1308 = vpop.f32.mrb[0].mxu0
  %v1309 = vpop.f32.mrb[0].mxu0
  %v1310 = vadd.f32 %v1213, %v1309
  %v1311 = vpop.f32.mrb[0].mxu0
  %1312 = vmatprep.mubr.bf16.mxu0 %v520
  %1313 = vmatmul.mubr.bf16.gmra.mrb[0].mxu0 %v519
  %v1314 = vpop.f32.mrb[0].mxu0
  %v1315 = vadd.f32 %v1218, %v1314
  %v1316 = vpop.f32.mrb[0].mxu0
  %v1317 = vpop.f32.mrb[0].mxu0
  %v1318 = vadd.f32 %v1221, %v1317
  %v1319 = vpop.f32.mrb[0].mxu0
  %1320 = vmatprep.mubr.bf16.mxu0 %v529
  %1321 = vmatmul.mubr.bf16.gmra.mrb[0].mxu0 %v528
  %v1322 = vpop.f32.mrb[0].mxu0
  %v1323 = vadd.f32 %v1226, %v1322
  %v1324 = vpop.f32.mrb[0].mxu0
  %v1325 = vpop.f32.mrb[0].mxu0
  %v1326 = vadd.f32 %v1229, %v1325
  %v1327 = vpop.f32.mrb[0].mxu0
  %1328 = vmatprep.mubr.bf16.mxu0 %v538
  %1329 = vmatmul.mubr.bf16.gmra.mrb[0].mxu0 %v537
  %v1330 = vpop.f32.mrb[0].mxu0
  %v1331 = vadd.f32 %v1234, %v1330
  %v1332 = vpop.f32.mrb[0].mxu0
  %v1333 = vpop.f32.mrb[0].mxu0
  %v1334 = vadd.f32 %v1237, %v1333
  %v1335 = vpop.f32.mrb[0].mxu0
  %1336 = vdwg.mxu0
  %1337 = vmatprep.subr.bf16.mxu0 0
  %1338 = vmatpush1.bf16.msra.mxu0 %v950
  %1339 = vmatprep.subr.bf16.mxu0 0
  %1340 = vmatpush1.bf16.msra.mxu0 %v951
  %1341 = vmatprep.subr.bf16.mxu0 0
  %1342 = vmatpush1.bf16.msra.mxu0 %v952
  %1343 = vmatprep.subr.bf16.mxu0 0
  %1344 = vmatpush1.bf16.msra.mxu0 %v953
  %1345 = vmatprep.subr.bf16.mxu0 0
  %1346 = vmatpush1.bf16.msra.mxu0 %v954
  %1347 = vmatprep.subr.bf16.mxu0 0
  %1348 = vmatpush1.bf16.msra.mxu0 %v955
  %1349 = vmatprep.subr.bf16.mxu0 0
  %1350 = vmatpush1.bf16.msra.mxu0 %v956
  %1351 = vmatprep.subr.bf16.mxu0 0
  %1352 = vmatpush1.bf16.msra.mxu0 %v957
  %1353 = vmatprep.subr.bf16.mxu0 0
  %1354 = vmatpush1.bf16.msra.mxu0 %v958
  %1355 = vmatprep.subr.bf16.mxu0 0
  %1356 = vmatpush1.bf16.msra.mxu0 %v959
  %1357 = vmatprep.subr.bf16.mxu0 0
  %1358 = vmatpush1.bf16.msra.mxu0 %v960
  %1359 = vmatprep.subr.bf16.mxu0 0
  %1360 = vmatpush1.bf16.msra.mxu0 %v961
  %1361 = vmatprep.subr.bf16.mxu0 0
  %1362 = vmatpush1.bf16.msra.mxu0 %v962
  %1363 = vmatprep.subr.bf16.mxu0 0
  %1364 = vmatpush1.bf16.msra.mxu0 %v963
  %1365 = vmatprep.subr.bf16.mxu0 0
  %1366 = vmatpush1.bf16.msra.mxu0 %v964
  %1367 = vmatprep.subr.bf16.mxu0 0
  %1368 = vmatpush1.bf16.msra.mxu0 %v965
  %1369 = vmatprep.mubr.bf16.mxu0 %v477
  %1370 = vmatmul.mubr.bf16.gmra.mrb[0].mxu0 %v476
  %v1371 = vpop.f32.mrb[0].mxu0
  %v1372 = vadd.f32 %v1275, %v1371
  %v1373 = vpop.f32.mrb[0].mxu0
  %v1374 = vpop.f32.mrb[0].mxu0
  %v1375 = vadd.f32 %v1278, %v1374
  %v1376 = vpop.f32.mrb[0].mxu0
  %1377 = vmatprep.mubr.bf16.mxu0 %v486
  %1378 = vmatmul.mubr.bf16.gmra.mrb[0].mxu0 %v485
  %v1379 = vpop.f32.mrb[0].mxu0
  %v1380 = vadd.f32 %v1283, %v1379
  %v1381 = vpop.f32.mrb[0].mxu0
  %v1382 = vpop.f32.mrb[0].mxu0
  %v1383 = vadd.f32 %v1286, %v1382
  %v1384 = vpop.f32.mrb[0].mxu0
  %1385 = vmatprep.mubr.bf16.mxu0 %v495
  %1386 = vmatmul.mubr.bf16.gmra.mrb[0].mxu0 %v494
  %v1387 = vpop.f32.mrb[0].mxu0
  %v1388 = vadd.f32 %v1291, %v1387
  %v1389 = vpop.f32.mrb[0].mxu0
  %v1390 = vpop.f32.mrb[0].mxu0
  %v1391 = vadd.f32 %v1294, %v1390
  %v1392 = vpop.f32.mrb[0].mxu0
  %1393 = vmatprep.mubr.bf16.mxu0 %v504
  %1394 = vmatmul.mubr.bf16.gmra.mrb[0].mxu0 %v503
  %v1395 = vpop.f32.mrb[0].mxu0
  %v1396 = vadd.f32 %v1299, %v1395
  %v1397 = vpop.f32.mrb[0].mxu0
  %v1398 = vpop.f32.mrb[0].mxu0
  %v1399 = vadd.f32 %v1302, %v1398
  %v1400 = vpop.f32.mrb[0].mxu0
  %1401 = vmatprep.mubr.bf16.mxu0 %v513
  %1402 = vmatmul.mubr.bf16.gmra.mrb[0].mxu0 %v512
  %v1403 = vpop.f32.mrb[0].mxu0
  %v1404 = vadd.f32 %v1307, %v1403
  %v1405 = vpop.f32.mrb[0].mxu0
  %v1406 = vpop.f32.mrb[0].mxu0
  %v1407 = vadd.f32 %v1310, %v1406
  %v1408 = vpop.f32.mrb[0].mxu0
  %1409 = vmatprep.mubr.bf16.mxu0 %v522
  %1410 = vmatmul.mubr.bf16.gmra.mrb[0].mxu0 %v521
  %v1411 = vpop.f32.mrb[0].mxu0
  %v1412 = vadd.f32 %v1315, %v1411
  %v1413 = vpop.f32.mrb[0].mxu0
  %v1414 = vpop.f32.mrb[0].mxu0
  %v1415 = vadd.f32 %v1318, %v1414
  %v1416 = vpop.f32.mrb[0].mxu0
  %1417 = vmatprep.mubr.bf16.mxu0 %v531
  %1418 = vmatmul.mubr.bf16.gmra.mrb[0].mxu0 %v530
  %v1419 = vpop.f32.mrb[0].mxu0
  %v1420 = vadd.f32 %v1323, %v1419
  %v1421 = vpop.f32.mrb[0].mxu0
  %v1422 = vpop.f32.mrb[0].mxu0
  %v1423 = vadd.f32 %v1326, %v1422
  %v1424 = vpop.f32.mrb[0].mxu0
  %1425 = vmatprep.mubr.bf16.mxu0 %v540
  %1426 = vmatmul.mubr.bf16.gmra.mrb[0].mxu0 %v539
  %v1427 = vpop.f32.mrb[0].mxu0
  %v1428 = vadd.f32 %v1331, %v1427
  %v1429 = vpop.f32.mrb[0].mxu0
  %v1430 = vpop.f32.mrb[0].mxu0
  %v1431 = vadd.f32 %v1334, %v1430
  %v1432 = vpop.f32.mrb[0].mxu0
  %1433 = vdwg.mxu0
  %1434 = vmatprep.subr.bf16.mxu0 0
  %1435 = vmatpush1.bf16.msra.mxu0 %v966
  %1436 = vmatprep.subr.bf16.mxu0 0
  %1437 = vmatpush1.bf16.msra.mxu0 %v967
  %1438 = vmatprep.subr.bf16.mxu0 0
  %1439 = vmatpush1.bf16.msra.mxu0 %v968
  %1440 = vmatprep.subr.bf16.mxu0 0
  %1441 = vmatpush1.bf16.msra.mxu0 %v969
  %1442 = vmatprep.subr.bf16.mxu0 0
  %1443 = vmatpush1.bf16.msra.mxu0 %v970
  %1444 = vmatprep.subr.bf16.mxu0 0
  %1445 = vmatpush1.bf16.msra.mxu0 %v971
  %1446 = vmatprep.subr.bf16.mxu0 0
  %1447 = vmatpush1.bf16.msra.mxu0 %v972
  %1448 = vmatprep.subr.bf16.mxu0 0
  %1449 = vmatpush1.bf16.msra.mxu0 %v973
  %1450 = vmatprep.subr.bf16.mxu0 0
  %1451 = vmatpush1.bf16.msra.mxu0 0
  %1452 = vmatprep.subr.bf16.mxu0 0
  %1453 = vmatpush1.bf16.msra.mxu0 0
  %1454 = vmatprep.subr.bf16.mxu0 0
  %1455 = vmatpush1.bf16.msra.mxu0 0
  %1456 = vmatprep.subr.bf16.mxu0 0
  %1457 = vmatpush1.bf16.msra.mxu0 0
  %1458 = vmatprep.subr.bf16.mxu0 0
  %1459 = vmatpush1.bf16.msra.mxu0 0
  %1460 = vmatprep.subr.bf16.mxu0 0
  %1461 = vmatpush1.bf16.msra.mxu0 0
  %1462 = vmatprep.subr.bf16.mxu0 0
  %1463 = vmatpush1.bf16.msra.mxu0 0
  %1464 = vmatprep.subr.bf16.mxu0 0
  %1465 = vmatpush1.bf16.msra.mxu0 0
  %1466 = vmatprep.mubr.bf16.mxu0 0
  %1467 = vmatmul.mubr.bf16.gmra.mrb[0].mxu0 %v478
  %v1468 = vpop.f32.mrb[0].mxu0
  %v1469 = vadd.f32 %v1372, %v1468
  %v1470 = vpop.f32.mrb[0].mxu0
  %v1471 = vpop.f32.mrb[0].mxu0
  %v1472 = vadd.f32 %v1375, %v1471
  %v1473 = vpop.f32.mrb[0].mxu0
  %1474 = vmatprep.mubr.bf16.mxu0 0
  %1475 = vmatmul.mubr.bf16.gmra.mrb[0].mxu0 %v487
  %v1476 = vpop.f32.mrb[0].mxu0
  %v1477 = vadd.f32 %v1380, %v1476
  %v1478 = vpop.f32.mrb[0].mxu0
  %v1479 = vpop.f32.mrb[0].mxu0
  %v1480 = vadd.f32 %v1383, %v1479
  %v1481 = vpop.f32.mrb[0].mxu0
  %1482 = vmatprep.mubr.bf16.mxu0 0
  %1483 = vmatmul.mubr.bf16.gmra.mrb[0].mxu0 %v496
  %v1484 = vpop.f32.mrb[0].mxu0
  %v1485 = vadd.f32 %v1388, %v1484
  %v1486 = vpop.f32.mrb[0].mxu0
  %v1487 = vpop.f32.mrb[0].mxu0
  %v1488 = vadd.f32 %v1391, %v1487
  %v1489 = vpop.f32.mrb[0].mxu0
  %1490 = vmatprep.mubr.bf16.mxu0 0
  %1491 = vmatmul.mubr.bf16.gmra.mrb[0].mxu0 %v505
  %v1492 = vpop.f32.mrb[0].mxu0
  %v1493 = vadd.f32 %v1396, %v1492
  %v1494 = vpop.f32.mrb[0].mxu0
  %v1495 = vpop.f32.mrb[0].mxu0
  %v1496 = vadd.f32 %v1399, %v1495
  %v1497 = vpop.f32.mrb[0].mxu0
  %1498 = vmatprep.mubr.bf16.mxu0 0
  %1499 = vmatmul.mubr.bf16.gmra.mrb[0].mxu0 %v514
  %v1500 = vpop.f32.mrb[0].mxu0
  %v1501 = vadd.f32 %v1404, %v1500
  %v1502 = vpop.f32.mrb[0].mxu0
  %v1503 = vpop.f32.mrb[0].mxu0
  %v1504 = vadd.f32 %v1407, %v1503
  %v1505 = vpop.f32.mrb[0].mxu0
  %1506 = vmatprep.mubr.bf16.mxu0 0
  %1507 = vmatmul.mubr.bf16.gmra.mrb[0].mxu0 %v523
  %v1508 = vpop.f32.mrb[0].mxu0
  %v1509 = vadd.f32 %v1412, %v1508
  %v1510 = vpop.f32.mrb[0].mxu0
  %v1511 = vpop.f32.mrb[0].mxu0
  %v1512 = vadd.f32 %v1415, %v1511
  %v1513 = vpop.f32.mrb[0].mxu0
  %1514 = vmatprep.mubr.bf16.mxu0 0
  %1515 = vmatmul.mubr.bf16.gmra.mrb[0].mxu0 %v532
  %v1516 = vpop.f32.mrb[0].mxu0
  %v1517 = vadd.f32 %v1420, %v1516
  %v1518 = vpop.f32.mrb[0].mxu0
  %v1519 = vpop.f32.mrb[0].mxu0
  %v1520 = vadd.f32 %v1423, %v1519
  %v1521 = vpop.f32.mrb[0].mxu0
  %1522 = vmatprep.mubr.bf16.mxu0 0
  %1523 = vmatmul.mubr.bf16.gmra.mrb[0].mxu0 %v541
  %v1524 = vpop.f32.mrb[0].mxu0
  %v1525 = vadd.f32 %v1428, %v1524
  %v1526 = vpop.f32.mrb[0].mxu0
  %v1527 = vpop.f32.mrb[0].mxu0
  %v1528 = vadd.f32 %v1431, %v1527
  %v1529 = vpop.f32.mrb[0].mxu0
  %1530 = vdwg.mxu0
  %v1531 = vmax.f32 %v1469, 0.0
  %v1532 = vmax.f32 %v1472, 0.0
  %v1533 = vmax.f32 %v1477, 0.0
  %v1534 = vmax.f32 %v1480, 0.0
  %v1535 = vmax.f32 %v1485, 0.0
  %v1536 = vmax.f32 %v1488, 0.0
  %v1537 = vmax.f32 %v1493, 0.0
  %v1538 = vmax.f32 %v1496, 0.0
  %v1539 = vmax.f32 %v1501, 0.0
  %v1540 = vmax.f32 %v1504, 0.0
  %v1541 = vmax.f32 %v1509, 0.0
  %v1542 = vmax.f32 %v1512, 0.0
  %v1543 = vmax.f32 %v1517, 0.0
  %v1544 = vmax.f32 %v1520, 0.0
  %v1545 = vmax.f32 %v1525, 0.0
  %v1546 = vmax.f32 %v1528, 0.0
  %1547 = vst [vmem:[%s3] sm:$0xff] %v1531
  %1548 = vst [vmem:[%s3 + $0x8] sm:$0xff] %v1532
  %1549 = vst [vmem:[%s3 + $0x10] sm:$0xff] %v1533
  %1550 = vst [vmem:[%s3 + $0x18] sm:$0xff] %v1534
  %1551 = vst [vmem:[%s3 + $0x20] sm:$0xff] %v1535
  %1552 = vst [vmem:[%s3 + $0x28] sm:$0xff] %v1536
  %1553 = vst [vmem:[%s3 + $0x30] sm:$0xff] %v1537
  %1554 = vst [vmem:[%s3 + $0x38] sm:$0xff] %v1538
  %1555 = vst [vmem:[%s3 + $0x40] sm:$0xff] %v1539
  %1556 = vst [vmem:[%s3 + $0x48] sm:$0xff] %v1540
  %1557 = vst [vmem:[%s3 + $0x50] sm:$0xff] %v1541
  %1558 = vst [vmem:[%s3 + $0x58] sm:$0xff] %v1542
  %1559 = vst [vmem:[%s3 + $0x60] sm:$0xff] %v1543
  %1560 = vst [vmem:[%s3 + $0x68] sm:$0xff] %v1544
  %1561 = vst [vmem:[%s3 + $0x70] sm:$0xff] %v1545
  %1562 = vst [vmem:[%s3 + $0x78] sm:$0xff] %v1546
  // Predicated region
  $region14: #{deeplab_forward.5} parent=0 // pred_check
    _
  $region15: #{deeplab_forward.5} parent=0 // pred_check_branch
    %1564 = sbr.rel (0) target = $region17
  $region16: #{deeplab_forward.5} parent=0 // pred_region
    _
  $region17: #{deeplab_forward.5} parent=0 // pred_fallthru
    _
  // Predicated region
  $region18: #{deeplab_forward.5} parent=0 // pred_check
    _
  $region19: #{deeplab_forward.5} parent=0 // pred_check_branch
    %1566 = sbr.rel (0) target = $region21
  $region20: #{deeplab_forward.5} parent=0 // pred_region
    _
  $region21: #{deeplab_forward.5} parent=0 // pred_fallthru
    _

// kernel: deeplab_forward.7
$region0: #{deeplab_forward.7}
  #allocation0 [shape = 'u32[]', space=smem, size = 0x4, offset = 0x4, fixed_abs, tag = 'smem constant byte address 0x4 - core index']
  #allocation1 [shape = 'u32[144,128]{1,0:T(1,128)}', space=vmem, size = 0x12000, scoped, tag = 'internal scratch']
  %s0 = inlined_call_operand.vmem [shape: bf16[2,10,10,128], index: 0, kind: input, shape index: {}]
  %s1 = inlined_call_operand.vmem [shape: bf16[9,128,64], index: 1, kind: input, shape index: {}]
  %s2 = inlined_call_operand.vmem [shape: f32[1,64], index: 2, kind: input, shape index: {}]
  %s3 = inlined_call_operand.vmem [shape: bf16[64,128], index: 3, kind: input, shape index: {}]
  %s4 = inlined_call_operand.vmem [shape: f32[1,128], index: 4, kind: input, shape index: {}]
  %s5 = inlined_call_operand.vmem [shape: f32[2,64,128], index: 5, kind: output, shape index: {}]
  %s6 = sld [smem:[#allocation0]]
  $region53: #{deeplab_forward.7} parent=0
    _
  %s8 = ssub.s32 1, %s6
  %s9 = scalar_select 0, %s8, %s6
  loop: start=0, step=1, limit=4
  $region2: #{deeplab_forward.7} parent=0 // loop_pre_header
    _
  $region3: #{deeplab_forward.7} parent=0 // loop_header
    %s11 = sphi 0, %s15
    %p12 = scmp.ge.s32.totalorder %s11, 4
    %s21 = sphi 0, %s23
    %s24 = sphi 0, %s21
    %s25 = sphi 0, %s24
    %s41 = sphi 0, %s25
    %s45 = sphi 0, %s45
    %s47 = sphi 0, %s45
    %s48 = sphi 0, %s47
    %s62 = sphi 0, %s48
    %s66 = sphi 0, %s66
    %s68 = sphi 0, %s66
    %s69 = sphi 0, %s68
    %s83 = sphi 0, %s69
    %s87 = sphi 0, %s87
    %s89 = sphi 0, %s87
    %s90 = sphi 0, %s89
    %s104 = sphi 0, %s90
    %s108 = sphi 0, %s108
    %s110 = sphi 0, %s108
    %s111 = sphi 0, %s110
    %s125 = sphi 0, %s111
    %s131 = sphi 0, %s133
    %s134 = sphi 0, %s131
    %s135 = sphi 0, %s134
    %s151 = sphi 0, %s135
  $region4: #{deeplab_forward.7} parent=0 // loop_header_branch
    %14 = sbr.rel (%p12) target = $region8
  $region5: #{deeplab_forward.7} parent=0 // loop_body
    %s16 = ssub.s32 %s11, 1
    %s17 = ssub.s32 %s11, 2
    %s18 = sadd.s32 %s11, 1
    %s19 = ssub.s32 %s11, %s18
    %p20 = scmp.eq.s32.totalorder %s19, 0
    %s22 = sadd.s32 %s21, 1
    %s23 = scalar_select %p20, %s21, %s22
    %p26 = pneg %p20
    %p27 = scmp.eq.s32.totalorder %s11, 1
    %p28 = por %p26, %p27
    %p29 = scmp.ne.s32.totalorder %s21, %s24
    %p30 = scmp.eq.s32.totalorder %s11, 0
    %p31 = por %p29, %p30
    %p32 = scmp.ne.s32.totalorder %s21, %s24
    %p33 = scmp.eq.s32.totalorder %s16, 1
    %p34 = por %p32, %p33
    %p35 = scmp.ne.s32.totalorder %s24, %s25
    %p36 = scmp.eq.s32.totalorder %s16, 0
    %p37 = por %p35, %p36
    %p38 = scmp.ne.s32.totalorder %s24, %s25
    %p39 = scmp.eq.s32.totalorder %s17, 1
    %p40 = por %p38, %p39
    %p42 = scmp.ne.s32.totalorder %s25, %s41
    %p43 = scmp.eq.s32.totalorder %s17, 0
    %p44 = por %p42, %p43
    %s46 = sadd.s32 %s45, 1
    %p49 = scmp.eq.s32.totalorder %s11, 1
    %p50 = scmp.ne.s32.totalorder %s45, %s47
    %p51 = scmp.eq.s32.totalorder %s11, 0
    %p52 = por %p50, %p51
    %p53 = scmp.ne.s32.totalorder %s45, %s47
    %p54 = scmp.eq.s32.totalorder %s16, 1
    %p55 = por %p53, %p54
    %p56 = scmp.ne.s32.totalorder %s47, %s48
    %p57 = scmp.eq.s32.totalorder %s16, 0
    %p58 = por %p56, %p57
    %p59 = scmp.ne.s32.totalorder %s47, %s48
    %p60 = scmp.eq.s32.totalorder %s17, 1
    %p61 = por %p59, %p60
    %p63 = scmp.ne.s32.totalorder %s48, %s62
    %p64 = scmp.eq.s32.totalorder %s17, 0
    %p65 = por %p63, %p64
    %s67 = sadd.s32 %s66, 1
    %p70 = scmp.eq.s32.totalorder %s11, 1
    %p71 = scmp.ne.s32.totalorder %s66, %s68
    %p72 = scmp.eq.s32.totalorder %s11, 0
    %p73 = por %p71, %p72
    %p74 = scmp.ne.s32.totalorder %s66, %s68
    %p75 = scmp.eq.s32.totalorder %s16, 1
    %p76 = por %p74, %p75
    %p77 = scmp.ne.s32.totalorder %s68, %s69
    %p78 = scmp.eq.s32.totalorder %s16, 0
    %p79 = por %p77, %p78
    %p80 = scmp.ne.s32.totalorder %s68, %s69
    %p81 = scmp.eq.s32.totalorder %s17, 1
    %p82 = por %p80, %p81
    %p84 = scmp.ne.s32.totalorder %s69, %s83
    %p85 = scmp.eq.s32.totalorder %s17, 0
    %p86 = por %p84, %p85
    %s88 = sadd.s32 %s87, 1
    %p91 = scmp.eq.s32.totalorder %s11, 1
    %p92 = scmp.ne.s32.totalorder %s87, %s89
    %p93 = scmp.eq.s32.totalorder %s11, 0
    %p94 = por %p92, %p93
    %p95 = scmp.ne.s32.totalorder %s87, %s89
    %p96 = scmp.eq.s32.totalorder %s16, 1
    %p97 = por %p95, %p96
    %p98 = scmp.ne.s32.totalorder %s89, %s90
    %p99 = scmp.eq.s32.totalorder %s16, 0
    %p100 = por %p98, %p99
    %p101 = scmp.ne.s32.totalorder %s89, %s90
    %p102 = scmp.eq.s32.totalorder %s17, 1
    %p103 = por %p101, %p102
    %p105 = scmp.ne.s32.totalorder %s90, %s104
    %p106 = scmp.eq.s32.totalorder %s17, 0
    %p107 = por %p105, %p106
    %s109 = sadd.s32 %s108, 1
    %p112 = scmp.eq.s32.totalorder %s11, 1
    %p113 = scmp.ne.s32.totalorder %s108, %s110
    %p114 = scmp.eq.s32.totalorder %s11, 0
    %p115 = por %p113, %p114
    %p116 = scmp.ne.s32.totalorder %s108, %s110
    %p117 = scmp.eq.s32.totalorder %s16, 1
    %p118 = por %p116, %p117
    %p119 = scmp.ne.s32.totalorder %s110, %s111
    %p120 = scmp.eq.s32.totalorder %s16, 0
    %p121 = por %p119, %p120
    %p122 = scmp.ne.s32.totalorder %s110, %s111
    %p123 = scmp.eq.s32.totalorder %s17, 1
    %p124 = por %p122, %p123
    %p126 = scmp.ne.s32.totalorder %s111, %s125
    %p127 = scmp.eq.s32.totalorder %s17, 0
    %p128 = por %p126, %p127
    %s129 = ssub.s32 %s11, %s18
    %p130 = scmp.eq.s32.totalorder %s129, 0
    %s132 = sadd.s32 %s131, 1
    %s133 = scalar_select %p130, %s131, %s132
    %p136 = pneg %p130
    %p137 = scmp.eq.s32.totalorder %s11, 1
    %p138 = por %p136, %p137
    %p139 = scmp.ne.s32.totalorder %s131, %s134
    %p140 = scmp.eq.s32.totalorder %s11, 0
    %p141 = por %p139, %p140
    %p142 = scmp.ne.s32.totalorder %s131, %s134
    %p143 = scmp.eq.s32.totalorder %s16, 1
    %p144 = por %p142, %p143
    %p145 = scmp.ne.s32.totalorder %s134, %s135
    %p146 = scmp.eq.s32.totalorder %s16, 0
    %p147 = por %p145, %p146
    %p148 = scmp.ne.s32.totalorder %s134, %s135
    %p149 = scmp.eq.s32.totalorder %s17, 1
    %p150 = por %p148, %p149
    %p152 = scmp.ne.s32.totalorder %s135, %s151
    %p153 = scmp.eq.s32.totalorder %s17, 0
    %p154 = por %p152, %p153
    %p155 = scmp.le.s32.totalorder 1, %s11
    %p156 = scmp.lt.s32.totalorder %s11, 3
    %p157 = pnand %p155, %p156
    %p158 = pneg %p157
    // Predicated region
    $region9: #{deeplab_forward.7} parent=5 // pred_check
      _
    $region10: #{deeplab_forward.7} parent=5 // pred_check_branch
      %160 = sbr.rel (%p157) target = $region12
    $region11: #{deeplab_forward.7} parent=5 // pred_region
      %s161 = ssub.s32 %s11, 1
      // Predicated region
      $region13: #{deeplab_forward.7} parent=11 // pred_check
        %p162 = pneg %p58
      $region14: #{deeplab_forward.7} parent=11 // pred_check_branch
        %164 = sbr.rel (%p162) target = $region16
      $region15: #{deeplab_forward.7} parent=11 // pred_region
        _
      $region16: #{deeplab_forward.7} parent=11 // pred_fallthru
        _
      // Predicated region
      $region17: #{deeplab_forward.7} parent=11 // pred_check
        %p165 = pneg %p79
      $region18: #{deeplab_forward.7} parent=11 // pred_check_branch
        %167 = sbr.rel (%p165) target = $region20
      $region19: #{deeplab_forward.7} parent=11 // pred_region
        _
      $region20: #{deeplab_forward.7} parent=11 // pred_fallthru
        _
      // Predicated region
      $region21: #{deeplab_forward.7} parent=11 // pred_check
        %p168 = pneg %p100
      $region22: #{deeplab_forward.7} parent=11 // pred_check_branch
        %170 = sbr.rel (%p168) target = $region24
      $region23: #{deeplab_forward.7} parent=11 // pred_region
        _
      $region24: #{deeplab_forward.7} parent=11 // pred_fallthru
        _
      // Predicated region
      $region25: #{deeplab_forward.7} parent=11 // pred_check
        %p171 = pneg %p121
      $region26: #{deeplab_forward.7} parent=11 // pred_check_branch
        %173 = sbr.rel (%p171) target = $region28
      $region27: #{deeplab_forward.7} parent=11 // pred_region
        _
      $region28: #{deeplab_forward.7} parent=11 // pred_fallthru
        _
    $region12: #{deeplab_forward.7} parent=5 // pred_fallthru
      _
    %p174 = scmp.lt.s32.totalorder %s11, 2
    // Predicated region
    $region29: #{deeplab_forward.7} parent=5 // pred_check
      %p175 = pneg %p174
    $region30: #{deeplab_forward.7} parent=5 // pred_check_branch
      %177 = sbr.rel (%p175) target = $region32
    $region31: #{deeplab_forward.7} parent=5 // pred_region
      // Predicated region
      $region33: #{deeplab_forward.7} parent=31 // pred_check
        %p178 = pneg %p31
      $region34: #{deeplab_forward.7} parent=31 // pred_check_branch
        %180 = sbr.rel (%p178) target = $region36
      $region35: #{deeplab_forward.7} parent=31 // pred_region
        %p181 = scmp.lt.s32.totalorder %s11, 1
        %s182 = scalar_select %p181, %s11, 1
        %s183 = smul.addr %s182, 20
        %s184 = smul.addr %s183, 4
        %s185 = scalar_lea.vmem %s0, %s184
      $region36: #{deeplab_forward.7} parent=31 // pred_fallthru
        _
    $region32: #{deeplab_forward.7} parent=5 // pred_fallthru
      _
    %p186 = scmp.le.s32.totalorder 1, %s11
    %p187 = scmp.lt.s32.totalorder %s11, 3
    %p188 = pnand %p186, %p187
    %p189 = pneg %p188
    // Predicated region
    $region37: #{deeplab_forward.7} parent=5 // pred_check
      _
    $region38: #{deeplab_forward.7} parent=5 // pred_check_branch
      %191 = sbr.rel (%p188) target = $region40
    $region39: #{deeplab_forward.7} parent=5 // pred_region
      %s192 = ssub.s32 %s11, 1
      %p193 = scmp.lt.s32.totalorder %s16, 1
      %s194 = scalar_select %p193, %s16, 1
      %s195 = smul.addr %s194, 20
      %s196 = smul.addr %s195, 4
      %s197 = scalar_lea.vmem %s0, %s196
      %p198 = pneg %p37
      %p199 = pneg %p34
      %p200 = pneg %p58
      %p201 = pneg %p55
      %p202 = pneg %p79
      %p203 = pneg %p76
      %p204 = pneg %p100
      %p205 = pneg %p97
      %p206 = pneg %p121
      %p207 = pneg %p118
      %p208 = pneg %p147
      %p209 = pneg %p144
      %p210 = scmp.lt.s32.totalorder %s16, 1
      %s211 = scalar_select %p210, %s16, 1
      %s212 = smul.addr %s211, 8
      %s213 = smul.addr %s212, 8
      %s214 = scalar_lea.vmem %s5, %s213
      %p215 = scmp.lt.s32.totalorder %s16, 1
      %s216 = scalar_select %p215, %s16, 1
      %s217 = smul.addr %s216, 20
      %s218 = smul.addr %s217, 4
      %s219 = scalar_lea.vmem %s0, %s218
      %p220 = scmp.lt.s32.totalorder %s16, 1
      %s221 = scalar_select %p220, %s16, 1
      %s222 = smul.addr %s221, 8
      %s223 = smul.addr %s222, 8
      %s224 = scalar_lea.vmem %s5, %s223
      %v226 = vld [vmem:[%s219] sm:$0xf]
      %v227 = vld [vmem:[%s219 + $0x8] sm:$0xf]
      %v228 = vld [vmem:[%s219 + $0x10] sm:$0xf]
      %v229 = vld [vmem:[%s219 + $0x18] sm:$0xf]
      %v230 = vld [vmem:[%s219 + $0x20] sm:$0xf]
      %v231 = vld [vmem:[%s219 + $0x28] sm:$0xf]
      %v232 = vld [vmem:[%s219 + $0x30] sm:$0xf]
      %v233 = vld [vmem:[%s219 + $0x38] sm:$0xf]
      %v234 = vld [vmem:[%s1] sm:$0xf]
      %v235 = vld [vmem:[%s1 + $0x4] sm:$0xf]
      %v236 = vld [vmem:[%s1 + $0x8] sm:$0xf]
      %v237 = vld [vmem:[%s1 + $0xc] sm:$0xf]
      %v238 = vld [vmem:[%s1 + $0x10] sm:$0xf]
      %v239 = vld [vmem:[%s1 + $0x14] sm:$0xf]
      %v240 = vld [vmem:[%s1 + $0x18] sm:$0xf]
      %v241 = vld [vmem:[%s1 + $0x1c] sm:$0xf]
      %v242 = vld [vmem:[%s1 + $0x20] sm:$0xf]
      %v243 = vld [vmem:[%s1 + $0x24] sm:$0xf]
      %v244 = vld [vmem:[%s1 + $0x28] sm:$0xf]
      %v245 = vld [vmem:[%s1 + $0x2c] sm:$0xf]
      %v246 = vld [vmem:[%s1 + $0x30] sm:$0xf]
      %v247 = vld [vmem:[%s1 + $0x34] sm:$0xf]
      %v248 = vld [vmem:[%s1 + $0x38] sm:$0xf]
      %v249 = vld [vmem:[%s1 + $0x3c] sm:$0xf]
      %v250 = vld [vmem:[%s219 + $0x4] sm:$0x1]
      %v251 = vld [vmem:[%s219 + $0xc] sm:$0x1]
      %v252 = vld [vmem:[%s219 + $0x14] sm:$0x1]
      %v253 = vld [vmem:[%s219 + $0x1c] sm:$0x1]
      %v254 = vld [vmem:[%s219 + $0x24] sm:$0x1]
      %v255 = vld [vmem:[%s219 + $0x2c] sm:$0x1]
      %v256 = vld [vmem:[%s219 + $0x34] sm:$0x1]
      %v257 = vld [vmem:[%s219 + $0x3c] sm:$0x1]
      %vm258 = vsmask.f32 3328
      %vm259 = vsmask.f32 7440
      %vm260 = vmor %vm258, %vm259
      %v262 = vshrl.u32 %v226, 16
      %v264 = vrot.slane %v262, 4
      %v265 = vshll.u32 %v226, 16
      %v267 = vrot.slane %v265, 5
      %v268 = vor.u32 %v264, %v267
      %v269 = vrot.slane %v268, 4
      %v271 = vshll.u32 %v250, 16
      %v273 = vrot.slane %v271, 5
      %v274 = vsel %vm260, %v269, %v273
      %v276 = vshrl.u32 %v227, 16
      %v278 = vrot.slane %v276, 4
      %v279 = vshll.u32 %v227, 16
      %v281 = vrot.slane %v279, 5
      %v282 = vor.u32 %v278, %v281
      %v283 = vrot.slane %v282, 4
      %v285 = vshll.u32 %v251, 16
      %v287 = vrot.slane %v285, 5
      %v288 = vsel %vm260, %v283, %v287
      %v290 = vshrl.u32 %v228, 16
      %v292 = vrot.slane %v290, 4
      %v293 = vshll.u32 %v228, 16
      %v295 = vrot.slane %v293, 5
      %v296 = vor.u32 %v292, %v295
      %v297 = vrot.slane %v296, 4
      %v299 = vshll.u32 %v252, 16
      %v301 = vrot.slane %v299, 5
      %v302 = vsel %vm260, %v297, %v301
      %v304 = vshrl.u32 %v229, 16
      %v306 = vrot.slane %v304, 4
      %v307 = vshll.u32 %v229, 16
      %v309 = vrot.slane %v307, 5
      %v310 = vor.u32 %v306, %v309
      %v311 = vrot.slane %v310, 4
      %v313 = vshll.u32 %v253, 16
      %v315 = vrot.slane %v313, 5
      %v316 = vsel %vm260, %v311, %v315
      %v318 = vshrl.u32 %v230, 16
      %v320 = vrot.slane %v318, 4
      %v321 = vshll.u32 %v230, 16
      %v323 = vrot.slane %v321, 5
      %v324 = vor.u32 %v320, %v323
      %v325 = vrot.slane %v324, 4
      %v327 = vshll.u32 %v254, 16
      %v329 = vrot.slane %v327, 5
      %v330 = vsel %vm260, %v325, %v329
      %v332 = vshrl.u32 %v231, 16
      %v334 = vrot.slane %v332, 4
      %v335 = vshll.u32 %v231, 16
      %v337 = vrot.slane %v335, 5
      %v338 = vor.u32 %v334, %v337
      %v339 = vrot.slane %v338, 4
      %v341 = vshll.u32 %v255, 16
      %v343 = vrot.slane %v341, 5
      %v344 = vsel %vm260, %v339, %v343
      %v346 = vshrl.u32 %v232, 16
      %v348 = vrot.slane %v346, 4
      %v349 = vshll.u32 %v232, 16
      %v351 = vrot.slane %v349, 5
      %v352 = vor.u32 %v348, %v351
      %v353 = vrot.slane %v352, 4
      %v355 = vshll.u32 %v256, 16
      %v357 = vrot.slane %v355, 5
      %v358 = vsel %vm260, %v353, %v357
      %v360 = vshrl.u32 %v233, 16
      %v362 = vrot.slane %v360, 4
      %v363 = vshll.u32 %v233, 16
      %v365 = vrot.slane %v363, 5
      %v366 = vor.u32 %v362, %v365
      %v367 = vrot.slane %v366, 4
      %v369 = vshll.u32 %v257, 16
      %v371 = vrot.slane %v369, 5
      %v372 = vsel %vm260, %v367, %v371
      %s373 = scalar_lea.vmem %s1, 64
      %v374 = vld [vmem:[%s373] sm:$0xf]
      %v375 = vld [vmem:[%s373 + $0x4] sm:$0xf]
      %v376 = vld [vmem:[%s373 + $0x8] sm:$0xf]
      %v377 = vld [vmem:[%s373 + $0xc] sm:$0xf]
      %v378 = vld [vmem:[%s373 + $0x10] sm:$0xf]
      %v379 = vld [vmem:[%s373 + $0x14] sm:$0xf]
      %v380 = vld [vmem:[%s373 + $0x18] sm:$0xf]
      %v381 = vld [vmem:[%s373 + $0x1c] sm:$0xf]
      %v382 = vld [vmem:[%s373 + $0x20] sm:$0xf]
      %v383 = vld [vmem:[%s373 + $0x24] sm:$0xf]
      %v384 = vld [vmem:[%s373 + $0x28] sm:$0xf]
      %v385 = vld [vmem:[%s373 + $0x2c] sm:$0xf]
      %v386 = vld [vmem:[%s373 + $0x30] sm:$0xf]
      %v387 = vld [vmem:[%s373 + $0x34] sm:$0xf]
      %v388 = vld [vmem:[%s373 + $0x38] sm:$0xf]
      %v389 = vld [vmem:[%s373 + $0x3c] sm:$0xf]
      %v390 = vunpack.c.l.b16 %v274
      %v391 = vunpack.c.l.b16 %v288
      %v392 = vunpack.c.l.b16 %v302
      %v393 = vunpack.c.l.b16 %v316
      %v394 = vunpack.c.l.b16 %v330
      %v395 = vunpack.c.l.b16 %v344
      %v396 = vunpack.c.l.b16 %v358
      %v397 = vunpack.c.l.b16 %v372
      %v398 = vpack.c.b16 %v391, %v390
      %v399 = vpack.c.b16 %v393, %v392
      %v400 = vpack.c.b16 %v395, %v394
      %v401 = vpack.c.b16 %v397, %v396
      %v422 = vunpack.c.l.b16 %v374
      %v423 = vunpack.c.l.b16 %v375
      %v424 = vunpack.c.l.b16 %v376
      %v425 = vunpack.c.l.b16 %v377
      %v426 = vunpack.c.l.b16 %v378
      %v427 = vunpack.c.l.b16 %v379
      %v428 = vunpack.c.l.b16 %v380
      %v429 = vunpack.c.l.b16 %v381
      %v430 = vunpack.c.l.b16 %v382
      %v431 = vunpack.c.l.b16 %v383
      %v432 = vunpack.c.l.b16 %v384
      %v433 = vunpack.c.l.b16 %v385
      %v434 = vunpack.c.l.b16 %v386
      %v435 = vunpack.c.l.b16 %v387
      %v436 = vunpack.c.l.b16 %v388
      %v437 = vunpack.c.l.b16 %v389
      %v438 = vpack.c.b16 %v423, %v422
      %v439 = vpack.c.b16 %v425, %v424
      %v440 = vpack.c.b16 %v427, %v426
      %v441 = vpack.c.b16 %v429, %v428
      %v442 = vpack.c.b16 %v431, %v430
      %v443 = vpack.c.b16 %v433, %v432
      %v444 = vpack.c.b16 %v435, %v434
      %v445 = vpack.c.b16 %v437, %v436
      %454 = vmatprep.subr.bf16.mxu0 0
      %455 = vmatpush1.bf16.msra.mxu0 %v438
      %456 = vmatprep.subr.bf16.mxu0 0
      %457 = vmatpush1.bf16.msra.mxu0 %v439
      %458 = vmatprep.subr.bf16.mxu0 0
      %459 = vmatpush1.bf16.msra.mxu0 %v440
      %460 = vmatprep.subr.bf16.mxu0 0
      %461 = vmatpush1.bf16.msra.mxu0 %v441
      %462 = vmatprep.subr.bf16.mxu0 0
      %463 = vmatpush1.bf16.msra.mxu0 %v442
      %464 = vmatprep.subr.bf16.mxu0 0
      %465 = vmatpush1.bf16.msra.mxu0 %v443
      %466 = vmatprep.subr.bf16.mxu0 0
      %467 = vmatpush1.bf16.msra.mxu0 %v444
      %468 = vmatprep.subr.bf16.mxu0 0
      %469 = vmatpush1.bf16.msra.mxu0 %v445
      %470 = vmatprep.subr.bf16.mxu0 0
      %471 = vmatpush1.bf16.msra.mxu0 0
      %472 = vmatprep.subr.bf16.mxu0 0
      %473 = vmatpush1.bf16.msra.mxu0 0
      %474 = vmatprep.subr.bf16.mxu0 0
      %475 = vmatpush1.bf16.msra.mxu0 0
      %476 = vmatprep.subr.bf16.mxu0 0
      %477 = vmatpush1.bf16.msra.mxu0 0
      %478 = vmatprep.subr.bf16.mxu0 0
      %479 = vmatpush1.bf16.msra.mxu0 0
      %480 = vmatprep.subr.bf16.mxu0 0
      %481 = vmatpush1.bf16.msra.mxu0 0
      %482 = vmatprep.subr.bf16.mxu0 0
      %483 = vmatpush1.bf16.msra.mxu0 0
      %484 = vmatprep.subr.bf16.mxu0 0
      %485 = vmatpush1.bf16.msra.mxu0 0
      %486 = vmatprep.mubr.bf16.mxu0 0
      %487 = vmatmul.mubr.bf16.gmra.mrb[0].mxu0 %v398
      %v488 = vpop.f32.mrb[0].mxu0
      %v489 = vadd.f32 0.0, %v488
      %v490 = vpop.f32.mrb[0].mxu0
      %v491 = vpop.f32.mrb[0].mxu0
      %v492 = vadd.f32 0.0, %v491
      %v493 = vpop.f32.mrb[0].mxu0
      %494 = vmatprep.mubr.bf16.mxu0 0
      %495 = vmatmul.mubr.bf16.gmra.mrb[0].mxu0 %v399
      %v496 = vpop.f32.mrb[0].mxu0
      %v497 = vadd.f32 0.0, %v496
      %v498 = vpop.f32.mrb[0].mxu0
      %v499 = vpop.f32.mrb[0].mxu0
      %v500 = vadd.f32 0.0, %v499
      %v501 = vpop.f32.mrb[0].mxu0
      %502 = vmatprep.mubr.bf16.mxu0 0
      %503 = vmatmul.mubr.bf16.gmra.mrb[0].mxu0 %v400
      %v504 = vpop.f32.mrb[0].mxu0
      %v505 = vadd.f32 0.0, %v504
      %v506 = vpop.f32.mrb[0].mxu0
      %v507 = vpop.f32.mrb[0].mxu0
      %v508 = vadd.f32 0.0, %v507
      %v509 = vpop.f32.mrb[0].mxu0
      %510 = vmatprep.mubr.bf16.mxu0 0
      %511 = vmatmul.mubr.bf16.gmra.mrb[0].mxu0 %v401
      %v512 = vpop.f32.mrb[0].mxu0
      %v513 = vadd.f32 0.0, %v512
      %v514 = vpop.f32.mrb[0].mxu0
      %v515 = vpop.f32.mrb[0].mxu0
      %v516 = vadd.f32 0.0, %v515
      %v517 = vpop.f32.mrb[0].mxu0
      %518 = vdwg.mxu0
      %v527 = vunpack.c.l.b16 %v226
      %v528 = vunpack.c.l.b16 %v227
      %v529 = vunpack.c.l.b16 %v228
      %v530 = vunpack.c.l.b16 %v229
      %v531 = vunpack.c.l.b16 %v230
      %v532 = vunpack.c.l.b16 %v231
      %v533 = vunpack.c.l.b16 %v232
      %v534 = vunpack.c.l.b16 %v233
      %v535 = vpack.c.b16 %v528, %v527
      %v536 = vpack.c.b16 %v530, %v529
      %v537 = vpack.c.b16 %v532, %v531
      %v538 = vpack.c.b16 %v534, %v533
      %v559 = vunpack.c.l.b16 %v234
      %v560 = vunpack.c.l.b16 %v235
      %v561 = vunpack.c.l.b16 %v236
      %v562 = vunpack.c.l.b16 %v237
      %v563 = vunpack.c.l.b16 %v238
      %v564 = vunpack.c.l.b16 %v239
      %v565 = vunpack.c.l.b16 %v240
      %v566 = vunpack.c.l.b16 %v241
      %v567 = vunpack.c.l.b16 %v242
      %v568 = vunpack.c.l.b16 %v243
      %v569 = vunpack.c.l.b16 %v244
      %v570 = vunpack.c.l.b16 %v245
      %v571 = vunpack.c.l.b16 %v246
      %v572 = vunpack.c.l.b16 %v247
      %v573 = vunpack.c.l.b16 %v248
      %v574 = vunpack.c.l.b16 %v249
      %v575 = vpack.c.b16 %v560, %v559
      %v576 = vpack.c.b16 %v562, %v561
      %v577 = vpack.c.b16 %v564, %v563
      %v578 = vpack.c.b16 %v566, %v565
      %v579 = vpack.c.b16 %v568, %v567
      %v580 = vpack.c.b16 %v570, %v569
      %v581 = vpack.c.b16 %v572, %v571
      %v582 = vpack.c.b16 %v574, %v573
      %591 = vmatprep.subr.bf16.mxu0 0
      %592 = vmatpush1.bf16.msra.mxu0 %v575
      %593 = vmatprep.subr.bf16.mxu0 0
      %594 = vmatpush1.bf16.msra.mxu0 %v576
      %595 = vmatprep.subr.bf16.mxu0 0
      %596 = vmatpush1.bf16.msra.mxu0 %v577
      %597 = vmatprep.subr.bf16.mxu0 0
      %598 = vmatpush1.bf16.msra.mxu0 %v578
      %599 = vmatprep.subr.bf16.mxu0 0
      %600 = vmatpush1.bf16.msra.mxu0 %v579
      %601 = vmatprep.subr.bf16.mxu0 0
      %602 = vmatpush1.bf16.msra.mxu0 %v580
      %603 = vmatprep.subr.bf16.mxu0 0
      %604 = vmatpush1.bf16.msra.mxu0 %v581
      %605 = vmatprep.subr.bf16.mxu0 0
      %606 = vmatpush1.bf16.msra.mxu0 %v582
      %607 = vmatprep.subr.bf16.mxu0 0
      %608 = vmatpush1.bf16.msra.mxu0 0
      %609 = vmatprep.subr.bf16.mxu0 0
      %610 = vmatpush1.bf16.msra.mxu0 0
      %611 = vmatprep.subr.bf16.mxu0 0
      %612 = vmatpush1.bf16.msra.mxu0 0
      %613 = vmatprep.subr.bf16.mxu0 0
      %614 = vmatpush1.bf16.msra.mxu0 0
      %615 = vmatprep.subr.bf16.mxu0 0
      %616 = vmatpush1.bf16.msra.mxu0 0
      %617 = vmatprep.subr.bf16.mxu0 0
      %618 = vmatpush1.bf16.msra.mxu0 0
      %619 = vmatprep.subr.bf16.mxu0 0
      %620 = vmatpush1.bf16.msra.mxu0 0
      %621 = vmatprep.subr.bf16.mxu0 0
      %622 = vmatpush1.bf16.msra.mxu0 0
      %623 = vmatprep.mubr.bf16.mxu0 0
      %624 = vmatmul.mubr.bf16.gmra.mrb[0].mxu0 %v535
      %v625 = vpop.f32.mrb[0].mxu0
      %v626 = vadd.f32 %v489, %v625
      %v627 = vpop.f32.mrb[0].mxu0
      %v628 = vpop.f32.mrb[0].mxu0
      %v629 = vadd.f32 %v492, %v628
      %v630 = vpop.f32.mrb[0].mxu0
      %631 = vmatprep.mubr.bf16.mxu0 0
      %632 = vmatmul.mubr.bf16.gmra.mrb[0].mxu0 %v536
      %v633 = vpop.f32.mrb[0].mxu0
      %v634 = vadd.f32 %v497, %v633
      %v635 = vpop.f32.mrb[0].mxu0
      %v636 = vpop.f32.mrb[0].mxu0
      %v637 = vadd.f32 %v500, %v636
      %v638 = vpop.f32.mrb[0].mxu0
      %639 = vmatprep.mubr.bf16.mxu0 0
      %640 = vmatmul.mubr.bf16.gmra.mrb[0].mxu0 %v537
      %v641 = vpop.f32.mrb[0].mxu0
      %v642 = vadd.f32 %v505, %v641
      %v643 = vpop.f32.mrb[0].mxu0
      %v644 = vpop.f32.mrb[0].mxu0
      %v645 = vadd.f32 %v508, %v644
      %v646 = vpop.f32.mrb[0].mxu0
      %647 = vmatprep.mubr.bf16.mxu0 0
      %648 = vmatmul.mubr.bf16.gmra.mrb[0].mxu0 %v538
      %v649 = vpop.f32.mrb[0].mxu0
      %v650 = vadd.f32 %v513, %v649
      %v651 = vpop.f32.mrb[0].mxu0
      %v652 = vpop.f32.mrb[0].mxu0
      %v653 = vadd.f32 %v516, %v652
      %v654 = vpop.f32.mrb[0].mxu0
      %655 = vdwg.mxu0
      %v656 = vld [vmem:[%s219] sm:$0xe]
      %v657 = vld [vmem:[%s219 + $0x8] sm:$0xe]
      %v658 = vld [vmem:[%s219 + $0x10] sm:$0xe]
      %v659 = vld [vmem:[%s219 + $0x18] sm:$0xe]
      %v660 = vld [vmem:[%s219 + $0x20] sm:$0xe]
      %v661 = vld [vmem:[%s219 + $0x28] sm:$0xe]
      %v662 = vld [vmem:[%s219 + $0x30] sm:$0xe]
      %v663 = vld [vmem:[%s219 + $0x38] sm:$0xe]
      %vm680 = vcmask 1042432
      %vm681 = vcmask 1046532
      %vm682 = vmor %vm680, %vm681
      %v683 = vrot.slane %v656, 5
      %v684 = vrot.slane %v683, 4
      %v685 = vrot.slane %v250, 5
      %v686 = vsel %vm682, %v684, %v685
      %v687 = vrot.slane %v657, 5
      %v688 = vrot.slane %v687, 4
      %v689 = vrot.slane %v251, 5
      %v690 = vsel %vm682, %v688, %v689
      %v691 = vrot.slane %v658, 5
      %v692 = vrot.slane %v691, 4
      %v693 = vrot.slane %v252, 5
      %v694 = vsel %vm682, %v692, %v693
      %v695 = vrot.slane %v659, 5
      %v696 = vrot.slane %v695, 4
      %v697 = vrot.slane %v253, 5
      %v698 = vsel %vm682, %v696, %v697
      %v699 = vrot.slane %v660, 5
      %v700 = vrot.slane %v699, 4
      %v701 = vrot.slane %v254, 5
      %v702 = vsel %vm682, %v700, %v701
      %v703 = vrot.slane %v661, 5
      %v704 = vrot.slane %v703, 4
      %v705 = vrot.slane %v255, 5
      %v706 = vsel %vm682, %v704, %v705
      %v707 = vrot.slane %v662, 5
      %v708 = vrot.slane %v707, 4
      %v709 = vrot.slane %v256, 5
      %v710 = vsel %vm682, %v708, %v709
      %v711 = vrot.slane %v663, 5
      %v712 = vrot.slane %v711, 4
      %v713 = vrot.slane %v257, 5
      %v714 = vsel %vm682, %v712, %v713
      %s715 = scalar_lea.vmem %s1, 128
      %v716 = vld [vmem:[%s715] sm:$0xf]
      %v717 = vld [vmem:[%s715 + $0x4] sm:$0xf]
      %v718 = vld [vmem:[%s715 + $0x8] sm:$0xf]
      %v719 = vld [vmem:[%s715 + $0xc] sm:$0xf]
      %v720 = vld [vmem:[%s715 + $0x10] sm:$0xf]
      %v721 = vld [vmem:[%s715 + $0x14] sm:$0xf]
      %v722 = vld [vmem:[%s715 + $0x18] sm:$0xf]
      %v723 = vld [vmem:[%s715 + $0x1c] sm:$0xf]
      %v724 = vld [vmem:[%s715 + $0x20] sm:$0xf]
      %v725 = vld [vmem:[%s715 + $0x24] sm:$0xf]
      %v726 = vld [vmem:[%s715 + $0x28] sm:$0xf]
      %v727 = vld [vmem:[%s715 + $0x2c] sm:$0xf]
      %v728 = vld [vmem:[%s715 + $0x30] sm:$0xf]
      %v729 = vld [vmem:[%s715 + $0x34] sm:$0xf]
      %v730 = vld [vmem:[%s715 + $0x38] sm:$0xf]
      %v731 = vld [vmem:[%s715 + $0x3c] sm:$0xf]
      %v732 = vunpack.c.l.b16 %v686
      %v733 = vunpack.c.l.b16 %v690
      %v734 = vunpack.c.l.b16 %v694
      %v735 = vunpack.c.l.b16 %v698
      %v736 = vunpack.c.l.b16 %v702
      %v737 = vunpack.c.l.b16 %v706
      %v738 = vunpack.c.l.b16 %v710
      %v739 = vunpack.c.l.b16 %v714
      %v740 = vpack.c.b16 %v733, %v732
      %v741 = vpack.c.b16 %v735, %v734
      %v742 = vpack.c.b16 %v737, %v736
      %v743 = vpack.c.b16 %v739, %v738
      %v764 = vunpack.c.l.b16 %v716
      %v765 = vunpack.c.l.b16 %v717
      %v766 = vunpack.c.l.b16 %v718
      %v767 = vunpack.c.l.b16 %v719
      %v768 = vunpack.c.l.b16 %v720
      %v769 = vunpack.c.l.b16 %v721
      %v770 = vunpack.c.l.b16 %v722
      %v771 = vunpack.c.l.b16 %v723
      %v772 = vunpack.c.l.b16 %v724
      %v773 = vunpack.c.l.b16 %v725
      %v774 = vunpack.c.l.b16 %v726
      %v775 = vunpack.c.l.b16 %v727
      %v776 = vunpack.c.l.b16 %v728
      %v777 = vunpack.c.l.b16 %v729
      %v778 = vunpack.c.l.b16 %v730
      %v779 = vunpack.c.l.b16 %v731
      %v780 = vpack.c.b16 %v765, %v764
      %v781 = vpack.c.b16 %v767, %v766
      %v782 = vpack.c.b16 %v769, %v768
      %v783 = vpack.c.b16 %v771, %v770
      %v784 = vpack.c.b16 %v773, %v772
      %v785 = vpack.c.b16 %v775, %v774
      %v786 = vpack.c.b16 %v777, %v776
      %v787 = vpack.c.b16 %v779, %v778
      %796 = vmatprep.subr.bf16.mxu0 0
      %797 = vmatpush1.bf16.msra.mxu0 %v780
      %798 = vmatprep.subr.bf16.mxu0 0
      %799 = vmatpush1.bf16.msra.mxu0 %v781
      %800 = vmatprep.subr.bf16.mxu0 0
      %801 = vmatpush1.bf16.msra.mxu0 %v782
      %802 = vmatprep.subr.bf16.mxu0 0
      %803 = vmatpush1.bf16.msra.mxu0 %v783
      %804 = vmatprep.subr.bf16.mxu0 0
      %805 = vmatpush1.bf16.msra.mxu0 %v784
      %806 = vmatprep.subr.bf16.mxu0 0
      %807 = vmatpush1.bf16.msra.mxu0 %v785
      %808 = vmatprep.subr.bf16.mxu0 0
      %809 = vmatpush1.bf16.msra.mxu0 %v786
      %810 = vmatprep.subr.bf16.mxu0 0
      %811 = vmatpush1.bf16.msra.mxu0 %v787
      %812 = vmatprep.subr.bf16.mxu0 0
      %813 = vmatpush1.bf16.msra.mxu0 0
      %814 = vmatprep.subr.bf16.mxu0 0
      %815 = vmatpush1.bf16.msra.mxu0 0
      %816 = vmatprep.subr.bf16.mxu0 0
      %817 = vmatpush1.bf16.msra.mxu0 0
      %818 = vmatprep.subr.bf16.mxu0 0
      %819 = vmatpush1.bf16.msra.mxu0 0
      %820 = vmatprep.subr.bf16.mxu0 0
      %821 = vmatpush1.bf16.msra.mxu0 0
      %822 = vmatprep.subr.bf16.mxu0 0
      %823 = vmatpush1.bf16.msra.mxu0 0
      %824 = vmatprep.subr.bf16.mxu0 0
      %825 = vmatpush1.bf16.msra.mxu0 0
      %826 = vmatprep.subr.bf16.mxu0 0
      %827 = vmatpush1.bf16.msra.mxu0 0
      %828 = vmatprep.mubr.bf16.mxu0 0
      %829 = vmatmul.mubr.bf16.gmra.mrb[0].mxu0 %v740
      %v830 = vpop.f32.mrb[0].mxu0
      %v831 = vadd.f32 0.0, %v830
      %v832 = vpop.f32.mrb[0].mxu0
      %v833 = vpop.f32.mrb[0].mxu0
      %v834 = vadd.f32 0.0, %v833
      %v835 = vpop.f32.mrb[0].mxu0
      %836 = vmatprep.mubr.bf16.mxu0 0
      %837 = vmatmul.mubr.bf16.gmra.mrb[0].mxu0 %v741
      %v838 = vpop.f32.mrb[0].mxu0
      %v839 = vadd.f32 0.0, %v838
      %v840 = vpop.f32.mrb[0].mxu0
      %v841 = vpop.f32.mrb[0].mxu0
      %v842 = vadd.f32 0.0, %v841
      %v843 = vpop.f32.mrb[0].mxu0
      %844 = vmatprep.mubr.bf16.mxu0 0
      %845 = vmatmul.mubr.bf16.gmra.mrb[0].mxu0 %v742
      %v846 = vpop.f32.mrb[0].mxu0
      %v847 = vadd.f32 0.0, %v846
      %v848 = vpop.f32.mrb[0].mxu0
      %v849 = vpop.f32.mrb[0].mxu0
      %v850 = vadd.f32 0.0, %v849
      %v851 = vpop.f32.mrb[0].mxu0
      %852 = vmatprep.mubr.bf16.mxu0 0
      %853 = vmatmul.mubr.bf16.gmra.mrb[0].mxu0 %v743
      %v854 = vpop.f32.mrb[0].mxu0
      %v855 = vadd.f32 0.0, %v854
      %v856 = vpop.f32.mrb[0].mxu0
      %v857 = vpop.f32.mrb[0].mxu0
      %v858 = vadd.f32 0.0, %v857
      %v859 = vpop.f32.mrb[0].mxu0
      %860 = vdwg.mxu0
      %v861 = vadd.f32 %v626, %v831
      %v862 = vadd.f32 %v629, %v834
      %v863 = vadd.f32 %v634, %v839
      %v864 = vadd.f32 %v637, %v842
      %v865 = vadd.f32 %v642, %v847
      %v866 = vadd.f32 %v645, %v850
      %v867 = vadd.f32 %v650, %v855
      %v868 = vadd.f32 %v653, %v858
      %s869 = scalar_lea.vmem %s219, 8
      %v870 = vld [vmem:[%s869] sm:$0xf]
      %v871 = vld [vmem:[%s869 + $0x8] sm:$0xf]
      %v872 = vld [vmem:[%s869 + $0x10] sm:$0xf]
      %v873 = vld [vmem:[%s869 + $0x18] sm:$0xf]
      %v874 = vld [vmem:[%s869 + $0x20] sm:$0xf]
      %v875 = vld [vmem:[%s869 + $0x28] sm:$0xf]
      %v876 = vld [vmem:[%s869 + $0x30] sm:$0xf]
      %v877 = vld [vmem:[%s869 + $0x38] sm:$0xf]
      %s878 = scalar_lea.vmem %s1, 192
      %v879 = vld [vmem:[%s878] sm:$0xf]
      %v880 = vld [vmem:[%s878 + $0x4] sm:$0xf]
      %v881 = vld [vmem:[%s878 + $0x8] sm:$0xf]
      %v882 = vld [vmem:[%s878 + $0xc] sm:$0xf]
      %v883 = vld [vmem:[%s878 + $0x10] sm:$0xf]
      %v884 = vld [vmem:[%s878 + $0x14] sm:$0xf]
      %v885 = vld [vmem:[%s878 + $0x18] sm:$0xf]
      %v886 = vld [vmem:[%s878 + $0x1c] sm:$0xf]
      %v887 = vld [vmem:[%s878 + $0x20] sm:$0xf]
      %v888 = vld [vmem:[%s878 + $0x24] sm:$0xf]
      %v889 = vld [vmem:[%s878 + $0x28] sm:$0xf]
      %v890 = vld [vmem:[%s878 + $0x2c] sm:$0xf]
      %v891 = vld [vmem:[%s878 + $0x30] sm:$0xf]
      %v892 = vld [vmem:[%s878 + $0x34] sm:$0xf]
      %v893 = vld [vmem:[%s878 + $0x38] sm:$0xf]
      %v894 = vld [vmem:[%s878 + $0x3c] sm:$0xf]
      %v903 = vunpack.c.l.b16 %v870
      %v904 = vunpack.c.l.b16 %v871
      %v905 = vunpack.c.l.b16 %v872
      %v906 = vunpack.c.l.b16 %v873
      %v907 = vunpack.c.l.b16 %v874
      %v908 = vunpack.c.l.b16 %v875
      %v909 = vunpack.c.l.b16 %v876
      %v910 = vunpack.c.l.b16 %v877
      %v911 = vpack.c.b16 %v904, %v903
      %v912 = vpack.c.b16 %v906, %v905
      %v913 = vpack.c.b16 %v908, %v907
      %v914 = vpack.c.b16 %v910, %v909
      %v935 = vunpack.c.l.b16 %v879
      %v936 = vunpack.c.l.b16 %v880
      %v937 = vunpack.c.l.b16 %v881
      %v938 = vunpack.c.l.b16 %v882
      %v939 = vunpack.c.l.b16 %v883
      %v940 = vunpack.c.l.b16 %v884
      %v941 = vunpack.c.l.b16 %v885
      %v942 = vunpack.c.l.b16 %v886
      %v943 = vunpack.c.l.b16 %v887
      %v944 = vunpack.c.l.b16 %v888
      %v945 = vunpack.c.l.b16 %v889
      %v946 = vunpack.c.l.b16 %v890
      %v947 = vunpack.c.l.b16 %v891
      %v948 = vunpack.c.l.b16 %v892
      %v949 = vunpack.c.l.b16 %v893
      %v950 = vunpack.c.l.b16 %v894
      %v951 = vpack.c.b16 %v936, %v935
      %v952 = vpack.c.b16 %v938, %v937
      %v953 = vpack.c.b16 %v940, %v939
      %v954 = vpack.c.b16 %v942, %v941
      %v955 = vpack.c.b16 %v944, %v943
      %v956 = vpack.c.b16 %v946, %v945
      %v957 = vpack.c.b16 %v948, %v947
      %v958 = vpack.c.b16 %v950, %v949
      %967 = vmatprep.subr.bf16.mxu0 0
      %968 = vmatpush1.bf16.msra.mxu0 %v951
      %969 = vmatprep.subr.bf16.mxu0 0
      %970 = vmatpush1.bf16.msra.mxu0 %v952
      %971 = vmatprep.subr.bf16.mxu0 0
      %972 = vmatpush1.bf16.msra.mxu0 %v953
      %973 = vmatprep.subr.bf16.mxu0 0
      %974 = vmatpush1.bf16.msra.mxu0 %v954
      %975 = vmatprep.subr.bf16.mxu0 0
      %976 = vmatpush1.bf16.msra.mxu0 %v955
      %977 = vmatprep.subr.bf16.mxu0 0
      %978 = vmatpush1.bf16.msra.mxu0 %v956
      %979 = vmatprep.subr.bf16.mxu0 0
      %980 = vmatpush1.bf16.msra.mxu0 %v957
      %981 = vmatprep.subr.bf16.mxu0 0
      %982 = vmatpush1.bf16.msra.mxu0 %v958
      %983 = vmatprep.subr.bf16.mxu0 0
      %984 = vmatpush1.bf16.msra.mxu0 0
      %985 = vmatprep.subr.bf16.mxu0 0
      %986 = vmatpush1.bf16.msra.mxu0 0
      %987 = vmatprep.subr.bf16.mxu0 0
      %988 = vmatpush1.bf16.msra.mxu0 0
      %989 = vmatprep.subr.bf16.mxu0 0
      %990 = vmatpush1.bf16.msra.mxu0 0
      %991 = vmatprep.subr.bf16.mxu0 0
      %992 = vmatpush1.bf16.msra.mxu0 0
      %993 = vmatprep.subr.bf16.mxu0 0
      %994 = vmatpush1.bf16.msra.mxu0 0
      %995 = vmatprep.subr.bf16.mxu0 0
      %996 = vmatpush1.bf16.msra.mxu0 0
      %997 = vmatprep.subr.bf16.mxu0 0
      %998 = vmatpush1.bf16.msra.mxu0 0
      %999 = vmatprep.mubr.bf16.mxu0 0
      %1000 = vmatmul.mubr.bf16.gmra.mrb[0].mxu0 %v911
      %v1001 = vpop.f32.mrb[0].mxu0
      %v1002 = vadd.f32 0.0, %v1001
      %v1003 = vpop.f32.mrb[0].mxu0
      %v1004 = vpop.f32.mrb[0].mxu0
      %v1005 = vadd.f32 0.0, %v1004
      %v1006 = vpop.f32.mrb[0].mxu0
      %1007 = vmatprep.mubr.bf16.mxu0 0
      %1008 = vmatmul.mubr.bf16.gmra.mrb[0].mxu0 %v912
      %v1009 = vpop.f32.mrb[0].mxu0
      %v1010 = vadd.f32 0.0, %v1009
      %v1011 = vpop.f32.mrb[0].mxu0
      %v1012 = vpop.f32.mrb[0].mxu0
      %v1013 = vadd.f32 0.0, %v1012
      %v1014 = vpop.f32.mrb[0].mxu0
      %1015 = vmatprep.mubr.bf16.mxu0 0
      %1016 = vmatmul.mubr.bf16.gmra.mrb[0].mxu0 %v913
      %v1017 = vpop.f32.mrb[0].mxu0
      %v1018 = vadd.f32 0.0, %v1017
      %v1019 = vpop.f32.mrb[0].mxu0
      %v1020 = vpop.f32.mrb[0].mxu0
      %v1021 = vadd.f32 0.0, %v1020
      %v1022 = vpop.f32.mrb[0].mxu0
      %1023 = vmatprep.mubr.bf16.mxu0 0
      %1024 = vmatmul.mubr.bf16.gmra.mrb[0].mxu0 %v914
      %v1025 = vpop.f32.mrb[0].mxu0
      %v1026 = vadd.f32 0.0, %v1025
      %v1027 = vpop.f32.mrb[0].mxu0
      %v1028 = vpop.f32.mrb[0].mxu0
      %v1029 = vadd.f32 0.0, %v1028
      %v1030 = vpop.f32.mrb[0].mxu0
      %1031 = vdwg.mxu0
      %v1032 = vadd.f32 %v861, %v1002
      %v1033 = vadd.f32 %v862, %v1005
      %v1034 = vadd.f32 %v863, %v1010
      %v1035 = vadd.f32 %v864, %v1013
      %v1036 = vadd.f32 %v865, %v1018
      %v1037 = vadd.f32 %v866, %v1021
      %v1038 = vadd.f32 %v867, %v1026
      %v1039 = vadd.f32 %v868, %v1029
      %v1040 = vld [vmem:[%s869] sm:$0xf]
      %v1041 = vld [vmem:[%s869 + $0x4] sm:$0x1]
      %v1042 = vld [vmem:[%s869 + $0x8] sm:$0xf]
      %v1043 = vld [vmem:[%s869 + $0xc] sm:$0x1]
      %v1044 = vld [vmem:[%s869 + $0x10] sm:$0xf]
      %v1045 = vld [vmem:[%s869 + $0x14] sm:$0x1]
      %v1046 = vld [vmem:[%s869 + $0x18] sm:$0xf]
      %v1047 = vld [vmem:[%s869 + $0x1c] sm:$0x1]
      %v1048 = vld [vmem:[%s869 + $0x20] sm:$0xf]
      %v1049 = vld [vmem:[%s869 + $0x24] sm:$0x1]
      %v1050 = vld [vmem:[%s869 + $0x28] sm:$0xf]
      %v1051 = vld [vmem:[%s869 + $0x2c] sm:$0x1]
      %v1052 = vld [vmem:[%s869 + $0x30] sm:$0xf]
      %v1053 = vld [vmem:[%s869 + $0x34] sm:$0x1]
      %v1054 = vld [vmem:[%s869 + $0x38] sm:$0xf]
      %v1055 = vld [vmem:[%s869 + $0x3c] sm:$0x1]
      %v1057 = vshrl.u32 %v1040, 16
      %v1059 = vrot.slane %v1057, 4
      %v1060 = vshll.u32 %v1040, 16
      %v1062 = vrot.slane %v1060, 5
      %v1063 = vor.u32 %v1059, %v1062
      %v1064 = vrot.slane %v1063, 4
      %v1066 = vshll.u32 %v1041, 16
      %v1068 = vrot.slane %v1066, 5
      %v1069 = vsel %vm260, %v1064, %v1068
      %v1071 = vshrl.u32 %v1042, 16
      %v1073 = vrot.slane %v1071, 4
      %v1074 = vshll.u32 %v1042, 16
      %v1076 = vrot.slane %v1074, 5
      %v1077 = vor.u32 %v1073, %v1076
      %v1078 = vrot.slane %v1077, 4
      %v1080 = vshll.u32 %v1043, 16
      %v1082 = vrot.slane %v1080, 5
      %v1083 = vsel %vm260, %v1078, %v1082
      %v1085 = vshrl.u32 %v1044, 16
      %v1087 = vrot.slane %v1085, 4
      %v1088 = vshll.u32 %v1044, 16
      %v1090 = vrot.slane %v1088, 5
      %v1091 = vor.u32 %v1087, %v1090
      %v1092 = vrot.slane %v1091, 4
      %v1094 = vshll.u32 %v1045, 16
      %v1096 = vrot.slane %v1094, 5
      %v1097 = vsel %vm260, %v1092, %v1096
      %v1099 = vshrl.u32 %v1046, 16
      %v1101 = vrot.slane %v1099, 4
      %v1102 = vshll.u32 %v1046, 16
      %v1104 = vrot.slane %v1102, 5
      %v1105 = vor.u32 %v1101, %v1104
      %v1106 = vrot.slane %v1105, 4
      %v1108 = vshll.u32 %v1047, 16
      %v1110 = vrot.slane %v1108, 5
      %v1111 = vsel %vm260, %v1106, %v1110
      %v1113 = vshrl.u32 %v1048, 16
      %v1115 = vrot.slane %v1113, 4
      %v1116 = vshll.u32 %v1048, 16
      %v1118 = vrot.slane %v1116, 5
      %v1119 = vor.u32 %v1115, %v1118
      %v1120 = vrot.slane %v1119, 4
      %v1122 = vshll.u32 %v1049, 16
      %v1124 = vrot.slane %v1122, 5
      %v1125 = vsel %vm260, %v1120, %v1124
      %v1127 = vshrl.u32 %v1050, 16
      %v1129 = vrot.slane %v1127, 4
      %v1130 = vshll.u32 %v1050, 16
      %v1132 = vrot.slane %v1130, 5
      %v1133 = vor.u32 %v1129, %v1132
      %v1134 = vrot.slane %v1133, 4
      %v1136 = vshll.u32 %v1051, 16
      %v1138 = vrot.slane %v1136, 5
      %v1139 = vsel %vm260, %v1134, %v1138
      %v1141 = vshrl.u32 %v1052, 16
      %v1143 = vrot.slane %v1141, 4
      %v1144 = vshll.u32 %v1052, 16
      %v1146 = vrot.slane %v1144, 5
      %v1147 = vor.u32 %v1143, %v1146
      %v1148 = vrot.slane %v1147, 4
      %v1150 = vshll.u32 %v1053, 16
      %v1152 = vrot.slane %v1150, 5
      %v1153 = vsel %vm260, %v1148, %v1152
      %v1155 = vshrl.u32 %v1054, 16
      %v1157 = vrot.slane %v1155, 4
      %v1158 = vshll.u32 %v1054, 16
      %v1160 = vrot.slane %v1158, 5
      %v1161 = vor.u32 %v1157, %v1160
      %v1162 = vrot.slane %v1161, 4
      %v1164 = vshll.u32 %v1055, 16
      %v1166 = vrot.slane %v1164, 5
      %v1167 = vsel %vm260, %v1162, %v1166
      %s1168 = scalar_lea.vmem %s1, 256
      %v1169 = vld [vmem:[%s1168] sm:$0xf]
      %v1170 = vld [vmem:[%s1168 + $0x4] sm:$0xf]
      %v1171 = vld [vmem:[%s1168 + $0x8] sm:$0xf]
      %v1172 = vld [vmem:[%s1168 + $0xc] sm:$0xf]
      %v1173 = vld [vmem:[%s1168 + $0x10] sm:$0xf]
      %v1174 = vld [vmem:[%s1168 + $0x14] sm:$0xf]
      %v1175 = vld [vmem:[%s1168 + $0x18] sm:$0xf]
      %v1176 = vld [vmem:[%s1168 + $0x1c] sm:$0xf]
      %v1177 = vld [vmem:[%s1168 + $0x20] sm:$0xf]
      %v1178 = vld [vmem:[%s1168 + $0x24] sm:$0xf]
      %v1179 = vld [vmem:[%s1168 + $0x28] sm:$0xf]
      %v1180 = vld [vmem:[%s1168 + $0x2c] sm:$0xf]
      %v1181 = vld [vmem:[%s1168 + $0x30] sm:$0xf]
      %v1182 = vld [vmem:[%s1168 + $0x34] sm:$0xf]
      %v1183 = vld [vmem:[%s1168 + $0x38] sm:$0xf]
      %v1184 = vld [vmem:[%s1168 + $0x3c] sm:$0xf]
      %v1185 = vunpack.c.l.b16 %v1069
      %v1186 = vunpack.c.l.b16 %v1083
      %v1187 = vunpack.c.l.b16 %v1097
      %v1188 = vunpack.c.l.b16 %v1111
      %v1189 = vunpack.c.l.b16 %v1125
      %v1190 = vunpack.c.l.b16 %v1139
      %v1191 = vunpack.c.l.b16 %v1153
      %v1192 = vunpack.c.l.b16 %v1167
      %v1193 = vpack.c.b16 %v1186, %v1185
      %v1194 = vpack.c.b16 %v1188, %v1187
      %v1195 = vpack.c.b16 %v1190, %v1189
      %v1196 = vpack.c.b16 %v1192, %v1191
      %v1217 = vunpack.c.l.b16 %v1169
      %v1218 = vunpack.c.l.b16 %v1170
      %v1219 = vunpack.c.l.b16 %v1171
      %v1220 = vunpack.c.l.b16 %v1172
      %v1221 = vunpack.c.l.b16 %v1173
      %v1222 = vunpack.c.l.b16 %v1174
      %v1223 = vunpack.c.l.b16 %v1175
      %v1224 = vunpack.c.l.b16 %v1176
      %v1225 = vunpack.c.l.b16 %v1177
      %v1226 = vunpack.c.l.b16 %v1178
      %v1227 = vunpack.c.l.b16 %v1179
      %v1228 = vunpack.c.l.b16 %v1180
      %v1229 = vunpack.c.l.b16 %v1181
      %v1230 = vunpack.c.l.b16 %v1182
      %v1231 = vunpack.c.l.b16 %v1183
      %v1232 = vunpack.c.l.b16 %v1184
      %v1233 = vpack.c.b16 %v1218, %v1217
      %v1234 = vpack.c.b16 %v1220, %v1219
      %v1235 = vpack.c.b16 %v1222, %v1221
      %v1236 = vpack.c.b16 %v1224, %v1223
      %v1237 = vpack.c.b16 %v1226, %v1225
      %v1238 = vpack.c.b16 %v1228, %v1227
      %v1239 = vpack.c.b16 %v1230, %v1229
      %v1240 = vpack.c.b16 %v1232, %v1231
      %1249 = vmatprep.subr.bf16.mxu0 0
      %1250 = vmatpush1.bf16.msra.mxu0 %v1233
      %1251 = vmatprep.subr.bf16.mxu0 0
      %1252 = vmatpush1.bf16.msra.mxu0 %v1234
      %1253 = vmatprep.subr.bf16.mxu0 0
      %1254 = vmatpush1.bf16.msra.mxu0 %v1235
      %1255 = vmatprep.subr.bf16.mxu0 0
      %1256 = vmatpush1.bf16.msra.mxu0 %v1236
      %1257 = vmatprep.subr.bf16.mxu0 0
      %1258 = vmatpush1.bf16.msra.mxu0 %v1237
      %1259 = vmatprep.subr.bf16.mxu0 0
      %1260 = vmatpush1.bf16.msra.mxu0 %v1238
      %1261 = vmatprep.subr.bf16.mxu0 0
      %1262 = vmatpush1.bf16.msra.mxu0 %v1239
      %1263 = vmatprep.subr.bf16.mxu0 0
      %1264 = vmatpush1.bf16.msra.mxu0 %v1240
      %1265 = vmatprep.subr.bf16.mxu0 0
      %1266 = vmatpush1.bf16.msra.mxu0 0
      %1267 = vmatprep.subr.bf16.mxu0 0
      %1268 = vmatpush1.bf16.msra.mxu0 0
      %1269 = vmatprep.subr.bf16.mxu0 0
      %1270 = vmatpush1.bf16.msra.mxu0 0
      %1271 = vmatprep.subr.bf16.mxu0 0
      %1272 = vmatpush1.bf16.msra.mxu0 0
      %1273 = vmatprep.subr.bf16.mxu0 0
      %1274 = vmatpush1.bf16.msra.mxu0 0
      %1275 = vmatprep.subr.bf16.mxu0 0
      %1276 = vmatpush1.bf16.msra.mxu0 0
      %1277 = vmatprep.subr.bf16.mxu0 0
      %1278 = vmatpush1.bf16.msra.mxu0 0
      %1279 = vmatprep.subr.bf16.mxu0 0
      %1280 = vmatpush1.bf16.msra.mxu0 0
      %1281 = vmatprep.mubr.bf16.mxu0 0
      %1282 = vmatmul.mubr.bf16.gmra.mrb[0].mxu0 %v1193
      %v1283 = vpop.f32.mrb[0].mxu0
      %v1284 = vadd.f32 0.0, %v1283
      %v1285 = vpop.f32.mrb[0].mxu0
      %v1286 = vpop.f32.mrb[0].mxu0
      %v1287 = vadd.f32 0.0, %v1286
      %v1288 = vpop.f32.mrb[0].mxu0
      %1289 = vmatprep.mubr.bf16.mxu0 0
      %1290 = vmatmul.mubr.bf16.gmra.mrb[0].mxu0 %v1194
      %v1291 = vpop.f32.mrb[0].mxu0
      %v1292 = vadd.f32 0.0, %v1291
      %v1293 = vpop.f32.mrb[0].mxu0
      %v1294 = vpop.f32.mrb[0].mxu0
      %v1295 = vadd.f32 0.0, %v1294
      %v1296 = vpop.f32.mrb[0].mxu0
      %1297 = vmatprep.mubr.bf16.mxu0 0
      %1298 = vmatmul.mubr.bf16.gmra.mrb[0].mxu0 %v1195
      %v1299 = vpop.f32.mrb[0].mxu0
      %v1300 = vadd.f32 0.0, %v1299
      %v1301 = vpop.f32.mrb[0].mxu0
      %v1302 = vpop.f32.mrb[0].mxu0
      %v1303 = vadd.f32 0.0, %v1302
      %v1304 = vpop.f32.mrb[0].mxu0
      %1305 = vmatprep.mubr.bf16.mxu0 0
      %1306 = vmatmul.mubr.bf16.gmra.mrb[0].mxu0 %v1196
      %v1307 = vpop.f32.mrb[0].mxu0
      %v1308 = vadd.f32 0.0, %v1307
      %v1309 = vpop.f32.mrb[0].mxu0
      %v1310 = vpop.f32.mrb[0].mxu0
      %v1311 = vadd.f32 0.0, %v1310
      %v1312 = vpop.f32.mrb[0].mxu0
      %1313 = vdwg.mxu0
      %v1314 = vadd.f32 %v1032, %v1284
      %v1315 = vadd.f32 %v1033, %v1287
      %v1316 = vadd.f32 %v1034, %v1292
      %v1317 = vadd.f32 %v1035, %v1295
      %v1318 = vadd.f32 %v1036, %v1300
      %v1319 = vadd.f32 %v1037, %v1303
      %v1320 = vadd.f32 %v1038, %v1308
      %v1321 = vadd.f32 %v1039, %v1311
      %v1322 = vld [vmem:[%s869] sm:$0xe]
      %v1323 = vld [vmem:[%s869 + $0x8] sm:$0xe]
      %v1324 = vld [vmem:[%s869 + $0x10] sm:$0xe]
      %v1325 = vld [vmem:[%s869 + $0x18] sm:$0xe]
      %v1326 = vld [vmem:[%s869 + $0x20] sm:$0xe]
      %v1327 = vld [vmem:[%s869 + $0x28] sm:$0xe]
      %v1328 = vld [vmem:[%s869 + $0x30] sm:$0xe]
      %v1329 = vld [vmem:[%s869 + $0x38] sm:$0xe]
      %v1346 = vrot.slane %v1322, 5
      %v1347 = vrot.slane %v1346, 4
      %v1348 = vrot.slane %v1041, 5
      %v1349 = vsel %vm682, %v1347, %v1348
      %v1350 = vrot.slane %v1323, 5
      %v1351 = vrot.slane %v1350, 4
      %v1352 = vrot.slane %v1043, 5
      %v1353 = vsel %vm682, %v1351, %v1352
      %v1354 = vrot.slane %v1324, 5
      %v1355 = vrot.slane %v1354, 4
      %v1356 = vrot.slane %v1045, 5
      %v1357 = vsel %vm682, %v1355, %v1356
      %v1358 = vrot.slane %v1325, 5
      %v1359 = vrot.slane %v1358, 4
      %v1360 = vrot.slane %v1047, 5
      %v1361 = vsel %vm682, %v1359, %v1360
      %v1362 = vrot.slane %v1326, 5
      %v1363 = vrot.slane %v1362, 4
      %v1364 = vrot.slane %v1049, 5
      %v1365 = vsel %vm682, %v1363, %v1364
      %v1366 = vrot.slane %v1327, 5
      %v1367 = vrot.slane %v1366, 4
      %v1368 = vrot.slane %v1051, 5
      %v1369 = vsel %vm682, %v1367, %v1368
      %v1370 = vrot.slane %v1328, 5
      %v1371 = vrot.slane %v1370, 4
      %v1372 = vrot.slane %v1053, 5
      %v1373 = vsel %vm682, %v1371, %v1372
      %v1374 = vrot.slane %v1329, 5
      %v1375 = vrot.slane %v1374, 4
      %v1376 = vrot.slane %v1055, 5
      %v1377 = vsel %vm682, %v1375, %v1376
      %s1378 = scalar_lea.vmem %s1, 320
      %v1379 = vld [vmem:[%s1378] sm:$0xf]
      %v1380 = vld [vmem:[%s1378 + $0x4] sm:$0xf]
      %v1381 = vld [vmem:[%s1378 + $0x8] sm:$0xf]
      %v1382 = vld [vmem:[%s1378 + $0xc] sm:$0xf]
      %v1383 = vld [vmem:[%s1378 + $0x10] sm:$0xf]
      %v1384 = vld [vmem:[%s1378 + $0x14] sm:$0xf]
      %v1385 = vld [vmem:[%s1378 + $0x18] sm:$0xf]
      %v1386 = vld [vmem:[%s1378 + $0x1c] sm:$0xf]
      %v1387 = vld [vmem:[%s1378 + $0x20] sm:$0xf]
      %v1388 = vld [vmem:[%s1378 + $0x24] sm:$0xf]
      %v1389 = vld [vmem:[%s1378 + $0x28] sm:$0xf]
      %v1390 = vld [vmem:[%s1378 + $0x2c] sm:$0xf]
      %v1391 = vld [vmem:[%s1378 + $0x30] sm:$0xf]
      %v1392 = vld [vmem:[%s1378 + $0x34] sm:$0xf]
      %v1393 = vld [vmem:[%s1378 + $0x38] sm:$0xf]
      %v1394 = vld [vmem:[%s1378 + $0x3c] sm:$0xf]
      %v1395 = vunpack.c.l.b16 %v1349
      %v1396 = vunpack.c.l.b16 %v1353
      %v1397 = vunpack.c.l.b16 %v1357
      %v1398 = vunpack.c.l.b16 %v1361
      %v1399 = vunpack.c.l.b16 %v1365
      %v1400 = vunpack.c.l.b16 %v1369
      %v1401 = vunpack.c.l.b16 %v1373
      %v1402 = vunpack.c.l.b16 %v1377
      %v1403 = vpack.c.b16 %v1396, %v1395
      %v1404 = vpack.c.b16 %v1398, %v1397
      %v1405 = vpack.c.b16 %v1400, %v1399
      %v1406 = vpack.c.b16 %v1402, %v1401
      %v1427 = vunpack.c.l.b16 %v1379
      %v1428 = vunpack.c.l.b16 %v1380
      %v1429 = vunpack.c.l.b16 %v1381
      %v1430 = vunpack.c.l.b16 %v1382
      %v1431 = vunpack.c.l.b16 %v1383
      %v1432 = vunpack.c.l.b16 %v1384
      %v1433 = vunpack.c.l.b16 %v1385
      %v1434 = vunpack.c.l.b16 %v1386
      %v1435 = vunpack.c.l.b16 %v1387
      %v1436 = vunpack.c.l.b16 %v1388
      %v1437 = vunpack.c.l.b16 %v1389
      %v1438 = vunpack.c.l.b16 %v1390
      %v1439 = vunpack.c.l.b16 %v1391
      %v1440 = vunpack.c.l.b16 %v1392
      %v1441 = vunpack.c.l.b16 %v1393
      %v1442 = vunpack.c.l.b16 %v1394
      %v1443 = vpack.c.b16 %v1428, %v1427
      %v1444 = vpack.c.b16 %v1430, %v1429
      %v1445 = vpack.c.b16 %v1432, %v1431
      %v1446 = vpack.c.b16 %v1434, %v1433
      %v1447 = vpack.c.b16 %v1436, %v1435
      %v1448 = vpack.c.b16 %v1438, %v1437
      %v1449 = vpack.c.b16 %v1440, %v1439
      %v1450 = vpack.c.b16 %v1442, %v1441
      %1459 = vmatprep.subr.bf16.mxu0 0
      %1460 = vmatpush1.bf16.msra.mxu0 %v1443
      %1461 = vmatprep.subr.bf16.mxu0 0
      %1462 = vmatpush1.bf16.msra.mxu0 %v1444
      %1463 = vmatprep.subr.bf16.mxu0 0
      %1464 = vmatpush1.bf16.msra.mxu0 %v1445
      %1465 = vmatprep.subr.bf16.mxu0 0
      %1466 = vmatpush1.bf16.msra.mxu0 %v1446
      %1467 = vmatprep.subr.bf16.mxu0 0
      %1468 = vmatpush1.bf16.msra.mxu0 %v1447
      %1469 = vmatprep.subr.bf16.mxu0 0
      %1470 = vmatpush1.bf16.msra.mxu0 %v1448
      %1471 = vmatprep.subr.bf16.mxu0 0
      %1472 = vmatpush1.bf16.msra.mxu0 %v1449
      %1473 = vmatprep.subr.bf16.mxu0 0
      %1474 = vmatpush1.bf16.msra.mxu0 %v1450
      %1475 = vmatprep.subr.bf16.mxu0 0
      %1476 = vmatpush1.bf16.msra.mxu0 0
      %1477 = vmatprep.subr.bf16.mxu0 0
      %1478 = vmatpush1.bf16.msra.mxu0 0
      %1479 = vmatprep.subr.bf16.mxu0 0
      %1480 = vmatpush1.bf16.msra.mxu0 0
      %1481 = vmatprep.subr.bf16.mxu0 0
      %1482 = vmatpush1.bf16.msra.mxu0 0
      %1483 = vmatprep.subr.bf16.mxu0 0
      %1484 = vmatpush1.bf16.msra.mxu0 0
      %1485 = vmatprep.subr.bf16.mxu0 0
      %1486 = vmatpush1.bf16.msra.mxu0 0
      %1487 = vmatprep.subr.bf16.mxu0 0
      %1488 = vmatpush1.bf16.msra.mxu0 0
      %1489 = vmatprep.subr.bf16.mxu0 0
      %1490 = vmatpush1.bf16.msra.mxu0 0
      %1491 = vmatprep.mubr.bf16.mxu0 0
      %1492 = vmatmul.mubr.bf16.gmra.mrb[0].mxu0 %v1403
      %v1493 = vpop.f32.mrb[0].mxu0
      %v1494 = vadd.f32 0.0, %v1493
      %v1495 = vpop.f32.mrb[0].mxu0
      %v1496 = vpop.f32.mrb[0].mxu0
      %v1497 = vadd.f32 0.0, %v1496
      %v1498 = vpop.f32.mrb[0].mxu0
      %1499 = vmatprep.mubr.bf16.mxu0 0
      %1500 = vmatmul.mubr.bf16.gmra.mrb[0].mxu0 %v1404
      %v1501 = vpop.f32.mrb[0].mxu0
      %v1502 = vadd.f32 0.0, %v1501
      %v1503 = vpop.f32.mrb[0].mxu0
      %v1504 = vpop.f32.mrb[0].mxu0
      %v1505 = vadd.f32 0.0, %v1504
      %v1506 = vpop.f32.mrb[0].mxu0
      %1507 = vmatprep.mubr.bf16.mxu0 0
      %1508 = vmatmul.mubr.bf16.gmra.mrb[0].mxu0 %v1405
      %v1509 = vpop.f32.mrb[0].mxu0
      %v1510 = vadd.f32 0.0, %v1509
      %v1511 = vpop.f32.mrb[0].mxu0
      %v1512 = vpop.f32.mrb[0].mxu0
      %v1513 = vadd.f32 0.0, %v1512
      %v1514 = vpop.f32.mrb[0].mxu0
      %1515 = vmatprep.mubr.bf16.mxu0 0
      %1516 = vmatmul.mubr.bf16.gmra.mrb[0].mxu0 %v1406
      %v1517 = vpop.f32.mrb[0].mxu0
      %v1518 = vadd.f32 0.0, %v1517
      %v1519 = vpop.f32.mrb[0].mxu0
      %v1520 = vpop.f32.mrb[0].mxu0
      %v1521 = vadd.f32 0.0, %v1520
      %v1522 = vpop.f32.mrb[0].mxu0
      %1523 = vdwg.mxu0
      %v1524 = vadd.f32 %v1314, %v1494
      %v1525 = vadd.f32 %v1315, %v1497
      %v1526 = vadd.f32 %v1316, %v1502
      %v1527 = vadd.f32 %v1317, %v1505
      %v1528 = vadd.f32 %v1318, %v1510
      %v1529 = vadd.f32 %v1319, %v1513
      %v1530 = vadd.f32 %v1320, %v1518
      %v1531 = vadd.f32 %v1321, %v1521
      %s1532 = scalar_lea.vmem %s219, 16
      %v1533 = vld [vmem:[%s1532] sm:$0xf]
      %v1534 = vld [vmem:[%s1532 + $0x8] sm:$0xf]
      %v1535 = vld [vmem:[%s1532 + $0x10] sm:$0xf]
      %v1536 = vld [vmem:[%s1532 + $0x18] sm:$0xf]
      %v1537 = vld [vmem:[%s1532 + $0x20] sm:$0xf]
      %v1538 = vld [vmem:[%s1532 + $0x28] sm:$0xf]
      %v1539 = vld [vmem:[%s1532 + $0x30] sm:$0xf]
      %v1540 = vld [vmem:[%s1532 + $0x38] sm:$0xf]
      %s1541 = scalar_lea.vmem %s1, 384
      %v1542 = vld [vmem:[%s1541] sm:$0xf]
      %v1543 = vld [vmem:[%s1541 + $0x4] sm:$0xf]
      %v1544 = vld [vmem:[%s1541 + $0x8] sm:$0xf]
      %v1545 = vld [vmem:[%s1541 + $0xc] sm:$0xf]
      %v1546 = vld [vmem:[%s1541 + $0x10] sm:$0xf]
      %v1547 = vld [vmem:[%s1541 + $0x14] sm:$0xf]
      %v1548 = vld [vmem:[%s1541 + $0x18] sm:$0xf]
      %v1549 = vld [vmem:[%s1541 + $0x1c] sm:$0xf]
      %v1550 = vld [vmem:[%s1541 + $0x20] sm:$0xf]
      %v1551 = vld [vmem:[%s1541 + $0x24] sm:$0xf]
      %v1552 = vld [vmem:[%s1541 + $0x28] sm:$0xf]
      %v1553 = vld [vmem:[%s1541 + $0x2c] sm:$0xf]
      %v1554 = vld [vmem:[%s1541 + $0x30] sm:$0xf]
      %v1555 = vld [vmem:[%s1541 + $0x34] sm:$0xf]
      %v1556 = vld [vmem:[%s1541 + $0x38] sm:$0xf]
      %v1557 = vld [vmem:[%s1541 + $0x3c] sm:$0xf]
      %v1566 = vunpack.c.l.b16 %v1533
      %v1567 = vunpack.c.l.b16 %v1534
      %v1568 = vunpack.c.l.b16 %v1535
      %v1569 = vunpack.c.l.b16 %v1536
      %v1570 = vunpack.c.l.b16 %v1537
      %v1571 = vunpack.c.l.b16 %v1538
      %v1572 = vunpack.c.l.b16 %v1539
      %v1573 = vunpack.c.l.b16 %v1540
      %v1574 = vpack.c.b16 %v1567, %v1566
      %v1575 = vpack.c.b16 %v1569, %v1568
      %v1576 = vpack.c.b16 %v1571, %v1570
      %v1577 = vpack.c.b16 %v1573, %v1572
      %v1598 = vunpack.c.l.b16 %v1542
      %v1599 = vunpack.c.l.b16 %v1543
      %v1600 = vunpack.c.l.b16 %v1544
      %v1601 = vunpack.c.l.b16 %v1545
      %v1602 = vunpack.c.l.b16 %v1546
      %v1603 = vunpack.c.l.b16 %v1547
      %v1604 = vunpack.c.l.b16 %v1548
      %v1605 = vunpack.c.l.b16 %v1549
      %v1606 = vunpack.c.l.b16 %v1550
      %v1607 = vunpack.c.l.b16 %v1551
      %v1608 = vunpack.c.l.b16 %v1552
      %v1609 = vunpack.c.l.b16 %v1553
      %v1610 = vunpack.c.l.b16 %v1554
      %v1611 = vunpack.c.l.b16 %v1555
      %v1612 = vunpack.c.l.b16 %v1556
      %v1613 = vunpack.c.l.b16 %v1557
      %v1614 = vpack.c.b16 %v1599, %v1598
      %v1615 = vpack.c.b16 %v1601, %v1600
      %v1616 = vpack.c.b16 %v1603, %v1602
      %v1617 = vpack.c.b16 %v1605, %v1604
      %v1618 = vpack.c.b16 %v1607, %v1606
      %v1619 = vpack.c.b16 %v1609, %v1608
      %v1620 = vpack.c.b16 %v1611, %v1610
      %v1621 = vpack.c.b16 %v1613, %v1612
      %1630 = vmatprep.subr.bf16.mxu0 0
      %1631 = vmatpush1.bf16.msra.mxu0 %v1614
      %1632 = vmatprep.subr.bf16.mxu0 0
      %1633 = vmatpush1.bf16.msra.mxu0 %v1615
      %1634 = vmatprep.subr.bf16.mxu0 0
      %1635 = vmatpush1.bf16.msra.mxu0 %v1616
      %1636 = vmatprep.subr.bf16.mxu0 0
      %1637 = vmatpush1.bf16.msra.mxu0 %v1617
      %1638 = vmatprep.subr.bf16.mxu0 0
      %1639 = vmatpush1.bf16.msra.mxu0 %v1618
      %1640 = vmatprep.subr.bf16.mxu0 0
      %1641 = vmatpush1.bf16.msra.mxu0 %v1619
      %1642 = vmatprep.subr.bf16.mxu0 0
      %1643 = vmatpush1.bf16.msra.mxu0 %v1620
      %1644 = vmatprep.subr.bf16.mxu0 0
      %1645 = vmatpush1.bf16.msra.mxu0 %v1621
      %1646 = vmatprep.subr.bf16.mxu0 0
      %1647 = vmatpush1.bf16.msra.mxu0 0
      %1648 = vmatprep.subr.bf16.mxu0 0
      %1649 = vmatpush1.bf16.msra.mxu0 0
      %1650 = vmatprep.subr.bf16.mxu0 0
      %1651 = vmatpush1.bf16.msra.mxu0 0
      %1652 = vmatprep.subr.bf16.mxu0 0
      %1653 = vmatpush1.bf16.msra.mxu0 0
      %1654 = vmatprep.subr.bf16.mxu0 0
      %1655 = vmatpush1.bf16.msra.mxu0 0
      %1656 = vmatprep.subr.bf16.mxu0 0
      %1657 = vmatpush1.bf16.msra.mxu0 0
      %1658 = vmatprep.subr.bf16.mxu0 0
      %1659 = vmatpush1.bf16.msra.mxu0 0
      %1660 = vmatprep.subr.bf16.mxu0 0
      %1661 = vmatpush1.bf16.msra.mxu0 0
      %1662 = vmatprep.mubr.bf16.mxu0 0
      %1663 = vmatmul.mubr.bf16.gmra.mrb[0].mxu0 %v1574
      %v1664 = vpop.f32.mrb[0].mxu0
      %v1665 = vadd.f32 0.0, %v1664
      %v1666 = vpop.f32.mrb[0].mxu0
      %v1667 = vpop.f32.mrb[0].mxu0
      %v1668 = vadd.f32 0.0, %v1667
      %v1669 = vpop.f32.mrb[0].mxu0
      %1670 = vmatprep.mubr.bf16.mxu0 0
      %1671 = vmatmul.mubr.bf16.gmra.mrb[0].mxu0 %v1575
      %v1672 = vpop.f32.mrb[0].mxu0
      %v1673 = vadd.f32 0.0, %v1672
      %v1674 = vpop.f32.mrb[0].mxu0
      %v1675 = vpop.f32.mrb[0].mxu0
      %v1676 = vadd.f32 0.0, %v1675
      %v1677 = vpop.f32.mrb[0].mxu0
      %1678 = vmatprep.mubr.bf16.mxu0 0
      %1679 = vmatmul.mubr.bf16.gmra.mrb[0].mxu0 %v1576
      %v1680 = vpop.f32.mrb[0].mxu0
      %v1681 = vadd.f32 0.0, %v1680
      %v1682 = vpop.f32.mrb[0].mxu0
      %v1683 = vpop.f32.mrb[0].mxu0
      %v1684 = vadd.f32 0.0, %v1683
      %v1685 = vpop.f32.mrb[0].mxu0
      %1686 = vmatprep.mubr.bf16.mxu0 0
      %1687 = vmatmul.mubr.bf16.gmra.mrb[0].mxu0 %v1577
      %v1688 = vpop.f32.mrb[0].mxu0
      %v1689 = vadd.f32 0.0, %v1688
      %v1690 = vpop.f32.mrb[0].mxu0
      %v1691 = vpop.f32.mrb[0].mxu0
      %v1692 = vadd.f32 0.0, %v1691
      %v1693 = vpop.f32.mrb[0].mxu0
      %1694 = vdwg.mxu0
      %v1695 = vadd.f32 %v1524, %v1665
      %v1696 = vadd.f32 %v1525, %v1668
      %v1697 = vadd.f32 %v1526, %v1673
      %v1698 = vadd.f32 %v1527, %v1676
      %v1699 = vadd.f32 %v1528, %v1681
      %v1700 = vadd.f32 %v1529, %v1684
      %v1701 = vadd.f32 %v1530, %v1689
      %v1702 = vadd.f32 %v1531, %v1692
      %v1703 = vld [vmem:[%s1532] sm:$0xf]
      %v1704 = vld [vmem:[%s1532 + $0x4] sm:$0x1]
      %v1705 = vld [vmem:[%s1532 + $0x8] sm:$0xf]
      %v1706 = vld [vmem:[%s1532 + $0xc] sm:$0x1]
      %v1707 = vld [vmem:[%s1532 + $0x10] sm:$0xf]
      %v1708 = vld [vmem:[%s1532 + $0x14] sm:$0x1]
      %v1709 = vld [vmem:[%s1532 + $0x18] sm:$0xf]
      %v1710 = vld [vmem:[%s1532 + $0x1c] sm:$0x1]
      %v1711 = vld [vmem:[%s1532 + $0x20] sm:$0xf]
      %v1712 = vld [vmem:[%s1532 + $0x24] sm:$0x1]
      %v1713 = vld [vmem:[%s1532 + $0x28] sm:$0xf]
      %v1714 = vld [vmem:[%s1532 + $0x2c] sm:$0x1]
      %v1715 = vld [vmem:[%s1532 + $0x30] sm:$0xf]
      %v1716 = vld [vmem:[%s1532 + $0x34] sm:$0x1]
      %v1717 = vld [vmem:[%s1532 + $0x38] sm:$0xf]
      %v1718 = vld [vmem:[%s1532 + $0x3c] sm:$0x1]
      %v1720 = vshrl.u32 %v1703, 16
      %v1722 = vrot.slane %v1720, 4
      %v1723 = vshll.u32 %v1703, 16
      %v1725 = vrot.slane %v1723, 5
      %v1726 = vor.u32 %v1722, %v1725
      %v1727 = vrot.slane %v1726, 4
      %v1729 = vshll.u32 %v1704, 16
      %v1731 = vrot.slane %v1729, 5
      %v1732 = vsel %vm260, %v1727, %v1731
      %v1734 = vshrl.u32 %v1705, 16
      %v1736 = vrot.slane %v1734, 4
      %v1737 = vshll.u32 %v1705, 16
      %v1739 = vrot.slane %v1737, 5
      %v1740 = vor.u32 %v1736, %v1739
      %v1741 = vrot.slane %v1740, 4
      %v1743 = vshll.u32 %v1706, 16
      %v1745 = vrot.slane %v1743, 5
      %v1746 = vsel %vm260, %v1741, %v1745
      %v1748 = vshrl.u32 %v1707, 16
      %v1750 = vrot.slane %v1748, 4
      %v1751 = vshll.u32 %v1707, 16
      %v1753 = vrot.slane %v1751, 5
      %v1754 = vor.u32 %v1750, %v1753
      %v1755 = vrot.slane %v1754, 4
      %v1757 = vshll.u32 %v1708, 16
      %v1759 = vrot.slane %v1757, 5
      %v1760 = vsel %vm260, %v1755, %v1759
      %v1762 = vshrl.u32 %v1709, 16
      %v1764 = vrot.slane %v1762, 4
      %v1765 = vshll.u32 %v1709, 16
      %v1767 = vrot.slane %v1765, 5
      %v1768 = vor.u32 %v1764, %v1767
      %v1769 = vrot.slane %v1768, 4
      %v1771 = vshll.u32 %v1710, 16
      %v1773 = vrot.slane %v1771, 5
      %v1774 = vsel %vm260, %v1769, %v1773
      %v1776 = vshrl.u32 %v1711, 16
      %v1778 = vrot.slane %v1776, 4
      %v1779 = vshll.u32 %v1711, 16
      %v1781 = vrot.slane %v1779, 5
      %v1782 = vor.u32 %v1778, %v1781
      %v1783 = vrot.slane %v1782, 4
      %v1785 = vshll.u32 %v1712, 16
      %v1787 = vrot.slane %v1785, 5
      %v1788 = vsel %vm260, %v1783, %v1787
      %v1790 = vshrl.u32 %v1713, 16
      %v1792 = vrot.slane %v1790, 4
      %v1793 = vshll.u32 %v1713, 16
      %v1795 = vrot.slane %v1793, 5
      %v1796 = vor.u32 %v1792, %v1795
      %v1797 = vrot.slane %v1796, 4
      %v1799 = vshll.u32 %v1714, 16
      %v1801 = vrot.slane %v1799, 5
      %v1802 = vsel %vm260, %v1797, %v1801
      %v1804 = vshrl.u32 %v1715, 16
      %v1806 = vrot.slane %v1804, 4
      %v1807 = vshll.u32 %v1715, 16
      %v1809 = vrot.slane %v1807, 5
      %v1810 = vor.u32 %v1806, %v1809
      %v1811 = vrot.slane %v1810, 4
      %v1813 = vshll.u32 %v1716, 16
      %v1815 = vrot.slane %v1813, 5
      %v1816 = vsel %vm260, %v1811, %v1815
      %v1818 = vshrl.u32 %v1717, 16
      %v1820 = vrot.slane %v1818, 4
      %v1821 = vshll.u32 %v1717, 16
      %v1823 = vrot.slane %v1821, 5
      %v1824 = vor.u32 %v1820, %v1823
      %v1825 = vrot.slane %v1824, 4
      %v1827 = vshll.u32 %v1718, 16
      %v1829 = vrot.slane %v1827, 5
      %v1830 = vsel %vm260, %v1825, %v1829
      %s1831 = scalar_lea.vmem %s1, 448
      %v1832 = vld [vmem:[%s1831] sm:$0xf]
      %v1833 = vld [vmem:[%s1831 + $0x4] sm:$0xf]
      %v1834 = vld [vmem:[%s1831 + $0x8] sm:$0xf]
      %v1835 = vld [vmem:[%s1831 + $0xc] sm:$0xf]
      %v1836 = vld [vmem:[%s1831 + $0x10] sm:$0xf]
      %v1837 = vld [vmem:[%s1831 + $0x14] sm:$0xf]
      %v1838 = vld [vmem:[%s1831 + $0x18] sm:$0xf]
      %v1839 = vld [vmem:[%s1831 + $0x1c] sm:$0xf]
      %v1840 = vld [vmem:[%s1831 + $0x20] sm:$0xf]
      %v1841 = vld [vmem:[%s1831 + $0x24] sm:$0xf]
      %v1842 = vld [vmem:[%s1831 + $0x28] sm:$0xf]
      %v1843 = vld [vmem:[%s1831 + $0x2c] sm:$0xf]
      %v1844 = vld [vmem:[%s1831 + $0x30] sm:$0xf]
      %v1845 = vld [vmem:[%s1831 + $0x34] sm:$0xf]
      %v1846 = vld [vmem:[%s1831 + $0x38] sm:$0xf]
      %v1847 = vld [vmem:[%s1831 + $0x3c] sm:$0xf]
      %v1848 = vunpack.c.l.b16 %v1732
      %v1849 = vunpack.c.l.b16 %v1746
      %v1850 = vunpack.c.l.b16 %v1760
      %v1851 = vunpack.c.l.b16 %v1774
      %v1852 = vunpack.c.l.b16 %v1788
      %v1853 = vunpack.c.l.b16 %v1802
      %v1854 = vunpack.c.l.b16 %v1816
      %v1855 = vunpack.c.l.b16 %v1830
      %v1856 = vpack.c.b16 %v1849, %v1848
      %v1857 = vpack.c.b16 %v1851, %v1850
      %v1858 = vpack.c.b16 %v1853, %v1852
      %v1859 = vpack.c.b16 %v1855, %v1854
      %v1880 = vunpack.c.l.b16 %v1832
      %v1881 = vunpack.c.l.b16 %v1833
      %v1882 = vunpack.c.l.b16 %v1834
      %v1883 = vunpack.c.l.b16 %v1835
      %v1884 = vunpack.c.l.b16 %v1836
      %v1885 = vunpack.c.l.b16 %v1837
      %v1886 = vunpack.c.l.b16 %v1838
      %v1887 = vunpack.c.l.b16 %v1839
      %v1888 = vunpack.c.l.b16 %v1840
      %v1889 = vunpack.c.l.b16 %v1841
      %v1890 = vunpack.c.l.b16 %v1842
      %v1891 = vunpack.c.l.b16 %v1843
      %v1892 = vunpack.c.l.b16 %v1844
      %v1893 = vunpack.c.l.b16 %v1845
      %v1894 = vunpack.c.l.b16 %v1846
      %v1895 = vunpack.c.l.b16 %v1847
      %v1896 = vpack.c.b16 %v1881, %v1880
      %v1897 = vpack.c.b16 %v1883, %v1882
      %v1898 = vpack.c.b16 %v1885, %v1884
      %v1899 = vpack.c.b16 %v1887, %v1886
      %v1900 = vpack.c.b16 %v1889, %v1888
      %v1901 = vpack.c.b16 %v1891, %v1890
      %v1902 = vpack.c.b16 %v1893, %v1892
      %v1903 = vpack.c.b16 %v1895, %v1894
      %1912 = vmatprep.subr.bf16.mxu0 0
      %1913 = vmatpush1.bf16.msra.mxu0 %v1896
      %1914 = vmatprep.subr.bf16.mxu0 0
      %1915 = vmatpush1.bf16.msra.mxu0 %v1897
      %1916 = vmatprep.subr.bf16.mxu0 0
      %1917 = vmatpush1.bf16.msra.mxu0 %v1898
      %1918 = vmatprep.subr.bf16.mxu0 0
      %1919 = vmatpush1.bf16.msra.mxu0 %v1899
      %1920 = vmatprep.subr.bf16.mxu0 0
      %1921 = vmatpush1.bf16.msra.mxu0 %v1900
      %1922 = vmatprep.subr.bf16.mxu0 0
      %1923 = vmatpush1.bf16.msra.mxu0 %v1901
      %1924 = vmatprep.subr.bf16.mxu0 0
      %1925 = vmatpush1.bf16.msra.mxu0 %v1902
      %1926 = vmatprep.subr.bf16.mxu0 0
      %1927 = vmatpush1.bf16.msra.mxu0 %v1903
      %1928 = vmatprep.subr.bf16.mxu0 0
      %1929 = vmatpush1.bf16.msra.mxu0 0
      %1930 = vmatprep.subr.bf16.mxu0 0
      %1931 = vmatpush1.bf16.msra.mxu0 0
      %1932 = vmatprep.subr.bf16.mxu0 0
      %1933 = vmatpush1.bf16.msra.mxu0 0
      %1934 = vmatprep.subr.bf16.mxu0 0
      %1935 = vmatpush1.bf16.msra.mxu0 0
      %1936 = vmatprep.subr.bf16.mxu0 0
      %1937 = vmatpush1.bf16.msra.mxu0 0
      %1938 = vmatprep.subr.bf16.mxu0 0
      %1939 = vmatpush1.bf16.msra.mxu0 0
      %1940 = vmatprep.subr.bf16.mxu0 0
      %1941 = vmatpush1.bf16.msra.mxu0 0
      %1942 = vmatprep.subr.bf16.mxu0 0
      %1943 = vmatpush1.bf16.msra.mxu0 0
      %1944 = vmatprep.mubr.bf16.mxu0 0
      %1945 = vmatmul.mubr.bf16.gmra.mrb[0].mxu0 %v1856
      %v1946 = vpop.f32.mrb[0].mxu0
      %v1947 = vadd.f32 0.0, %v1946
      %v1948 = vpop.f32.mrb[0].mxu0
      %v1949 = vpop.f32.mrb[0].mxu0
      %v1950 = vadd.f32 0.0, %v1949
      %v1951 = vpop.f32.mrb[0].mxu0
      %1952 = vmatprep.mubr.bf16.mxu0 0
      %1953 = vmatmul.mubr.bf16.gmra.mrb[0].mxu0 %v1857
      %v1954 = vpop.f32.mrb[0].mxu0
      %v1955 = vadd.f32 0.0, %v1954
      %v1956 = vpop.f32.mrb[0].mxu0
      %v1957 = vpop.f32.mrb[0].mxu0
      %v1958 = vadd.f32 0.0, %v1957
      %v1959 = vpop.f32.mrb[0].mxu0
      %1960 = vmatprep.mubr.bf16.mxu0 0
      %1961 = vmatmul.mubr.bf16.gmra.mrb[0].mxu0 %v1858
      %v1962 = vpop.f32.mrb[0].mxu0
      %v1963 = vadd.f32 0.0, %v1962
      %v1964 = vpop.f32.mrb[0].mxu0
      %v1965 = vpop.f32.mrb[0].mxu0
      %v1966 = vadd.f32 0.0, %v1965
      %v1967 = vpop.f32.mrb[0].mxu0
      %1968 = vmatprep.mubr.bf16.mxu0 0
      %1969 = vmatmul.mubr.bf16.gmra.mrb[0].mxu0 %v1859
      %v1970 = vpop.f32.mrb[0].mxu0
      %v1971 = vadd.f32 0.0, %v1970
      %v1972 = vpop.f32.mrb[0].mxu0
      %v1973 = vpop.f32.mrb[0].mxu0
      %v1974 = vadd.f32 0.0, %v1973
      %v1975 = vpop.f32.mrb[0].mxu0
      %1976 = vdwg.mxu0
      %v1977 = vadd.f32 %v1695, %v1947
      %v1978 = vadd.f32 %v1696, %v1950
      %v1979 = vadd.f32 %v1697, %v1955
      %v1980 = vadd.f32 %v1698, %v1958
      %v1981 = vadd.f32 %v1699, %v1963
      %v1982 = vadd.f32 %v1700, %v1966
      %v1983 = vadd.f32 %v1701, %v1971
      %v1984 = vadd.f32 %v1702, %v1974
      %v1985 = vld [vmem:[%s1532] sm:$0xe]
      %v1986 = vld [vmem:[%s1532 + $0x8] sm:$0xe]
      %v1987 = vld [vmem:[%s1532 + $0x10] sm:$0xe]
      %v1988 = vld [vmem:[%s1532 + $0x18] sm:$0xe]
      %v1989 = vld [vmem:[%s1532 + $0x20] sm:$0xe]
      %v1990 = vld [vmem:[%s1532 + $0x28] sm:$0xe]
      %v1991 = vld [vmem:[%s1532 + $0x30] sm:$0xe]
      %v1992 = vld [vmem:[%s1532 + $0x38] sm:$0xe]
      %v2009 = vrot.slane %v1985, 5
      %v2010 = vrot.slane %v2009, 4
      %v2011 = vrot.slane %v1704, 5
      %v2012 = vsel %vm682, %v2010, %v2011
      %v2013 = vrot.slane %v1986, 5
      %v2014 = vrot.slane %v2013, 4
      %v2015 = vrot.slane %v1706, 5
      %v2016 = vsel %vm682, %v2014, %v2015
      %v2017 = vrot.slane %v1987, 5
      %v2018 = vrot.slane %v2017, 4
      %v2019 = vrot.slane %v1708, 5
      %v2020 = vsel %vm682, %v2018, %v2019
      %v2021 = vrot.slane %v1988, 5
      %v2022 = vrot.slane %v2021, 4
      %v2023 = vrot.slane %v1710, 5
      %v2024 = vsel %vm682, %v2022, %v2023
      %v2025 = vrot.slane %v1989, 5
      %v2026 = vrot.slane %v2025, 4
      %v2027 = vrot.slane %v1712, 5
      %v2028 = vsel %vm682, %v2026, %v2027
      %v2029 = vrot.slane %v1990, 5
      %v2030 = vrot.slane %v2029, 4
      %v2031 = vrot.slane %v1714, 5
      %v2032 = vsel %vm682, %v2030, %v2031
      %v2033 = vrot.slane %v1991, 5
      %v2034 = vrot.slane %v2033, 4
      %v2035 = vrot.slane %v1716, 5
      %v2036 = vsel %vm682, %v2034, %v2035
      %v2037 = vrot.slane %v1992, 5
      %v2038 = vrot.slane %v2037, 4
      %v2039 = vrot.slane %v1718, 5
      %v2040 = vsel %vm682, %v2038, %v2039
      %s2041 = scalar_lea.vmem %s1, 512
      %v2042 = vld [vmem:[%s2041] sm:$0xf]
      %v2043 = vld [vmem:[%s2041 + $0x4] sm:$0xf]
      %v2044 = vld [vmem:[%s2041 + $0x8] sm:$0xf]
      %v2045 = vld [vmem:[%s2041 + $0xc] sm:$0xf]
      %v2046 = vld [vmem:[%s2041 + $0x10] sm:$0xf]
      %v2047 = vld [vmem:[%s2041 + $0x14] sm:$0xf]
      %v2048 = vld [vmem:[%s2041 + $0x18] sm:$0xf]
      %v2049 = vld [vmem:[%s2041 + $0x1c] sm:$0xf]
      %v2050 = vld [vmem:[%s2041 + $0x20] sm:$0xf]
      %v2051 = vld [vmem:[%s2041 + $0x24] sm:$0xf]
      %v2052 = vld [vmem:[%s2041 + $0x28] sm:$0xf]
      %v2053 = vld [vmem:[%s2041 + $0x2c] sm:$0xf]
      %v2054 = vld [vmem:[%s2041 + $0x30] sm:$0xf]
      %v2055 = vld [vmem:[%s2041 + $0x34] sm:$0xf]
      %v2056 = vld [vmem:[%s2041 + $0x38] sm:$0xf]
      %v2057 = vld [vmem:[%s2041 + $0x3c] sm:$0xf]
      %v2058 = vunpack.c.l.b16 %v2012
      %v2059 = vunpack.c.l.b16 %v2016
      %v2060 = vunpack.c.l.b16 %v2020
      %v2061 = vunpack.c.l.b16 %v2024
      %v2062 = vunpack.c.l.b16 %v2028
      %v2063 = vunpack.c.l.b16 %v2032
      %v2064 = vunpack.c.l.b16 %v2036
      %v2065 = vunpack.c.l.b16 %v2040
      %v2066 = vpack.c.b16 %v2059, %v2058
      %v2067 = vpack.c.b16 %v2061, %v2060
      %v2068 = vpack.c.b16 %v2063, %v2062
      %v2069 = vpack.c.b16 %v2065, %v2064
      %v2090 = vunpack.c.l.b16 %v2042
      %v2091 = vunpack.c.l.b16 %v2043
      %v2092 = vunpack.c.l.b16 %v2044
      %v2093 = vunpack.c.l.b16 %v2045
      %v2094 = vunpack.c.l.b16 %v2046
      %v2095 = vunpack.c.l.b16 %v2047
      %v2096 = vunpack.c.l.b16 %v2048
      %v2097 = vunpack.c.l.b16 %v2049
      %v2098 = vunpack.c.l.b16 %v2050
      %v2099 = vunpack.c.l.b16 %v2051
      %v2100 = vunpack.c.l.b16 %v2052
      %v2101 = vunpack.c.l.b16 %v2053
      %v2102 = vunpack.c.l.b16 %v2054
      %v2103 = vunpack.c.l.b16 %v2055
      %v2104 = vunpack.c.l.b16 %v2056
      %v2105 = vunpack.c.l.b16 %v2057
      %v2106 = vpack.c.b16 %v2091, %v2090
      %v2107 = vpack.c.b16 %v2093, %v2092
      %v2108 = vpack.c.b16 %v2095, %v2094
      %v2109 = vpack.c.b16 %v2097, %v2096
      %v2110 = vpack.c.b16 %v2099, %v2098
      %v2111 = vpack.c.b16 %v2101, %v2100
      %v2112 = vpack.c.b16 %v2103, %v2102
      %v2113 = vpack.c.b16 %v2105, %v2104
      %2122 = vmatprep.subr.bf16.mxu0 0
      %2123 = vmatpush1.bf16.msra.mxu0 %v2106
      %2124 = vmatprep.subr.bf16.mxu0 0
      %2125 = vmatpush1.bf16.msra.mxu0 %v2107
      %2126 = vmatprep.subr.bf16.mxu0 0
      %2127 = vmatpush1.bf16.msra.mxu0 %v2108
      %2128 = vmatprep.subr.bf16.mxu0 0
      %2129 = vmatpush1.bf16.msra.mxu0 %v2109
      %2130 = vmatprep.subr.bf16.mxu0 0
      %2131 = vmatpush1.bf16.msra.mxu0 %v2110
      %2132 = vmatprep.subr.bf16.mxu0 0
      %2133 = vmatpush1.bf16.msra.mxu0 %v2111
      %2134 = vmatprep.subr.bf16.mxu0 0
      %2135 = vmatpush1.bf16.msra.mxu0 %v2112
      %2136 = vmatprep.subr.bf16.mxu0 0
      %2137 = vmatpush1.bf16.msra.mxu0 %v2113
      %2138 = vmatprep.subr.bf16.mxu0 0
      %2139 = vmatpush1.bf16.msra.mxu0 0
      %2140 = vmatprep.subr.bf16.mxu0 0
      %2141 = vmatpush1.bf16.msra.mxu0 0
      %2142 = vmatprep.subr.bf16.mxu0 0
      %2143 = vmatpush1.bf16.msra.mxu0 0
      %2144 = vmatprep.subr.bf16.mxu0 0
      %2145 = vmatpush1.bf16.msra.mxu0 0
      %2146 = vmatprep.subr.bf16.mxu0 0
      %2147 = vmatpush1.bf16.msra.mxu0 0
      %2148 = vmatprep.subr.bf16.mxu0 0
      %2149 = vmatpush1.bf16.msra.mxu0 0
      %2150 = vmatprep.subr.bf16.mxu0 0
      %2151 = vmatpush1.bf16.msra.mxu0 0
      %2152 = vmatprep.subr.bf16.mxu0 0
      %2153 = vmatpush1.bf16.msra.mxu0 0
      %2154 = vmatprep.mubr.bf16.mxu0 0
      %2155 = vmatmul.mubr.bf16.gmra.mrb[0].mxu0 %v2066
      %v2156 = vpop.f32.mrb[0].mxu0
      %v2157 = vadd.f32 0.0, %v2156
      %v2158 = vpop.f32.mrb[0].mxu0
      %v2159 = vpop.f32.mrb[0].mxu0
      %v2160 = vadd.f32 0.0, %v2159
      %v2161 = vpop.f32.mrb[0].mxu0
      %2162 = vmatprep.mubr.bf16.mxu0 0
      %2163 = vmatmul.mubr.bf16.gmra.mrb[0].mxu0 %v2067
      %v2164 = vpop.f32.mrb[0].mxu0
      %v2165 = vadd.f32 0.0, %v2164
      %v2166 = vpop.f32.mrb[0].mxu0
      %v2167 = vpop.f32.mrb[0].mxu0
      %v2168 = vadd.f32 0.0, %v2167
      %v2169 = vpop.f32.mrb[0].mxu0
      %2170 = vmatprep.mubr.bf16.mxu0 0
      %2171 = vmatmul.mubr.bf16.gmra.mrb[0].mxu0 %v2068
      %v2172 = vpop.f32.mrb[0].mxu0
      %v2173 = vadd.f32 0.0, %v2172
      %v2174 = vpop.f32.mrb[0].mxu0
      %v2175 = vpop.f32.mrb[0].mxu0
      %v2176 = vadd.f32 0.0, %v2175
      %v2177 = vpop.f32.mrb[0].mxu0
      %2178 = vmatprep.mubr.bf16.mxu0 0
      %2179 = vmatmul.mubr.bf16.gmra.mrb[0].mxu0 %v2069
      %v2180 = vpop.f32.mrb[0].mxu0
      %v2181 = vadd.f32 0.0, %v2180
      %v2182 = vpop.f32.mrb[0].mxu0
      %v2183 = vpop.f32.mrb[0].mxu0
      %v2184 = vadd.f32 0.0, %v2183
      %v2185 = vpop.f32.mrb[0].mxu0
      %2186 = vdwg.mxu0
      %v2187 = vadd.f32 %v1977, %v2157
      %v2188 = vadd.f32 %v1978, %v2160
      %v2189 = vadd.f32 %v1979, %v2165
      %v2190 = vadd.f32 %v1980, %v2168
      %v2191 = vadd.f32 %v1981, %v2173
      %v2192 = vadd.f32 %v1982, %v2176
      %v2193 = vadd.f32 %v1983, %v2181
      %v2194 = vadd.f32 %v1984, %v2184
      %v2195 = vld [vmem:[%s2] sm:$0x1]
      %v2197 = vlaneseq
      %v2198 = vshrl.u32 %v2197, 7
      %v2199 = vsub.s32 0, %v2198
      %v2200 = vrot.slane %v2195, %v2199
      %v2202 = vadd.f32 %v2187, %v2200
      %v2203 = vadd.f32 %v2188, %v2200
      %v2204 = vadd.f32 %v2189, %v2200
      %v2205 = vadd.f32 %v2190, %v2200
      %v2206 = vadd.f32 %v2191, %v2200
      %v2207 = vadd.f32 %v2192, %v2200
      %v2208 = vadd.f32 %v2193, %v2200
      %v2209 = vadd.f32 %v2194, %v2200
      %v2210 = vmax.f32 %v2202, 0.0
      %v2211 = vmax.f32 %v2203, 0.0
      %v2212 = vmax.f32 %v2204, 0.0
      %v2213 = vmax.f32 %v2205, 0.0
      %v2214 = vmax.f32 %v2206, 0.0
      %v2215 = vmax.f32 %v2207, 0.0
      %v2216 = vmax.f32 %v2208, 0.0
      %v2217 = vmax.f32 %v2209, 0.0
      %v2218 = vpack.c.bf16 %v2211, %v2210
      %v2219 = vpack.c.bf16 %v2213, %v2212
      %v2220 = vpack.c.bf16 %v2215, %v2214
      %v2221 = vpack.c.bf16 %v2217, %v2216
      %v2222 = vld [vmem:[%s3] sm:$0xf]
      %v2223 = vld [vmem:[%s3 + $0x4] sm:$0xf]
      %v2224 = vld [vmem:[%s3 + $0x8] sm:$0xf]
      %v2225 = vld [vmem:[%s3 + $0xc] sm:$0xf]
      %v2226 = vld [vmem:[%s3 + $0x10] sm:$0xf]
      %v2227 = vld [vmem:[%s3 + $0x14] sm:$0xf]
      %v2228 = vld [vmem:[%s3 + $0x18] sm:$0xf]
      %v2229 = vld [vmem:[%s3 + $0x1c] sm:$0xf]
      %v2230 = vld [vmem:[%s4] sm:$0x1]
      %v2232 = vlaneseq
      %v2233 = vshrl.u32 %v2232, 7
      %v2234 = vsub.s32 0, %v2233
      %v2235 = vrot.slane %v2230, %v2234
      %v2245 = vunpack.c.l.b16 %v2222
      %v2246 = vunpack.c.l.b16 %v2223
      %v2247 = vunpack.c.l.b16 %v2224
      %v2248 = vunpack.c.l.b16 %v2225
      %v2249 = vunpack.c.l.b16 %v2226
      %v2250 = vunpack.c.l.b16 %v2227
      %v2251 = vunpack.c.l.b16 %v2228
      %v2252 = vunpack.c.l.b16 %v2229
      %v2253 = vpack.c.b16 %v2246, %v2245
      %v2254 = vpack.c.b16 %v2248, %v2247
      %v2255 = vpack.c.b16 %v2250, %v2249
      %v2256 = vpack.c.b16 %v2252, %v2251
      %vm2261 = vcmask 523264
      %v2263 = vsel %vm2261, %v2218, 0
      %v2266 = vsel %vm2261, %v2219, 0
      %v2269 = vsel %vm2261, %v2220, 0
      %v2272 = vsel %vm2261, %v2221, 0
      %2274 = vmatprep.subr.bf16.mxu0 0
      %2275 = vmatpush1.bf16.msra.mxu0 %v2253
      %2276 = vmatprep.subr.bf16.mxu0 0
      %2277 = vmatpush1.bf16.msra.mxu0 %v2254
      %2278 = vmatprep.subr.bf16.mxu0 0
      %2279 = vmatpush1.bf16.msra.mxu0 %v2255
      %2280 = vmatprep.subr.bf16.mxu0 0
      %2281 = vmatpush1.bf16.msra.mxu0 %v2256
      %2282 = vmatprep.subr.bf16.mxu0 0
      %2283 = vmatpush1.bf16.msra.mxu0 0
      %2284 = vmatprep.subr.bf16.mxu0 0
      %2285 = vmatpush1.bf16.msra.mxu0 0
      %2286 = vmatprep.subr.bf16.mxu0 0
      %2287 = vmatpush1.bf16.msra.mxu0 0
      %2288 = vmatprep.subr.bf16.mxu0 0
      %2289 = vmatpush1.bf16.msra.mxu0 0
      %2290 = vmatprep.subr.bf16.mxu0 0
      %2291 = vmatpush1.bf16.msra.mxu0 0
      %2292 = vmatprep.subr.bf16.mxu0 0
      %2293 = vmatpush1.bf16.msra.mxu0 0
      %2294 = vmatprep.subr.bf16.mxu0 0
      %2295 = vmatpush1.bf16.msra.mxu0 0
      %2296 = vmatprep.subr.bf16.mxu0 0
      %2297 = vmatpush1.bf16.msra.mxu0 0
      %2298 = vmatprep.subr.bf16.mxu0 0
      %2299 = vmatpush1.bf16.msra.mxu0 0
      %2300 = vmatprep.subr.bf16.mxu0 0
      %2301 = vmatpush1.bf16.msra.mxu0 0
      %2302 = vmatprep.subr.bf16.mxu0 0
      %2303 = vmatpush1.bf16.msra.mxu0 0
      %2304 = vmatprep.subr.bf16.mxu0 0
      %2305 = vmatpush1.bf16.msra.mxu0 0
      %2306 = vmatprep.mubr.bf16.mxu0 0
      %2307 = vmatmul.mubr.bf16.gmra.mrb[0].mxu0 %v2263
      %v2308 = vpop.f32.mrb[0].mxu0
      %v2309 = vadd.f32 %v2235, %v2308
      %v2310 = vpop.f32.mrb[0].mxu0
      %v2311 = vpop.f32.mrb[0].mxu0
      %v2312 = vadd.f32 %v2235, %v2311
      %v2313 = vpop.f32.mrb[0].mxu0
      %2314 = vmatprep.mubr.bf16.mxu0 0
      %2315 = vmatmul.mubr.bf16.gmra.mrb[0].mxu0 %v2266
      %v2316 = vpop.f32.mrb[0].mxu0
      %v2317 = vadd.f32 %v2235, %v2316
      %v2318 = vpop.f32.mrb[0].mxu0
      %v2319 = vpop.f32.mrb[0].mxu0
      %v2320 = vadd.f32 %v2235, %v2319
      %v2321 = vpop.f32.mrb[0].mxu0
      %2322 = vmatprep.mubr.bf16.mxu0 0
      %2323 = vmatmul.mubr.bf16.gmra.mrb[0].mxu0 %v2269
      %v2324 = vpop.f32.mrb[0].mxu0
      %v2325 = vadd.f32 %v2235, %v2324
      %v2326 = vpop.f32.mrb[0].mxu0
      %v2327 = vpop.f32.mrb[0].mxu0
      %v2328 = vadd.f32 %v2235, %v2327
      %v2329 = vpop.f32.mrb[0].mxu0
      %2330 = vmatprep.mubr.bf16.mxu0 0
      %2331 = vmatmul.mubr.bf16.gmra.mrb[0].mxu0 %v2272
      %v2332 = vpop.f32.mrb[0].mxu0
      %v2333 = vadd.f32 %v2235, %v2332
      %v2334 = vpop.f32.mrb[0].mxu0
      %v2335 = vpop.f32.mrb[0].mxu0
      %v2336 = vadd.f32 %v2235, %v2335
      %v2337 = vpop.f32.mrb[0].mxu0
      %2338 = vdwg.mxu0
      %2339 = vst [vmem:[%s224] sm:$0xff] %v2309
      %2340 = vst [vmem:[%s224 + $0x8] sm:$0xff] %v2312
      %2341 = vst [vmem:[%s224 + $0x10] sm:$0xff] %v2317
      %2342 = vst [vmem:[%s224 + $0x18] sm:$0xff] %v2320
      %2343 = vst [vmem:[%s224 + $0x20] sm:$0xff] %v2325
      %2344 = vst [vmem:[%s224 + $0x28] sm:$0xff] %v2328
      %2345 = vst [vmem:[%s224 + $0x30] sm:$0xff] %v2333
      %2346 = vst [vmem:[%s224 + $0x38] sm:$0xff] %v2336
      %p2347 = scmp.lt.s32.totalorder %s16, 1
      %s2348 = scalar_select %p2347, %s16, 1
      %s2349 = smul.addr %s2348, 8
      %s2350 = smul.addr %s2349, 8
      %s2351 = scalar_lea.vmem %s5, %s2350
      // Predicated region
      $region41: #{deeplab_forward.7} parent=39 // pred_check
        %p2352 = pneg %p144
      $region42: #{deeplab_forward.7} parent=39 // pred_check_branch
        %2354 = sbr.rel (%p2352) target = $region44
      $region43: #{deeplab_forward.7} parent=39 // pred_region
        _
      $region44: #{deeplab_forward.7} parent=39 // pred_fallthru
        _
    $region40: #{deeplab_forward.7} parent=5 // pred_fallthru
      _
    %p2355 = scmp.le.s32.totalorder 2, %s11
    // Predicated region
    $region45: #{deeplab_forward.7} parent=5 // pred_check
      %p2356 = pneg %p2355
    $region46: #{deeplab_forward.7} parent=5 // pred_check_branch
      %2358 = sbr.rel (%p2356) target = $region48
    $region47: #{deeplab_forward.7} parent=5 // pred_region
      %s2359 = ssub.s32 %s11, 2
      // Predicated region
      $region49: #{deeplab_forward.7} parent=47 // pred_check
        %p2360 = pneg %p150
      $region50: #{deeplab_forward.7} parent=47 // pred_check_branch
        %2362 = sbr.rel (%p2360) target = $region52
      $region51: #{deeplab_forward.7} parent=47 // pred_region
        %p2363 = scmp.lt.s32.totalorder %s17, 1
        %s2364 = scalar_select %p2363, %s17, 1
        %s2365 = smul.addr %s2364, 8
        %s2366 = smul.addr %s2365, 8
        %s2367 = scalar_lea.vmem %s5, %s2366
      $region52: #{deeplab_forward.7} parent=47 // pred_fallthru
        _
    $region48: #{deeplab_forward.7} parent=5 // pred_fallthru
      _
  $region6: #{deeplab_forward.7} parent=0 // loop_footer
    %s15 = sadd.s32 1, %s11
  $region7: #{deeplab_forward.7} parent=0 // loop_footer_branch
    %10 = sbr.rel target = $region3
  $region8: #{deeplab_forward.7} parent=0 // loop_exit
    _

// kernel: deeplab_forward.6
$region0: #{deeplab_forward.6}
  #allocation0 [shape = 'u32[]', space=smem, size = 0x4, offset = 0x4, fixed_abs, tag = 'smem constant byte address 0x4 - core index']
  #allocation1 [shape = 'u32[144,128]{1,0:T(1,128)}', space=vmem, size = 0x12000, scoped, tag = 'internal scratch']
  %s0 = inlined_call_operand.vmem [shape: f32[2,44,44,128], index: 0, kind: input, shape index: {}]
  %s1 = inlined_call_operand.vmem [shape: bf16[2,128,64], index: 1, kind: input, shape index: {}]
  %s2 = inlined_call_operand.vmem [shape: bf16[3,9,128,64], index: 2, kind: input, shape index: {}]
  %s3 = inlined_call_operand.vmem [shape: f32[5,64], index: 3, kind: input, shape index: {}]
  %s4 = inlined_call_operand.vmem [shape: bf16[5,64,128], index: 4, kind: input, shape index: {}]
  %s5 = inlined_call_operand.vmem [shape: f32[1,128], index: 5, kind: input, shape index: {}]
  %s6 = inlined_call_operand.vmem [shape: bf16[2,64,128], index: 6, kind: output, shape index: {}]
  %s7 = sld [smem:[#allocation0]]
  $region57: #{deeplab_forward.6} parent=0
    _
  %s9 = ssub.s32 1, %s7
  %s10 = scalar_select 0, %s9, %s7
  loop: start=0, step=1, limit=4
  $region2: #{deeplab_forward.6} parent=0 // loop_pre_header
    _
  $region3: #{deeplab_forward.6} parent=0 // loop_header
    %s12 = sphi 0, %s16
    %p13 = scmp.ge.s32.totalorder %s12, 4
    %s22 = sphi 0, %s24
    %s25 = sphi 0, %s22
    %s26 = sphi 0, %s25
    %s42 = sphi 0, %s26
    %s46 = sphi 0, %s46
    %s48 = sphi 0, %s46
    %s49 = sphi 0, %s48
    %s63 = sphi 0, %s49
    %s67 = sphi 0, %s67
    %s69 = sphi 0, %s67
    %s70 = sphi 0, %s69
    %s84 = sphi 0, %s70
    %s88 = sphi 0, %s88
    %s90 = sphi 0, %s88
    %s91 = sphi 0, %s90
    %s105 = sphi 0, %s91
    %s109 = sphi 0, %s109
    %s111 = sphi 0, %s109
    %s112 = sphi 0, %s111
    %s126 = sphi 0, %s112
    %s130 = sphi 0, %s130
    %s132 = sphi 0, %s130
    %s133 = sphi 0, %s132
    %s147 = sphi 0, %s133
    %s153 = sphi 0, %s155
    %s156 = sphi 0, %s153
    %s157 = sphi 0, %s156
    %s173 = sphi 0, %s157
  $region4: #{deeplab_forward.6} parent=0 // loop_header_branch
    %15 = sbr.rel (%p13) target = $region8
  $region5: #{deeplab_forward.6} parent=0 // loop_body
    %s17 = ssub.s32 %s12, 1
    %s18 = ssub.s32 %s12, 2
    %s19 = sadd.s32 %s12, 1
    %s20 = ssub.s32 %s12, %s19
    %p21 = scmp.eq.s32.totalorder %s20, 0
    %s23 = sadd.s32 %s22, 1
    %s24 = scalar_select %p21, %s22, %s23
    %p27 = pneg %p21
    %p28 = scmp.eq.s32.totalorder %s12, 1
    %p29 = por %p27, %p28
    %p30 = scmp.ne.s32.totalorder %s22, %s25
    %p31 = scmp.eq.s32.totalorder %s12, 0
    %p32 = por %p30, %p31
    %p33 = scmp.ne.s32.totalorder %s22, %s25
    %p34 = scmp.eq.s32.totalorder %s17, 1
    %p35 = por %p33, %p34
    %p36 = scmp.ne.s32.totalorder %s25, %s26
    %p37 = scmp.eq.s32.totalorder %s17, 0
    %p38 = por %p36, %p37
    %p39 = scmp.ne.s32.totalorder %s25, %s26
    %p40 = scmp.eq.s32.totalorder %s18, 1
    %p41 = por %p39, %p40
    %p43 = scmp.ne.s32.totalorder %s26, %s42
    %p44 = scmp.eq.s32.totalorder %s18, 0
    %p45 = por %p43, %p44
    %s47 = sadd.s32 %s46, 1
    %p50 = scmp.eq.s32.totalorder %s12, 1
    %p51 = scmp.ne.s32.totalorder %s46, %s48
    %p52 = scmp.eq.s32.totalorder %s12, 0
    %p53 = por %p51, %p52
    %p54 = scmp.ne.s32.totalorder %s46, %s48
    %p55 = scmp.eq.s32.totalorder %s17, 1
    %p56 = por %p54, %p55
    %p57 = scmp.ne.s32.totalorder %s48, %s49
    %p58 = scmp.eq.s32.totalorder %s17, 0
    %p59 = por %p57, %p58
    %p60 = scmp.ne.s32.totalorder %s48, %s49
    %p61 = scmp.eq.s32.totalorder %s18, 1
    %p62 = por %p60, %p61
    %p64 = scmp.ne.s32.totalorder %s49, %s63
    %p65 = scmp.eq.s32.totalorder %s18, 0
    %p66 = por %p64, %p65
    %s68 = sadd.s32 %s67, 1
    %p71 = scmp.eq.s32.totalorder %s12, 1
    %p72 = scmp.ne.s32.totalorder %s67, %s69
    %p73 = scmp.eq.s32.totalorder %s12, 0
    %p74 = por %p72, %p73
    %p75 = scmp.ne.s32.totalorder %s67, %s69
    %p76 = scmp.eq.s32.totalorder %s17, 1
    %p77 = por %p75, %p76
    %p78 = scmp.ne.s32.totalorder %s69, %s70
    %p79 = scmp.eq.s32.totalorder %s17, 0
    %p80 = por %p78, %p79
    %p81 = scmp.ne.s32.totalorder %s69, %s70
    %p82 = scmp.eq.s32.totalorder %s18, 1
    %p83 = por %p81, %p82
    %p85 = scmp.ne.s32.totalorder %s70, %s84
    %p86 = scmp.eq.s32.totalorder %s18, 0
    %p87 = por %p85, %p86
    %s89 = sadd.s32 %s88, 1
    %p92 = scmp.eq.s32.totalorder %s12, 1
    %p93 = scmp.ne.s32.totalorder %s88, %s90
    %p94 = scmp.eq.s32.totalorder %s12, 0
    %p95 = por %p93, %p94
    %p96 = scmp.ne.s32.totalorder %s88, %s90
    %p97 = scmp.eq.s32.totalorder %s17, 1
    %p98 = por %p96, %p97
    %p99 = scmp.ne.s32.totalorder %s90, %s91
    %p100 = scmp.eq.s32.totalorder %s17, 0
    %p101 = por %p99, %p100
    %p102 = scmp.ne.s32.totalorder %s90, %s91
    %p103 = scmp.eq.s32.totalorder %s18, 1
    %p104 = por %p102, %p103
    %p106 = scmp.ne.s32.totalorder %s91, %s105
    %p107 = scmp.eq.s32.totalorder %s18, 0
    %p108 = por %p106, %p107
    %s110 = sadd.s32 %s109, 1
    %p113 = scmp.eq.s32.totalorder %s12, 1
    %p114 = scmp.ne.s32.totalorder %s109, %s111
    %p115 = scmp.eq.s32.totalorder %s12, 0
    %p116 = por %p114, %p115
    %p117 = scmp.ne.s32.totalorder %s109, %s111
    %p118 = scmp.eq.s32.totalorder %s17, 1
    %p119 = por %p117, %p118
    %p120 = scmp.ne.s32.totalorder %s111, %s112
    %p121 = scmp.eq.s32.totalorder %s17, 0
    %p122 = por %p120, %p121
    %p123 = scmp.ne.s32.totalorder %s111, %s112
    %p124 = scmp.eq.s32.totalorder %s18, 1
    %p125 = por %p123, %p124
    %p127 = scmp.ne.s32.totalorder %s112, %s126
    %p128 = scmp.eq.s32.totalorder %s18, 0
    %p129 = por %p127, %p128
    %s131 = sadd.s32 %s130, 1
    %p134 = scmp.eq.s32.totalorder %s12, 1
    %p135 = scmp.ne.s32.totalorder %s130, %s132
    %p136 = scmp.eq.s32.totalorder %s12, 0
    %p137 = por %p135, %p136
    %p138 = scmp.ne.s32.totalorder %s130, %s132
    %p139 = scmp.eq.s32.totalorder %s17, 1
    %p140 = por %p138, %p139
    %p141 = scmp.ne.s32.totalorder %s132, %s133
    %p142 = scmp.eq.s32.totalorder %s17, 0
    %p143 = por %p141, %p142
    %p144 = scmp.ne.s32.totalorder %s132, %s133
    %p145 = scmp.eq.s32.totalorder %s18, 1
    %p146 = por %p144, %p145
    %p148 = scmp.ne.s32.totalorder %s133, %s147
    %p149 = scmp.eq.s32.totalorder %s18, 0
    %p150 = por %p148, %p149
    %s151 = ssub.s32 %s12, %s19
    %p152 = scmp.eq.s32.totalorder %s151, 0
    %s154 = sadd.s32 %s153, 1
    %s155 = scalar_select %p152, %s153, %s154
    %p158 = pneg %p152
    %p159 = scmp.eq.s32.totalorder %s12, 1
    %p160 = por %p158, %p159
    %p161 = scmp.ne.s32.totalorder %s153, %s156
    %p162 = scmp.eq.s32.totalorder %s12, 0
    %p163 = por %p161, %p162
    %p164 = scmp.ne.s32.totalorder %s153, %s156
    %p165 = scmp.eq.s32.totalorder %s17, 1
    %p166 = por %p164, %p165
    %p167 = scmp.ne.s32.totalorder %s156, %s157
    %p168 = scmp.eq.s32.totalorder %s17, 0
    %p169 = por %p167, %p168
    %p170 = scmp.ne.s32.totalorder %s156, %s157
    %p171 = scmp.eq.s32.totalorder %s18, 1
    %p172 = por %p170, %p171
    %p174 = scmp.ne.s32.totalorder %s157, %s173
    %p175 = scmp.eq.s32.totalorder %s18, 0
    %p176 = por %p174, %p175
    %p177 = scmp.le.s32.totalorder 1, %s12
    %p178 = scmp.lt.s32.totalorder %s12, 3
    %p179 = pnand %p177, %p178
    %p180 = pneg %p179
    // Predicated region
    $region9: #{deeplab_forward.6} parent=5 // pred_check
      _
    $region10: #{deeplab_forward.6} parent=5 // pred_check_branch
      %182 = sbr.rel (%p179) target = $region12
    $region11: #{deeplab_forward.6} parent=5 // pred_region
      %s183 = ssub.s32 %s12, 1
      // Predicated region
      $region13: #{deeplab_forward.6} parent=11 // pred_check
        %p184 = pneg %p59
      $region14: #{deeplab_forward.6} parent=11 // pred_check_branch
        %186 = sbr.rel (%p184) target = $region16
      $region15: #{deeplab_forward.6} parent=11 // pred_region
        _
      $region16: #{deeplab_forward.6} parent=11 // pred_fallthru
        _
      // Predicated region
      $region17: #{deeplab_forward.6} parent=11 // pred_check
        %p187 = pneg %p80
      $region18: #{deeplab_forward.6} parent=11 // pred_check_branch
        %189 = sbr.rel (%p187) target = $region20
      $region19: #{deeplab_forward.6} parent=11 // pred_region
        _
      $region20: #{deeplab_forward.6} parent=11 // pred_fallthru
        _
      // Predicated region
      $region21: #{deeplab_forward.6} parent=11 // pred_check
        %p190 = pneg %p101
      $region22: #{deeplab_forward.6} parent=11 // pred_check_branch
        %192 = sbr.rel (%p190) target = $region24
      $region23: #{deeplab_forward.6} parent=11 // pred_region
        _
      $region24: #{deeplab_forward.6} parent=11 // pred_fallthru
        _
      // Predicated region
      $region25: #{deeplab_forward.6} parent=11 // pred_check
        %p193 = pneg %p122
      $region26: #{deeplab_forward.6} parent=11 // pred_check_branch
        %195 = sbr.rel (%p193) target = $region28
      $region27: #{deeplab_forward.6} parent=11 // pred_region
        _
      $region28: #{deeplab_forward.6} parent=11 // pred_fallthru
        _
      // Predicated region
      $region29: #{deeplab_forward.6} parent=11 // pred_check
        %p196 = pneg %p143
      $region30: #{deeplab_forward.6} parent=11 // pred_check_branch
        %198 = sbr.rel (%p196) target = $region32
      $region31: #{deeplab_forward.6} parent=11 // pred_region
        _
      $region32: #{deeplab_forward.6} parent=11 // pred_fallthru
        _
    $region12: #{deeplab_forward.6} parent=5 // pred_fallthru
      _
    %p199 = scmp.lt.s32.totalorder %s12, 2
    // Predicated region
    $region33: #{deeplab_forward.6} parent=5 // pred_check
      %p200 = pneg %p199
    $region34: #{deeplab_forward.6} parent=5 // pred_check_branch
      %202 = sbr.rel (%p200) target = $region36
    $region35: #{deeplab_forward.6} parent=5 // pred_region
      // Predicated region
      $region37: #{deeplab_forward.6} parent=35 // pred_check
        %p203 = pneg %p32
      $region38: #{deeplab_forward.6} parent=35 // pred_check_branch
        %205 = sbr.rel (%p203) target = $region40
      $region39: #{deeplab_forward.6} parent=35 // pred_region
        %p206 = scmp.lt.s32.totalorder %s12, 1
        %s207 = scalar_select %p206, %s12, 1
        %s208 = smul.addr %s207, 264
        %s209 = smul.addr %s208, 8
        %s210 = scalar_lea.vmem %s0, %s209
      $region40: #{deeplab_forward.6} parent=35 // pred_fallthru
        _
    $region36: #{deeplab_forward.6} parent=5 // pred_fallthru
      _
    %p211 = scmp.le.s32.totalorder 1, %s12
    %p212 = scmp.lt.s32.totalorder %s12, 3
    %p213 = pnand %p211, %p212
    %p214 = pneg %p213
    // Predicated region
    $region41: #{deeplab_forward.6} parent=5 // pred_check
      _
    $region42: #{deeplab_forward.6} parent=5 // pred_check_branch
      %216 = sbr.rel (%p213) target = $region44
    $region43: #{deeplab_forward.6} parent=5 // pred_region
      %s217 = ssub.s32 %s12, 1
      %p218 = scmp.lt.s32.totalorder %s17, 1
      %s219 = scalar_select %p218, %s17, 1
      %s220 = smul.addr %s219, 264
      %s221 = smul.addr %s220, 8
      %s222 = scalar_lea.vmem %s0, %s221
      %p223 = pneg %p38
      %p224 = pneg %p35
      %p225 = pneg %p59
      %p226 = pneg %p56
      %p227 = pneg %p80
      %p228 = pneg %p77
      %p229 = pneg %p101
      %p230 = pneg %p98
      %p231 = pneg %p122
      %p232 = pneg %p119
      %p233 = pneg %p143
      %p234 = pneg %p140
      %p235 = pneg %p169
      %p236 = pneg %p166
      %p237 = scmp.lt.s32.totalorder %s17, 1
      %s238 = scalar_select %p237, %s17, 1
      %s239 = smul.addr %s238, 8
      %s240 = smul.addr %s239, 4
      %s241 = scalar_lea.vmem %s6, %s240
      %p242 = scmp.lt.s32.totalorder %s17, 1
      %s243 = scalar_select %p242, %s17, 1
      %s244 = smul.addr %s243, 264
      %s245 = smul.addr %s244, 8
      %s246 = scalar_lea.vmem %s0, %s245
      %p247 = scmp.lt.s32.totalorder %s17, 1
      %s248 = scalar_select %p247, %s17, 1
      %s249 = smul.addr %s248, 8
      %s250 = smul.addr %s249, 4
      %s251 = scalar_lea.vmem %s6, %s250
      %s253 = scalar_lea.vmem %s246, 864
      %v254 = vld [vmem:[%s253 + $0x12] sm:$0xff]
      %v255 = vld [vmem:[%s253 + $0x42] sm:$0xff]
      %v256 = vld [vmem:[%s253 + $0x72] sm:$0xff]
      %v257 = vld [vmem:[%s253 + $0xa2] sm:$0xff]
      %v258 = vld [vmem:[%s253 + $0xd2] sm:$0xff]
      %v259 = vld [vmem:[%s253 + $0x102] sm:$0xff]
      %v260 = vld [vmem:[%s253 + $0x132] sm:$0xff]
      %v261 = vld [vmem:[%s253 + $0x162] sm:$0xff]
      %v262 = vpack.c.bf16 %v255, %v254
      %v263 = vpack.c.bf16 %v257, %v256
      %v264 = vpack.c.bf16 %v259, %v258
      %v265 = vpack.c.bf16 %v261, %v260
      %v266 = vld [vmem:[%s1] sm:$0xf]
      %v267 = vld [vmem:[%s1 + $0x4] sm:$0xf]
      %v268 = vld [vmem:[%s1 + $0x8] sm:$0xf]
      %v269 = vld [vmem:[%s1 + $0xc] sm:$0xf]
      %v270 = vld [vmem:[%s1 + $0x10] sm:$0xf]
      %v271 = vld [vmem:[%s1 + $0x14] sm:$0xf]
      %v272 = vld [vmem:[%s1 + $0x18] sm:$0xf]
      %v273 = vld [vmem:[%s1 + $0x1c] sm:$0xf]
      %v274 = vld [vmem:[%s1 + $0x20] sm:$0xf]
      %v275 = vld [vmem:[%s1 + $0x24] sm:$0xf]
      %v276 = vld [vmem:[%s1 + $0x28] sm:$0xf]
      %v277 = vld [vmem:[%s1 + $0x2c] sm:$0xf]
      %v278 = vld [vmem:[%s1 + $0x30] sm:$0xf]
      %v279 = vld [vmem:[%s1 + $0x34] sm:$0xf]
      %v280 = vld [vmem:[%s1 + $0x38] sm:$0xf]
      %v281 = vld [vmem:[%s1 + $0x3c] sm:$0xf]
      %v282 = vld [vmem:[%s3] sm:$0x1]
      %v283 = vlaneseq
      %v284 = vshrl.u32 %v283, 7
      %v285 = vsub.s32 0, %v284
      %v286 = vrot.slane %v282, %v285
      %v303 = vunpack.c.l.b16 %v266
      %v304 = vunpack.c.l.b16 %v267
      %v305 = vunpack.c.l.b16 %v268
      %v306 = vunpack.c.l.b16 %v269
      %v307 = vunpack.c.l.b16 %v270
      %v308 = vunpack.c.l.b16 %v271
      %v309 = vunpack.c.l.b16 %v272
      %v310 = vunpack.c.l.b16 %v273
      %v311 = vunpack.c.l.b16 %v274
      %v312 = vunpack.c.l.b16 %v275
      %v313 = vunpack.c.l.b16 %v276
      %v314 = vunpack.c.l.b16 %v277
      %v315 = vunpack.c.l.b16 %v278
      %v316 = vunpack.c.l.b16 %v279
      %v317 = vunpack.c.l.b16 %v280
      %v318 = vunpack.c.l.b16 %v281
      %v319 = vpack.c.b16 %v304, %v303
      %v320 = vpack.c.b16 %v306, %v305
      %v321 = vpack.c.b16 %v308, %v307
      %v322 = vpack.c.b16 %v310, %v309
      %v323 = vpack.c.b16 %v312, %v311
      %v324 = vpack.c.b16 %v314, %v313
      %v325 = vpack.c.b16 %v316, %v315
      %v326 = vpack.c.b16 %v318, %v317
      %335 = vmatprep.subr.bf16.mxu0 0
      %336 = vmatpush1.bf16.msra.mxu0 %v319
      %337 = vmatprep.subr.bf16.mxu0 0
      %338 = vmatpush1.bf16.msra.mxu0 %v320
      %339 = vmatprep.subr.bf16.mxu0 0
      %340 = vmatpush1.bf16.msra.mxu0 %v321
      %341 = vmatprep.subr.bf16.mxu0 0
      %342 = vmatpush1.bf16.msra.mxu0 %v322
      %343 = vmatprep.subr.bf16.mxu0 0
      %344 = vmatpush1.bf16.msra.mxu0 %v323
      %345 = vmatprep.subr.bf16.mxu0 0
      %346 = vmatpush1.bf16.msra.mxu0 %v324
      %347 = vmatprep.subr.bf16.mxu0 0
      %348 = vmatpush1.bf16.msra.mxu0 %v325
      %349 = vmatprep.subr.bf16.mxu0 0
      %350 = vmatpush1.bf16.msra.mxu0 %v326
      %351 = vmatprep.subr.bf16.mxu0 0
      %352 = vmatpush1.bf16.msra.mxu0 0
      %353 = vmatprep.subr.bf16.mxu0 0
      %354 = vmatpush1.bf16.msra.mxu0 0
      %355 = vmatprep.subr.bf16.mxu0 0
      %356 = vmatpush1.bf16.msra.mxu0 0
      %357 = vmatprep.subr.bf16.mxu0 0
      %358 = vmatpush1.bf16.msra.mxu0 0
      %359 = vmatprep.subr.bf16.mxu0 0
      %360 = vmatpush1.bf16.msra.mxu0 0
      %361 = vmatprep.subr.bf16.mxu0 0
      %362 = vmatpush1.bf16.msra.mxu0 0
      %363 = vmatprep.subr.bf16.mxu0 0
      %364 = vmatpush1.bf16.msra.mxu0 0
      %365 = vmatprep.subr.bf16.mxu0 0
      %366 = vmatpush1.bf16.msra.mxu0 0
      %367 = vmatprep.mubr.bf16.mxu0 0
      %368 = vmatmul.mubr.bf16.gmra.mrb[0].mxu0 %v262
      %v369 = vpop.f32.mrb[0].mxu0
      %v370 = vadd.f32 %v286, %v369
      %v371 = vpop.f32.mrb[0].mxu0
      %v372 = vpop.f32.mrb[0].mxu0
      %v373 = vadd.f32 %v286, %v372
      %v374 = vpop.f32.mrb[0].mxu0
      %375 = vmatprep.mubr.bf16.mxu0 0
      %376 = vmatmul.mubr.bf16.gmra.mrb[0].mxu0 %v263
      %v377 = vpop.f32.mrb[0].mxu0
      %v378 = vadd.f32 %v286, %v377
      %v379 = vpop.f32.mrb[0].mxu0
      %v380 = vpop.f32.mrb[0].mxu0
      %v381 = vadd.f32 %v286, %v380
      %v382 = vpop.f32.mrb[0].mxu0
      %383 = vmatprep.mubr.bf16.mxu0 0
      %384 = vmatmul.mubr.bf16.gmra.mrb[0].mxu0 %v264
      %v385 = vpop.f32.mrb[0].mxu0
      %v386 = vadd.f32 %v286, %v385
      %v387 = vpop.f32.mrb[0].mxu0
      %v388 = vpop.f32.mrb[0].mxu0
      %v389 = vadd.f32 %v286, %v388
      %v390 = vpop.f32.mrb[0].mxu0
      %391 = vmatprep.mubr.bf16.mxu0 0
      %392 = vmatmul.mubr.bf16.gmra.mrb[0].mxu0 %v265
      %v393 = vpop.f32.mrb[0].mxu0
      %v394 = vadd.f32 %v286, %v393
      %v395 = vpop.f32.mrb[0].mxu0
      %v396 = vpop.f32.mrb[0].mxu0
      %v397 = vadd.f32 %v286, %v396
      %v398 = vpop.f32.mrb[0].mxu0
      %399 = vdwg.mxu0
      %v400 = vmax.f32 %v370, 0.0
      %v401 = vmax.f32 %v373, 0.0
      %v402 = vmax.f32 %v378, 0.0
      %v403 = vmax.f32 %v381, 0.0
      %v404 = vmax.f32 %v386, 0.0
      %v405 = vmax.f32 %v389, 0.0
      %v406 = vmax.f32 %v394, 0.0
      %v407 = vmax.f32 %v397, 0.0
      %v408 = vpack.c.bf16 %v401, %v400
      %v409 = vpack.c.bf16 %v403, %v402
      %v410 = vpack.c.bf16 %v405, %v404
      %v411 = vpack.c.bf16 %v407, %v406
      %v412 = vld [vmem:[%s4] sm:$0xf]
      %v413 = vld [vmem:[%s4 + $0x4] sm:$0xf]
      %v414 = vld [vmem:[%s4 + $0x8] sm:$0xf]
      %v415 = vld [vmem:[%s4 + $0xc] sm:$0xf]
      %v416 = vld [vmem:[%s4 + $0x10] sm:$0xf]
      %v417 = vld [vmem:[%s4 + $0x14] sm:$0xf]
      %v418 = vld [vmem:[%s4 + $0x18] sm:$0xf]
      %v419 = vld [vmem:[%s4 + $0x1c] sm:$0xf]
      %s420 = scalar_lea.vmem %s246, 576
      %v421 = vld [vmem:[%s420 + $0xc] sm:$0xff]
      %v422 = vld [vmem:[%s420 + $0x3c] sm:$0xff]
      %v423 = vld [vmem:[%s420 + $0x6c] sm:$0xff]
      %v424 = vld [vmem:[%s420 + $0x9c] sm:$0xff]
      %v425 = vld [vmem:[%s420 + $0xcc] sm:$0xff]
      %v426 = vld [vmem:[%s420 + $0xfc] sm:$0xff]
      %v427 = vld [vmem:[%s420 + $0x12c] sm:$0xff]
      %v428 = vld [vmem:[%s420 + $0x15c] sm:$0xff]
      %v429 = vpack.c.bf16 %v422, %v421
      %v430 = vpack.c.bf16 %v424, %v423
      %v431 = vpack.c.bf16 %v426, %v425
      %v432 = vpack.c.bf16 %v428, %v427
      %v433 = vld [vmem:[%s2] sm:$0xf]
      %v434 = vld [vmem:[%s2 + $0x4] sm:$0xf]
      %v435 = vld [vmem:[%s2 + $0x8] sm:$0xf]
      %v436 = vld [vmem:[%s2 + $0xc] sm:$0xf]
      %v437 = vld [vmem:[%s2 + $0x10] sm:$0xf]
      %v438 = vld [vmem:[%s2 + $0x14] sm:$0xf]
      %v439 = vld [vmem:[%s2 + $0x18] sm:$0xf]
      %v440 = vld [vmem:[%s2 + $0x1c] sm:$0xf]
      %v441 = vld [vmem:[%s2 + $0x20] sm:$0xf]
      %v442 = vld [vmem:[%s2 + $0x24] sm:$0xf]
      %v443 = vld [vmem:[%s2 + $0x28] sm:$0xf]
      %v444 = vld [vmem:[%s2 + $0x2c] sm:$0xf]
      %v445 = vld [vmem:[%s2 + $0x30] sm:$0xf]
      %v446 = vld [vmem:[%s2 + $0x34] sm:$0xf]
      %v447 = vld [vmem:[%s2 + $0x38] sm:$0xf]
      %v448 = vld [vmem:[%s2 + $0x3c] sm:$0xf]
      %v449 = vld [vmem:[%s420 + $0x12] sm:$0xff]
      %v450 = vld [vmem:[%s420 + $0x42] sm:$0xff]
      %v451 = vld [vmem:[%s420 + $0x72] sm:$0xff]
      %v452 = vld [vmem:[%s420 + $0xa2] sm:$0xff]
      %v453 = vld [vmem:[%s420 + $0xd2] sm:$0xff]
      %v454 = vld [vmem:[%s420 + $0x102] sm:$0xff]
      %v455 = vld [vmem:[%s420 + $0x132] sm:$0xff]
      %v456 = vld [vmem:[%s420 + $0x162] sm:$0xff]
      %v457 = vpack.c.bf16 %v450, %v449
      %v458 = vpack.c.bf16 %v452, %v451
      %v459 = vpack.c.bf16 %v454, %v453
      %v460 = vpack.c.bf16 %v456, %v455
      %s461 = scalar_lea.vmem %s2, 64
      %v462 = vld [vmem:[%s461] sm:$0xf]
      %v463 = vld [vmem:[%s461 + $0x4] sm:$0xf]
      %v464 = vld [vmem:[%s461 + $0x8] sm:$0xf]
      %v465 = vld [vmem:[%s461 + $0xc] sm:$0xf]
      %v466 = vld [vmem:[%s461 + $0x10] sm:$0xf]
      %v467 = vld [vmem:[%s461 + $0x14] sm:$0xf]
      %v468 = vld [vmem:[%s461 + $0x18] sm:$0xf]
      %v469 = vld [vmem:[%s461 + $0x1c] sm:$0xf]
      %v470 = vld [vmem:[%s461 + $0x20] sm:$0xf]
      %v471 = vld [vmem:[%s461 + $0x24] sm:$0xf]
      %v472 = vld [vmem:[%s461 + $0x28] sm:$0xf]
      %v473 = vld [vmem:[%s461 + $0x2c] sm:$0xf]
      %v474 = vld [vmem:[%s461 + $0x30] sm:$0xf]
      %v475 = vld [vmem:[%s461 + $0x34] sm:$0xf]
      %v476 = vld [vmem:[%s461 + $0x38] sm:$0xf]
      %v477 = vld [vmem:[%s461 + $0x3c] sm:$0xf]
      %v494 = vunpack.c.l.b16 %v462
      %v495 = vunpack.c.l.b16 %v463
      %v496 = vunpack.c.l.b16 %v464
      %v497 = vunpack.c.l.b16 %v465
      %v498 = vunpack.c.l.b16 %v466
      %v499 = vunpack.c.l.b16 %v467
      %v500 = vunpack.c.l.b16 %v468
      %v501 = vunpack.c.l.b16 %v469
      %v502 = vunpack.c.l.b16 %v470
      %v503 = vunpack.c.l.b16 %v471
      %v504 = vunpack.c.l.b16 %v472
      %v505 = vunpack.c.l.b16 %v473
      %v506 = vunpack.c.l.b16 %v474
      %v507 = vunpack.c.l.b16 %v475
      %v508 = vunpack.c.l.b16 %v476
      %v509 = vunpack.c.l.b16 %v477
      %v510 = vpack.c.b16 %v495, %v494
      %v511 = vpack.c.b16 %v497, %v496
      %v512 = vpack.c.b16 %v499, %v498
      %v513 = vpack.c.b16 %v501, %v500
      %v514 = vpack.c.b16 %v503, %v502
      %v515 = vpack.c.b16 %v505, %v504
      %v516 = vpack.c.b16 %v507, %v506
      %v517 = vpack.c.b16 %v509, %v508
      %526 = vmatprep.subr.bf16.mxu0 0
      %527 = vmatpush1.bf16.msra.mxu0 %v510
      %528 = vmatprep.subr.bf16.mxu0 0
      %529 = vmatpush1.bf16.msra.mxu0 %v511
      %530 = vmatprep.subr.bf16.mxu0 0
      %531 = vmatpush1.bf16.msra.mxu0 %v512
      %532 = vmatprep.subr.bf16.mxu0 0
      %533 = vmatpush1.bf16.msra.mxu0 %v513
      %534 = vmatprep.subr.bf16.mxu0 0
      %535 = vmatpush1.bf16.msra.mxu0 %v514
      %536 = vmatprep.subr.bf16.mxu0 0
      %537 = vmatpush1.bf16.msra.mxu0 %v515
      %538 = vmatprep.subr.bf16.mxu0 0
      %539 = vmatpush1.bf16.msra.mxu0 %v516
      %540 = vmatprep.subr.bf16.mxu0 0
      %541 = vmatpush1.bf16.msra.mxu0 %v517
      %542 = vmatprep.subr.bf16.mxu0 0
      %543 = vmatpush1.bf16.msra.mxu0 0
      %544 = vmatprep.subr.bf16.mxu0 0
      %545 = vmatpush1.bf16.msra.mxu0 0
      %546 = vmatprep.subr.bf16.mxu0 0
      %547 = vmatpush1.bf16.msra.mxu0 0
      %548 = vmatprep.subr.bf16.mxu0 0
      %549 = vmatpush1.bf16.msra.mxu0 0
      %550 = vmatprep.subr.bf16.mxu0 0
      %551 = vmatpush1.bf16.msra.mxu0 0
      %552 = vmatprep.subr.bf16.mxu0 0
      %553 = vmatpush1.bf16.msra.mxu0 0
      %554 = vmatprep.subr.bf16.mxu0 0
      %555 = vmatpush1.bf16.msra.mxu0 0
      %556 = vmatprep.subr.bf16.mxu0 0
      %557 = vmatpush1.bf16.msra.mxu0 0
      %558 = vmatprep.mubr.bf16.mxu0 0
      %559 = vmatmul.mubr.bf16.gmra.mrb[0].mxu0 %v457
      %v560 = vpop.f32.mrb[0].mxu0
      %v561 = vadd.f32 0.0, %v560
      %v562 = vpop.f32.mrb[0].mxu0
      %v563 = vpop.f32.mrb[0].mxu0
      %v564 = vadd.f32 0.0, %v563
      %v565 = vpop.f32.mrb[0].mxu0
      %566 = vmatprep.mubr.bf16.mxu0 0
      %567 = vmatmul.mubr.bf16.gmra.mrb[0].mxu0 %v458
      %v568 = vpop.f32.mrb[0].mxu0
      %v569 = vadd.f32 0.0, %v568
      %v570 = vpop.f32.mrb[0].mxu0
      %v571 = vpop.f32.mrb[0].mxu0
      %v572 = vadd.f32 0.0, %v571
      %v573 = vpop.f32.mrb[0].mxu0
      %574 = vmatprep.mubr.bf16.mxu0 0
      %575 = vmatmul.mubr.bf16.gmra.mrb[0].mxu0 %v459
      %v576 = vpop.f32.mrb[0].mxu0
      %v577 = vadd.f32 0.0, %v576
      %v578 = vpop.f32.mrb[0].mxu0
      %v579 = vpop.f32.mrb[0].mxu0
      %v580 = vadd.f32 0.0, %v579
      %v581 = vpop.f32.mrb[0].mxu0
      %582 = vmatprep.mubr.bf16.mxu0 0
      %583 = vmatmul.mubr.bf16.gmra.mrb[0].mxu0 %v460
      %v584 = vpop.f32.mrb[0].mxu0
      %v585 = vadd.f32 0.0, %v584
      %v586 = vpop.f32.mrb[0].mxu0
      %v587 = vpop.f32.mrb[0].mxu0
      %v588 = vadd.f32 0.0, %v587
      %v589 = vpop.f32.mrb[0].mxu0
      %590 = vdwg.mxu0
      %v607 = vunpack.c.l.b16 %v433
      %v608 = vunpack.c.l.b16 %v434
      %v609 = vunpack.c.l.b16 %v435
      %v610 = vunpack.c.l.b16 %v436
      %v611 = vunpack.c.l.b16 %v437
      %v612 = vunpack.c.l.b16 %v438
      %v613 = vunpack.c.l.b16 %v439
      %v614 = vunpack.c.l.b16 %v440
      %v615 = vunpack.c.l.b16 %v441
      %v616 = vunpack.c.l.b16 %v442
      %v617 = vunpack.c.l.b16 %v443
      %v618 = vunpack.c.l.b16 %v444
      %v619 = vunpack.c.l.b16 %v445
      %v620 = vunpack.c.l.b16 %v446
      %v621 = vunpack.c.l.b16 %v447
      %v622 = vunpack.c.l.b16 %v448
      %v623 = vpack.c.b16 %v608, %v607
      %v624 = vpack.c.b16 %v610, %v609
      %v625 = vpack.c.b16 %v612, %v611
      %v626 = vpack.c.b16 %v614, %v613
      %v627 = vpack.c.b16 %v616, %v615
      %v628 = vpack.c.b16 %v618, %v617
      %v629 = vpack.c.b16 %v620, %v619
      %v630 = vpack.c.b16 %v622, %v621
      %639 = vmatprep.subr.bf16.mxu0 0
      %640 = vmatpush1.bf16.msra.mxu0 %v623
      %641 = vmatprep.subr.bf16.mxu0 0
      %642 = vmatpush1.bf16.msra.mxu0 %v624
      %643 = vmatprep.subr.bf16.mxu0 0
      %644 = vmatpush1.bf16.msra.mxu0 %v625
      %645 = vmatprep.subr.bf16.mxu0 0
      %646 = vmatpush1.bf16.msra.mxu0 %v626
      %647 = vmatprep.subr.bf16.mxu0 0
      %648 = vmatpush1.bf16.msra.mxu0 %v627
      %649 = vmatprep.subr.bf16.mxu0 0
      %650 = vmatpush1.bf16.msra.mxu0 %v628
      %651 = vmatprep.subr.bf16.mxu0 0
      %652 = vmatpush1.bf16.msra.mxu0 %v629
      %653 = vmatprep.subr.bf16.mxu0 0
      %654 = vmatpush1.bf16.msra.mxu0 %v630
      %655 = vmatprep.subr.bf16.mxu0 0
      %656 = vmatpush1.bf16.msra.mxu0 0
      %657 = vmatprep.subr.bf16.mxu0 0
      %658 = vmatpush1.bf16.msra.mxu0 0
      %659 = vmatprep.subr.bf16.mxu0 0
      %660 = vmatpush1.bf16.msra.mxu0 0
      %661 = vmatprep.subr.bf16.mxu0 0
      %662 = vmatpush1.bf16.msra.mxu0 0
      %663 = vmatprep.subr.bf16.mxu0 0
      %664 = vmatpush1.bf16.msra.mxu0 0
      %665 = vmatprep.subr.bf16.mxu0 0
      %666 = vmatpush1.bf16.msra.mxu0 0
      %667 = vmatprep.subr.bf16.mxu0 0
      %668 = vmatpush1.bf16.msra.mxu0 0
      %669 = vmatprep.subr.bf16.mxu0 0
      %670 = vmatpush1.bf16.msra.mxu0 0
      %671 = vmatprep.mubr.bf16.mxu0 0
      %672 = vmatmul.mubr.bf16.gmra.mrb[0].mxu0 %v429
      %v673 = vpop.f32.mrb[0].mxu0
      %v674 = vadd.f32 %v561, %v673
      %v675 = vpop.f32.mrb[0].mxu0
      %v676 = vpop.f32.mrb[0].mxu0
      %v677 = vadd.f32 %v564, %v676
      %v678 = vpop.f32.mrb[0].mxu0
      %679 = vmatprep.mubr.bf16.mxu0 0
      %680 = vmatmul.mubr.bf16.gmra.mrb[0].mxu0 %v430
      %v681 = vpop.f32.mrb[0].mxu0
      %v682 = vadd.f32 %v569, %v681
      %v683 = vpop.f32.mrb[0].mxu0
      %v684 = vpop.f32.mrb[0].mxu0
      %v685 = vadd.f32 %v572, %v684
      %v686 = vpop.f32.mrb[0].mxu0
      %687 = vmatprep.mubr.bf16.mxu0 0
      %688 = vmatmul.mubr.bf16.gmra.mrb[0].mxu0 %v431
      %v689 = vpop.f32.mrb[0].mxu0
      %v690 = vadd.f32 %v577, %v689
      %v691 = vpop.f32.mrb[0].mxu0
      %v692 = vpop.f32.mrb[0].mxu0
      %v693 = vadd.f32 %v580, %v692
      %v694 = vpop.f32.mrb[0].mxu0
      %695 = vmatprep.mubr.bf16.mxu0 0
      %696 = vmatmul.mubr.bf16.gmra.mrb[0].mxu0 %v432
      %v697 = vpop.f32.mrb[0].mxu0
      %v698 = vadd.f32 %v585, %v697
      %v699 = vpop.f32.mrb[0].mxu0
      %v700 = vpop.f32.mrb[0].mxu0
      %v701 = vadd.f32 %v588, %v700
      %v702 = vpop.f32.mrb[0].mxu0
      %703 = vdwg.mxu0
      %v704 = vld [vmem:[%s420 + $0x18] sm:$0xff]
      %v705 = vld [vmem:[%s420 + $0x48] sm:$0xff]
      %v706 = vld [vmem:[%s420 + $0x78] sm:$0xff]
      %v707 = vld [vmem:[%s420 + $0xa8] sm:$0xff]
      %v708 = vld [vmem:[%s420 + $0xd8] sm:$0xff]
      %v709 = vld [vmem:[%s420 + $0x108] sm:$0xff]
      %v710 = vld [vmem:[%s420 + $0x138] sm:$0xff]
      %v711 = vld [vmem:[%s420 + $0x168] sm:$0xff]
      %v712 = vpack.c.bf16 %v705, %v704
      %v713 = vpack.c.bf16 %v707, %v706
      %v714 = vpack.c.bf16 %v709, %v708
      %v715 = vpack.c.bf16 %v711, %v710
      %s716 = scalar_lea.vmem %s2, 128
      %v717 = vld [vmem:[%s716] sm:$0xf]
      %v718 = vld [vmem:[%s716 + $0x4] sm:$0xf]
      %v719 = vld [vmem:[%s716 + $0x8] sm:$0xf]
      %v720 = vld [vmem:[%s716 + $0xc] sm:$0xf]
      %v721 = vld [vmem:[%s716 + $0x10] sm:$0xf]
      %v722 = vld [vmem:[%s716 + $0x14] sm:$0xf]
      %v723 = vld [vmem:[%s716 + $0x18] sm:$0xf]
      %v724 = vld [vmem:[%s716 + $0x1c] sm:$0xf]
      %v725 = vld [vmem:[%s716 + $0x20] sm:$0xf]
      %v726 = vld [vmem:[%s716 + $0x24] sm:$0xf]
      %v727 = vld [vmem:[%s716 + $0x28] sm:$0xf]
      %v728 = vld [vmem:[%s716 + $0x2c] sm:$0xf]
      %v729 = vld [vmem:[%s716 + $0x30] sm:$0xf]
      %v730 = vld [vmem:[%s716 + $0x34] sm:$0xf]
      %v731 = vld [vmem:[%s716 + $0x38] sm:$0xf]
      %v732 = vld [vmem:[%s716 + $0x3c] sm:$0xf]
      %v749 = vunpack.c.l.b16 %v717
      %v750 = vunpack.c.l.b16 %v718
      %v751 = vunpack.c.l.b16 %v719
      %v752 = vunpack.c.l.b16 %v720
      %v753 = vunpack.c.l.b16 %v721
      %v754 = vunpack.c.l.b16 %v722
      %v755 = vunpack.c.l.b16 %v723
      %v756 = vunpack.c.l.b16 %v724
      %v757 = vunpack.c.l.b16 %v725
      %v758 = vunpack.c.l.b16 %v726
      %v759 = vunpack.c.l.b16 %v727
      %v760 = vunpack.c.l.b16 %v728
      %v761 = vunpack.c.l.b16 %v729
      %v762 = vunpack.c.l.b16 %v730
      %v763 = vunpack.c.l.b16 %v731
      %v764 = vunpack.c.l.b16 %v732
      %v765 = vpack.c.b16 %v750, %v749
      %v766 = vpack.c.b16 %v752, %v751
      %v767 = vpack.c.b16 %v754, %v753
      %v768 = vpack.c.b16 %v756, %v755
      %v769 = vpack.c.b16 %v758, %v757
      %v770 = vpack.c.b16 %v760, %v759
      %v771 = vpack.c.b16 %v762, %v761
      %v772 = vpack.c.b16 %v764, %v763
      %781 = vmatprep.subr.bf16.mxu0 0
      %782 = vmatpush1.bf16.msra.mxu0 %v765
      %783 = vmatprep.subr.bf16.mxu0 0
      %784 = vmatpush1.bf16.msra.mxu0 %v766
      %785 = vmatprep.subr.bf16.mxu0 0
      %786 = vmatpush1.bf16.msra.mxu0 %v767
      %787 = vmatprep.subr.bf16.mxu0 0
      %788 = vmatpush1.bf16.msra.mxu0 %v768
      %789 = vmatprep.subr.bf16.mxu0 0
      %790 = vmatpush1.bf16.msra.mxu0 %v769
      %791 = vmatprep.subr.bf16.mxu0 0
      %792 = vmatpush1.bf16.msra.mxu0 %v770
      %793 = vmatprep.subr.bf16.mxu0 0
      %794 = vmatpush1.bf16.msra.mxu0 %v771
      %795 = vmatprep.subr.bf16.mxu0 0
      %796 = vmatpush1.bf16.msra.mxu0 %v772
      %797 = vmatprep.subr.bf16.mxu0 0
      %798 = vmatpush1.bf16.msra.mxu0 0
      %799 = vmatprep.subr.bf16.mxu0 0
      %800 = vmatpush1.bf16.msra.mxu0 0
      %801 = vmatprep.subr.bf16.mxu0 0
      %802 = vmatpush1.bf16.msra.mxu0 0
      %803 = vmatprep.subr.bf16.mxu0 0
      %804 = vmatpush1.bf16.msra.mxu0 0
      %805 = vmatprep.subr.bf16.mxu0 0
      %806 = vmatpush1.bf16.msra.mxu0 0
      %807 = vmatprep.subr.bf16.mxu0 0
      %808 = vmatpush1.bf16.msra.mxu0 0
      %809 = vmatprep.subr.bf16.mxu0 0
      %810 = vmatpush1.bf16.msra.mxu0 0
      %811 = vmatprep.subr.bf16.mxu0 0
      %812 = vmatpush1.bf16.msra.mxu0 0
      %813 = vmatprep.mubr.bf16.mxu0 0
      %814 = vmatmul.mubr.bf16.gmra.mrb[0].mxu0 %v712
      %v815 = vpop.f32.mrb[0].mxu0
      %v816 = vadd.f32 0.0, %v815
      %v817 = vpop.f32.mrb[0].mxu0
      %v818 = vpop.f32.mrb[0].mxu0
      %v819 = vadd.f32 0.0, %v818
      %v820 = vpop.f32.mrb[0].mxu0
      %821 = vmatprep.mubr.bf16.mxu0 0
      %822 = vmatmul.mubr.bf16.gmra.mrb[0].mxu0 %v713
      %v823 = vpop.f32.mrb[0].mxu0
      %v824 = vadd.f32 0.0, %v823
      %v825 = vpop.f32.mrb[0].mxu0
      %v826 = vpop.f32.mrb[0].mxu0
      %v827 = vadd.f32 0.0, %v826
      %v828 = vpop.f32.mrb[0].mxu0
      %829 = vmatprep.mubr.bf16.mxu0 0
      %830 = vmatmul.mubr.bf16.gmra.mrb[0].mxu0 %v714
      %v831 = vpop.f32.mrb[0].mxu0
      %v832 = vadd.f32 0.0, %v831
      %v833 = vpop.f32.mrb[0].mxu0
      %v834 = vpop.f32.mrb[0].mxu0
      %v835 = vadd.f32 0.0, %v834
      %v836 = vpop.f32.mrb[0].mxu0
      %837 = vmatprep.mubr.bf16.mxu0 0
      %838 = vmatmul.mubr.bf16.gmra.mrb[0].mxu0 %v715
      %v839 = vpop.f32.mrb[0].mxu0
      %v840 = vadd.f32 0.0, %v839
      %v841 = vpop.f32.mrb[0].mxu0
      %v842 = vpop.f32.mrb[0].mxu0
      %v843 = vadd.f32 0.0, %v842
      %v844 = vpop.f32.mrb[0].mxu0
      %845 = vdwg.mxu0
      %v846 = vadd.f32 %v674, %v816
      %v847 = vadd.f32 %v677, %v819
      %v848 = vadd.f32 %v682, %v824
      %v849 = vadd.f32 %v685, %v827
      %v850 = vadd.f32 %v690, %v832
      %v851 = vadd.f32 %v693, %v835
      %v852 = vadd.f32 %v698, %v840
      %v853 = vadd.f32 %v701, %v843
      %v854 = vld [vmem:[%s253 + $0xc] sm:$0xff]
      %v855 = vld [vmem:[%s253 + $0x3c] sm:$0xff]
      %v856 = vld [vmem:[%s253 + $0x6c] sm:$0xff]
      %v857 = vld [vmem:[%s253 + $0x9c] sm:$0xff]
      %v858 = vld [vmem:[%s253 + $0xcc] sm:$0xff]
      %v859 = vld [vmem:[%s253 + $0xfc] sm:$0xff]
      %v860 = vld [vmem:[%s253 + $0x12c] sm:$0xff]
      %v861 = vld [vmem:[%s253 + $0x15c] sm:$0xff]
      %v862 = vpack.c.bf16 %v855, %v854
      %v863 = vpack.c.bf16 %v857, %v856
      %v864 = vpack.c.bf16 %v859, %v858
      %v865 = vpack.c.bf16 %v861, %v860
      %s866 = scalar_lea.vmem %s2, 192
      %v867 = vld [vmem:[%s866] sm:$0xf]
      %v868 = vld [vmem:[%s866 + $0x4] sm:$0xf]
      %v869 = vld [vmem:[%s866 + $0x8] sm:$0xf]
      %v870 = vld [vmem:[%s866 + $0xc] sm:$0xf]
      %v871 = vld [vmem:[%s866 + $0x10] sm:$0xf]
      %v872 = vld [vmem:[%s866 + $0x14] sm:$0xf]
      %v873 = vld [vmem:[%s866 + $0x18] sm:$0xf]
      %v874 = vld [vmem:[%s866 + $0x1c] sm:$0xf]
      %v875 = vld [vmem:[%s866 + $0x20] sm:$0xf]
      %v876 = vld [vmem:[%s866 + $0x24] sm:$0xf]
      %v877 = vld [vmem:[%s866 + $0x28] sm:$0xf]
      %v878 = vld [vmem:[%s866 + $0x2c] sm:$0xf]
      %v879 = vld [vmem:[%s866 + $0x30] sm:$0xf]
      %v880 = vld [vmem:[%s866 + $0x34] sm:$0xf]
      %v881 = vld [vmem:[%s866 + $0x38] sm:$0xf]
      %v882 = vld [vmem:[%s866 + $0x3c] sm:$0xf]
      %v899 = vunpack.c.l.b16 %v867
      %v900 = vunpack.c.l.b16 %v868
      %v901 = vunpack.c.l.b16 %v869
      %v902 = vunpack.c.l.b16 %v870
      %v903 = vunpack.c.l.b16 %v871
      %v904 = vunpack.c.l.b16 %v872
      %v905 = vunpack.c.l.b16 %v873
      %v906 = vunpack.c.l.b16 %v874
      %v907 = vunpack.c.l.b16 %v875
      %v908 = vunpack.c.l.b16 %v876
      %v909 = vunpack.c.l.b16 %v877
      %v910 = vunpack.c.l.b16 %v878
      %v911 = vunpack.c.l.b16 %v879
      %v912 = vunpack.c.l.b16 %v880
      %v913 = vunpack.c.l.b16 %v881
      %v914 = vunpack.c.l.b16 %v882
      %v915 = vpack.c.b16 %v900, %v899
      %v916 = vpack.c.b16 %v902, %v901
      %v917 = vpack.c.b16 %v904, %v903
      %v918 = vpack.c.b16 %v906, %v905
      %v919 = vpack.c.b16 %v908, %v907
      %v920 = vpack.c.b16 %v910, %v909
      %v921 = vpack.c.b16 %v912, %v911
      %v922 = vpack.c.b16 %v914, %v913
      %931 = vmatprep.subr.bf16.mxu0 0
      %932 = vmatpush1.bf16.msra.mxu0 %v915
      %933 = vmatprep.subr.bf16.mxu0 0
      %934 = vmatpush1.bf16.msra.mxu0 %v916
      %935 = vmatprep.subr.bf16.mxu0 0
      %936 = vmatpush1.bf16.msra.mxu0 %v917
      %937 = vmatprep.subr.bf16.mxu0 0
      %938 = vmatpush1.bf16.msra.mxu0 %v918
      %939 = vmatprep.subr.bf16.mxu0 0
      %940 = vmatpush1.bf16.msra.mxu0 %v919
      %941 = vmatprep.subr.bf16.mxu0 0
      %942 = vmatpush1.bf16.msra.mxu0 %v920
      %943 = vmatprep.subr.bf16.mxu0 0
      %944 = vmatpush1.bf16.msra.mxu0 %v921
      %945 = vmatprep.subr.bf16.mxu0 0
      %946 = vmatpush1.bf16.msra.mxu0 %v922
      %947 = vmatprep.subr.bf16.mxu0 0
      %948 = vmatpush1.bf16.msra.mxu0 0
      %949 = vmatprep.subr.bf16.mxu0 0
      %950 = vmatpush1.bf16.msra.mxu0 0
      %951 = vmatprep.subr.bf16.mxu0 0
      %952 = vmatpush1.bf16.msra.mxu0 0
      %953 = vmatprep.subr.bf16.mxu0 0
      %954 = vmatpush1.bf16.msra.mxu0 0
      %955 = vmatprep.subr.bf16.mxu0 0
      %956 = vmatpush1.bf16.msra.mxu0 0
      %957 = vmatprep.subr.bf16.mxu0 0
      %958 = vmatpush1.bf16.msra.mxu0 0
      %959 = vmatprep.subr.bf16.mxu0 0
      %960 = vmatpush1.bf16.msra.mxu0 0
      %961 = vmatprep.subr.bf16.mxu0 0
      %962 = vmatpush1.bf16.msra.mxu0 0
      %963 = vmatprep.mubr.bf16.mxu0 0
      %964 = vmatmul.mubr.bf16.gmra.mrb[0].mxu0 %v862
      %v965 = vpop.f32.mrb[0].mxu0
      %v966 = vadd.f32 0.0, %v965
      %v967 = vpop.f32.mrb[0].mxu0
      %v968 = vpop.f32.mrb[0].mxu0
      %v969 = vadd.f32 0.0, %v968
      %v970 = vpop.f32.mrb[0].mxu0
      %971 = vmatprep.mubr.bf16.mxu0 0
      %972 = vmatmul.mubr.bf16.gmra.mrb[0].mxu0 %v863
      %v973 = vpop.f32.mrb[0].mxu0
      %v974 = vadd.f32 0.0, %v973
      %v975 = vpop.f32.mrb[0].mxu0
      %v976 = vpop.f32.mrb[0].mxu0
      %v977 = vadd.f32 0.0, %v976
      %v978 = vpop.f32.mrb[0].mxu0
      %979 = vmatprep.mubr.bf16.mxu0 0
      %980 = vmatmul.mubr.bf16.gmra.mrb[0].mxu0 %v864
      %v981 = vpop.f32.mrb[0].mxu0
      %v982 = vadd.f32 0.0, %v981
      %v983 = vpop.f32.mrb[0].mxu0
      %v984 = vpop.f32.mrb[0].mxu0
      %v985 = vadd.f32 0.0, %v984
      %v986 = vpop.f32.mrb[0].mxu0
      %987 = vmatprep.mubr.bf16.mxu0 0
      %988 = vmatmul.mubr.bf16.gmra.mrb[0].mxu0 %v865
      %v989 = vpop.f32.mrb[0].mxu0
      %v990 = vadd.f32 0.0, %v989
      %v991 = vpop.f32.mrb[0].mxu0
      %v992 = vpop.f32.mrb[0].mxu0
      %v993 = vadd.f32 0.0, %v992
      %v994 = vpop.f32.mrb[0].mxu0
      %995 = vdwg.mxu0
      %v996 = vadd.f32 %v846, %v966
      %v997 = vadd.f32 %v847, %v969
      %v998 = vadd.f32 %v848, %v974
      %v999 = vadd.f32 %v849, %v977
      %v1000 = vadd.f32 %v850, %v982
      %v1001 = vadd.f32 %v851, %v985
      %v1002 = vadd.f32 %v852, %v990
      %v1003 = vadd.f32 %v853, %v993
      %s1004 = scalar_lea.vmem %s2, 256
      %v1005 = vld [vmem:[%s1004] sm:$0xf]
      %v1006 = vld [vmem:[%s1004 + $0x4] sm:$0xf]
      %v1007 = vld [vmem:[%s1004 + $0x8] sm:$0xf]
      %v1008 = vld [vmem:[%s1004 + $0xc] sm:$0xf]
      %v1009 = vld [vmem:[%s1004 + $0x10] sm:$0xf]
      %v1010 = vld [vmem:[%s1004 + $0x14] sm:$0xf]
      %v1011 = vld [vmem:[%s1004 + $0x18] sm:$0xf]
      %v1012 = vld [vmem:[%s1004 + $0x1c] sm:$0xf]
      %v1013 = vld [vmem:[%s1004 + $0x20] sm:$0xf]
      %v1014 = vld [vmem:[%s1004 + $0x24] sm:$0xf]
      %v1015 = vld [vmem:[%s1004 + $0x28] sm:$0xf]
      %v1016 = vld [vmem:[%s1004 + $0x2c] sm:$0xf]
      %v1017 = vld [vmem:[%s1004 + $0x30] sm:$0xf]
      %v1018 = vld [vmem:[%s1004 + $0x34] sm:$0xf]
      %v1019 = vld [vmem:[%s1004 + $0x38] sm:$0xf]
      %v1020 = vld [vmem:[%s1004 + $0x3c] sm:$0xf]
      %v1037 = vunpack.c.l.b16 %v1005
      %v1038 = vunpack.c.l.b16 %v1006
      %v1039 = vunpack.c.l.b16 %v1007
      %v1040 = vunpack.c.l.b16 %v1008
      %v1041 = vunpack.c.l.b16 %v1009
      %v1042 = vunpack.c.l.b16 %v1010
      %v1043 = vunpack.c.l.b16 %v1011
      %v1044 = vunpack.c.l.b16 %v1012
      %v1045 = vunpack.c.l.b16 %v1013
      %v1046 = vunpack.c.l.b16 %v1014
      %v1047 = vunpack.c.l.b16 %v1015
      %v1048 = vunpack.c.l.b16 %v1016
      %v1049 = vunpack.c.l.b16 %v1017
      %v1050 = vunpack.c.l.b16 %v1018
      %v1051 = vunpack.c.l.b16 %v1019
      %v1052 = vunpack.c.l.b16 %v1020
      %v1053 = vpack.c.b16 %v1038, %v1037
      %v1054 = vpack.c.b16 %v1040, %v1039
      %v1055 = vpack.c.b16 %v1042, %v1041
      %v1056 = vpack.c.b16 %v1044, %v1043
      %v1057 = vpack.c.b16 %v1046, %v1045
      %v1058 = vpack.c.b16 %v1048, %v1047
      %v1059 = vpack.c.b16 %v1050, %v1049
      %v1060 = vpack.c.b16 %v1052, %v1051
      %1069 = vmatprep.subr.bf16.mxu0 0
      %1070 = vmatpush1.bf16.msra.mxu0 %v1053
      %1071 = vmatprep.subr.bf16.mxu0 0
      %1072 = vmatpush1.bf16.msra.mxu0 %v1054
      %1073 = vmatprep.subr.bf16.mxu0 0
      %1074 = vmatpush1.bf16.msra.mxu0 %v1055
      %1075 = vmatprep.subr.bf16.mxu0 0
      %1076 = vmatpush1.bf16.msra.mxu0 %v1056
      %1077 = vmatprep.subr.bf16.mxu0 0
      %1078 = vmatpush1.bf16.msra.mxu0 %v1057
      %1079 = vmatprep.subr.bf16.mxu0 0
      %1080 = vmatpush1.bf16.msra.mxu0 %v1058
      %1081 = vmatprep.subr.bf16.mxu0 0
      %1082 = vmatpush1.bf16.msra.mxu0 %v1059
      %1083 = vmatprep.subr.bf16.mxu0 0
      %1084 = vmatpush1.bf16.msra.mxu0 %v1060
      %1085 = vmatprep.subr.bf16.mxu0 0
      %1086 = vmatpush1.bf16.msra.mxu0 0
      %1087 = vmatprep.subr.bf16.mxu0 0
      %1088 = vmatpush1.bf16.msra.mxu0 0
      %1089 = vmatprep.subr.bf16.mxu0 0
      %1090 = vmatpush1.bf16.msra.mxu0 0
      %1091 = vmatprep.subr.bf16.mxu0 0
      %1092 = vmatpush1.bf16.msra.mxu0 0
      %1093 = vmatprep.subr.bf16.mxu0 0
      %1094 = vmatpush1.bf16.msra.mxu0 0
      %1095 = vmatprep.subr.bf16.mxu0 0
      %1096 = vmatpush1.bf16.msra.mxu0 0
      %1097 = vmatprep.subr.bf16.mxu0 0
      %1098 = vmatpush1.bf16.msra.mxu0 0
      %1099 = vmatprep.subr.bf16.mxu0 0
      %1100 = vmatpush1.bf16.msra.mxu0 0
      %1101 = vmatprep.mubr.bf16.mxu0 0
      %1102 = vmatmul.mubr.bf16.gmra.mrb[0].mxu0 %v262
      %v1103 = vpop.f32.mrb[0].mxu0
      %v1104 = vadd.f32 0.0, %v1103
      %v1105 = vpop.f32.mrb[0].mxu0
      %v1106 = vpop.f32.mrb[0].mxu0
      %v1107 = vadd.f32 0.0, %v1106
      %v1108 = vpop.f32.mrb[0].mxu0
      %1109 = vmatprep.mubr.bf16.mxu0 0
      %1110 = vmatmul.mubr.bf16.gmra.mrb[0].mxu0 %v263
      %v1111 = vpop.f32.mrb[0].mxu0
      %v1112 = vadd.f32 0.0, %v1111
      %v1113 = vpop.f32.mrb[0].mxu0
      %v1114 = vpop.f32.mrb[0].mxu0
      %v1115 = vadd.f32 0.0, %v1114
      %v1116 = vpop.f32.mrb[0].mxu0
      %1117 = vmatprep.mubr.bf16.mxu0 0
      %1118 = vmatmul.mubr.bf16.gmra.mrb[0].mxu0 %v264
      %v1119 = vpop.f32.mrb[0].mxu0
      %v1120 = vadd.f32 0.0, %v1119
      %v1121 = vpop.f32.mrb[0].mxu0
      %v1122 = vpop.f32.mrb[0].mxu0
      %v1123 = vadd.f32 0.0, %v1122
      %v1124 = vpop.f32.mrb[0].mxu0
      %1125 = vmatprep.mubr.bf16.mxu0 0
      %1126 = vmatmul.mubr.bf16.gmra.mrb[0].mxu0 %v265
      %v1127 = vpop.f32.mrb[0].mxu0
      %v1128 = vadd.f32 0.0, %v1127
      %v1129 = vpop.f32.mrb[0].mxu0
      %v1130 = vpop.f32.mrb[0].mxu0
      %v1131 = vadd.f32 0.0, %v1130
      %v1132 = vpop.f32.mrb[0].mxu0
      %1133 = vdwg.mxu0
      %v1134 = vadd.f32 %v996, %v1104
      %v1135 = vadd.f32 %v997, %v1107
      %v1136 = vadd.f32 %v998, %v1112
      %v1137 = vadd.f32 %v999, %v1115
      %v1138 = vadd.f32 %v1000, %v1120
      %v1139 = vadd.f32 %v1001, %v1123
      %v1140 = vadd.f32 %v1002, %v1128
      %v1141 = vadd.f32 %v1003, %v1131
      %v1142 = vld [vmem:[%s253 + $0x18] sm:$0xff]
      %v1143 = vld [vmem:[%s253 + $0x48] sm:$0xff]
      %v1144 = vld [vmem:[%s253 + $0x78] sm:$0xff]
      %v1145 = vld [vmem:[%s253 + $0xa8] sm:$0xff]
      %v1146 = vld [vmem:[%s253 + $0xd8] sm:$0xff]
      %v1147 = vld [vmem:[%s253 + $0x108] sm:$0xff]
      %v1148 = vld [vmem:[%s253 + $0x138] sm:$0xff]
      %v1149 = vld [vmem:[%s253 + $0x168] sm:$0xff]
      %v1150 = vpack.c.bf16 %v1143, %v1142
      %v1151 = vpack.c.bf16 %v1145, %v1144
      %v1152 = vpack.c.bf16 %v1147, %v1146
      %v1153 = vpack.c.bf16 %v1149, %v1148
      %s1154 = scalar_lea.vmem %s2, 320
      %v1155 = vld [vmem:[%s1154] sm:$0xf]
      %v1156 = vld [vmem:[%s1154 + $0x4] sm:$0xf]
      %v1157 = vld [vmem:[%s1154 + $0x8] sm:$0xf]
      %v1158 = vld [vmem:[%s1154 + $0xc] sm:$0xf]
      %v1159 = vld [vmem:[%s1154 + $0x10] sm:$0xf]
      %v1160 = vld [vmem:[%s1154 + $0x14] sm:$0xf]
      %v1161 = vld [vmem:[%s1154 + $0x18] sm:$0xf]
      %v1162 = vld [vmem:[%s1154 + $0x1c] sm:$0xf]
      %v1163 = vld [vmem:[%s1154 + $0x20] sm:$0xf]
      %v1164 = vld [vmem:[%s1154 + $0x24] sm:$0xf]
      %v1165 = vld [vmem:[%s1154 + $0x28] sm:$0xf]
      %v1166 = vld [vmem:[%s1154 + $0x2c] sm:$0xf]
      %v1167 = vld [vmem:[%s1154 + $0x30] sm:$0xf]
      %v1168 = vld [vmem:[%s1154 + $0x34] sm:$0xf]
      %v1169 = vld [vmem:[%s1154 + $0x38] sm:$0xf]
      %v1170 = vld [vmem:[%s1154 + $0x3c] sm:$0xf]
      %v1187 = vunpack.c.l.b16 %v1155
      %v1188 = vunpack.c.l.b16 %v1156
      %v1189 = vunpack.c.l.b16 %v1157
      %v1190 = vunpack.c.l.b16 %v1158
      %v1191 = vunpack.c.l.b16 %v1159
      %v1192 = vunpack.c.l.b16 %v1160
      %v1193 = vunpack.c.l.b16 %v1161
      %v1194 = vunpack.c.l.b16 %v1162
      %v1195 = vunpack.c.l.b16 %v1163
      %v1196 = vunpack.c.l.b16 %v1164
      %v1197 = vunpack.c.l.b16 %v1165
      %v1198 = vunpack.c.l.b16 %v1166
      %v1199 = vunpack.c.l.b16 %v1167
      %v1200 = vunpack.c.l.b16 %v1168
      %v1201 = vunpack.c.l.b16 %v1169
      %v1202 = vunpack.c.l.b16 %v1170
      %v1203 = vpack.c.b16 %v1188, %v1187
      %v1204 = vpack.c.b16 %v1190, %v1189
      %v1205 = vpack.c.b16 %v1192, %v1191
      %v1206 = vpack.c.b16 %v1194, %v1193
      %v1207 = vpack.c.b16 %v1196, %v1195
      %v1208 = vpack.c.b16 %v1198, %v1197
      %v1209 = vpack.c.b16 %v1200, %v1199
      %v1210 = vpack.c.b16 %v1202, %v1201
      %1219 = vmatprep.subr.bf16.mxu0 0
      %1220 = vmatpush1.bf16.msra.mxu0 %v1203
      %1221 = vmatprep.subr.bf16.mxu0 0
      %1222 = vmatpush1.bf16.msra.mxu0 %v1204
      %1223 = vmatprep.subr.bf16.mxu0 0
      %1224 = vmatpush1.bf16.msra.mxu0 %v1205
      %1225 = vmatprep.subr.bf16.mxu0 0
      %1226 = vmatpush1.bf16.msra.mxu0 %v1206
      %1227 = vmatprep.subr.bf16.mxu0 0
      %1228 = vmatpush1.bf16.msra.mxu0 %v1207
      %1229 = vmatprep.subr.bf16.mxu0 0
      %1230 = vmatpush1.bf16.msra.mxu0 %v1208
      %1231 = vmatprep.subr.bf16.mxu0 0
      %1232 = vmatpush1.bf16.msra.mxu0 %v1209
      %1233 = vmatprep.subr.bf16.mxu0 0
      %1234 = vmatpush1.bf16.msra.mxu0 %v1210
      %1235 = vmatprep.subr.bf16.mxu0 0
      %1236 = vmatpush1.bf16.msra.mxu0 0
      %1237 = vmatprep.subr.bf16.mxu0 0
      %1238 = vmatpush1.bf16.msra.mxu0 0
      %1239 = vmatprep.subr.bf16.mxu0 0
      %1240 = vmatpush1.bf16.msra.mxu0 0
      %1241 = vmatprep.subr.bf16.mxu0 0
      %1242 = vmatpush1.bf16.msra.mxu0 0
      %1243 = vmatprep.subr.bf16.mxu0 0
      %1244 = vmatpush1.bf16.msra.mxu0 0
      %1245 = vmatprep.subr.bf16.mxu0 0
      %1246 = vmatpush1.bf16.msra.mxu0 0
      %1247 = vmatprep.subr.bf16.mxu0 0
      %1248 = vmatpush1.bf16.msra.mxu0 0
      %1249 = vmatprep.subr.bf16.mxu0 0
      %1250 = vmatpush1.bf16.msra.mxu0 0
      %1251 = vmatprep.mubr.bf16.mxu0 0
      %1252 = vmatmul.mubr.bf16.gmra.mrb[0].mxu0 %v1150
      %v1253 = vpop.f32.mrb[0].mxu0
      %v1254 = vadd.f32 0.0, %v1253
      %v1255 = vpop.f32.mrb[0].mxu0
      %v1256 = vpop.f32.mrb[0].mxu0
      %v1257 = vadd.f32 0.0, %v1256
      %v1258 = vpop.f32.mrb[0].mxu0
      %1259 = vmatprep.mubr.bf16.mxu0 0
      %1260 = vmatmul.mubr.bf16.gmra.mrb[0].mxu0 %v1151
      %v1261 = vpop.f32.mrb[0].mxu0
      %v1262 = vadd.f32 0.0, %v1261
      %v1263 = vpop.f32.mrb[0].mxu0
      %v1264 = vpop.f32.mrb[0].mxu0
      %v1265 = vadd.f32 0.0, %v1264
      %v1266 = vpop.f32.mrb[0].mxu0
      %1267 = vmatprep.mubr.bf16.mxu0 0
      %1268 = vmatmul.mubr.bf16.gmra.mrb[0].mxu0 %v1152
      %v1269 = vpop.f32.mrb[0].mxu0
      %v1270 = vadd.f32 0.0, %v1269
      %v1271 = vpop.f32.mrb[0].mxu0
      %v1272 = vpop.f32.mrb[0].mxu0
      %v1273 = vadd.f32 0.0, %v1272
      %v1274 = vpop.f32.mrb[0].mxu0
      %1275 = vmatprep.mubr.bf16.mxu0 0
      %1276 = vmatmul.mubr.bf16.gmra.mrb[0].mxu0 %v1153
      %v1277 = vpop.f32.mrb[0].mxu0
      %v1278 = vadd.f32 0.0, %v1277
      %v1279 = vpop.f32.mrb[0].mxu0
      %v1280 = vpop.f32.mrb[0].mxu0
      %v1281 = vadd.f32 0.0, %v1280
      %v1282 = vpop.f32.mrb[0].mxu0
      %1283 = vdwg.mxu0
      %v1284 = vadd.f32 %v1134, %v1254
      %v1285 = vadd.f32 %v1135, %v1257
      %v1286 = vadd.f32 %v1136, %v1262
      %v1287 = vadd.f32 %v1137, %v1265
      %v1288 = vadd.f32 %v1138, %v1270
      %v1289 = vadd.f32 %v1139, %v1273
      %v1290 = vadd.f32 %v1140, %v1278
      %v1291 = vadd.f32 %v1141, %v1281
      %s1292 = scalar_lea.vmem %s246, 1152
      %v1293 = vld [vmem:[%s1292 + $0xc] sm:$0xff]
      %v1294 = vld [vmem:[%s1292 + $0x3c] sm:$0xff]
      %v1295 = vld [vmem:[%s1292 + $0x6c] sm:$0xff]
      %v1296 = vld [vmem:[%s1292 + $0x9c] sm:$0xff]
      %v1297 = vld [vmem:[%s1292 + $0xcc] sm:$0xff]
      %v1298 = vld [vmem:[%s1292 + $0xfc] sm:$0xff]
      %v1299 = vld [vmem:[%s1292 + $0x12c] sm:$0xff]
      %v1300 = vld [vmem:[%s1292 + $0x15c] sm:$0xff]
      %v1301 = vpack.c.bf16 %v1294, %v1293
      %v1302 = vpack.c.bf16 %v1296, %v1295
      %v1303 = vpack.c.bf16 %v1298, %v1297
      %v1304 = vpack.c.bf16 %v1300, %v1299
      %s1305 = scalar_lea.vmem %s2, 384
      %v1306 = vld [vmem:[%s1305] sm:$0xf]
      %v1307 = vld [vmem:[%s1305 + $0x4] sm:$0xf]
      %v1308 = vld [vmem:[%s1305 + $0x8] sm:$0xf]
      %v1309 = vld [vmem:[%s1305 + $0xc] sm:$0xf]
      %v1310 = vld [vmem:[%s1305 + $0x10] sm:$0xf]
      %v1311 = vld [vmem:[%s1305 + $0x14] sm:$0xf]
      %v1312 = vld [vmem:[%s1305 + $0x18] sm:$0xf]
      %v1313 = vld [vmem:[%s1305 + $0x1c] sm:$0xf]
      %v1314 = vld [vmem:[%s1305 + $0x20] sm:$0xf]
      %v1315 = vld [vmem:[%s1305 + $0x24] sm:$0xf]
      %v1316 = vld [vmem:[%s1305 + $0x28] sm:$0xf]
      %v1317 = vld [vmem:[%s1305 + $0x2c] sm:$0xf]
      %v1318 = vld [vmem:[%s1305 + $0x30] sm:$0xf]
      %v1319 = vld [vmem:[%s1305 + $0x34] sm:$0xf]
      %v1320 = vld [vmem:[%s1305 + $0x38] sm:$0xf]
      %v1321 = vld [vmem:[%s1305 + $0x3c] sm:$0xf]
      %v1338 = vunpack.c.l.b16 %v1306
      %v1339 = vunpack.c.l.b16 %v1307
      %v1340 = vunpack.c.l.b16 %v1308
      %v1341 = vunpack.c.l.b16 %v1309
      %v1342 = vunpack.c.l.b16 %v1310
      %v1343 = vunpack.c.l.b16 %v1311
      %v1344 = vunpack.c.l.b16 %v1312
      %v1345 = vunpack.c.l.b16 %v1313
      %v1346 = vunpack.c.l.b16 %v1314
      %v1347 = vunpack.c.l.b16 %v1315
      %v1348 = vunpack.c.l.b16 %v1316
      %v1349 = vunpack.c.l.b16 %v1317
      %v1350 = vunpack.c.l.b16 %v1318
      %v1351 = vunpack.c.l.b16 %v1319
      %v1352 = vunpack.c.l.b16 %v1320
      %v1353 = vunpack.c.l.b16 %v1321
      %v1354 = vpack.c.b16 %v1339, %v1338
      %v1355 = vpack.c.b16 %v1341, %v1340
      %v1356 = vpack.c.b16 %v1343, %v1342
      %v1357 = vpack.c.b16 %v1345, %v1344
      %v1358 = vpack.c.b16 %v1347, %v1346
      %v1359 = vpack.c.b16 %v1349, %v1348
      %v1360 = vpack.c.b16 %v1351, %v1350
      %v1361 = vpack.c.b16 %v1353, %v1352
      %1370 = vmatprep.subr.bf16.mxu0 0
      %1371 = vmatpush1.bf16.msra.mxu0 %v1354
      %1372 = vmatprep.subr.bf16.mxu0 0
      %1373 = vmatpush1.bf16.msra.mxu0 %v1355
      %1374 = vmatprep.subr.bf16.mxu0 0
      %1375 = vmatpush1.bf16.msra.mxu0 %v1356
      %1376 = vmatprep.subr.bf16.mxu0 0
      %1377 = vmatpush1.bf16.msra.mxu0 %v1357
      %1378 = vmatprep.subr.bf16.mxu0 0
      %1379 = vmatpush1.bf16.msra.mxu0 %v1358
      %1380 = vmatprep.subr.bf16.mxu0 0
      %1381 = vmatpush1.bf16.msra.mxu0 %v1359
      %1382 = vmatprep.subr.bf16.mxu0 0
      %1383 = vmatpush1.bf16.msra.mxu0 %v1360
      %1384 = vmatprep.subr.bf16.mxu0 0
      %1385 = vmatpush1.bf16.msra.mxu0 %v1361
      %1386 = vmatprep.subr.bf16.mxu0 0
      %1387 = vmatpush1.bf16.msra.mxu0 0
      %1388 = vmatprep.subr.bf16.mxu0 0
      %1389 = vmatpush1.bf16.msra.mxu0 0
      %1390 = vmatprep.subr.bf16.mxu0 0
      %1391 = vmatpush1.bf16.msra.mxu0 0
      %1392 = vmatprep.subr.bf16.mxu0 0
      %1393 = vmatpush1.bf16.msra.mxu0 0
      %1394 = vmatprep.subr.bf16.mxu0 0
      %1395 = vmatpush1.bf16.msra.mxu0 0
      %1396 = vmatprep.subr.bf16.mxu0 0
      %1397 = vmatpush1.bf16.msra.mxu0 0
      %1398 = vmatprep.subr.bf16.mxu0 0
      %1399 = vmatpush1.bf16.msra.mxu0 0
      %1400 = vmatprep.subr.bf16.mxu0 0
      %1401 = vmatpush1.bf16.msra.mxu0 0
      %1402 = vmatprep.mubr.bf16.mxu0 0
      %1403 = vmatmul.mubr.bf16.gmra.mrb[0].mxu0 %v1301
      %v1404 = vpop.f32.mrb[0].mxu0
      %v1405 = vadd.f32 0.0, %v1404
      %v1406 = vpop.f32.mrb[0].mxu0
      %v1407 = vpop.f32.mrb[0].mxu0
      %v1408 = vadd.f32 0.0, %v1407
      %v1409 = vpop.f32.mrb[0].mxu0
      %1410 = vmatprep.mubr.bf16.mxu0 0
      %1411 = vmatmul.mubr.bf16.gmra.mrb[0].mxu0 %v1302
      %v1412 = vpop.f32.mrb[0].mxu0
      %v1413 = vadd.f32 0.0, %v1412
      %v1414 = vpop.f32.mrb[0].mxu0
      %v1415 = vpop.f32.mrb[0].mxu0
      %v1416 = vadd.f32 0.0, %v1415
      %v1417 = vpop.f32.mrb[0].mxu0
      %1418 = vmatprep.mubr.bf16.mxu0 0
      %1419 = vmatmul.mubr.bf16.gmra.mrb[0].mxu0 %v1303
      %v1420 = vpop.f32.mrb[0].mxu0
      %v1421 = vadd.f32 0.0, %v1420
      %v1422 = vpop.f32.mrb[0].mxu0
      %v1423 = vpop.f32.mrb[0].mxu0
      %v1424 = vadd.f32 0.0, %v1423
      %v1425 = vpop.f32.mrb[0].mxu0
      %1426 = vmatprep.mubr.bf16.mxu0 0
      %1427 = vmatmul.mubr.bf16.gmra.mrb[0].mxu0 %v1304
      %v1428 = vpop.f32.mrb[0].mxu0
      %v1429 = vadd.f32 0.0, %v1428
      %v1430 = vpop.f32.mrb[0].mxu0
      %v1431 = vpop.f32.mrb[0].mxu0
      %v1432 = vadd.f32 0.0, %v1431
      %v1433 = vpop.f32.mrb[0].mxu0
      %1434 = vdwg.mxu0
      %v1435 = vadd.f32 %v1284, %v1405
      %v1436 = vadd.f32 %v1285, %v1408
      %v1437 = vadd.f32 %v1286, %v1413
      %v1438 = vadd.f32 %v1287, %v1416
      %v1439 = vadd.f32 %v1288, %v1421
      %v1440 = vadd.f32 %v1289, %v1424
      %v1441 = vadd.f32 %v1290, %v1429
      %v1442 = vadd.f32 %v1291, %v1432
      %v1443 = vld [vmem:[%s1292 + $0x12] sm:$0xff]
      %v1444 = vld [vmem:[%s1292 + $0x42] sm:$0xff]
      %v1445 = vld [vmem:[%s1292 + $0x72] sm:$0xff]
      %v1446 = vld [vmem:[%s1292 + $0xa2] sm:$0xff]
      %v1447 = vld [vmem:[%s1292 + $0xd2] sm:$0xff]
      %v1448 = vld [vmem:[%s1292 + $0x102] sm:$0xff]
      %v1449 = vld [vmem:[%s1292 + $0x132] sm:$0xff]
      %v1450 = vld [vmem:[%s1292 + $0x162] sm:$0xff]
      %v1451 = vpack.c.bf16 %v1444, %v1443
      %v1452 = vpack.c.bf16 %v1446, %v1445
      %v1453 = vpack.c.bf16 %v1448, %v1447
      %v1454 = vpack.c.bf16 %v1450, %v1449
      %s1455 = scalar_lea.vmem %s2, 448
      %v1456 = vld [vmem:[%s1455] sm:$0xf]
      %v1457 = vld [vmem:[%s1455 + $0x4] sm:$0xf]
      %v1458 = vld [vmem:[%s1455 + $0x8] sm:$0xf]
      %v1459 = vld [vmem:[%s1455 + $0xc] sm:$0xf]
      %v1460 = vld [vmem:[%s1455 + $0x10] sm:$0xf]
      %v1461 = vld [vmem:[%s1455 + $0x14] sm:$0xf]
      %v1462 = vld [vmem:[%s1455 + $0x18] sm:$0xf]
      %v1463 = vld [vmem:[%s1455 + $0x1c] sm:$0xf]
      %v1464 = vld [vmem:[%s1455 + $0x20] sm:$0xf]
      %v1465 = vld [vmem:[%s1455 + $0x24] sm:$0xf]
      %v1466 = vld [vmem:[%s1455 + $0x28] sm:$0xf]
      %v1467 = vld [vmem:[%s1455 + $0x2c] sm:$0xf]
      %v1468 = vld [vmem:[%s1455 + $0x30] sm:$0xf]
      %v1469 = vld [vmem:[%s1455 + $0x34] sm:$0xf]
      %v1470 = vld [vmem:[%s1455 + $0x38] sm:$0xf]
      %v1471 = vld [vmem:[%s1455 + $0x3c] sm:$0xf]
      %v1488 = vunpack.c.l.b16 %v1456
      %v1489 = vunpack.c.l.b16 %v1457
      %v1490 = vunpack.c.l.b16 %v1458
      %v1491 = vunpack.c.l.b16 %v1459
      %v1492 = vunpack.c.l.b16 %v1460
      %v1493 = vunpack.c.l.b16 %v1461
      %v1494 = vunpack.c.l.b16 %v1462
      %v1495 = vunpack.c.l.b16 %v1463
      %v1496 = vunpack.c.l.b16 %v1464
      %v1497 = vunpack.c.l.b16 %v1465
      %v1498 = vunpack.c.l.b16 %v1466
      %v1499 = vunpack.c.l.b16 %v1467
      %v1500 = vunpack.c.l.b16 %v1468
      %v1501 = vunpack.c.l.b16 %v1469
      %v1502 = vunpack.c.l.b16 %v1470
      %v1503 = vunpack.c.l.b16 %v1471
      %v1504 = vpack.c.b16 %v1489, %v1488
      %v1505 = vpack.c.b16 %v1491, %v1490
      %v1506 = vpack.c.b16 %v1493, %v1492
      %v1507 = vpack.c.b16 %v1495, %v1494
      %v1508 = vpack.c.b16 %v1497, %v1496
      %v1509 = vpack.c.b16 %v1499, %v1498
      %v1510 = vpack.c.b16 %v1501, %v1500
      %v1511 = vpack.c.b16 %v1503, %v1502
      %1520 = vmatprep.subr.bf16.mxu0 0
      %1521 = vmatpush1.bf16.msra.mxu0 %v1504
      %1522 = vmatprep.subr.bf16.mxu0 0
      %1523 = vmatpush1.bf16.msra.mxu0 %v1505
      %1524 = vmatprep.subr.bf16.mxu0 0
      %1525 = vmatpush1.bf16.msra.mxu0 %v1506
      %1526 = vmatprep.subr.bf16.mxu0 0
      %1527 = vmatpush1.bf16.msra.mxu0 %v1507
      %1528 = vmatprep.subr.bf16.mxu0 0
      %1529 = vmatpush1.bf16.msra.mxu0 %v1508
      %1530 = vmatprep.subr.bf16.mxu0 0
      %1531 = vmatpush1.bf16.msra.mxu0 %v1509
      %1532 = vmatprep.subr.bf16.mxu0 0
      %1533 = vmatpush1.bf16.msra.mxu0 %v1510
      %1534 = vmatprep.subr.bf16.mxu0 0
      %1535 = vmatpush1.bf16.msra.mxu0 %v1511
      %1536 = vmatprep.subr.bf16.mxu0 0
      %1537 = vmatpush1.bf16.msra.mxu0 0
      %1538 = vmatprep.subr.bf16.mxu0 0
      %1539 = vmatpush1.bf16.msra.mxu0 0
      %1540 = vmatprep.subr.bf16.mxu0 0
      %1541 = vmatpush1.bf16.msra.mxu0 0
      %1542 = vmatprep.subr.bf16.mxu0 0
      %1543 = vmatpush1.bf16.msra.mxu0 0
      %1544 = vmatprep.subr.bf16.mxu0 0
      %1545 = vmatpush1.bf16.msra.mxu0 0
      %1546 = vmatprep.subr.bf16.mxu0 0
      %1547 = vmatpush1.bf16.msra.mxu0 0
      %1548 = vmatprep.subr.bf16.mxu0 0
      %1549 = vmatpush1.bf16.msra.mxu0 0
      %1550 = vmatprep.subr.bf16.mxu0 0
      %1551 = vmatpush1.bf16.msra.mxu0 0
      %1552 = vmatprep.mubr.bf16.mxu0 0
      %1553 = vmatmul.mubr.bf16.gmra.mrb[0].mxu0 %v1451
      %v1554 = vpop.f32.mrb[0].mxu0
      %v1555 = vadd.f32 0.0, %v1554
      %v1556 = vpop.f32.mrb[0].mxu0
      %v1557 = vpop.f32.mrb[0].mxu0
      %v1558 = vadd.f32 0.0, %v1557
      %v1559 = vpop.f32.mrb[0].mxu0
      %1560 = vmatprep.mubr.bf16.mxu0 0
      %1561 = vmatmul.mubr.bf16.gmra.mrb[0].mxu0 %v1452
      %v1562 = vpop.f32.mrb[0].mxu0
      %v1563 = vadd.f32 0.0, %v1562
      %v1564 = vpop.f32.mrb[0].mxu0
      %v1565 = vpop.f32.mrb[0].mxu0
      %v1566 = vadd.f32 0.0, %v1565
      %v1567 = vpop.f32.mrb[0].mxu0
      %1568 = vmatprep.mubr.bf16.mxu0 0
      %1569 = vmatmul.mubr.bf16.gmra.mrb[0].mxu0 %v1453
      %v1570 = vpop.f32.mrb[0].mxu0
      %v1571 = vadd.f32 0.0, %v1570
      %v1572 = vpop.f32.mrb[0].mxu0
      %v1573 = vpop.f32.mrb[0].mxu0
      %v1574 = vadd.f32 0.0, %v1573
      %v1575 = vpop.f32.mrb[0].mxu0
      %1576 = vmatprep.mubr.bf16.mxu0 0
      %1577 = vmatmul.mubr.bf16.gmra.mrb[0].mxu0 %v1454
      %v1578 = vpop.f32.mrb[0].mxu0
      %v1579 = vadd.f32 0.0, %v1578
      %v1580 = vpop.f32.mrb[0].mxu0
      %v1581 = vpop.f32.mrb[0].mxu0
      %v1582 = vadd.f32 0.0, %v1581
      %v1583 = vpop.f32.mrb[0].mxu0
      %1584 = vdwg.mxu0
      %v1585 = vadd.f32 %v1435, %v1555
      %v1586 = vadd.f32 %v1436, %v1558
      %v1587 = vadd.f32 %v1437, %v1563
      %v1588 = vadd.f32 %v1438, %v1566
      %v1589 = vadd.f32 %v1439, %v1571
      %v1590 = vadd.f32 %v1440, %v1574
      %v1591 = vadd.f32 %v1441, %v1579
      %v1592 = vadd.f32 %v1442, %v1582
      %v1593 = vld [vmem:[%s1292 + $0x18] sm:$0xff]
      %v1594 = vld [vmem:[%s1292 + $0x48] sm:$0xff]
      %v1595 = vld [vmem:[%s1292 + $0x78] sm:$0xff]
      %v1596 = vld [vmem:[%s1292 + $0xa8] sm:$0xff]
      %v1597 = vld [vmem:[%s1292 + $0xd8] sm:$0xff]
      %v1598 = vld [vmem:[%s1292 + $0x108] sm:$0xff]
      %v1599 = vld [vmem:[%s1292 + $0x138] sm:$0xff]
      %v1600 = vld [vmem:[%s1292 + $0x168] sm:$0xff]
      %v1601 = vpack.c.bf16 %v1594, %v1593
      %v1602 = vpack.c.bf16 %v1596, %v1595
      %v1603 = vpack.c.bf16 %v1598, %v1597
      %v1604 = vpack.c.bf16 %v1600, %v1599
      %s1605 = scalar_lea.vmem %s2, 512
      %v1606 = vld [vmem:[%s1605] sm:$0xf]
      %v1607 = vld [vmem:[%s1605 + $0x4] sm:$0xf]
      %v1608 = vld [vmem:[%s1605 + $0x8] sm:$0xf]
      %v1609 = vld [vmem:[%s1605 + $0xc] sm:$0xf]
      %v1610 = vld [vmem:[%s1605 + $0x10] sm:$0xf]
      %v1611 = vld [vmem:[%s1605 + $0x14] sm:$0xf]
      %v1612 = vld [vmem:[%s1605 + $0x18] sm:$0xf]
      %v1613 = vld [vmem:[%s1605 + $0x1c] sm:$0xf]
      %v1614 = vld [vmem:[%s1605 + $0x20] sm:$0xf]
      %v1615 = vld [vmem:[%s1605 + $0x24] sm:$0xf]
      %v1616 = vld [vmem:[%s1605 + $0x28] sm:$0xf]
      %v1617 = vld [vmem:[%s1605 + $0x2c] sm:$0xf]
      %v1618 = vld [vmem:[%s1605 + $0x30] sm:$0xf]
      %v1619 = vld [vmem:[%s1605 + $0x34] sm:$0xf]
      %v1620 = vld [vmem:[%s1605 + $0x38] sm:$0xf]
      %v1621 = vld [vmem:[%s1605 + $0x3c] sm:$0xf]
      %v1638 = vunpack.c.l.b16 %v1606
      %v1639 = vunpack.c.l.b16 %v1607
      %v1640 = vunpack.c.l.b16 %v1608
      %v1641 = vunpack.c.l.b16 %v1609
      %v1642 = vunpack.c.l.b16 %v1610
      %v1643 = vunpack.c.l.b16 %v1611
      %v1644 = vunpack.c.l.b16 %v1612
      %v1645 = vunpack.c.l.b16 %v1613
      %v1646 = vunpack.c.l.b16 %v1614
      %v1647 = vunpack.c.l.b16 %v1615
      %v1648 = vunpack.c.l.b16 %v1616
      %v1649 = vunpack.c.l.b16 %v1617
      %v1650 = vunpack.c.l.b16 %v1618
      %v1651 = vunpack.c.l.b16 %v1619
      %v1652 = vunpack.c.l.b16 %v1620
      %v1653 = vunpack.c.l.b16 %v1621
      %v1654 = vpack.c.b16 %v1639, %v1638
      %v1655 = vpack.c.b16 %v1641, %v1640
      %v1656 = vpack.c.b16 %v1643, %v1642
      %v1657 = vpack.c.b16 %v1645, %v1644
      %v1658 = vpack.c.b16 %v1647, %v1646
      %v1659 = vpack.c.b16 %v1649, %v1648
      %v1660 = vpack.c.b16 %v1651, %v1650
      %v1661 = vpack.c.b16 %v1653, %v1652
      %1670 = vmatprep.subr.bf16.mxu0 0
      %1671 = vmatpush1.bf16.msra.mxu0 %v1654
      %1672 = vmatprep.subr.bf16.mxu0 0
      %1673 = vmatpush1.bf16.msra.mxu0 %v1655
      %1674 = vmatprep.subr.bf16.mxu0 0
      %1675 = vmatpush1.bf16.msra.mxu0 %v1656
      %1676 = vmatprep.subr.bf16.mxu0 0
      %1677 = vmatpush1.bf16.msra.mxu0 %v1657
      %1678 = vmatprep.subr.bf16.mxu0 0
      %1679 = vmatpush1.bf16.msra.mxu0 %v1658
      %1680 = vmatprep.subr.bf16.mxu0 0
      %1681 = vmatpush1.bf16.msra.mxu0 %v1659
      %1682 = vmatprep.subr.bf16.mxu0 0
      %1683 = vmatpush1.bf16.msra.mxu0 %v1660
      %1684 = vmatprep.subr.bf16.mxu0 0
      %1685 = vmatpush1.bf16.msra.mxu0 %v1661
      %1686 = vmatprep.subr.bf16.mxu0 0
      %1687 = vmatpush1.bf16.msra.mxu0 0
      %1688 = vmatprep.subr.bf16.mxu0 0
      %1689 = vmatpush1.bf16.msra.mxu0 0
      %1690 = vmatprep.subr.bf16.mxu0 0
      %1691 = vmatpush1.bf16.msra.mxu0 0
      %1692 = vmatprep.subr.bf16.mxu0 0
      %1693 = vmatpush1.bf16.msra.mxu0 0
      %1694 = vmatprep.subr.bf16.mxu0 0
      %1695 = vmatpush1.bf16.msra.mxu0 0
      %1696 = vmatprep.subr.bf16.mxu0 0
      %1697 = vmatpush1.bf16.msra.mxu0 0
      %1698 = vmatprep.subr.bf16.mxu0 0
      %1699 = vmatpush1.bf16.msra.mxu0 0
      %1700 = vmatprep.subr.bf16.mxu0 0
      %1701 = vmatpush1.bf16.msra.mxu0 0
      %1702 = vmatprep.mubr.bf16.mxu0 0
      %1703 = vmatmul.mubr.bf16.gmra.mrb[0].mxu0 %v1601
      %v1704 = vpop.f32.mrb[0].mxu0
      %v1705 = vadd.f32 0.0, %v1704
      %v1706 = vpop.f32.mrb[0].mxu0
      %v1707 = vpop.f32.mrb[0].mxu0
      %v1708 = vadd.f32 0.0, %v1707
      %v1709 = vpop.f32.mrb[0].mxu0
      %1710 = vmatprep.mubr.bf16.mxu0 0
      %1711 = vmatmul.mubr.bf16.gmra.mrb[0].mxu0 %v1602
      %v1712 = vpop.f32.mrb[0].mxu0
      %v1713 = vadd.f32 0.0, %v1712
      %v1714 = vpop.f32.mrb[0].mxu0
      %v1715 = vpop.f32.mrb[0].mxu0
      %v1716 = vadd.f32 0.0, %v1715
      %v1717 = vpop.f32.mrb[0].mxu0
      %1718 = vmatprep.mubr.bf16.mxu0 0
      %1719 = vmatmul.mubr.bf16.gmra.mrb[0].mxu0 %v1603
      %v1720 = vpop.f32.mrb[0].mxu0
      %v1721 = vadd.f32 0.0, %v1720
      %v1722 = vpop.f32.mrb[0].mxu0
      %v1723 = vpop.f32.mrb[0].mxu0
      %v1724 = vadd.f32 0.0, %v1723
      %v1725 = vpop.f32.mrb[0].mxu0
      %1726 = vmatprep.mubr.bf16.mxu0 0
      %1727 = vmatmul.mubr.bf16.gmra.mrb[0].mxu0 %v1604
      %v1728 = vpop.f32.mrb[0].mxu0
      %v1729 = vadd.f32 0.0, %v1728
      %v1730 = vpop.f32.mrb[0].mxu0
      %v1731 = vpop.f32.mrb[0].mxu0
      %v1732 = vadd.f32 0.0, %v1731
      %v1733 = vpop.f32.mrb[0].mxu0
      %1734 = vdwg.mxu0
      %v1735 = vadd.f32 %v1585, %v1705
      %v1736 = vadd.f32 %v1586, %v1708
      %v1737 = vadd.f32 %v1587, %v1713
      %v1738 = vadd.f32 %v1588, %v1716
      %v1739 = vadd.f32 %v1589, %v1721
      %v1740 = vadd.f32 %v1590, %v1724
      %v1741 = vadd.f32 %v1591, %v1729
      %v1742 = vadd.f32 %v1592, %v1732
      %v1743 = vld [vmem:[%s3 + $0x1] sm:$0x1]
      %v1744 = vlaneseq
      %v1745 = vshrl.u32 %v1744, 7
      %v1746 = vsub.s32 0, %v1745
      %v1747 = vrot.slane %v1743, %v1746
      %v1748 = vadd.f32 %v1735, %v1747
      %v1749 = vadd.f32 %v1736, %v1747
      %v1750 = vadd.f32 %v1737, %v1747
      %v1751 = vadd.f32 %v1738, %v1747
      %v1752 = vadd.f32 %v1739, %v1747
      %v1753 = vadd.f32 %v1740, %v1747
      %v1754 = vadd.f32 %v1741, %v1747
      %v1755 = vadd.f32 %v1742, %v1747
      %v1756 = vmax.f32 %v1748, 0.0
      %v1757 = vmax.f32 %v1749, 0.0
      %v1758 = vmax.f32 %v1750, 0.0
      %v1759 = vmax.f32 %v1751, 0.0
      %v1760 = vmax.f32 %v1752, 0.0
      %v1761 = vmax.f32 %v1753, 0.0
      %v1762 = vmax.f32 %v1754, 0.0
      %v1763 = vmax.f32 %v1755, 0.0
      %v1764 = vpack.c.bf16 %v1757, %v1756
      %v1765 = vpack.c.bf16 %v1759, %v1758
      %v1766 = vpack.c.bf16 %v1761, %v1760
      %v1767 = vpack.c.bf16 %v1763, %v1762
      %s1768 = scalar_lea.vmem %s4, 32
      %v1769 = vld [vmem:[%s1768] sm:$0xf]
      %v1770 = vld [vmem:[%s1768 + $0x4] sm:$0xf]
      %v1771 = vld [vmem:[%s1768 + $0x8] sm:$0xf]
      %v1772 = vld [vmem:[%s1768 + $0xc] sm:$0xf]
      %v1773 = vld [vmem:[%s1768 + $0x10] sm:$0xf]
      %v1774 = vld [vmem:[%s1768 + $0x14] sm:$0xf]
      %v1775 = vld [vmem:[%s1768 + $0x18] sm:$0xf]
      %v1776 = vld [vmem:[%s1768 + $0x1c] sm:$0xf]
      %v1785 = vunpack.c.l.b16 %v1769
      %v1786 = vunpack.c.l.b16 %v1770
      %v1787 = vunpack.c.l.b16 %v1771
      %v1788 = vunpack.c.l.b16 %v1772
      %v1789 = vunpack.c.l.b16 %v1773
      %v1790 = vunpack.c.l.b16 %v1774
      %v1791 = vunpack.c.l.b16 %v1775
      %v1792 = vunpack.c.l.b16 %v1776
      %v1793 = vpack.c.b16 %v1786, %v1785
      %v1794 = vpack.c.b16 %v1788, %v1787
      %v1795 = vpack.c.b16 %v1790, %v1789
      %v1796 = vpack.c.b16 %v1792, %v1791
      %vm1801 = vcmask 523264
      %v1803 = vsel %vm1801, %v1764, 0
      %v1806 = vsel %vm1801, %v1765, 0
      %v1809 = vsel %vm1801, %v1766, 0
      %v1812 = vsel %vm1801, %v1767, 0
      %1814 = vmatprep.subr.bf16.mxu0 0
      %1815 = vmatpush1.bf16.msra.mxu0 %v1793
      %1816 = vmatprep.subr.bf16.mxu0 0
      %1817 = vmatpush1.bf16.msra.mxu0 %v1794
      %1818 = vmatprep.subr.bf16.mxu0 0
      %1819 = vmatpush1.bf16.msra.mxu0 %v1795
      %1820 = vmatprep.subr.bf16.mxu0 0
      %1821 = vmatpush1.bf16.msra.mxu0 %v1796
      %1822 = vmatprep.subr.bf16.mxu0 0
      %1823 = vmatpush1.bf16.msra.mxu0 0
      %1824 = vmatprep.subr.bf16.mxu0 0
      %1825 = vmatpush1.bf16.msra.mxu0 0
      %1826 = vmatprep.subr.bf16.mxu0 0
      %1827 = vmatpush1.bf16.msra.mxu0 0
      %1828 = vmatprep.subr.bf16.mxu0 0
      %1829 = vmatpush1.bf16.msra.mxu0 0
      %1830 = vmatprep.subr.bf16.mxu0 0
      %1831 = vmatpush1.bf16.msra.mxu0 0
      %1832 = vmatprep.subr.bf16.mxu0 0
      %1833 = vmatpush1.bf16.msra.mxu0 0
      %1834 = vmatprep.subr.bf16.mxu0 0
      %1835 = vmatpush1.bf16.msra.mxu0 0
      %1836 = vmatprep.subr.bf16.mxu0 0
      %1837 = vmatpush1.bf16.msra.mxu0 0
      %1838 = vmatprep.subr.bf16.mxu0 0
      %1839 = vmatpush1.bf16.msra.mxu0 0
      %1840 = vmatprep.subr.bf16.mxu0 0
      %1841 = vmatpush1.bf16.msra.mxu0 0
      %1842 = vmatprep.subr.bf16.mxu0 0
      %1843 = vmatpush1.bf16.msra.mxu0 0
      %1844 = vmatprep.subr.bf16.mxu0 0
      %1845 = vmatpush1.bf16.msra.mxu0 0
      %1846 = vmatprep.mubr.bf16.mxu0 0
      %1847 = vmatmul.mubr.bf16.gmra.mrb[0].mxu0 %v1803
      %v1848 = vpop.f32.mrb[0].mxu0
      %v1849 = vadd.f32 0.0, %v1848
      %v1850 = vpop.f32.mrb[0].mxu0
      %v1851 = vpop.f32.mrb[0].mxu0
      %v1852 = vadd.f32 0.0, %v1851
      %v1853 = vpop.f32.mrb[0].mxu0
      %1854 = vmatprep.mubr.bf16.mxu0 0
      %1855 = vmatmul.mubr.bf16.gmra.mrb[0].mxu0 %v1806
      %v1856 = vpop.f32.mrb[0].mxu0
      %v1857 = vadd.f32 0.0, %v1856
      %v1858 = vpop.f32.mrb[0].mxu0
      %v1859 = vpop.f32.mrb[0].mxu0
      %v1860 = vadd.f32 0.0, %v1859
      %v1861 = vpop.f32.mrb[0].mxu0
      %1862 = vmatprep.mubr.bf16.mxu0 0
      %1863 = vmatmul.mubr.bf16.gmra.mrb[0].mxu0 %v1809
      %v1864 = vpop.f32.mrb[0].mxu0
      %v1865 = vadd.f32 0.0, %v1864
      %v1866 = vpop.f32.mrb[0].mxu0
      %v1867 = vpop.f32.mrb[0].mxu0
      %v1868 = vadd.f32 0.0, %v1867
      %v1869 = vpop.f32.mrb[0].mxu0
      %1870 = vmatprep.mubr.bf16.mxu0 0
      %1871 = vmatmul.mubr.bf16.gmra.mrb[0].mxu0 %v1812
      %v1872 = vpop.f32.mrb[0].mxu0
      %v1873 = vadd.f32 0.0, %v1872
      %v1874 = vpop.f32.mrb[0].mxu0
      %v1875 = vpop.f32.mrb[0].mxu0
      %v1876 = vadd.f32 0.0, %v1875
      %v1877 = vpop.f32.mrb[0].mxu0
      %1878 = vdwg.mxu0
      %v1887 = vunpack.c.l.b16 %v412
      %v1888 = vunpack.c.l.b16 %v413
      %v1889 = vunpack.c.l.b16 %v414
      %v1890 = vunpack.c.l.b16 %v415
      %v1891 = vunpack.c.l.b16 %v416
      %v1892 = vunpack.c.l.b16 %v417
      %v1893 = vunpack.c.l.b16 %v418
      %v1894 = vunpack.c.l.b16 %v419
      %v1895 = vpack.c.b16 %v1888, %v1887
      %v1896 = vpack.c.b16 %v1890, %v1889
      %v1897 = vpack.c.b16 %v1892, %v1891
      %v1898 = vpack.c.b16 %v1894, %v1893
      %v1904 = vsel %vm1801, %v408, 0
      %v1907 = vsel %vm1801, %v409, 0
      %v1910 = vsel %vm1801, %v410, 0
      %v1913 = vsel %vm1801, %v411, 0
      %1915 = vmatprep.subr.bf16.mxu0 0
      %1916 = vmatpush1.bf16.msra.mxu0 %v1895
      %1917 = vmatprep.subr.bf16.mxu0 0
      %1918 = vmatpush1.bf16.msra.mxu0 %v1896
      %1919 = vmatprep.subr.bf16.mxu0 0
      %1920 = vmatpush1.bf16.msra.mxu0 %v1897
      %1921 = vmatprep.subr.bf16.mxu0 0
      %1922 = vmatpush1.bf16.msra.mxu0 %v1898
      %1923 = vmatprep.subr.bf16.mxu0 0
      %1924 = vmatpush1.bf16.msra.mxu0 0
      %1925 = vmatprep.subr.bf16.mxu0 0
      %1926 = vmatpush1.bf16.msra.mxu0 0
      %1927 = vmatprep.subr.bf16.mxu0 0
      %1928 = vmatpush1.bf16.msra.mxu0 0
      %1929 = vmatprep.subr.bf16.mxu0 0
      %1930 = vmatpush1.bf16.msra.mxu0 0
      %1931 = vmatprep.subr.bf16.mxu0 0
      %1932 = vmatpush1.bf16.msra.mxu0 0
      %1933 = vmatprep.subr.bf16.mxu0 0
      %1934 = vmatpush1.bf16.msra.mxu0 0
      %1935 = vmatprep.subr.bf16.mxu0 0
      %1936 = vmatpush1.bf16.msra.mxu0 0
      %1937 = vmatprep.subr.bf16.mxu0 0
      %1938 = vmatpush1.bf16.msra.mxu0 0
      %1939 = vmatprep.subr.bf16.mxu0 0
      %1940 = vmatpush1.bf16.msra.mxu0 0
      %1941 = vmatprep.subr.bf16.mxu0 0
      %1942 = vmatpush1.bf16.msra.mxu0 0
      %1943 = vmatprep.subr.bf16.mxu0 0
      %1944 = vmatpush1.bf16.msra.mxu0 0
      %1945 = vmatprep.subr.bf16.mxu0 0
      %1946 = vmatpush1.bf16.msra.mxu0 0
      %1947 = vmatprep.mubr.bf16.mxu0 0
      %1948 = vmatmul.mubr.bf16.gmra.mrb[0].mxu0 %v1904
      %v1949 = vpop.f32.mrb[0].mxu0
      %v1950 = vadd.f32 %v1849, %v1949
      %v1951 = vpop.f32.mrb[0].mxu0
      %v1952 = vpop.f32.mrb[0].mxu0
      %v1953 = vadd.f32 %v1852, %v1952
      %v1954 = vpop.f32.mrb[0].mxu0
      %1955 = vmatprep.mubr.bf16.mxu0 0
      %1956 = vmatmul.mubr.bf16.gmra.mrb[0].mxu0 %v1907
      %v1957 = vpop.f32.mrb[0].mxu0
      %v1958 = vadd.f32 %v1857, %v1957
      %v1959 = vpop.f32.mrb[0].mxu0
      %v1960 = vpop.f32.mrb[0].mxu0
      %v1961 = vadd.f32 %v1860, %v1960
      %v1962 = vpop.f32.mrb[0].mxu0
      %1963 = vmatprep.mubr.bf16.mxu0 0
      %1964 = vmatmul.mubr.bf16.gmra.mrb[0].mxu0 %v1910
      %v1965 = vpop.f32.mrb[0].mxu0
      %v1966 = vadd.f32 %v1865, %v1965
      %v1967 = vpop.f32.mrb[0].mxu0
      %v1968 = vpop.f32.mrb[0].mxu0
      %v1969 = vadd.f32 %v1868, %v1968
      %v1970 = vpop.f32.mrb[0].mxu0
      %1971 = vmatprep.mubr.bf16.mxu0 0
      %1972 = vmatmul.mubr.bf16.gmra.mrb[0].mxu0 %v1913
      %v1973 = vpop.f32.mrb[0].mxu0
      %v1974 = vadd.f32 %v1873, %v1973
      %v1975 = vpop.f32.mrb[0].mxu0
      %v1976 = vpop.f32.mrb[0].mxu0
      %v1977 = vadd.f32 %v1876, %v1976
      %v1978 = vpop.f32.mrb[0].mxu0
      %1979 = vdwg.mxu0
      %s1980 = scalar_lea.vmem %s246, 288
      %v1981 = vld [vmem:[%s1980 + $0x6] sm:$0xff]
      %v1982 = vld [vmem:[%s1980 + $0x36] sm:$0xff]
      %v1983 = vld [vmem:[%s1980 + $0x66] sm:$0xff]
      %v1984 = vld [vmem:[%s1980 + $0x96] sm:$0xff]
      %v1985 = vld [vmem:[%s1980 + $0xc6] sm:$0xff]
      %v1986 = vld [vmem:[%s1980 + $0xf6] sm:$0xff]
      %v1987 = vld [vmem:[%s1980 + $0x126] sm:$0xff]
      %v1988 = vld [vmem:[%s1980 + $0x156] sm:$0xff]
      %v1989 = vpack.c.bf16 %v1982, %v1981
      %v1990 = vpack.c.bf16 %v1984, %v1983
      %v1991 = vpack.c.bf16 %v1986, %v1985
      %v1992 = vpack.c.bf16 %v1988, %v1987
      %s1993 = scalar_lea.vmem %s2, 576
      %v1994 = vld [vmem:[%s1993] sm:$0xf]
      %v1995 = vld [vmem:[%s1993 + $0x4] sm:$0xf]
      %v1996 = vld [vmem:[%s1993 + $0x8] sm:$0xf]
      %v1997 = vld [vmem:[%s1993 + $0xc] sm:$0xf]
      %v1998 = vld [vmem:[%s1993 + $0x10] sm:$0xf]
      %v1999 = vld [vmem:[%s1993 + $0x14] sm:$0xf]
      %v2000 = vld [vmem:[%s1993 + $0x18] sm:$0xf]
      %v2001 = vld [vmem:[%s1993 + $0x1c] sm:$0xf]
      %v2002 = vld [vmem:[%s1993 + $0x20] sm:$0xf]
      %v2003 = vld [vmem:[%s1993 + $0x24] sm:$0xf]
      %v2004 = vld [vmem:[%s1993 + $0x28] sm:$0xf]
      %v2005 = vld [vmem:[%s1993 + $0x2c] sm:$0xf]
      %v2006 = vld [vmem:[%s1993 + $0x30] sm:$0xf]
      %v2007 = vld [vmem:[%s1993 + $0x34] sm:$0xf]
      %v2008 = vld [vmem:[%s1993 + $0x38] sm:$0xf]
      %v2009 = vld [vmem:[%s1993 + $0x3c] sm:$0xf]
      %v2010 = vld [vmem:[%s1980 + $0x12] sm:$0xff]
      %v2011 = vld [vmem:[%s1980 + $0x42] sm:$0xff]
      %v2012 = vld [vmem:[%s1980 + $0x72] sm:$0xff]
      %v2013 = vld [vmem:[%s1980 + $0xa2] sm:$0xff]
      %v2014 = vld [vmem:[%s1980 + $0xd2] sm:$0xff]
      %v2015 = vld [vmem:[%s1980 + $0x102] sm:$0xff]
      %v2016 = vld [vmem:[%s1980 + $0x132] sm:$0xff]
      %v2017 = vld [vmem:[%s1980 + $0x162] sm:$0xff]
      %v2018 = vpack.c.bf16 %v2011, %v2010
      %v2019 = vpack.c.bf16 %v2013, %v2012
      %v2020 = vpack.c.bf16 %v2015, %v2014
      %v2021 = vpack.c.bf16 %v2017, %v2016
      %s2022 = scalar_lea.vmem %s2, 640
      %v2023 = vld [vmem:[%s2022] sm:$0xf]
      %v2024 = vld [vmem:[%s2022 + $0x4] sm:$0xf]
      %v2025 = vld [vmem:[%s2022 + $0x8] sm:$0xf]
      %v2026 = vld [vmem:[%s2022 + $0xc] sm:$0xf]
      %v2027 = vld [vmem:[%s2022 + $0x10] sm:$0xf]
      %v2028 = vld [vmem:[%s2022 + $0x14] sm:$0xf]
      %v2029 = vld [vmem:[%s2022 + $0x18] sm:$0xf]
      %v2030 = vld [vmem:[%s2022 + $0x1c] sm:$0xf]
      %v2031 = vld [vmem:[%s2022 + $0x20] sm:$0xf]
      %v2032 = vld [vmem:[%s2022 + $0x24] sm:$0xf]
      %v2033 = vld [vmem:[%s2022 + $0x28] sm:$0xf]
      %v2034 = vld [vmem:[%s2022 + $0x2c] sm:$0xf]
      %v2035 = vld [vmem:[%s2022 + $0x30] sm:$0xf]
      %v2036 = vld [vmem:[%s2022 + $0x34] sm:$0xf]
      %v2037 = vld [vmem:[%s2022 + $0x38] sm:$0xf]
      %v2038 = vld [vmem:[%s2022 + $0x3c] sm:$0xf]
      %v2055 = vunpack.c.l.b16 %v2023
      %v2056 = vunpack.c.l.b16 %v2024
      %v2057 = vunpack.c.l.b16 %v2025
      %v2058 = vunpack.c.l.b16 %v2026
      %v2059 = vunpack.c.l.b16 %v2027
      %v2060 = vunpack.c.l.b16 %v2028
      %v2061 = vunpack.c.l.b16 %v2029
      %v2062 = vunpack.c.l.b16 %v2030
      %v2063 = vunpack.c.l.b16 %v2031
      %v2064 = vunpack.c.l.b16 %v2032
      %v2065 = vunpack.c.l.b16 %v2033
      %v2066 = vunpack.c.l.b16 %v2034
      %v2067 = vunpack.c.l.b16 %v2035
      %v2068 = vunpack.c.l.b16 %v2036
      %v2069 = vunpack.c.l.b16 %v2037
      %v2070 = vunpack.c.l.b16 %v2038
      %v2071 = vpack.c.b16 %v2056, %v2055
      %v2072 = vpack.c.b16 %v2058, %v2057
      %v2073 = vpack.c.b16 %v2060, %v2059
      %v2074 = vpack.c.b16 %v2062, %v2061
      %v2075 = vpack.c.b16 %v2064, %v2063
      %v2076 = vpack.c.b16 %v2066, %v2065
      %v2077 = vpack.c.b16 %v2068, %v2067
      %v2078 = vpack.c.b16 %v2070, %v2069
      %2087 = vmatprep.subr.bf16.mxu0 0
      %2088 = vmatpush1.bf16.msra.mxu0 %v2071
      %2089 = vmatprep.subr.bf16.mxu0 0
      %2090 = vmatpush1.bf16.msra.mxu0 %v2072
      %2091 = vmatprep.subr.bf16.mxu0 0
      %2092 = vmatpush1.bf16.msra.mxu0 %v2073
      %2093 = vmatprep.subr.bf16.mxu0 0
      %2094 = vmatpush1.bf16.msra.mxu0 %v2074
      %2095 = vmatprep.subr.bf16.mxu0 0
      %2096 = vmatpush1.bf16.msra.mxu0 %v2075
      %2097 = vmatprep.subr.bf16.mxu0 0
      %2098 = vmatpush1.bf16.msra.mxu0 %v2076
      %2099 = vmatprep.subr.bf16.mxu0 0
      %2100 = vmatpush1.bf16.msra.mxu0 %v2077
      %2101 = vmatprep.subr.bf16.mxu0 0
      %2102 = vmatpush1.bf16.msra.mxu0 %v2078
      %2103 = vmatprep.subr.bf16.mxu0 0
      %2104 = vmatpush1.bf16.msra.mxu0 0
      %2105 = vmatprep.subr.bf16.mxu0 0
      %2106 = vmatpush1.bf16.msra.mxu0 0
      %2107 = vmatprep.subr.bf16.mxu0 0
      %2108 = vmatpush1.bf16.msra.mxu0 0
      %2109 = vmatprep.subr.bf16.mxu0 0
      %2110 = vmatpush1.bf16.msra.mxu0 0
      %2111 = vmatprep.subr.bf16.mxu0 0
      %2112 = vmatpush1.bf16.msra.mxu0 0
      %2113 = vmatprep.subr.bf16.mxu0 0
      %2114 = vmatpush1.bf16.msra.mxu0 0
      %2115 = vmatprep.subr.bf16.mxu0 0
      %2116 = vmatpush1.bf16.msra.mxu0 0
      %2117 = vmatprep.subr.bf16.mxu0 0
      %2118 = vmatpush1.bf16.msra.mxu0 0
      %2119 = vmatprep.mubr.bf16.mxu0 0
      %2120 = vmatmul.mubr.bf16.gmra.mrb[0].mxu0 %v2018
      %v2121 = vpop.f32.mrb[0].mxu0
      %v2122 = vadd.f32 0.0, %v2121
      %v2123 = vpop.f32.mrb[0].mxu0
      %v2124 = vpop.f32.mrb[0].mxu0
      %v2125 = vadd.f32 0.0, %v2124
      %v2126 = vpop.f32.mrb[0].mxu0
      %2127 = vmatprep.mubr.bf16.mxu0 0
      %2128 = vmatmul.mubr.bf16.gmra.mrb[0].mxu0 %v2019
      %v2129 = vpop.f32.mrb[0].mxu0
      %v2130 = vadd.f32 0.0, %v2129
      %v2131 = vpop.f32.mrb[0].mxu0
      %v2132 = vpop.f32.mrb[0].mxu0
      %v2133 = vadd.f32 0.0, %v2132
      %v2134 = vpop.f32.mrb[0].mxu0
      %2135 = vmatprep.mubr.bf16.mxu0 0
      %2136 = vmatmul.mubr.bf16.gmra.mrb[0].mxu0 %v2020
      %v2137 = vpop.f32.mrb[0].mxu0
      %v2138 = vadd.f32 0.0, %v2137
      %v2139 = vpop.f32.mrb[0].mxu0
      %v2140 = vpop.f32.mrb[0].mxu0
      %v2141 = vadd.f32 0.0, %v2140
      %v2142 = vpop.f32.mrb[0].mxu0
      %2143 = vmatprep.mubr.bf16.mxu0 0
      %2144 = vmatmul.mubr.bf16.gmra.mrb[0].mxu0 %v2021
      %v2145 = vpop.f32.mrb[0].mxu0
      %v2146 = vadd.f32 0.0, %v2145
      %v2147 = vpop.f32.mrb[0].mxu0
      %v2148 = vpop.f32.mrb[0].mxu0
      %v2149 = vadd.f32 0.0, %v2148
      %v2150 = vpop.f32.mrb[0].mxu0
      %2151 = vdwg.mxu0
      %v2168 = vunpack.c.l.b16 %v1994
      %v2169 = vunpack.c.l.b16 %v1995
      %v2170 = vunpack.c.l.b16 %v1996
      %v2171 = vunpack.c.l.b16 %v1997
      %v2172 = vunpack.c.l.b16 %v1998
      %v2173 = vunpack.c.l.b16 %v1999
      %v2174 = vunpack.c.l.b16 %v2000
      %v2175 = vunpack.c.l.b16 %v2001
      %v2176 = vunpack.c.l.b16 %v2002
      %v2177 = vunpack.c.l.b16 %v2003
      %v2178 = vunpack.c.l.b16 %v2004
      %v2179 = vunpack.c.l.b16 %v2005
      %v2180 = vunpack.c.l.b16 %v2006
      %v2181 = vunpack.c.l.b16 %v2007
      %v2182 = vunpack.c.l.b16 %v2008
      %v2183 = vunpack.c.l.b16 %v2009
      %v2184 = vpack.c.b16 %v2169, %v2168
      %v2185 = vpack.c.b16 %v2171, %v2170
      %v2186 = vpack.c.b16 %v2173, %v2172
      %v2187 = vpack.c.b16 %v2175, %v2174
      %v2188 = vpack.c.b16 %v2177, %v2176
      %v2189 = vpack.c.b16 %v2179, %v2178
      %v2190 = vpack.c.b16 %v2181, %v2180
      %v2191 = vpack.c.b16 %v2183, %v2182
      %2200 = vmatprep.subr.bf16.mxu0 0
      %2201 = vmatpush1.bf16.msra.mxu0 %v2184
      %2202 = vmatprep.subr.bf16.mxu0 0
      %2203 = vmatpush1.bf16.msra.mxu0 %v2185
      %2204 = vmatprep.subr.bf16.mxu0 0
      %2205 = vmatpush1.bf16.msra.mxu0 %v2186
      %2206 = vmatprep.subr.bf16.mxu0 0
      %2207 = vmatpush1.bf16.msra.mxu0 %v2187
      %2208 = vmatprep.subr.bf16.mxu0 0
      %2209 = vmatpush1.bf16.msra.mxu0 %v2188
      %2210 = vmatprep.subr.bf16.mxu0 0
      %2211 = vmatpush1.bf16.msra.mxu0 %v2189
      %2212 = vmatprep.subr.bf16.mxu0 0
      %2213 = vmatpush1.bf16.msra.mxu0 %v2190
      %2214 = vmatprep.subr.bf16.mxu0 0
      %2215 = vmatpush1.bf16.msra.mxu0 %v2191
      %2216 = vmatprep.subr.bf16.mxu0 0
      %2217 = vmatpush1.bf16.msra.mxu0 0
      %2218 = vmatprep.subr.bf16.mxu0 0
      %2219 = vmatpush1.bf16.msra.mxu0 0
      %2220 = vmatprep.subr.bf16.mxu0 0
      %2221 = vmatpush1.bf16.msra.mxu0 0
      %2222 = vmatprep.subr.bf16.mxu0 0
      %2223 = vmatpush1.bf16.msra.mxu0 0
      %2224 = vmatprep.subr.bf16.mxu0 0
      %2225 = vmatpush1.bf16.msra.mxu0 0
      %2226 = vmatprep.subr.bf16.mxu0 0
      %2227 = vmatpush1.bf16.msra.mxu0 0
      %2228 = vmatprep.subr.bf16.mxu0 0
      %2229 = vmatpush1.bf16.msra.mxu0 0
      %2230 = vmatprep.subr.bf16.mxu0 0
      %2231 = vmatpush1.bf16.msra.mxu0 0
      %2232 = vmatprep.mubr.bf16.mxu0 0
      %2233 = vmatmul.mubr.bf16.gmra.mrb[0].mxu0 %v1989
      %v2234 = vpop.f32.mrb[0].mxu0
      %v2235 = vadd.f32 %v2122, %v2234
      %v2236 = vpop.f32.mrb[0].mxu0
      %v2237 = vpop.f32.mrb[0].mxu0
      %v2238 = vadd.f32 %v2125, %v2237
      %v2239 = vpop.f32.mrb[0].mxu0
      %2240 = vmatprep.mubr.bf16.mxu0 0
      %2241 = vmatmul.mubr.bf16.gmra.mrb[0].mxu0 %v1990
      %v2242 = vpop.f32.mrb[0].mxu0
      %v2243 = vadd.f32 %v2130, %v2242
      %v2244 = vpop.f32.mrb[0].mxu0
      %v2245 = vpop.f32.mrb[0].mxu0
      %v2246 = vadd.f32 %v2133, %v2245
      %v2247 = vpop.f32.mrb[0].mxu0
      %2248 = vmatprep.mubr.bf16.mxu0 0
      %2249 = vmatmul.mubr.bf16.gmra.mrb[0].mxu0 %v1991
      %v2250 = vpop.f32.mrb[0].mxu0
      %v2251 = vadd.f32 %v2138, %v2250
      %v2252 = vpop.f32.mrb[0].mxu0
      %v2253 = vpop.f32.mrb[0].mxu0
      %v2254 = vadd.f32 %v2141, %v2253
      %v2255 = vpop.f32.mrb[0].mxu0
      %2256 = vmatprep.mubr.bf16.mxu0 0
      %2257 = vmatmul.mubr.bf16.gmra.mrb[0].mxu0 %v1992
      %v2258 = vpop.f32.mrb[0].mxu0
      %v2259 = vadd.f32 %v2146, %v2258
      %v2260 = vpop.f32.mrb[0].mxu0
      %v2261 = vpop.f32.mrb[0].mxu0
      %v2262 = vadd.f32 %v2149, %v2261
      %v2263 = vpop.f32.mrb[0].mxu0
      %2264 = vdwg.mxu0
      %v2265 = vld [vmem:[%s1980 + $0x1e] sm:$0xff]
      %v2266 = vld [vmem:[%s1980 + $0x4e] sm:$0xff]
      %v2267 = vld [vmem:[%s1980 + $0x7e] sm:$0xff]
      %v2268 = vld [vmem:[%s1980 + $0xae] sm:$0xff]
      %v2269 = vld [vmem:[%s1980 + $0xde] sm:$0xff]
      %v2270 = vld [vmem:[%s1980 + $0x10e] sm:$0xff]
      %v2271 = vld [vmem:[%s1980 + $0x13e] sm:$0xff]
      %v2272 = vld [vmem:[%s1980 + $0x16e] sm:$0xff]
      %v2273 = vpack.c.bf16 %v2266, %v2265
      %v2274 = vpack.c.bf16 %v2268, %v2267
      %v2275 = vpack.c.bf16 %v2270, %v2269
      %v2276 = vpack.c.bf16 %v2272, %v2271
      %s2277 = scalar_lea.vmem %s2, 704
      %v2278 = vld [vmem:[%s2277] sm:$0xf]
      %v2279 = vld [vmem:[%s2277 + $0x4] sm:$0xf]
      %v2280 = vld [vmem:[%s2277 + $0x8] sm:$0xf]
      %v2281 = vld [vmem:[%s2277 + $0xc] sm:$0xf]
      %v2282 = vld [vmem:[%s2277 + $0x10] sm:$0xf]
      %v2283 = vld [vmem:[%s2277 + $0x14] sm:$0xf]
      %v2284 = vld [vmem:[%s2277 + $0x18] sm:$0xf]
      %v2285 = vld [vmem:[%s2277 + $0x1c] sm:$0xf]
      %v2286 = vld [vmem:[%s2277 + $0x20] sm:$0xf]
      %v2287 = vld [vmem:[%s2277 + $0x24] sm:$0xf]
      %v2288 = vld [vmem:[%s2277 + $0x28] sm:$0xf]
      %v2289 = vld [vmem:[%s2277 + $0x2c] sm:$0xf]
      %v2290 = vld [vmem:[%s2277 + $0x30] sm:$0xf]
      %v2291 = vld [vmem:[%s2277 + $0x34] sm:$0xf]
      %v2292 = vld [vmem:[%s2277 + $0x38] sm:$0xf]
      %v2293 = vld [vmem:[%s2277 + $0x3c] sm:$0xf]
      %v2310 = vunpack.c.l.b16 %v2278
      %v2311 = vunpack.c.l.b16 %v2279
      %v2312 = vunpack.c.l.b16 %v2280
      %v2313 = vunpack.c.l.b16 %v2281
      %v2314 = vunpack.c.l.b16 %v2282
      %v2315 = vunpack.c.l.b16 %v2283
      %v2316 = vunpack.c.l.b16 %v2284
      %v2317 = vunpack.c.l.b16 %v2285
      %v2318 = vunpack.c.l.b16 %v2286
      %v2319 = vunpack.c.l.b16 %v2287
      %v2320 = vunpack.c.l.b16 %v2288
      %v2321 = vunpack.c.l.b16 %v2289
      %v2322 = vunpack.c.l.b16 %v2290
      %v2323 = vunpack.c.l.b16 %v2291
      %v2324 = vunpack.c.l.b16 %v2292
      %v2325 = vunpack.c.l.b16 %v2293
      %v2326 = vpack.c.b16 %v2311, %v2310
      %v2327 = vpack.c.b16 %v2313, %v2312
      %v2328 = vpack.c.b16 %v2315, %v2314
      %v2329 = vpack.c.b16 %v2317, %v2316
      %v2330 = vpack.c.b16 %v2319, %v2318
      %v2331 = vpack.c.b16 %v2321, %v2320
      %v2332 = vpack.c.b16 %v2323, %v2322
      %v2333 = vpack.c.b16 %v2325, %v2324
      %2342 = vmatprep.subr.bf16.mxu0 0
      %2343 = vmatpush1.bf16.msra.mxu0 %v2326
      %2344 = vmatprep.subr.bf16.mxu0 0
      %2345 = vmatpush1.bf16.msra.mxu0 %v2327
      %2346 = vmatprep.subr.bf16.mxu0 0
      %2347 = vmatpush1.bf16.msra.mxu0 %v2328
      %2348 = vmatprep.subr.bf16.mxu0 0
      %2349 = vmatpush1.bf16.msra.mxu0 %v2329
      %2350 = vmatprep.subr.bf16.mxu0 0
      %2351 = vmatpush1.bf16.msra.mxu0 %v2330
      %2352 = vmatprep.subr.bf16.mxu0 0
      %2353 = vmatpush1.bf16.msra.mxu0 %v2331
      %2354 = vmatprep.subr.bf16.mxu0 0
      %2355 = vmatpush1.bf16.msra.mxu0 %v2332
      %2356 = vmatprep.subr.bf16.mxu0 0
      %2357 = vmatpush1.bf16.msra.mxu0 %v2333
      %2358 = vmatprep.subr.bf16.mxu0 0
      %2359 = vmatpush1.bf16.msra.mxu0 0
      %2360 = vmatprep.subr.bf16.mxu0 0
      %2361 = vmatpush1.bf16.msra.mxu0 0
      %2362 = vmatprep.subr.bf16.mxu0 0
      %2363 = vmatpush1.bf16.msra.mxu0 0
      %2364 = vmatprep.subr.bf16.mxu0 0
      %2365 = vmatpush1.bf16.msra.mxu0 0
      %2366 = vmatprep.subr.bf16.mxu0 0
      %2367 = vmatpush1.bf16.msra.mxu0 0
      %2368 = vmatprep.subr.bf16.mxu0 0
      %2369 = vmatpush1.bf16.msra.mxu0 0
      %2370 = vmatprep.subr.bf16.mxu0 0
      %2371 = vmatpush1.bf16.msra.mxu0 0
      %2372 = vmatprep.subr.bf16.mxu0 0
      %2373 = vmatpush1.bf16.msra.mxu0 0
      %2374 = vmatprep.mubr.bf16.mxu0 0
      %2375 = vmatmul.mubr.bf16.gmra.mrb[0].mxu0 %v2273
      %v2376 = vpop.f32.mrb[0].mxu0
      %v2377 = vadd.f32 0.0, %v2376
      %v2378 = vpop.f32.mrb[0].mxu0
      %v2379 = vpop.f32.mrb[0].mxu0
      %v2380 = vadd.f32 0.0, %v2379
      %v2381 = vpop.f32.mrb[0].mxu0
      %2382 = vmatprep.mubr.bf16.mxu0 0
      %2383 = vmatmul.mubr.bf16.gmra.mrb[0].mxu0 %v2274
      %v2384 = vpop.f32.mrb[0].mxu0
      %v2385 = vadd.f32 0.0, %v2384
      %v2386 = vpop.f32.mrb[0].mxu0
      %v2387 = vpop.f32.mrb[0].mxu0
      %v2388 = vadd.f32 0.0, %v2387
      %v2389 = vpop.f32.mrb[0].mxu0
      %2390 = vmatprep.mubr.bf16.mxu0 0
      %2391 = vmatmul.mubr.bf16.gmra.mrb[0].mxu0 %v2275
      %v2392 = vpop.f32.mrb[0].mxu0
      %v2393 = vadd.f32 0.0, %v2392
      %v2394 = vpop.f32.mrb[0].mxu0
      %v2395 = vpop.f32.mrb[0].mxu0
      %v2396 = vadd.f32 0.0, %v2395
      %v2397 = vpop.f32.mrb[0].mxu0
      %2398 = vmatprep.mubr.bf16.mxu0 0
      %2399 = vmatmul.mubr.bf16.gmra.mrb[0].mxu0 %v2276
      %v2400 = vpop.f32.mrb[0].mxu0
      %v2401 = vadd.f32 0.0, %v2400
      %v2402 = vpop.f32.mrb[0].mxu0
      %v2403 = vpop.f32.mrb[0].mxu0
      %v2404 = vadd.f32 0.0, %v2403
      %v2405 = vpop.f32.mrb[0].mxu0
      %2406 = vdwg.mxu0
      %v2407 = vadd.f32 %v2235, %v2377
      %v2408 = vadd.f32 %v2238, %v2380
      %v2409 = vadd.f32 %v2243, %v2385
      %v2410 = vadd.f32 %v2246, %v2388
      %v2411 = vadd.f32 %v2251, %v2393
      %v2412 = vadd.f32 %v2254, %v2396
      %v2413 = vadd.f32 %v2259, %v2401
      %v2414 = vadd.f32 %v2262, %v2404
      %v2415 = vld [vmem:[%s253 + $0x6] sm:$0xff]
      %v2416 = vld [vmem:[%s253 + $0x36] sm:$0xff]
      %v2417 = vld [vmem:[%s253 + $0x66] sm:$0xff]
      %v2418 = vld [vmem:[%s253 + $0x96] sm:$0xff]
      %v2419 = vld [vmem:[%s253 + $0xc6] sm:$0xff]
      %v2420 = vld [vmem:[%s253 + $0xf6] sm:$0xff]
      %v2421 = vld [vmem:[%s253 + $0x126] sm:$0xff]
      %v2422 = vld [vmem:[%s253 + $0x156] sm:$0xff]
      %v2423 = vpack.c.bf16 %v2416, %v2415
      %v2424 = vpack.c.bf16 %v2418, %v2417
      %v2425 = vpack.c.bf16 %v2420, %v2419
      %v2426 = vpack.c.bf16 %v2422, %v2421
      %s2427 = scalar_lea.vmem %s2, 768
      %v2428 = vld [vmem:[%s2427] sm:$0xf]
      %v2429 = vld [vmem:[%s2427 + $0x4] sm:$0xf]
      %v2430 = vld [vmem:[%s2427 + $0x8] sm:$0xf]
      %v2431 = vld [vmem:[%s2427 + $0xc] sm:$0xf]
      %v2432 = vld [vmem:[%s2427 + $0x10] sm:$0xf]
      %v2433 = vld [vmem:[%s2427 + $0x14] sm:$0xf]
      %v2434 = vld [vmem:[%s2427 + $0x18] sm:$0xf]
      %v2435 = vld [vmem:[%s2427 + $0x1c] sm:$0xf]
      %v2436 = vld [vmem:[%s2427 + $0x20] sm:$0xf]
      %v2437 = vld [vmem:[%s2427 + $0x24] sm:$0xf]
      %v2438 = vld [vmem:[%s2427 + $0x28] sm:$0xf]
      %v2439 = vld [vmem:[%s2427 + $0x2c] sm:$0xf]
      %v2440 = vld [vmem:[%s2427 + $0x30] sm:$0xf]
      %v2441 = vld [vmem:[%s2427 + $0x34] sm:$0xf]
      %v2442 = vld [vmem:[%s2427 + $0x38] sm:$0xf]
      %v2443 = vld [vmem:[%s2427 + $0x3c] sm:$0xf]
      %v2460 = vunpack.c.l.b16 %v2428
      %v2461 = vunpack.c.l.b16 %v2429
      %v2462 = vunpack.c.l.b16 %v2430
      %v2463 = vunpack.c.l.b16 %v2431
      %v2464 = vunpack.c.l.b16 %v2432
      %v2465 = vunpack.c.l.b16 %v2433
      %v2466 = vunpack.c.l.b16 %v2434
      %v2467 = vunpack.c.l.b16 %v2435
      %v2468 = vunpack.c.l.b16 %v2436
      %v2469 = vunpack.c.l.b16 %v2437
      %v2470 = vunpack.c.l.b16 %v2438
      %v2471 = vunpack.c.l.b16 %v2439
      %v2472 = vunpack.c.l.b16 %v2440
      %v2473 = vunpack.c.l.b16 %v2441
      %v2474 = vunpack.c.l.b16 %v2442
      %v2475 = vunpack.c.l.b16 %v2443
      %v2476 = vpack.c.b16 %v2461, %v2460
      %v2477 = vpack.c.b16 %v2463, %v2462
      %v2478 = vpack.c.b16 %v2465, %v2464
      %v2479 = vpack.c.b16 %v2467, %v2466
      %v2480 = vpack.c.b16 %v2469, %v2468
      %v2481 = vpack.c.b16 %v2471, %v2470
      %v2482 = vpack.c.b16 %v2473, %v2472
      %v2483 = vpack.c.b16 %v2475, %v2474
      %2492 = vmatprep.subr.bf16.mxu0 0
      %2493 = vmatpush1.bf16.msra.mxu0 %v2476
      %2494 = vmatprep.subr.bf16.mxu0 0
      %2495 = vmatpush1.bf16.msra.mxu0 %v2477
      %2496 = vmatprep.subr.bf16.mxu0 0
      %2497 = vmatpush1.bf16.msra.mxu0 %v2478
      %2498 = vmatprep.subr.bf16.mxu0 0
      %2499 = vmatpush1.bf16.msra.mxu0 %v2479
      %2500 = vmatprep.subr.bf16.mxu0 0
      %2501 = vmatpush1.bf16.msra.mxu0 %v2480
      %2502 = vmatprep.subr.bf16.mxu0 0
      %2503 = vmatpush1.bf16.msra.mxu0 %v2481
      %2504 = vmatprep.subr.bf16.mxu0 0
      %2505 = vmatpush1.bf16.msra.mxu0 %v2482
      %2506 = vmatprep.subr.bf16.mxu0 0
      %2507 = vmatpush1.bf16.msra.mxu0 %v2483
      %2508 = vmatprep.subr.bf16.mxu0 0
      %2509 = vmatpush1.bf16.msra.mxu0 0
      %2510 = vmatprep.subr.bf16.mxu0 0
      %2511 = vmatpush1.bf16.msra.mxu0 0
      %2512 = vmatprep.subr.bf16.mxu0 0
      %2513 = vmatpush1.bf16.msra.mxu0 0
      %2514 = vmatprep.subr.bf16.mxu0 0
      %2515 = vmatpush1.bf16.msra.mxu0 0
      %2516 = vmatprep.subr.bf16.mxu0 0
      %2517 = vmatpush1.bf16.msra.mxu0 0
      %2518 = vmatprep.subr.bf16.mxu0 0
      %2519 = vmatpush1.bf16.msra.mxu0 0
      %2520 = vmatprep.subr.bf16.mxu0 0
      %2521 = vmatpush1.bf16.msra.mxu0 0
      %2522 = vmatprep.subr.bf16.mxu0 0
      %2523 = vmatpush1.bf16.msra.mxu0 0
      %2524 = vmatprep.mubr.bf16.mxu0 0
      %2525 = vmatmul.mubr.bf16.gmra.mrb[0].mxu0 %v2423
      %v2526 = vpop.f32.mrb[0].mxu0
      %v2527 = vadd.f32 0.0, %v2526
      %v2528 = vpop.f32.mrb[0].mxu0
      %v2529 = vpop.f32.mrb[0].mxu0
      %v2530 = vadd.f32 0.0, %v2529
      %v2531 = vpop.f32.mrb[0].mxu0
      %2532 = vmatprep.mubr.bf16.mxu0 0
      %2533 = vmatmul.mubr.bf16.gmra.mrb[0].mxu0 %v2424
      %v2534 = vpop.f32.mrb[0].mxu0
      %v2535 = vadd.f32 0.0, %v2534
      %v2536 = vpop.f32.mrb[0].mxu0
      %v2537 = vpop.f32.mrb[0].mxu0
      %v2538 = vadd.f32 0.0, %v2537
      %v2539 = vpop.f32.mrb[0].mxu0
      %2540 = vmatprep.mubr.bf16.mxu0 0
      %2541 = vmatmul.mubr.bf16.gmra.mrb[0].mxu0 %v2425
      %v2542 = vpop.f32.mrb[0].mxu0
      %v2543 = vadd.f32 0.0, %v2542
      %v2544 = vpop.f32.mrb[0].mxu0
      %v2545 = vpop.f32.mrb[0].mxu0
      %v2546 = vadd.f32 0.0, %v2545
      %v2547 = vpop.f32.mrb[0].mxu0
      %2548 = vmatprep.mubr.bf16.mxu0 0
      %2549 = vmatmul.mubr.bf16.gmra.mrb[0].mxu0 %v2426
      %v2550 = vpop.f32.mrb[0].mxu0
      %v2551 = vadd.f32 0.0, %v2550
      %v2552 = vpop.f32.mrb[0].mxu0
      %v2553 = vpop.f32.mrb[0].mxu0
      %v2554 = vadd.f32 0.0, %v2553
      %v2555 = vpop.f32.mrb[0].mxu0
      %2556 = vdwg.mxu0
      %v2557 = vadd.f32 %v2407, %v2527
      %v2558 = vadd.f32 %v2408, %v2530
      %v2559 = vadd.f32 %v2409, %v2535
      %v2560 = vadd.f32 %v2410, %v2538
      %v2561 = vadd.f32 %v2411, %v2543
      %v2562 = vadd.f32 %v2412, %v2546
      %v2563 = vadd.f32 %v2413, %v2551
      %v2564 = vadd.f32 %v2414, %v2554
      %s2565 = scalar_lea.vmem %s2, 832
      %v2566 = vld [vmem:[%s2565] sm:$0xf]
      %v2567 = vld [vmem:[%s2565 + $0x4] sm:$0xf]
      %v2568 = vld [vmem:[%s2565 + $0x8] sm:$0xf]
      %v2569 = vld [vmem:[%s2565 + $0xc] sm:$0xf]
      %v2570 = vld [vmem:[%s2565 + $0x10] sm:$0xf]
      %v2571 = vld [vmem:[%s2565 + $0x14] sm:$0xf]
      %v2572 = vld [vmem:[%s2565 + $0x18] sm:$0xf]
      %v2573 = vld [vmem:[%s2565 + $0x1c] sm:$0xf]
      %v2574 = vld [vmem:[%s2565 + $0x20] sm:$0xf]
      %v2575 = vld [vmem:[%s2565 + $0x24] sm:$0xf]
      %v2576 = vld [vmem:[%s2565 + $0x28] sm:$0xf]
      %v2577 = vld [vmem:[%s2565 + $0x2c] sm:$0xf]
      %v2578 = vld [vmem:[%s2565 + $0x30] sm:$0xf]
      %v2579 = vld [vmem:[%s2565 + $0x34] sm:$0xf]
      %v2580 = vld [vmem:[%s2565 + $0x38] sm:$0xf]
      %v2581 = vld [vmem:[%s2565 + $0x3c] sm:$0xf]
      %v2598 = vunpack.c.l.b16 %v2566
      %v2599 = vunpack.c.l.b16 %v2567
      %v2600 = vunpack.c.l.b16 %v2568
      %v2601 = vunpack.c.l.b16 %v2569
      %v2602 = vunpack.c.l.b16 %v2570
      %v2603 = vunpack.c.l.b16 %v2571
      %v2604 = vunpack.c.l.b16 %v2572
      %v2605 = vunpack.c.l.b16 %v2573
      %v2606 = vunpack.c.l.b16 %v2574
      %v2607 = vunpack.c.l.b16 %v2575
      %v2608 = vunpack.c.l.b16 %v2576
      %v2609 = vunpack.c.l.b16 %v2577
      %v2610 = vunpack.c.l.b16 %v2578
      %v2611 = vunpack.c.l.b16 %v2579
      %v2612 = vunpack.c.l.b16 %v2580
      %v2613 = vunpack.c.l.b16 %v2581
      %v2614 = vpack.c.b16 %v2599, %v2598
      %v2615 = vpack.c.b16 %v2601, %v2600
      %v2616 = vpack.c.b16 %v2603, %v2602
      %v2617 = vpack.c.b16 %v2605, %v2604
      %v2618 = vpack.c.b16 %v2607, %v2606
      %v2619 = vpack.c.b16 %v2609, %v2608
      %v2620 = vpack.c.b16 %v2611, %v2610
      %v2621 = vpack.c.b16 %v2613, %v2612
      %2630 = vmatprep.subr.bf16.mxu0 0
      %2631 = vmatpush1.bf16.msra.mxu0 %v2614
      %2632 = vmatprep.subr.bf16.mxu0 0
      %2633 = vmatpush1.bf16.msra.mxu0 %v2615
      %2634 = vmatprep.subr.bf16.mxu0 0
      %2635 = vmatpush1.bf16.msra.mxu0 %v2616
      %2636 = vmatprep.subr.bf16.mxu0 0
      %2637 = vmatpush1.bf16.msra.mxu0 %v2617
      %2638 = vmatprep.subr.bf16.mxu0 0
      %2639 = vmatpush1.bf16.msra.mxu0 %v2618
      %2640 = vmatprep.subr.bf16.mxu0 0
      %2641 = vmatpush1.bf16.msra.mxu0 %v2619
      %2642 = vmatprep.subr.bf16.mxu0 0
      %2643 = vmatpush1.bf16.msra.mxu0 %v2620
      %2644 = vmatprep.subr.bf16.mxu0 0
      %2645 = vmatpush1.bf16.msra.mxu0 %v2621
      %2646 = vmatprep.subr.bf16.mxu0 0
      %2647 = vmatpush1.bf16.msra.mxu0 0
      %2648 = vmatprep.subr.bf16.mxu0 0
      %2649 = vmatpush1.bf16.msra.mxu0 0
      %2650 = vmatprep.subr.bf16.mxu0 0
      %2651 = vmatpush1.bf16.msra.mxu0 0
      %2652 = vmatprep.subr.bf16.mxu0 0
      %2653 = vmatpush1.bf16.msra.mxu0 0
      %2654 = vmatprep.subr.bf16.mxu0 0
      %2655 = vmatpush1.bf16.msra.mxu0 0
      %2656 = vmatprep.subr.bf16.mxu0 0
      %2657 = vmatpush1.bf16.msra.mxu0 0
      %2658 = vmatprep.subr.bf16.mxu0 0
      %2659 = vmatpush1.bf16.msra.mxu0 0
      %2660 = vmatprep.subr.bf16.mxu0 0
      %2661 = vmatpush1.bf16.msra.mxu0 0
      %2662 = vmatprep.mubr.bf16.mxu0 0
      %2663 = vmatmul.mubr.bf16.gmra.mrb[0].mxu0 %v262
      %v2664 = vpop.f32.mrb[0].mxu0
      %v2665 = vadd.f32 0.0, %v2664
      %v2666 = vpop.f32.mrb[0].mxu0
      %v2667 = vpop.f32.mrb[0].mxu0
      %v2668 = vadd.f32 0.0, %v2667
      %v2669 = vpop.f32.mrb[0].mxu0
      %2670 = vmatprep.mubr.bf16.mxu0 0
      %2671 = vmatmul.mubr.bf16.gmra.mrb[0].mxu0 %v263
      %v2672 = vpop.f32.mrb[0].mxu0
      %v2673 = vadd.f32 0.0, %v2672
      %v2674 = vpop.f32.mrb[0].mxu0
      %v2675 = vpop.f32.mrb[0].mxu0
      %v2676 = vadd.f32 0.0, %v2675
      %v2677 = vpop.f32.mrb[0].mxu0
      %2678 = vmatprep.mubr.bf16.mxu0 0
      %2679 = vmatmul.mubr.bf16.gmra.mrb[0].mxu0 %v264
      %v2680 = vpop.f32.mrb[0].mxu0
      %v2681 = vadd.f32 0.0, %v2680
      %v2682 = vpop.f32.mrb[0].mxu0
      %v2683 = vpop.f32.mrb[0].mxu0
      %v2684 = vadd.f32 0.0, %v2683
      %v2685 = vpop.f32.mrb[0].mxu0
      %2686 = vmatprep.mubr.bf16.mxu0 0
      %2687 = vmatmul.mubr.bf16.gmra.mrb[0].mxu0 %v265
      %v2688 = vpop.f32.mrb[0].mxu0
      %v2689 = vadd.f32 0.0, %v2688
      %v2690 = vpop.f32.mrb[0].mxu0
      %v2691 = vpop.f32.mrb[0].mxu0
      %v2692 = vadd.f32 0.0, %v2691
      %v2693 = vpop.f32.mrb[0].mxu0
      %2694 = vdwg.mxu0
      %v2695 = vadd.f32 %v2557, %v2665
      %v2696 = vadd.f32 %v2558, %v2668
      %v2697 = vadd.f32 %v2559, %v2673
      %v2698 = vadd.f32 %v2560, %v2676
      %v2699 = vadd.f32 %v2561, %v2681
      %v2700 = vadd.f32 %v2562, %v2684
      %v2701 = vadd.f32 %v2563, %v2689
      %v2702 = vadd.f32 %v2564, %v2692
      %v2703 = vld [vmem:[%s253 + $0x1e] sm:$0xff]
      %v2704 = vld [vmem:[%s253 + $0x4e] sm:$0xff]
      %v2705 = vld [vmem:[%s253 + $0x7e] sm:$0xff]
      %v2706 = vld [vmem:[%s253 + $0xae] sm:$0xff]
      %v2707 = vld [vmem:[%s253 + $0xde] sm:$0xff]
      %v2708 = vld [vmem:[%s253 + $0x10e] sm:$0xff]
      %v2709 = vld [vmem:[%s253 + $0x13e] sm:$0xff]
      %v2710 = vld [vmem:[%s253 + $0x16e] sm:$0xff]
      %v2711 = vpack.c.bf16 %v2704, %v2703
      %v2712 = vpack.c.bf16 %v2706, %v2705
      %v2713 = vpack.c.bf16 %v2708, %v2707
      %v2714 = vpack.c.bf16 %v2710, %v2709
      %s2715 = scalar_lea.vmem %s2, 896
      %v2716 = vld [vmem:[%s2715] sm:$0xf]
      %v2717 = vld [vmem:[%s2715 + $0x4] sm:$0xf]
      %v2718 = vld [vmem:[%s2715 + $0x8] sm:$0xf]
      %v2719 = vld [vmem:[%s2715 + $0xc] sm:$0xf]
      %v2720 = vld [vmem:[%s2715 + $0x10] sm:$0xf]
      %v2721 = vld [vmem:[%s2715 + $0x14] sm:$0xf]
      %v2722 = vld [vmem:[%s2715 + $0x18] sm:$0xf]
      %v2723 = vld [vmem:[%s2715 + $0x1c] sm:$0xf]
      %v2724 = vld [vmem:[%s2715 + $0x20] sm:$0xf]
      %v2725 = vld [vmem:[%s2715 + $0x24] sm:$0xf]
      %v2726 = vld [vmem:[%s2715 + $0x28] sm:$0xf]
      %v2727 = vld [vmem:[%s2715 + $0x2c] sm:$0xf]
      %v2728 = vld [vmem:[%s2715 + $0x30] sm:$0xf]
      %v2729 = vld [vmem:[%s2715 + $0x34] sm:$0xf]
      %v2730 = vld [vmem:[%s2715 + $0x38] sm:$0xf]
      %v2731 = vld [vmem:[%s2715 + $0x3c] sm:$0xf]
      %v2748 = vunpack.c.l.b16 %v2716
      %v2749 = vunpack.c.l.b16 %v2717
      %v2750 = vunpack.c.l.b16 %v2718
      %v2751 = vunpack.c.l.b16 %v2719
      %v2752 = vunpack.c.l.b16 %v2720
      %v2753 = vunpack.c.l.b16 %v2721
      %v2754 = vunpack.c.l.b16 %v2722
      %v2755 = vunpack.c.l.b16 %v2723
      %v2756 = vunpack.c.l.b16 %v2724
      %v2757 = vunpack.c.l.b16 %v2725
      %v2758 = vunpack.c.l.b16 %v2726
      %v2759 = vunpack.c.l.b16 %v2727
      %v2760 = vunpack.c.l.b16 %v2728
      %v2761 = vunpack.c.l.b16 %v2729
      %v2762 = vunpack.c.l.b16 %v2730
      %v2763 = vunpack.c.l.b16 %v2731
      %v2764 = vpack.c.b16 %v2749, %v2748
      %v2765 = vpack.c.b16 %v2751, %v2750
      %v2766 = vpack.c.b16 %v2753, %v2752
      %v2767 = vpack.c.b16 %v2755, %v2754
      %v2768 = vpack.c.b16 %v2757, %v2756
      %v2769 = vpack.c.b16 %v2759, %v2758
      %v2770 = vpack.c.b16 %v2761, %v2760
      %v2771 = vpack.c.b16 %v2763, %v2762
      %2780 = vmatprep.subr.bf16.mxu0 0
      %2781 = vmatpush1.bf16.msra.mxu0 %v2764
      %2782 = vmatprep.subr.bf16.mxu0 0
      %2783 = vmatpush1.bf16.msra.mxu0 %v2765
      %2784 = vmatprep.subr.bf16.mxu0 0
      %2785 = vmatpush1.bf16.msra.mxu0 %v2766
      %2786 = vmatprep.subr.bf16.mxu0 0
      %2787 = vmatpush1.bf16.msra.mxu0 %v2767
      %2788 = vmatprep.subr.bf16.mxu0 0
      %2789 = vmatpush1.bf16.msra.mxu0 %v2768
      %2790 = vmatprep.subr.bf16.mxu0 0
      %2791 = vmatpush1.bf16.msra.mxu0 %v2769
      %2792 = vmatprep.subr.bf16.mxu0 0
      %2793 = vmatpush1.bf16.msra.mxu0 %v2770
      %2794 = vmatprep.subr.bf16.mxu0 0
      %2795 = vmatpush1.bf16.msra.mxu0 %v2771
      %2796 = vmatprep.subr.bf16.mxu0 0
      %2797 = vmatpush1.bf16.msra.mxu0 0
      %2798 = vmatprep.subr.bf16.mxu0 0
      %2799 = vmatpush1.bf16.msra.mxu0 0
      %2800 = vmatprep.subr.bf16.mxu0 0
      %2801 = vmatpush1.bf16.msra.mxu0 0
      %2802 = vmatprep.subr.bf16.mxu0 0
      %2803 = vmatpush1.bf16.msra.mxu0 0
      %2804 = vmatprep.subr.bf16.mxu0 0
      %2805 = vmatpush1.bf16.msra.mxu0 0
      %2806 = vmatprep.subr.bf16.mxu0 0
      %2807 = vmatpush1.bf16.msra.mxu0 0
      %2808 = vmatprep.subr.bf16.mxu0 0
      %2809 = vmatpush1.bf16.msra.mxu0 0
      %2810 = vmatprep.subr.bf16.mxu0 0
      %2811 = vmatpush1.bf16.msra.mxu0 0
      %2812 = vmatprep.mubr.bf16.mxu0 0
      %2813 = vmatmul.mubr.bf16.gmra.mrb[0].mxu0 %v2711
      %v2814 = vpop.f32.mrb[0].mxu0
      %v2815 = vadd.f32 0.0, %v2814
      %v2816 = vpop.f32.mrb[0].mxu0
      %v2817 = vpop.f32.mrb[0].mxu0
      %v2818 = vadd.f32 0.0, %v2817
      %v2819 = vpop.f32.mrb[0].mxu0
      %2820 = vmatprep.mubr.bf16.mxu0 0
      %2821 = vmatmul.mubr.bf16.gmra.mrb[0].mxu0 %v2712
      %v2822 = vpop.f32.mrb[0].mxu0
      %v2823 = vadd.f32 0.0, %v2822
      %v2824 = vpop.f32.mrb[0].mxu0
      %v2825 = vpop.f32.mrb[0].mxu0
      %v2826 = vadd.f32 0.0, %v2825
      %v2827 = vpop.f32.mrb[0].mxu0
      %2828 = vmatprep.mubr.bf16.mxu0 0
      %2829 = vmatmul.mubr.bf16.gmra.mrb[0].mxu0 %v2713
      %v2830 = vpop.f32.mrb[0].mxu0
      %v2831 = vadd.f32 0.0, %v2830
      %v2832 = vpop.f32.mrb[0].mxu0
      %v2833 = vpop.f32.mrb[0].mxu0
      %v2834 = vadd.f32 0.0, %v2833
      %v2835 = vpop.f32.mrb[0].mxu0
      %2836 = vmatprep.mubr.bf16.mxu0 0
      %2837 = vmatmul.mubr.bf16.gmra.mrb[0].mxu0 %v2714
      %v2838 = vpop.f32.mrb[0].mxu0
      %v2839 = vadd.f32 0.0, %v2838
      %v2840 = vpop.f32.mrb[0].mxu0
      %v2841 = vpop.f32.mrb[0].mxu0
      %v2842 = vadd.f32 0.0, %v2841
      %v2843 = vpop.f32.mrb[0].mxu0
      %2844 = vdwg.mxu0
      %v2845 = vadd.f32 %v2695, %v2815
      %v2846 = vadd.f32 %v2696, %v2818
      %v2847 = vadd.f32 %v2697, %v2823
      %v2848 = vadd.f32 %v2698, %v2826
      %v2849 = vadd.f32 %v2699, %v2831
      %v2850 = vadd.f32 %v2700, %v2834
      %v2851 = vadd.f32 %v2701, %v2839
      %v2852 = vadd.f32 %v2702, %v2842
      %s2853 = scalar_lea.vmem %s246, 1440
      %v2854 = vld [vmem:[%s2853 + $0x6] sm:$0xff]
      %v2855 = vld [vmem:[%s2853 + $0x36] sm:$0xff]
      %v2856 = vld [vmem:[%s2853 + $0x66] sm:$0xff]
      %v2857 = vld [vmem:[%s2853 + $0x96] sm:$0xff]
      %v2858 = vld [vmem:[%s2853 + $0xc6] sm:$0xff]
      %v2859 = vld [vmem:[%s2853 + $0xf6] sm:$0xff]
      %v2860 = vld [vmem:[%s2853 + $0x126] sm:$0xff]
      %v2861 = vld [vmem:[%s2853 + $0x156] sm:$0xff]
      %v2862 = vpack.c.bf16 %v2855, %v2854
      %v2863 = vpack.c.bf16 %v2857, %v2856
      %v2864 = vpack.c.bf16 %v2859, %v2858
      %v2865 = vpack.c.bf16 %v2861, %v2860
      %s2866 = scalar_lea.vmem %s2, 960
      %v2867 = vld [vmem:[%s2866] sm:$0xf]
      %v2868 = vld [vmem:[%s2866 + $0x4] sm:$0xf]
      %v2869 = vld [vmem:[%s2866 + $0x8] sm:$0xf]
      %v2870 = vld [vmem:[%s2866 + $0xc] sm:$0xf]
      %v2871 = vld [vmem:[%s2866 + $0x10] sm:$0xf]
      %v2872 = vld [vmem:[%s2866 + $0x14] sm:$0xf]
      %v2873 = vld [vmem:[%s2866 + $0x18] sm:$0xf]
      %v2874 = vld [vmem:[%s2866 + $0x1c] sm:$0xf]
      %v2875 = vld [vmem:[%s2866 + $0x20] sm:$0xf]
      %v2876 = vld [vmem:[%s2866 + $0x24] sm:$0xf]
      %v2877 = vld [vmem:[%s2866 + $0x28] sm:$0xf]
      %v2878 = vld [vmem:[%s2866 + $0x2c] sm:$0xf]
      %v2879 = vld [vmem:[%s2866 + $0x30] sm:$0xf]
      %v2880 = vld [vmem:[%s2866 + $0x34] sm:$0xf]
      %v2881 = vld [vmem:[%s2866 + $0x38] sm:$0xf]
      %v2882 = vld [vmem:[%s2866 + $0x3c] sm:$0xf]
      %v2899 = vunpack.c.l.b16 %v2867
      %v2900 = vunpack.c.l.b16 %v2868
      %v2901 = vunpack.c.l.b16 %v2869
      %v2902 = vunpack.c.l.b16 %v2870
      %v2903 = vunpack.c.l.b16 %v2871
      %v2904 = vunpack.c.l.b16 %v2872
      %v2905 = vunpack.c.l.b16 %v2873
      %v2906 = vunpack.c.l.b16 %v2874
      %v2907 = vunpack.c.l.b16 %v2875
      %v2908 = vunpack.c.l.b16 %v2876
      %v2909 = vunpack.c.l.b16 %v2877
      %v2910 = vunpack.c.l.b16 %v2878
      %v2911 = vunpack.c.l.b16 %v2879
      %v2912 = vunpack.c.l.b16 %v2880
      %v2913 = vunpack.c.l.b16 %v2881
      %v2914 = vunpack.c.l.b16 %v2882
      %v2915 = vpack.c.b16 %v2900, %v2899
      %v2916 = vpack.c.b16 %v2902, %v2901
      %v2917 = vpack.c.b16 %v2904, %v2903
      %v2918 = vpack.c.b16 %v2906, %v2905
      %v2919 = vpack.c.b16 %v2908, %v2907
      %v2920 = vpack.c.b16 %v2910, %v2909
      %v2921 = vpack.c.b16 %v2912, %v2911
      %v2922 = vpack.c.b16 %v2914, %v2913
      %2931 = vmatprep.subr.bf16.mxu0 0
      %2932 = vmatpush1.bf16.msra.mxu0 %v2915
      %2933 = vmatprep.subr.bf16.mxu0 0
      %2934 = vmatpush1.bf16.msra.mxu0 %v2916
      %2935 = vmatprep.subr.bf16.mxu0 0
      %2936 = vmatpush1.bf16.msra.mxu0 %v2917
      %2937 = vmatprep.subr.bf16.mxu0 0
      %2938 = vmatpush1.bf16.msra.mxu0 %v2918
      %2939 = vmatprep.subr.bf16.mxu0 0
      %2940 = vmatpush1.bf16.msra.mxu0 %v2919
      %2941 = vmatprep.subr.bf16.mxu0 0
      %2942 = vmatpush1.bf16.msra.mxu0 %v2920
      %2943 = vmatprep.subr.bf16.mxu0 0
      %2944 = vmatpush1.bf16.msra.mxu0 %v2921
      %2945 = vmatprep.subr.bf16.mxu0 0
      %2946 = vmatpush1.bf16.msra.mxu0 %v2922
      %2947 = vmatprep.subr.bf16.mxu0 0
      %2948 = vmatpush1.bf16.msra.mxu0 0
      %2949 = vmatprep.subr.bf16.mxu0 0
      %2950 = vmatpush1.bf16.msra.mxu0 0
      %2951 = vmatprep.subr.bf16.mxu0 0
      %2952 = vmatpush1.bf16.msra.mxu0 0
      %2953 = vmatprep.subr.bf16.mxu0 0
      %2954 = vmatpush1.bf16.msra.mxu0 0
      %2955 = vmatprep.subr.bf16.mxu0 0
      %2956 = vmatpush1.bf16.msra.mxu0 0
      %2957 = vmatprep.subr.bf16.mxu0 0
      %2958 = vmatpush1.bf16.msra.mxu0 0
      %2959 = vmatprep.subr.bf16.mxu0 0
      %2960 = vmatpush1.bf16.msra.mxu0 0
      %2961 = vmatprep.subr.bf16.mxu0 0
      %2962 = vmatpush1.bf16.msra.mxu0 0
      %2963 = vmatprep.mubr.bf16.mxu0 0
      %2964 = vmatmul.mubr.bf16.gmra.mrb[0].mxu0 %v2862
      %v2965 = vpop.f32.mrb[0].mxu0
      %v2966 = vadd.f32 0.0, %v2965
      %v2967 = vpop.f32.mrb[0].mxu0
      %v2968 = vpop.f32.mrb[0].mxu0
      %v2969 = vadd.f32 0.0, %v2968
      %v2970 = vpop.f32.mrb[0].mxu0
      %2971 = vmatprep.mubr.bf16.mxu0 0
      %2972 = vmatmul.mubr.bf16.gmra.mrb[0].mxu0 %v2863
      %v2973 = vpop.f32.mrb[0].mxu0
      %v2974 = vadd.f32 0.0, %v2973
      %v2975 = vpop.f32.mrb[0].mxu0
      %v2976 = vpop.f32.mrb[0].mxu0
      %v2977 = vadd.f32 0.0, %v2976
      %v2978 = vpop.f32.mrb[0].mxu0
      %2979 = vmatprep.mubr.bf16.mxu0 0
      %2980 = vmatmul.mubr.bf16.gmra.mrb[0].mxu0 %v2864
      %v2981 = vpop.f32.mrb[0].mxu0
      %v2982 = vadd.f32 0.0, %v2981
      %v2983 = vpop.f32.mrb[0].mxu0
      %v2984 = vpop.f32.mrb[0].mxu0
      %v2985 = vadd.f32 0.0, %v2984
      %v2986 = vpop.f32.mrb[0].mxu0
      %2987 = vmatprep.mubr.bf16.mxu0 0
      %2988 = vmatmul.mubr.bf16.gmra.mrb[0].mxu0 %v2865
      %v2989 = vpop.f32.mrb[0].mxu0
      %v2990 = vadd.f32 0.0, %v2989
      %v2991 = vpop.f32.mrb[0].mxu0
      %v2992 = vpop.f32.mrb[0].mxu0
      %v2993 = vadd.f32 0.0, %v2992
      %v2994 = vpop.f32.mrb[0].mxu0
      %2995 = vdwg.mxu0
      %v2996 = vadd.f32 %v2845, %v2966
      %v2997 = vadd.f32 %v2846, %v2969
      %v2998 = vadd.f32 %v2847, %v2974
      %v2999 = vadd.f32 %v2848, %v2977
      %v3000 = vadd.f32 %v2849, %v2982
      %v3001 = vadd.f32 %v2850, %v2985
      %v3002 = vadd.f32 %v2851, %v2990
      %v3003 = vadd.f32 %v2852, %v2993
      %v3004 = vld [vmem:[%s2853 + $0x12] sm:$0xff]
      %v3005 = vld [vmem:[%s2853 + $0x42] sm:$0xff]
      %v3006 = vld [vmem:[%s2853 + $0x72] sm:$0xff]
      %v3007 = vld [vmem:[%s2853 + $0xa2] sm:$0xff]
      %v3008 = vld [vmem:[%s2853 + $0xd2] sm:$0xff]
      %v3009 = vld [vmem:[%s2853 + $0x102] sm:$0xff]
      %v3010 = vld [vmem:[%s2853 + $0x132] sm:$0xff]
      %v3011 = vld [vmem:[%s2853 + $0x162] sm:$0xff]
      %v3012 = vpack.c.bf16 %v3005, %v3004
      %v3013 = vpack.c.bf16 %v3007, %v3006
      %v3014 = vpack.c.bf16 %v3009, %v3008
      %v3015 = vpack.c.bf16 %v3011, %v3010
      %s3016 = scalar_lea.vmem %s2, 1024
      %v3017 = vld [vmem:[%s3016] sm:$0xf]
      %v3018 = vld [vmem:[%s3016 + $0x4] sm:$0xf]
      %v3019 = vld [vmem:[%s3016 + $0x8] sm:$0xf]
      %v3020 = vld [vmem:[%s3016 + $0xc] sm:$0xf]
      %v3021 = vld [vmem:[%s3016 + $0x10] sm:$0xf]
      %v3022 = vld [vmem:[%s3016 + $0x14] sm:$0xf]
      %v3023 = vld [vmem:[%s3016 + $0x18] sm:$0xf]
      %v3024 = vld [vmem:[%s3016 + $0x1c] sm:$0xf]
      %v3025 = vld [vmem:[%s3016 + $0x20] sm:$0xf]
      %v3026 = vld [vmem:[%s3016 + $0x24] sm:$0xf]
      %v3027 = vld [vmem:[%s3016 + $0x28] sm:$0xf]
      %v3028 = vld [vmem:[%s3016 + $0x2c] sm:$0xf]
      %v3029 = vld [vmem:[%s3016 + $0x30] sm:$0xf]
      %v3030 = vld [vmem:[%s3016 + $0x34] sm:$0xf]
      %v3031 = vld [vmem:[%s3016 + $0x38] sm:$0xf]
      %v3032 = vld [vmem:[%s3016 + $0x3c] sm:$0xf]
      %v3049 = vunpack.c.l.b16 %v3017
      %v3050 = vunpack.c.l.b16 %v3018
      %v3051 = vunpack.c.l.b16 %v3019
      %v3052 = vunpack.c.l.b16 %v3020
      %v3053 = vunpack.c.l.b16 %v3021
      %v3054 = vunpack.c.l.b16 %v3022
      %v3055 = vunpack.c.l.b16 %v3023
      %v3056 = vunpack.c.l.b16 %v3024
      %v3057 = vunpack.c.l.b16 %v3025
      %v3058 = vunpack.c.l.b16 %v3026
      %v3059 = vunpack.c.l.b16 %v3027
      %v3060 = vunpack.c.l.b16 %v3028
      %v3061 = vunpack.c.l.b16 %v3029
      %v3062 = vunpack.c.l.b16 %v3030
      %v3063 = vunpack.c.l.b16 %v3031
      %v3064 = vunpack.c.l.b16 %v3032
      %v3065 = vpack.c.b16 %v3050, %v3049
      %v3066 = vpack.c.b16 %v3052, %v3051
      %v3067 = vpack.c.b16 %v3054, %v3053
      %v3068 = vpack.c.b16 %v3056, %v3055
      %v3069 = vpack.c.b16 %v3058, %v3057
      %v3070 = vpack.c.b16 %v3060, %v3059
      %v3071 = vpack.c.b16 %v3062, %v3061
      %v3072 = vpack.c.b16 %v3064, %v3063
      %3081 = vmatprep.subr.bf16.mxu0 0
      %3082 = vmatpush1.bf16.msra.mxu0 %v3065
      %3083 = vmatprep.subr.bf16.mxu0 0
      %3084 = vmatpush1.bf16.msra.mxu0 %v3066
      %3085 = vmatprep.subr.bf16.mxu0 0
      %3086 = vmatpush1.bf16.msra.mxu0 %v3067
      %3087 = vmatprep.subr.bf16.mxu0 0
      %3088 = vmatpush1.bf16.msra.mxu0 %v3068
      %3089 = vmatprep.subr.bf16.mxu0 0
      %3090 = vmatpush1.bf16.msra.mxu0 %v3069
      %3091 = vmatprep.subr.bf16.mxu0 0
      %3092 = vmatpush1.bf16.msra.mxu0 %v3070
      %3093 = vmatprep.subr.bf16.mxu0 0
      %3094 = vmatpush1.bf16.msra.mxu0 %v3071
      %3095 = vmatprep.subr.bf16.mxu0 0
      %3096 = vmatpush1.bf16.msra.mxu0 %v3072
      %3097 = vmatprep.subr.bf16.mxu0 0
      %3098 = vmatpush1.bf16.msra.mxu0 0
      %3099 = vmatprep.subr.bf16.mxu0 0
      %3100 = vmatpush1.bf16.msra.mxu0 0
      %3101 = vmatprep.subr.bf16.mxu0 0
      %3102 = vmatpush1.bf16.msra.mxu0 0
      %3103 = vmatprep.subr.bf16.mxu0 0
      %3104 = vmatpush1.bf16.msra.mxu0 0
      %3105 = vmatprep.subr.bf16.mxu0 0
      %3106 = vmatpush1.bf16.msra.mxu0 0
      %3107 = vmatprep.subr.bf16.mxu0 0
      %3108 = vmatpush1.bf16.msra.mxu0 0
      %3109 = vmatprep.subr.bf16.mxu0 0
      %3110 = vmatpush1.bf16.msra.mxu0 0
      %3111 = vmatprep.subr.bf16.mxu0 0
      %3112 = vmatpush1.bf16.msra.mxu0 0
      %3113 = vmatprep.mubr.bf16.mxu0 0
      %3114 = vmatmul.mubr.bf16.gmra.mrb[0].mxu0 %v3012
      %v3115 = vpop.f32.mrb[0].mxu0
      %v3116 = vadd.f32 0.0, %v3115
      %v3117 = vpop.f32.mrb[0].mxu0
      %v3118 = vpop.f32.mrb[0].mxu0
      %v3119 = vadd.f32 0.0, %v3118
      %v3120 = vpop.f32.mrb[0].mxu0
      %3121 = vmatprep.mubr.bf16.mxu0 0
      %3122 = vmatmul.mubr.bf16.gmra.mrb[0].mxu0 %v3013
      %v3123 = vpop.f32.mrb[0].mxu0
      %v3124 = vadd.f32 0.0, %v3123
      %v3125 = vpop.f32.mrb[0].mxu0
      %v3126 = vpop.f32.mrb[0].mxu0
      %v3127 = vadd.f32 0.0, %v3126
      %v3128 = vpop.f32.mrb[0].mxu0
      %3129 = vmatprep.mubr.bf16.mxu0 0
      %3130 = vmatmul.mubr.bf16.gmra.mrb[0].mxu0 %v3014
      %v3131 = vpop.f32.mrb[0].mxu0
      %v3132 = vadd.f32 0.0, %v3131
      %v3133 = vpop.f32.mrb[0].mxu0
      %v3134 = vpop.f32.mrb[0].mxu0
      %v3135 = vadd.f32 0.0, %v3134
      %v3136 = vpop.f32.mrb[0].mxu0
      %3137 = vmatprep.mubr.bf16.mxu0 0
      %3138 = vmatmul.mubr.bf16.gmra.mrb[0].mxu0 %v3015
      %v3139 = vpop.f32.mrb[0].mxu0
      %v3140 = vadd.f32 0.0, %v3139
      %v3141 = vpop.f32.mrb[0].mxu0
      %v3142 = vpop.f32.mrb[0].mxu0
      %v3143 = vadd.f32 0.0, %v3142
      %v3144 = vpop.f32.mrb[0].mxu0
      %3145 = vdwg.mxu0
      %v3146 = vadd.f32 %v2996, %v3116
      %v3147 = vadd.f32 %v2997, %v3119
      %v3148 = vadd.f32 %v2998, %v3124
      %v3149 = vadd.f32 %v2999, %v3127
      %v3150 = vadd.f32 %v3000, %v3132
      %v3151 = vadd.f32 %v3001, %v3135
      %v3152 = vadd.f32 %v3002, %v3140
      %v3153 = vadd.f32 %v3003, %v3143
      %v3154 = vld [vmem:[%s2853 + $0x1e] sm:$0xff]
      %v3155 = vld [vmem:[%s2853 + $0x4e] sm:$0xff]
      %v3156 = vld [vmem:[%s2853 + $0x7e] sm:$0xff]
      %v3157 = vld [vmem:[%s2853 + $0xae] sm:$0xff]
      %v3158 = vld [vmem:[%s2853 + $0xde] sm:$0xff]
      %v3159 = vld [vmem:[%s2853 + $0x10e] sm:$0xff]
      %v3160 = vld [vmem:[%s2853 + $0x13e] sm:$0xff]
      %v3161 = vld [vmem:[%s2853 + $0x16e] sm:$0xff]
      %v3162 = vpack.c.bf16 %v3155, %v3154
      %v3163 = vpack.c.bf16 %v3157, %v3156
      %v3164 = vpack.c.bf16 %v3159, %v3158
      %v3165 = vpack.c.bf16 %v3161, %v3160
      %s3166 = scalar_lea.vmem %s2, 1088
      %v3167 = vld [vmem:[%s3166] sm:$0xf]
      %v3168 = vld [vmem:[%s3166 + $0x4] sm:$0xf]
      %v3169 = vld [vmem:[%s3166 + $0x8] sm:$0xf]
      %v3170 = vld [vmem:[%s3166 + $0xc] sm:$0xf]
      %v3171 = vld [vmem:[%s3166 + $0x10] sm:$0xf]
      %v3172 = vld [vmem:[%s3166 + $0x14] sm:$0xf]
      %v3173 = vld [vmem:[%s3166 + $0x18] sm:$0xf]
      %v3174 = vld [vmem:[%s3166 + $0x1c] sm:$0xf]
      %v3175 = vld [vmem:[%s3166 + $0x20] sm:$0xf]
      %v3176 = vld [vmem:[%s3166 + $0x24] sm:$0xf]
      %v3177 = vld [vmem:[%s3166 + $0x28] sm:$0xf]
      %v3178 = vld [vmem:[%s3166 + $0x2c] sm:$0xf]
      %v3179 = vld [vmem:[%s3166 + $0x30] sm:$0xf]
      %v3180 = vld [vmem:[%s3166 + $0x34] sm:$0xf]
      %v3181 = vld [vmem:[%s3166 + $0x38] sm:$0xf]
      %v3182 = vld [vmem:[%s3166 + $0x3c] sm:$0xf]
      %v3199 = vunpack.c.l.b16 %v3167
      %v3200 = vunpack.c.l.b16 %v3168
      %v3201 = vunpack.c.l.b16 %v3169
      %v3202 = vunpack.c.l.b16 %v3170
      %v3203 = vunpack.c.l.b16 %v3171
      %v3204 = vunpack.c.l.b16 %v3172
      %v3205 = vunpack.c.l.b16 %v3173
      %v3206 = vunpack.c.l.b16 %v3174
      %v3207 = vunpack.c.l.b16 %v3175
      %v3208 = vunpack.c.l.b16 %v3176
      %v3209 = vunpack.c.l.b16 %v3177
      %v3210 = vunpack.c.l.b16 %v3178
      %v3211 = vunpack.c.l.b16 %v3179
      %v3212 = vunpack.c.l.b16 %v3180
      %v3213 = vunpack.c.l.b16 %v3181
      %v3214 = vunpack.c.l.b16 %v3182
      %v3215 = vpack.c.b16 %v3200, %v3199
      %v3216 = vpack.c.b16 %v3202, %v3201
      %v3217 = vpack.c.b16 %v3204, %v3203
      %v3218 = vpack.c.b16 %v3206, %v3205
      %v3219 = vpack.c.b16 %v3208, %v3207
      %v3220 = vpack.c.b16 %v3210, %v3209
      %v3221 = vpack.c.b16 %v3212, %v3211
      %v3222 = vpack.c.b16 %v3214, %v3213
      %3231 = vmatprep.subr.bf16.mxu0 0
      %3232 = vmatpush1.bf16.msra.mxu0 %v3215
      %3233 = vmatprep.subr.bf16.mxu0 0
      %3234 = vmatpush1.bf16.msra.mxu0 %v3216
      %3235 = vmatprep.subr.bf16.mxu0 0
      %3236 = vmatpush1.bf16.msra.mxu0 %v3217
      %3237 = vmatprep.subr.bf16.mxu0 0
      %3238 = vmatpush1.bf16.msra.mxu0 %v3218
      %3239 = vmatprep.subr.bf16.mxu0 0
      %3240 = vmatpush1.bf16.msra.mxu0 %v3219
      %3241 = vmatprep.subr.bf16.mxu0 0
      %3242 = vmatpush1.bf16.msra.mxu0 %v3220
      %3243 = vmatprep.subr.bf16.mxu0 0
      %3244 = vmatpush1.bf16.msra.mxu0 %v3221
      %3245 = vmatprep.subr.bf16.mxu0 0
      %3246 = vmatpush1.bf16.msra.mxu0 %v3222
      %3247 = vmatprep.subr.bf16.mxu0 0
      %3248 = vmatpush1.bf16.msra.mxu0 0
      %3249 = vmatprep.subr.bf16.mxu0 0
      %3250 = vmatpush1.bf16.msra.mxu0 0
      %3251 = vmatprep.subr.bf16.mxu0 0
      %3252 = vmatpush1.bf16.msra.mxu0 0
      %3253 = vmatprep.subr.bf16.mxu0 0
      %3254 = vmatpush1.bf16.msra.mxu0 0
      %3255 = vmatprep.subr.bf16.mxu0 0
      %3256 = vmatpush1.bf16.msra.mxu0 0
      %3257 = vmatprep.subr.bf16.mxu0 0
      %3258 = vmatpush1.bf16.msra.mxu0 0
      %3259 = vmatprep.subr.bf16.mxu0 0
      %3260 = vmatpush1.bf16.msra.mxu0 0
      %3261 = vmatprep.subr.bf16.mxu0 0
      %3262 = vmatpush1.bf16.msra.mxu0 0
      %3263 = vmatprep.mubr.bf16.mxu0 0
      %3264 = vmatmul.mubr.bf16.gmra.mrb[0].mxu0 %v3162
      %v3265 = vpop.f32.mrb[0].mxu0
      %v3266 = vadd.f32 0.0, %v3265
      %v3267 = vpop.f32.mrb[0].mxu0
      %v3268 = vpop.f32.mrb[0].mxu0
      %v3269 = vadd.f32 0.0, %v3268
      %v3270 = vpop.f32.mrb[0].mxu0
      %3271 = vmatprep.mubr.bf16.mxu0 0
      %3272 = vmatmul.mubr.bf16.gmra.mrb[0].mxu0 %v3163
      %v3273 = vpop.f32.mrb[0].mxu0
      %v3274 = vadd.f32 0.0, %v3273
      %v3275 = vpop.f32.mrb[0].mxu0
      %v3276 = vpop.f32.mrb[0].mxu0
      %v3277 = vadd.f32 0.0, %v3276
      %v3278 = vpop.f32.mrb[0].mxu0
      %3279 = vmatprep.mubr.bf16.mxu0 0
      %3280 = vmatmul.mubr.bf16.gmra.mrb[0].mxu0 %v3164
      %v3281 = vpop.f32.mrb[0].mxu0
      %v3282 = vadd.f32 0.0, %v3281
      %v3283 = vpop.f32.mrb[0].mxu0
      %v3284 = vpop.f32.mrb[0].mxu0
      %v3285 = vadd.f32 0.0, %v3284
      %v3286 = vpop.f32.mrb[0].mxu0
      %3287 = vmatprep.mubr.bf16.mxu0 0
      %3288 = vmatmul.mubr.bf16.gmra.mrb[0].mxu0 %v3165
      %v3289 = vpop.f32.mrb[0].mxu0
      %v3290 = vadd.f32 0.0, %v3289
      %v3291 = vpop.f32.mrb[0].mxu0
      %v3292 = vpop.f32.mrb[0].mxu0
      %v3293 = vadd.f32 0.0, %v3292
      %v3294 = vpop.f32.mrb[0].mxu0
      %3295 = vdwg.mxu0
      %v3296 = vadd.f32 %v3146, %v3266
      %v3297 = vadd.f32 %v3147, %v3269
      %v3298 = vadd.f32 %v3148, %v3274
      %v3299 = vadd.f32 %v3149, %v3277
      %v3300 = vadd.f32 %v3150, %v3282
      %v3301 = vadd.f32 %v3151, %v3285
      %v3302 = vadd.f32 %v3152, %v3290
      %v3303 = vadd.f32 %v3153, %v3293
      %v3304 = vld [vmem:[%s3 + $0x2] sm:$0x1]
      %v3305 = vlaneseq
      %v3306 = vshrl.u32 %v3305, 7
      %v3307 = vsub.s32 0, %v3306
      %v3308 = vrot.slane %v3304, %v3307
      %v3309 = vadd.f32 %v3296, %v3308
      %v3310 = vadd.f32 %v3297, %v3308
      %v3311 = vadd.f32 %v3298, %v3308
      %v3312 = vadd.f32 %v3299, %v3308
      %v3313 = vadd.f32 %v3300, %v3308
      %v3314 = vadd.f32 %v3301, %v3308
      %v3315 = vadd.f32 %v3302, %v3308
      %v3316 = vadd.f32 %v3303, %v3308
      %v3317 = vmax.f32 %v3309, 0.0
      %v3318 = vmax.f32 %v3310, 0.0
      %v3319 = vmax.f32 %v3311, 0.0
      %v3320 = vmax.f32 %v3312, 0.0
      %v3321 = vmax.f32 %v3313, 0.0
      %v3322 = vmax.f32 %v3314, 0.0
      %v3323 = vmax.f32 %v3315, 0.0
      %v3324 = vmax.f32 %v3316, 0.0
      %v3325 = vpack.c.bf16 %v3318, %v3317
      %v3326 = vpack.c.bf16 %v3320, %v3319
      %v3327 = vpack.c.bf16 %v3322, %v3321
      %v3328 = vpack.c.bf16 %v3324, %v3323
      %s3329 = scalar_lea.vmem %s4, 64
      %v3330 = vld [vmem:[%s3329] sm:$0xf]
      %v3331 = vld [vmem:[%s3329 + $0x4] sm:$0xf]
      %v3332 = vld [vmem:[%s3329 + $0x8] sm:$0xf]
      %v3333 = vld [vmem:[%s3329 + $0xc] sm:$0xf]
      %v3334 = vld [vmem:[%s3329 + $0x10] sm:$0xf]
      %v3335 = vld [vmem:[%s3329 + $0x14] sm:$0xf]
      %v3336 = vld [vmem:[%s3329 + $0x18] sm:$0xf]
      %v3337 = vld [vmem:[%s3329 + $0x1c] sm:$0xf]
      %v3346 = vunpack.c.l.b16 %v3330
      %v3347 = vunpack.c.l.b16 %v3331
      %v3348 = vunpack.c.l.b16 %v3332
      %v3349 = vunpack.c.l.b16 %v3333
      %v3350 = vunpack.c.l.b16 %v3334
      %v3351 = vunpack.c.l.b16 %v3335
      %v3352 = vunpack.c.l.b16 %v3336
      %v3353 = vunpack.c.l.b16 %v3337
      %v3354 = vpack.c.b16 %v3347, %v3346
      %v3355 = vpack.c.b16 %v3349, %v3348
      %v3356 = vpack.c.b16 %v3351, %v3350
      %v3357 = vpack.c.b16 %v3353, %v3352
      %v3363 = vsel %vm1801, %v3325, 0
      %v3366 = vsel %vm1801, %v3326, 0
      %v3369 = vsel %vm1801, %v3327, 0
      %v3372 = vsel %vm1801, %v3328, 0
      %3374 = vmatprep.subr.bf16.mxu0 0
      %3375 = vmatpush1.bf16.msra.mxu0 %v3354
      %3376 = vmatprep.subr.bf16.mxu0 0
      %3377 = vmatpush1.bf16.msra.mxu0 %v3355
      %3378 = vmatprep.subr.bf16.mxu0 0
      %3379 = vmatpush1.bf16.msra.mxu0 %v3356
      %3380 = vmatprep.subr.bf16.mxu0 0
      %3381 = vmatpush1.bf16.msra.mxu0 %v3357
      %3382 = vmatprep.subr.bf16.mxu0 0
      %3383 = vmatpush1.bf16.msra.mxu0 0
      %3384 = vmatprep.subr.bf16.mxu0 0
      %3385 = vmatpush1.bf16.msra.mxu0 0
      %3386 = vmatprep.subr.bf16.mxu0 0
      %3387 = vmatpush1.bf16.msra.mxu0 0
      %3388 = vmatprep.subr.bf16.mxu0 0
      %3389 = vmatpush1.bf16.msra.mxu0 0
      %3390 = vmatprep.subr.bf16.mxu0 0
      %3391 = vmatpush1.bf16.msra.mxu0 0
      %3392 = vmatprep.subr.bf16.mxu0 0
      %3393 = vmatpush1.bf16.msra.mxu0 0
      %3394 = vmatprep.subr.bf16.mxu0 0
      %3395 = vmatpush1.bf16.msra.mxu0 0
      %3396 = vmatprep.subr.bf16.mxu0 0
      %3397 = vmatpush1.bf16.msra.mxu0 0
      %3398 = vmatprep.subr.bf16.mxu0 0
      %3399 = vmatpush1.bf16.msra.mxu0 0
      %3400 = vmatprep.subr.bf16.mxu0 0
      %3401 = vmatpush1.bf16.msra.mxu0 0
      %3402 = vmatprep.subr.bf16.mxu0 0
      %3403 = vmatpush1.bf16.msra.mxu0 0
      %3404 = vmatprep.subr.bf16.mxu0 0
      %3405 = vmatpush1.bf16.msra.mxu0 0
      %3406 = vmatprep.mubr.bf16.mxu0 0
      %3407 = vmatmul.mubr.bf16.gmra.mrb[0].mxu0 %v3363
      %v3408 = vpop.f32.mrb[0].mxu0
      %v3409 = vadd.f32 0.0, %v3408
      %v3410 = vpop.f32.mrb[0].mxu0
      %v3411 = vpop.f32.mrb[0].mxu0
      %v3412 = vadd.f32 0.0, %v3411
      %v3413 = vpop.f32.mrb[0].mxu0
      %3414 = vmatprep.mubr.bf16.mxu0 0
      %3415 = vmatmul.mubr.bf16.gmra.mrb[0].mxu0 %v3366
      %v3416 = vpop.f32.mrb[0].mxu0
      %v3417 = vadd.f32 0.0, %v3416
      %v3418 = vpop.f32.mrb[0].mxu0
      %v3419 = vpop.f32.mrb[0].mxu0
      %v3420 = vadd.f32 0.0, %v3419
      %v3421 = vpop.f32.mrb[0].mxu0
      %3422 = vmatprep.mubr.bf16.mxu0 0
      %3423 = vmatmul.mubr.bf16.gmra.mrb[0].mxu0 %v3369
      %v3424 = vpop.f32.mrb[0].mxu0
      %v3425 = vadd.f32 0.0, %v3424
      %v3426 = vpop.f32.mrb[0].mxu0
      %v3427 = vpop.f32.mrb[0].mxu0
      %v3428 = vadd.f32 0.0, %v3427
      %v3429 = vpop.f32.mrb[0].mxu0
      %3430 = vmatprep.mubr.bf16.mxu0 0
      %3431 = vmatmul.mubr.bf16.gmra.mrb[0].mxu0 %v3372
      %v3432 = vpop.f32.mrb[0].mxu0
      %v3433 = vadd.f32 0.0, %v3432
      %v3434 = vpop.f32.mrb[0].mxu0
      %v3435 = vpop.f32.mrb[0].mxu0
      %v3436 = vadd.f32 0.0, %v3435
      %v3437 = vpop.f32.mrb[0].mxu0
      %3438 = vdwg.mxu0
      %v3439 = vadd.f32 %v1950, %v3409
      %v3440 = vadd.f32 %v1953, %v3412
      %v3441 = vadd.f32 %v1958, %v3417
      %v3442 = vadd.f32 %v1961, %v3420
      %v3443 = vadd.f32 %v1966, %v3425
      %v3444 = vadd.f32 %v1969, %v3428
      %v3445 = vadd.f32 %v1974, %v3433
      %v3446 = vadd.f32 %v1977, %v3436
      %v3447 = vld [vmem:[%s246] sm:$0xff]
      %v3448 = vld [vmem:[%s246 + $0x30] sm:$0xff]
      %v3449 = vld [vmem:[%s246 + $0x60] sm:$0xff]
      %v3450 = vld [vmem:[%s246 + $0x90] sm:$0xff]
      %v3451 = vld [vmem:[%s246 + $0xc0] sm:$0xff]
      %v3452 = vld [vmem:[%s246 + $0xf0] sm:$0xff]
      %v3453 = vld [vmem:[%s246 + $0x120] sm:$0xff]
      %v3454 = vld [vmem:[%s246 + $0x150] sm:$0xff]
      %v3455 = vpack.c.bf16 %v3448, %v3447
      %v3456 = vpack.c.bf16 %v3450, %v3449
      %v3457 = vpack.c.bf16 %v3452, %v3451
      %v3458 = vpack.c.bf16 %v3454, %v3453
      %s3459 = scalar_lea.vmem %s2, 1152
      %v3460 = vld [vmem:[%s3459] sm:$0xf]
      %v3461 = vld [vmem:[%s3459 + $0x4] sm:$0xf]
      %v3462 = vld [vmem:[%s3459 + $0x8] sm:$0xf]
      %v3463 = vld [vmem:[%s3459 + $0xc] sm:$0xf]
      %v3464 = vld [vmem:[%s3459 + $0x10] sm:$0xf]
      %v3465 = vld [vmem:[%s3459 + $0x14] sm:$0xf]
      %v3466 = vld [vmem:[%s3459 + $0x18] sm:$0xf]
      %v3467 = vld [vmem:[%s3459 + $0x1c] sm:$0xf]
      %v3468 = vld [vmem:[%s3459 + $0x20] sm:$0xf]
      %v3469 = vld [vmem:[%s3459 + $0x24] sm:$0xf]
      %v3470 = vld [vmem:[%s3459 + $0x28] sm:$0xf]
      %v3471 = vld [vmem:[%s3459 + $0x2c] sm:$0xf]
      %v3472 = vld [vmem:[%s3459 + $0x30] sm:$0xf]
      %v3473 = vld [vmem:[%s3459 + $0x34] sm:$0xf]
      %v3474 = vld [vmem:[%s3459 + $0x38] sm:$0xf]
      %v3475 = vld [vmem:[%s3459 + $0x3c] sm:$0xf]
      %v3476 = vld [vmem:[%s246 + $0x12] sm:$0xff]
      %v3477 = vld [vmem:[%s246 + $0x42] sm:$0xff]
      %v3478 = vld [vmem:[%s246 + $0x72] sm:$0xff]
      %v3479 = vld [vmem:[%s246 + $0xa2] sm:$0xff]
      %v3480 = vld [vmem:[%s246 + $0xd2] sm:$0xff]
      %v3481 = vld [vmem:[%s246 + $0x102] sm:$0xff]
      %v3482 = vld [vmem:[%s246 + $0x132] sm:$0xff]
      %v3483 = vld [vmem:[%s246 + $0x162] sm:$0xff]
      %v3484 = vpack.c.bf16 %v3477, %v3476
      %v3485 = vpack.c.bf16 %v3479, %v3478
      %v3486 = vpack.c.bf16 %v3481, %v3480
      %v3487 = vpack.c.bf16 %v3483, %v3482
      %s3488 = scalar_lea.vmem %s2, 1216
      %v3489 = vld [vmem:[%s3488] sm:$0xf]
      %v3490 = vld [vmem:[%s3488 + $0x4] sm:$0xf]
      %v3491 = vld [vmem:[%s3488 + $0x8] sm:$0xf]
      %v3492 = vld [vmem:[%s3488 + $0xc] sm:$0xf]
      %v3493 = vld [vmem:[%s3488 + $0x10] sm:$0xf]
      %v3494 = vld [vmem:[%s3488 + $0x14] sm:$0xf]
      %v3495 = vld [vmem:[%s3488 + $0x18] sm:$0xf]
      %v3496 = vld [vmem:[%s3488 + $0x1c] sm:$0xf]
      %v3497 = vld [vmem:[%s3488 + $0x20] sm:$0xf]
      %v3498 = vld [vmem:[%s3488 + $0x24] sm:$0xf]
      %v3499 = vld [vmem:[%s3488 + $0x28] sm:$0xf]
      %v3500 = vld [vmem:[%s3488 + $0x2c] sm:$0xf]
      %v3501 = vld [vmem:[%s3488 + $0x30] sm:$0xf]
      %v3502 = vld [vmem:[%s3488 + $0x34] sm:$0xf]
      %v3503 = vld [vmem:[%s3488 + $0x38] sm:$0xf]
      %v3504 = vld [vmem:[%s3488 + $0x3c] sm:$0xf]
      %v3521 = vunpack.c.l.b16 %v3489
      %v3522 = vunpack.c.l.b16 %v3490
      %v3523 = vunpack.c.l.b16 %v3491
      %v3524 = vunpack.c.l.b16 %v3492
      %v3525 = vunpack.c.l.b16 %v3493
      %v3526 = vunpack.c.l.b16 %v3494
      %v3527 = vunpack.c.l.b16 %v3495
      %v3528 = vunpack.c.l.b16 %v3496
      %v3529 = vunpack.c.l.b16 %v3497
      %v3530 = vunpack.c.l.b16 %v3498
      %v3531 = vunpack.c.l.b16 %v3499
      %v3532 = vunpack.c.l.b16 %v3500
      %v3533 = vunpack.c.l.b16 %v3501
      %v3534 = vunpack.c.l.b16 %v3502
      %v3535 = vunpack.c.l.b16 %v3503
      %v3536 = vunpack.c.l.b16 %v3504
      %v3537 = vpack.c.b16 %v3522, %v3521
      %v3538 = vpack.c.b16 %v3524, %v3523
      %v3539 = vpack.c.b16 %v3526, %v3525
      %v3540 = vpack.c.b16 %v3528, %v3527
      %v3541 = vpack.c.b16 %v3530, %v3529
      %v3542 = vpack.c.b16 %v3532, %v3531
      %v3543 = vpack.c.b16 %v3534, %v3533
      %v3544 = vpack.c.b16 %v3536, %v3535
      %3553 = vmatprep.subr.bf16.mxu0 0
      %3554 = vmatpush1.bf16.msra.mxu0 %v3537
      %3555 = vmatprep.subr.bf16.mxu0 0
      %3556 = vmatpush1.bf16.msra.mxu0 %v3538
      %3557 = vmatprep.subr.bf16.mxu0 0
      %3558 = vmatpush1.bf16.msra.mxu0 %v3539
      %3559 = vmatprep.subr.bf16.mxu0 0
      %3560 = vmatpush1.bf16.msra.mxu0 %v3540
      %3561 = vmatprep.subr.bf16.mxu0 0
      %3562 = vmatpush1.bf16.msra.mxu0 %v3541
      %3563 = vmatprep.subr.bf16.mxu0 0
      %3564 = vmatpush1.bf16.msra.mxu0 %v3542
      %3565 = vmatprep.subr.bf16.mxu0 0
      %3566 = vmatpush1.bf16.msra.mxu0 %v3543
      %3567 = vmatprep.subr.bf16.mxu0 0
      %3568 = vmatpush1.bf16.msra.mxu0 %v3544
      %3569 = vmatprep.subr.bf16.mxu0 0
      %3570 = vmatpush1.bf16.msra.mxu0 0
      %3571 = vmatprep.subr.bf16.mxu0 0
      %3572 = vmatpush1.bf16.msra.mxu0 0
      %3573 = vmatprep.subr.bf16.mxu0 0
      %3574 = vmatpush1.bf16.msra.mxu0 0
      %3575 = vmatprep.subr.bf16.mxu0 0
      %3576 = vmatpush1.bf16.msra.mxu0 0
      %3577 = vmatprep.subr.bf16.mxu0 0
      %3578 = vmatpush1.bf16.msra.mxu0 0
      %3579 = vmatprep.subr.bf16.mxu0 0
      %3580 = vmatpush1.bf16.msra.mxu0 0
      %3581 = vmatprep.subr.bf16.mxu0 0
      %3582 = vmatpush1.bf16.msra.mxu0 0
      %3583 = vmatprep.subr.bf16.mxu0 0
      %3584 = vmatpush1.bf16.msra.mxu0 0
      %3585 = vmatprep.mubr.bf16.mxu0 0
      %3586 = vmatmul.mubr.bf16.gmra.mrb[0].mxu0 %v3484
      %v3587 = vpop.f32.mrb[0].mxu0
      %v3588 = vadd.f32 0.0, %v3587
      %v3589 = vpop.f32.mrb[0].mxu0
      %v3590 = vpop.f32.mrb[0].mxu0
      %v3591 = vadd.f32 0.0, %v3590
      %v3592 = vpop.f32.mrb[0].mxu0
      %3593 = vmatprep.mubr.bf16.mxu0 0
      %3594 = vmatmul.mubr.bf16.gmra.mrb[0].mxu0 %v3485
      %v3595 = vpop.f32.mrb[0].mxu0
      %v3596 = vadd.f32 0.0, %v3595
      %v3597 = vpop.f32.mrb[0].mxu0
      %v3598 = vpop.f32.mrb[0].mxu0
      %v3599 = vadd.f32 0.0, %v3598
      %v3600 = vpop.f32.mrb[0].mxu0
      %3601 = vmatprep.mubr.bf16.mxu0 0
      %3602 = vmatmul.mubr.bf16.gmra.mrb[0].mxu0 %v3486
      %v3603 = vpop.f32.mrb[0].mxu0
      %v3604 = vadd.f32 0.0, %v3603
      %v3605 = vpop.f32.mrb[0].mxu0
      %v3606 = vpop.f32.mrb[0].mxu0
      %v3607 = vadd.f32 0.0, %v3606
      %v3608 = vpop.f32.mrb[0].mxu0
      %3609 = vmatprep.mubr.bf16.mxu0 0
      %3610 = vmatmul.mubr.bf16.gmra.mrb[0].mxu0 %v3487
      %v3611 = vpop.f32.mrb[0].mxu0
      %v3612 = vadd.f32 0.0, %v3611
      %v3613 = vpop.f32.mrb[0].mxu0
      %v3614 = vpop.f32.mrb[0].mxu0
      %v3615 = vadd.f32 0.0, %v3614
      %v3616 = vpop.f32.mrb[0].mxu0
      %3617 = vdwg.mxu0
      %v3634 = vunpack.c.l.b16 %v3460
      %v3635 = vunpack.c.l.b16 %v3461
      %v3636 = vunpack.c.l.b16 %v3462
      %v3637 = vunpack.c.l.b16 %v3463
      %v3638 = vunpack.c.l.b16 %v3464
      %v3639 = vunpack.c.l.b16 %v3465
      %v3640 = vunpack.c.l.b16 %v3466
      %v3641 = vunpack.c.l.b16 %v3467
      %v3642 = vunpack.c.l.b16 %v3468
      %v3643 = vunpack.c.l.b16 %v3469
      %v3644 = vunpack.c.l.b16 %v3470
      %v3645 = vunpack.c.l.b16 %v3471
      %v3646 = vunpack.c.l.b16 %v3472
      %v3647 = vunpack.c.l.b16 %v3473
      %v3648 = vunpack.c.l.b16 %v3474
      %v3649 = vunpack.c.l.b16 %v3475
      %v3650 = vpack.c.b16 %v3635, %v3634
      %v3651 = vpack.c.b16 %v3637, %v3636
      %v3652 = vpack.c.b16 %v3639, %v3638
      %v3653 = vpack.c.b16 %v3641, %v3640
      %v3654 = vpack.c.b16 %v3643, %v3642
      %v3655 = vpack.c.b16 %v3645, %v3644
      %v3656 = vpack.c.b16 %v3647, %v3646
      %v3657 = vpack.c.b16 %v3649, %v3648
      %3666 = vmatprep.subr.bf16.mxu0 0
      %3667 = vmatpush1.bf16.msra.mxu0 %v3650
      %3668 = vmatprep.subr.bf16.mxu0 0
      %3669 = vmatpush1.bf16.msra.mxu0 %v3651
      %3670 = vmatprep.subr.bf16.mxu0 0
      %3671 = vmatpush1.bf16.msra.mxu0 %v3652
      %3672 = vmatprep.subr.bf16.mxu0 0
      %3673 = vmatpush1.bf16.msra.mxu0 %v3653
      %3674 = vmatprep.subr.bf16.mxu0 0
      %3675 = vmatpush1.bf16.msra.mxu0 %v3654
      %3676 = vmatprep.subr.bf16.mxu0 0
      %3677 = vmatpush1.bf16.msra.mxu0 %v3655
      %3678 = vmatprep.subr.bf16.mxu0 0
      %3679 = vmatpush1.bf16.msra.mxu0 %v3656
      %3680 = vmatprep.subr.bf16.mxu0 0
      %3681 = vmatpush1.bf16.msra.mxu0 %v3657
      %3682 = vmatprep.subr.bf16.mxu0 0
      %3683 = vmatpush1.bf16.msra.mxu0 0
      %3684 = vmatprep.subr.bf16.mxu0 0
      %3685 = vmatpush1.bf16.msra.mxu0 0
      %3686 = vmatprep.subr.bf16.mxu0 0
      %3687 = vmatpush1.bf16.msra.mxu0 0
      %3688 = vmatprep.subr.bf16.mxu0 0
      %3689 = vmatpush1.bf16.msra.mxu0 0
      %3690 = vmatprep.subr.bf16.mxu0 0
      %3691 = vmatpush1.bf16.msra.mxu0 0
      %3692 = vmatprep.subr.bf16.mxu0 0
      %3693 = vmatpush1.bf16.msra.mxu0 0
      %3694 = vmatprep.subr.bf16.mxu0 0
      %3695 = vmatpush1.bf16.msra.mxu0 0
      %3696 = vmatprep.subr.bf16.mxu0 0
      %3697 = vmatpush1.bf16.msra.mxu0 0
      %3698 = vmatprep.mubr.bf16.mxu0 0
      %3699 = vmatmul.mubr.bf16.gmra.mrb[0].mxu0 %v3455
      %v3700 = vpop.f32.mrb[0].mxu0
      %v3701 = vadd.f32 %v3588, %v3700
      %v3702 = vpop.f32.mrb[0].mxu0
      %v3703 = vpop.f32.mrb[0].mxu0
      %v3704 = vadd.f32 %v3591, %v3703
      %v3705 = vpop.f32.mrb[0].mxu0
      %3706 = vmatprep.mubr.bf16.mxu0 0
      %3707 = vmatmul.mubr.bf16.gmra.mrb[0].mxu0 %v3456
      %v3708 = vpop.f32.mrb[0].mxu0
      %v3709 = vadd.f32 %v3596, %v3708
      %v3710 = vpop.f32.mrb[0].mxu0
      %v3711 = vpop.f32.mrb[0].mxu0
      %v3712 = vadd.f32 %v3599, %v3711
      %v3713 = vpop.f32.mrb[0].mxu0
      %3714 = vmatprep.mubr.bf16.mxu0 0
      %3715 = vmatmul.mubr.bf16.gmra.mrb[0].mxu0 %v3457
      %v3716 = vpop.f32.mrb[0].mxu0
      %v3717 = vadd.f32 %v3604, %v3716
      %v3718 = vpop.f32.mrb[0].mxu0
      %v3719 = vpop.f32.mrb[0].mxu0
      %v3720 = vadd.f32 %v3607, %v3719
      %v3721 = vpop.f32.mrb[0].mxu0
      %3722 = vmatprep.mubr.bf16.mxu0 0
      %3723 = vmatmul.mubr.bf16.gmra.mrb[0].mxu0 %v3458
      %v3724 = vpop.f32.mrb[0].mxu0
      %v3725 = vadd.f32 %v3612, %v3724
      %v3726 = vpop.f32.mrb[0].mxu0
      %v3727 = vpop.f32.mrb[0].mxu0
      %v3728 = vadd.f32 %v3615, %v3727
      %v3729 = vpop.f32.mrb[0].mxu0
      %3730 = vdwg.mxu0
      %v3731 = vld [vmem:[%s246 + $0x24] sm:$0xff]
      %v3732 = vld [vmem:[%s246 + $0x54] sm:$0xff]
      %v3733 = vld [vmem:[%s246 + $0x84] sm:$0xff]
      %v3734 = vld [vmem:[%s246 + $0xb4] sm:$0xff]
      %v3735 = vld [vmem:[%s246 + $0xe4] sm:$0xff]
      %v3736 = vld [vmem:[%s246 + $0x114] sm:$0xff]
      %v3737 = vld [vmem:[%s246 + $0x144] sm:$0xff]
      %v3738 = vld [vmem:[%s246 + $0x174] sm:$0xff]
      %v3739 = vpack.c.bf16 %v3732, %v3731
      %v3740 = vpack.c.bf16 %v3734, %v3733
      %v3741 = vpack.c.bf16 %v3736, %v3735
      %v3742 = vpack.c.bf16 %v3738, %v3737
      %s3743 = scalar_lea.vmem %s2, 1280
      %v3744 = vld [vmem:[%s3743] sm:$0xf]
      %v3745 = vld [vmem:[%s3743 + $0x4] sm:$0xf]
      %v3746 = vld [vmem:[%s3743 + $0x8] sm:$0xf]
      %v3747 = vld [vmem:[%s3743 + $0xc] sm:$0xf]
      %v3748 = vld [vmem:[%s3743 + $0x10] sm:$0xf]
      %v3749 = vld [vmem:[%s3743 + $0x14] sm:$0xf]
      %v3750 = vld [vmem:[%s3743 + $0x18] sm:$0xf]
      %v3751 = vld [vmem:[%s3743 + $0x1c] sm:$0xf]
      %v3752 = vld [vmem:[%s3743 + $0x20] sm:$0xf]
      %v3753 = vld [vmem:[%s3743 + $0x24] sm:$0xf]
      %v3754 = vld [vmem:[%s3743 + $0x28] sm:$0xf]
      %v3755 = vld [vmem:[%s3743 + $0x2c] sm:$0xf]
      %v3756 = vld [vmem:[%s3743 + $0x30] sm:$0xf]
      %v3757 = vld [vmem:[%s3743 + $0x34] sm:$0xf]
      %v3758 = vld [vmem:[%s3743 + $0x38] sm:$0xf]
      %v3759 = vld [vmem:[%s3743 + $0x3c] sm:$0xf]
      %v3776 = vunpack.c.l.b16 %v3744
      %v3777 = vunpack.c.l.b16 %v3745
      %v3778 = vunpack.c.l.b16 %v3746
      %v3779 = vunpack.c.l.b16 %v3747
      %v3780 = vunpack.c.l.b16 %v3748
      %v3781 = vunpack.c.l.b16 %v3749
      %v3782 = vunpack.c.l.b16 %v3750
      %v3783 = vunpack.c.l.b16 %v3751
      %v3784 = vunpack.c.l.b16 %v3752
      %v3785 = vunpack.c.l.b16 %v3753
      %v3786 = vunpack.c.l.b16 %v3754
      %v3787 = vunpack.c.l.b16 %v3755
      %v3788 = vunpack.c.l.b16 %v3756
      %v3789 = vunpack.c.l.b16 %v3757
      %v3790 = vunpack.c.l.b16 %v3758
      %v3791 = vunpack.c.l.b16 %v3759
      %v3792 = vpack.c.b16 %v3777, %v3776
      %v3793 = vpack.c.b16 %v3779, %v3778
      %v3794 = vpack.c.b16 %v3781, %v3780
      %v3795 = vpack.c.b16 %v3783, %v3782
      %v3796 = vpack.c.b16 %v3785, %v3784
      %v3797 = vpack.c.b16 %v3787, %v3786
      %v3798 = vpack.c.b16 %v3789, %v3788
      %v3799 = vpack.c.b16 %v3791, %v3790
      %3808 = vmatprep.subr.bf16.mxu0 0
      %3809 = vmatpush1.bf16.msra.mxu0 %v3792
      %3810 = vmatprep.subr.bf16.mxu0 0
      %3811 = vmatpush1.bf16.msra.mxu0 %v3793
      %3812 = vmatprep.subr.bf16.mxu0 0
      %3813 = vmatpush1.bf16.msra.mxu0 %v3794
      %3814 = vmatprep.subr.bf16.mxu0 0
      %3815 = vmatpush1.bf16.msra.mxu0 %v3795
      %3816 = vmatprep.subr.bf16.mxu0 0
      %3817 = vmatpush1.bf16.msra.mxu0 %v3796
      %3818 = vmatprep.subr.bf16.mxu0 0
      %3819 = vmatpush1.bf16.msra.mxu0 %v3797
      %3820 = vmatprep.subr.bf16.mxu0 0
      %3821 = vmatpush1.bf16.msra.mxu0 %v3798
      %3822 = vmatprep.subr.bf16.mxu0 0
      %3823 = vmatpush1.bf16.msra.mxu0 %v3799
      %3824 = vmatprep.subr.bf16.mxu0 0
      %3825 = vmatpush1.bf16.msra.mxu0 0
      %3826 = vmatprep.subr.bf16.mxu0 0
      %3827 = vmatpush1.bf16.msra.mxu0 0
      %3828 = vmatprep.subr.bf16.mxu0 0
      %3829 = vmatpush1.bf16.msra.mxu0 0
      %3830 = vmatprep.subr.bf16.mxu0 0
      %3831 = vmatpush1.bf16.msra.mxu0 0
      %3832 = vmatprep.subr.bf16.mxu0 0
      %3833 = vmatpush1.bf16.msra.mxu0 0
      %3834 = vmatprep.subr.bf16.mxu0 0
      %3835 = vmatpush1.bf16.msra.mxu0 0
      %3836 = vmatprep.subr.bf16.mxu0 0
      %3837 = vmatpush1.bf16.msra.mxu0 0
      %3838 = vmatprep.subr.bf16.mxu0 0
      %3839 = vmatpush1.bf16.msra.mxu0 0
      %3840 = vmatprep.mubr.bf16.mxu0 0
      %3841 = vmatmul.mubr.bf16.gmra.mrb[0].mxu0 %v3739
      %v3842 = vpop.f32.mrb[0].mxu0
      %v3843 = vadd.f32 0.0, %v3842
      %v3844 = vpop.f32.mrb[0].mxu0
      %v3845 = vpop.f32.mrb[0].mxu0
      %v3846 = vadd.f32 0.0, %v3845
      %v3847 = vpop.f32.mrb[0].mxu0
      %3848 = vmatprep.mubr.bf16.mxu0 0
      %3849 = vmatmul.mubr.bf16.gmra.mrb[0].mxu0 %v3740
      %v3850 = vpop.f32.mrb[0].mxu0
      %v3851 = vadd.f32 0.0, %v3850
      %v3852 = vpop.f32.mrb[0].mxu0
      %v3853 = vpop.f32.mrb[0].mxu0
      %v3854 = vadd.f32 0.0, %v3853
      %v3855 = vpop.f32.mrb[0].mxu0
      %3856 = vmatprep.mubr.bf16.mxu0 0
      %3857 = vmatmul.mubr.bf16.gmra.mrb[0].mxu0 %v3741
      %v3858 = vpop.f32.mrb[0].mxu0
      %v3859 = vadd.f32 0.0, %v3858
      %v3860 = vpop.f32.mrb[0].mxu0
      %v3861 = vpop.f32.mrb[0].mxu0
      %v3862 = vadd.f32 0.0, %v3861
      %v3863 = vpop.f32.mrb[0].mxu0
      %3864 = vmatprep.mubr.bf16.mxu0 0
      %3865 = vmatmul.mubr.bf16.gmra.mrb[0].mxu0 %v3742
      %v3866 = vpop.f32.mrb[0].mxu0
      %v3867 = vadd.f32 0.0, %v3866
      %v3868 = vpop.f32.mrb[0].mxu0
      %v3869 = vpop.f32.mrb[0].mxu0
      %v3870 = vadd.f32 0.0, %v3869
      %v3871 = vpop.f32.mrb[0].mxu0
      %3872 = vdwg.mxu0
      %v3873 = vadd.f32 %v3701, %v3843
      %v3874 = vadd.f32 %v3704, %v3846
      %v3875 = vadd.f32 %v3709, %v3851
      %v3876 = vadd.f32 %v3712, %v3854
      %v3877 = vadd.f32 %v3717, %v3859
      %v3878 = vadd.f32 %v3720, %v3862
      %v3879 = vadd.f32 %v3725, %v3867
      %v3880 = vadd.f32 %v3728, %v3870
      %v3881 = vld [vmem:[%s253] sm:$0xff]
      %v3882 = vld [vmem:[%s253 + $0x30] sm:$0xff]
      %v3883 = vld [vmem:[%s253 + $0x60] sm:$0xff]
      %v3884 = vld [vmem:[%s253 + $0x90] sm:$0xff]
      %v3885 = vld [vmem:[%s253 + $0xc0] sm:$0xff]
      %v3886 = vld [vmem:[%s253 + $0xf0] sm:$0xff]
      %v3887 = vld [vmem:[%s253 + $0x120] sm:$0xff]
      %v3888 = vld [vmem:[%s253 + $0x150] sm:$0xff]
      %v3889 = vpack.c.bf16 %v3882, %v3881
      %v3890 = vpack.c.bf16 %v3884, %v3883
      %v3891 = vpack.c.bf16 %v3886, %v3885
      %v3892 = vpack.c.bf16 %v3888, %v3887
      %s3893 = scalar_lea.vmem %s2, 1344
      %v3894 = vld [vmem:[%s3893] sm:$0xf]
      %v3895 = vld [vmem:[%s3893 + $0x4] sm:$0xf]
      %v3896 = vld [vmem:[%s3893 + $0x8] sm:$0xf]
      %v3897 = vld [vmem:[%s3893 + $0xc] sm:$0xf]
      %v3898 = vld [vmem:[%s3893 + $0x10] sm:$0xf]
      %v3899 = vld [vmem:[%s3893 + $0x14] sm:$0xf]
      %v3900 = vld [vmem:[%s3893 + $0x18] sm:$0xf]
      %v3901 = vld [vmem:[%s3893 + $0x1c] sm:$0xf]
      %v3902 = vld [vmem:[%s3893 + $0x20] sm:$0xf]
      %v3903 = vld [vmem:[%s3893 + $0x24] sm:$0xf]
      %v3904 = vld [vmem:[%s3893 + $0x28] sm:$0xf]
      %v3905 = vld [vmem:[%s3893 + $0x2c] sm:$0xf]
      %v3906 = vld [vmem:[%s3893 + $0x30] sm:$0xf]
      %v3907 = vld [vmem:[%s3893 + $0x34] sm:$0xf]
      %v3908 = vld [vmem:[%s3893 + $0x38] sm:$0xf]
      %v3909 = vld [vmem:[%s3893 + $0x3c] sm:$0xf]
      %v3926 = vunpack.c.l.b16 %v3894
      %v3927 = vunpack.c.l.b16 %v3895
      %v3928 = vunpack.c.l.b16 %v3896
      %v3929 = vunpack.c.l.b16 %v3897
      %v3930 = vunpack.c.l.b16 %v3898
      %v3931 = vunpack.c.l.b16 %v3899
      %v3932 = vunpack.c.l.b16 %v3900
      %v3933 = vunpack.c.l.b16 %v3901
      %v3934 = vunpack.c.l.b16 %v3902
      %v3935 = vunpack.c.l.b16 %v3903
      %v3936 = vunpack.c.l.b16 %v3904
      %v3937 = vunpack.c.l.b16 %v3905
      %v3938 = vunpack.c.l.b16 %v3906
      %v3939 = vunpack.c.l.b16 %v3907
      %v3940 = vunpack.c.l.b16 %v3908
      %v3941 = vunpack.c.l.b16 %v3909
      %v3942 = vpack.c.b16 %v3927, %v3926
      %v3943 = vpack.c.b16 %v3929, %v3928
      %v3944 = vpack.c.b16 %v3931, %v3930
      %v3945 = vpack.c.b16 %v3933, %v3932
      %v3946 = vpack.c.b16 %v3935, %v3934
      %v3947 = vpack.c.b16 %v3937, %v3936
      %v3948 = vpack.c.b16 %v3939, %v3938
      %v3949 = vpack.c.b16 %v3941, %v3940
      %3958 = vmatprep.subr.bf16.mxu0 0
      %3959 = vmatpush1.bf16.msra.mxu0 %v3942
      %3960 = vmatprep.subr.bf16.mxu0 0
      %3961 = vmatpush1.bf16.msra.mxu0 %v3943
      %3962 = vmatprep.subr.bf16.mxu0 0
      %3963 = vmatpush1.bf16.msra.mxu0 %v3944
      %3964 = vmatprep.subr.bf16.mxu0 0
      %3965 = vmatpush1.bf16.msra.mxu0 %v3945
      %3966 = vmatprep.subr.bf16.mxu0 0
      %3967 = vmatpush1.bf16.msra.mxu0 %v3946
      %3968 = vmatprep.subr.bf16.mxu0 0
      %3969 = vmatpush1.bf16.msra.mxu0 %v3947
      %3970 = vmatprep.subr.bf16.mxu0 0
      %3971 = vmatpush1.bf16.msra.mxu0 %v3948
      %3972 = vmatprep.subr.bf16.mxu0 0
      %3973 = vmatpush1.bf16.msra.mxu0 %v3949
      %3974 = vmatprep.subr.bf16.mxu0 0
      %3975 = vmatpush1.bf16.msra.mxu0 0
      %3976 = vmatprep.subr.bf16.mxu0 0
      %3977 = vmatpush1.bf16.msra.mxu0 0
      %3978 = vmatprep.subr.bf16.mxu0 0
      %3979 = vmatpush1.bf16.msra.mxu0 0
      %3980 = vmatprep.subr.bf16.mxu0 0
      %3981 = vmatpush1.bf16.msra.mxu0 0
      %3982 = vmatprep.subr.bf16.mxu0 0
      %3983 = vmatpush1.bf16.msra.mxu0 0
      %3984 = vmatprep.subr.bf16.mxu0 0
      %3985 = vmatpush1.bf16.msra.mxu0 0
      %3986 = vmatprep.subr.bf16.mxu0 0
      %3987 = vmatpush1.bf16.msra.mxu0 0
      %3988 = vmatprep.subr.bf16.mxu0 0
      %3989 = vmatpush1.bf16.msra.mxu0 0
      %3990 = vmatprep.mubr.bf16.mxu0 0
      %3991 = vmatmul.mubr.bf16.gmra.mrb[0].mxu0 %v3889
      %v3992 = vpop.f32.mrb[0].mxu0
      %v3993 = vadd.f32 0.0, %v3992
      %v3994 = vpop.f32.mrb[0].mxu0
      %v3995 = vpop.f32.mrb[0].mxu0
      %v3996 = vadd.f32 0.0, %v3995
      %v3997 = vpop.f32.mrb[0].mxu0
      %3998 = vmatprep.mubr.bf16.mxu0 0
      %3999 = vmatmul.mubr.bf16.gmra.mrb[0].mxu0 %v3890
      %v4000 = vpop.f32.mrb[0].mxu0
      %v4001 = vadd.f32 0.0, %v4000
      %v4002 = vpop.f32.mrb[0].mxu0
      %v4003 = vpop.f32.mrb[0].mxu0
      %v4004 = vadd.f32 0.0, %v4003
      %v4005 = vpop.f32.mrb[0].mxu0
      %4006 = vmatprep.mubr.bf16.mxu0 0
      %4007 = vmatmul.mubr.bf16.gmra.mrb[0].mxu0 %v3891
      %v4008 = vpop.f32.mrb[0].mxu0
      %v4009 = vadd.f32 0.0, %v4008
      %v4010 = vpop.f32.mrb[0].mxu0
      %v4011 = vpop.f32.mrb[0].mxu0
      %v4012 = vadd.f32 0.0, %v4011
      %v4013 = vpop.f32.mrb[0].mxu0
      %4014 = vmatprep.mubr.bf16.mxu0 0
      %4015 = vmatmul.mubr.bf16.gmra.mrb[0].mxu0 %v3892
      %v4016 = vpop.f32.mrb[0].mxu0
      %v4017 = vadd.f32 0.0, %v4016
      %v4018 = vpop.f32.mrb[0].mxu0
      %v4019 = vpop.f32.mrb[0].mxu0
      %v4020 = vadd.f32 0.0, %v4019
      %v4021 = vpop.f32.mrb[0].mxu0
      %4022 = vdwg.mxu0
      %v4023 = vadd.f32 %v3873, %v3993
      %v4024 = vadd.f32 %v3874, %v3996
      %v4025 = vadd.f32 %v3875, %v4001
      %v4026 = vadd.f32 %v3876, %v4004
      %v4027 = vadd.f32 %v3877, %v4009
      %v4028 = vadd.f32 %v3878, %v4012
      %v4029 = vadd.f32 %v3879, %v4017
      %v4030 = vadd.f32 %v3880, %v4020
      %s4031 = scalar_lea.vmem %s2, 1408
      %v4032 = vld [vmem:[%s4031] sm:$0xf]
      %v4033 = vld [vmem:[%s4031 + $0x4] sm:$0xf]
      %v4034 = vld [vmem:[%s4031 + $0x8] sm:$0xf]
      %v4035 = vld [vmem:[%s4031 + $0xc] sm:$0xf]
      %v4036 = vld [vmem:[%s4031 + $0x10] sm:$0xf]
      %v4037 = vld [vmem:[%s4031 + $0x14] sm:$0xf]
      %v4038 = vld [vmem:[%s4031 + $0x18] sm:$0xf]
      %v4039 = vld [vmem:[%s4031 + $0x1c] sm:$0xf]
      %v4040 = vld [vmem:[%s4031 + $0x20] sm:$0xf]
      %v4041 = vld [vmem:[%s4031 + $0x24] sm:$0xf]
      %v4042 = vld [vmem:[%s4031 + $0x28] sm:$0xf]
      %v4043 = vld [vmem:[%s4031 + $0x2c] sm:$0xf]
      %v4044 = vld [vmem:[%s4031 + $0x30] sm:$0xf]
      %v4045 = vld [vmem:[%s4031 + $0x34] sm:$0xf]
      %v4046 = vld [vmem:[%s4031 + $0x38] sm:$0xf]
      %v4047 = vld [vmem:[%s4031 + $0x3c] sm:$0xf]
      %v4064 = vunpack.c.l.b16 %v4032
      %v4065 = vunpack.c.l.b16 %v4033
      %v4066 = vunpack.c.l.b16 %v4034
      %v4067 = vunpack.c.l.b16 %v4035
      %v4068 = vunpack.c.l.b16 %v4036
      %v4069 = vunpack.c.l.b16 %v4037
      %v4070 = vunpack.c.l.b16 %v4038
      %v4071 = vunpack.c.l.b16 %v4039
      %v4072 = vunpack.c.l.b16 %v4040
      %v4073 = vunpack.c.l.b16 %v4041
      %v4074 = vunpack.c.l.b16 %v4042
      %v4075 = vunpack.c.l.b16 %v4043
      %v4076 = vunpack.c.l.b16 %v4044
      %v4077 = vunpack.c.l.b16 %v4045
      %v4078 = vunpack.c.l.b16 %v4046
      %v4079 = vunpack.c.l.b16 %v4047
      %v4080 = vpack.c.b16 %v4065, %v4064
      %v4081 = vpack.c.b16 %v4067, %v4066
      %v4082 = vpack.c.b16 %v4069, %v4068
      %v4083 = vpack.c.b16 %v4071, %v4070
      %v4084 = vpack.c.b16 %v4073, %v4072
      %v4085 = vpack.c.b16 %v4075, %v4074
      %v4086 = vpack.c.b16 %v4077, %v4076
      %v4087 = vpack.c.b16 %v4079, %v4078
      %4096 = vmatprep.subr.bf16.mxu0 0
      %4097 = vmatpush1.bf16.msra.mxu0 %v4080
      %4098 = vmatprep.subr.bf16.mxu0 0
      %4099 = vmatpush1.bf16.msra.mxu0 %v4081
      %4100 = vmatprep.subr.bf16.mxu0 0
      %4101 = vmatpush1.bf16.msra.mxu0 %v4082
      %4102 = vmatprep.subr.bf16.mxu0 0
      %4103 = vmatpush1.bf16.msra.mxu0 %v4083
      %4104 = vmatprep.subr.bf16.mxu0 0
      %4105 = vmatpush1.bf16.msra.mxu0 %v4084
      %4106 = vmatprep.subr.bf16.mxu0 0
      %4107 = vmatpush1.bf16.msra.mxu0 %v4085
      %4108 = vmatprep.subr.bf16.mxu0 0
      %4109 = vmatpush1.bf16.msra.mxu0 %v4086
      %4110 = vmatprep.subr.bf16.mxu0 0
      %4111 = vmatpush1.bf16.msra.mxu0 %v4087
      %4112 = vmatprep.subr.bf16.mxu0 0
      %4113 = vmatpush1.bf16.msra.mxu0 0
      %4114 = vmatprep.subr.bf16.mxu0 0
      %4115 = vmatpush1.bf16.msra.mxu0 0
      %4116 = vmatprep.subr.bf16.mxu0 0
      %4117 = vmatpush1.bf16.msra.mxu0 0
      %4118 = vmatprep.subr.bf16.mxu0 0
      %4119 = vmatpush1.bf16.msra.mxu0 0
      %4120 = vmatprep.subr.bf16.mxu0 0
      %4121 = vmatpush1.bf16.msra.mxu0 0
      %4122 = vmatprep.subr.bf16.mxu0 0
      %4123 = vmatpush1.bf16.msra.mxu0 0
      %4124 = vmatprep.subr.bf16.mxu0 0
      %4125 = vmatpush1.bf16.msra.mxu0 0
      %4126 = vmatprep.subr.bf16.mxu0 0
      %4127 = vmatpush1.bf16.msra.mxu0 0
      %4128 = vmatprep.mubr.bf16.mxu0 0
      %4129 = vmatmul.mubr.bf16.gmra.mrb[0].mxu0 %v262
      %v4130 = vpop.f32.mrb[0].mxu0
      %v4131 = vadd.f32 0.0, %v4130
      %v4132 = vpop.f32.mrb[0].mxu0
      %v4133 = vpop.f32.mrb[0].mxu0
      %v4134 = vadd.f32 0.0, %v4133
      %v4135 = vpop.f32.mrb[0].mxu0
      %4136 = vmatprep.mubr.bf16.mxu0 0
      %4137 = vmatmul.mubr.bf16.gmra.mrb[0].mxu0 %v263
      %v4138 = vpop.f32.mrb[0].mxu0
      %v4139 = vadd.f32 0.0, %v4138
      %v4140 = vpop.f32.mrb[0].mxu0
      %v4141 = vpop.f32.mrb[0].mxu0
      %v4142 = vadd.f32 0.0, %v4141
      %v4143 = vpop.f32.mrb[0].mxu0
      %4144 = vmatprep.mubr.bf16.mxu0 0
      %4145 = vmatmul.mubr.bf16.gmra.mrb[0].mxu0 %v264
      %v4146 = vpop.f32.mrb[0].mxu0
      %v4147 = vadd.f32 0.0, %v4146
      %v4148 = vpop.f32.mrb[0].mxu0
      %v4149 = vpop.f32.mrb[0].mxu0
      %v4150 = vadd.f32 0.0, %v4149
      %v4151 = vpop.f32.mrb[0].mxu0
      %4152 = vmatprep.mubr.bf16.mxu0 0
      %4153 = vmatmul.mubr.bf16.gmra.mrb[0].mxu0 %v265
      %v4154 = vpop.f32.mrb[0].mxu0
      %v4155 = vadd.f32 0.0, %v4154
      %v4156 = vpop.f32.mrb[0].mxu0
      %v4157 = vpop.f32.mrb[0].mxu0
      %v4158 = vadd.f32 0.0, %v4157
      %v4159 = vpop.f32.mrb[0].mxu0
      %4160 = vdwg.mxu0
      %v4161 = vadd.f32 %v4023, %v4131
      %v4162 = vadd.f32 %v4024, %v4134
      %v4163 = vadd.f32 %v4025, %v4139
      %v4164 = vadd.f32 %v4026, %v4142
      %v4165 = vadd.f32 %v4027, %v4147
      %v4166 = vadd.f32 %v4028, %v4150
      %v4167 = vadd.f32 %v4029, %v4155
      %v4168 = vadd.f32 %v4030, %v4158
      %v4169 = vld [vmem:[%s253 + $0x24] sm:$0xff]
      %v4170 = vld [vmem:[%s253 + $0x54] sm:$0xff]
      %v4171 = vld [vmem:[%s253 + $0x84] sm:$0xff]
      %v4172 = vld [vmem:[%s253 + $0xb4] sm:$0xff]
      %v4173 = vld [vmem:[%s253 + $0xe4] sm:$0xff]
      %v4174 = vld [vmem:[%s253 + $0x114] sm:$0xff]
      %v4175 = vld [vmem:[%s253 + $0x144] sm:$0xff]
      %v4176 = vld [vmem:[%s253 + $0x174] sm:$0xff]
      %v4177 = vpack.c.bf16 %v4170, %v4169
      %v4178 = vpack.c.bf16 %v4172, %v4171
      %v4179 = vpack.c.bf16 %v4174, %v4173
      %v4180 = vpack.c.bf16 %v4176, %v4175
      %s4181 = scalar_lea.vmem %s2, 1472
      %v4182 = vld [vmem:[%s4181] sm:$0xf]
      %v4183 = vld [vmem:[%s4181 + $0x4] sm:$0xf]
      %v4184 = vld [vmem:[%s4181 + $0x8] sm:$0xf]
      %v4185 = vld [vmem:[%s4181 + $0xc] sm:$0xf]
      %v4186 = vld [vmem:[%s4181 + $0x10] sm:$0xf]
      %v4187 = vld [vmem:[%s4181 + $0x14] sm:$0xf]
      %v4188 = vld [vmem:[%s4181 + $0x18] sm:$0xf]
      %v4189 = vld [vmem:[%s4181 + $0x1c] sm:$0xf]
      %v4190 = vld [vmem:[%s4181 + $0x20] sm:$0xf]
      %v4191 = vld [vmem:[%s4181 + $0x24] sm:$0xf]
      %v4192 = vld [vmem:[%s4181 + $0x28] sm:$0xf]
      %v4193 = vld [vmem:[%s4181 + $0x2c] sm:$0xf]
      %v4194 = vld [vmem:[%s4181 + $0x30] sm:$0xf]
      %v4195 = vld [vmem:[%s4181 + $0x34] sm:$0xf]
      %v4196 = vld [vmem:[%s4181 + $0x38] sm:$0xf]
      %v4197 = vld [vmem:[%s4181 + $0x3c] sm:$0xf]
      %v4214 = vunpack.c.l.b16 %v4182
      %v4215 = vunpack.c.l.b16 %v4183
      %v4216 = vunpack.c.l.b16 %v4184
      %v4217 = vunpack.c.l.b16 %v4185
      %v4218 = vunpack.c.l.b16 %v4186
      %v4219 = vunpack.c.l.b16 %v4187
      %v4220 = vunpack.c.l.b16 %v4188
      %v4221 = vunpack.c.l.b16 %v4189
      %v4222 = vunpack.c.l.b16 %v4190
      %v4223 = vunpack.c.l.b16 %v4191
      %v4224 = vunpack.c.l.b16 %v4192
      %v4225 = vunpack.c.l.b16 %v4193
      %v4226 = vunpack.c.l.b16 %v4194
      %v4227 = vunpack.c.l.b16 %v4195
      %v4228 = vunpack.c.l.b16 %v4196
      %v4229 = vunpack.c.l.b16 %v4197
      %v4230 = vpack.c.b16 %v4215, %v4214
      %v4231 = vpack.c.b16 %v4217, %v4216
      %v4232 = vpack.c.b16 %v4219, %v4218
      %v4233 = vpack.c.b16 %v4221, %v4220
      %v4234 = vpack.c.b16 %v4223, %v4222
      %v4235 = vpack.c.b16 %v4225, %v4224
      %v4236 = vpack.c.b16 %v4227, %v4226
      %v4237 = vpack.c.b16 %v4229, %v4228
      %4246 = vmatprep.subr.bf16.mxu0 0
      %4247 = vmatpush1.bf16.msra.mxu0 %v4230
      %4248 = vmatprep.subr.bf16.mxu0 0
      %4249 = vmatpush1.bf16.msra.mxu0 %v4231
      %4250 = vmatprep.subr.bf16.mxu0 0
      %4251 = vmatpush1.bf16.msra.mxu0 %v4232
      %4252 = vmatprep.subr.bf16.mxu0 0
      %4253 = vmatpush1.bf16.msra.mxu0 %v4233
      %4254 = vmatprep.subr.bf16.mxu0 0
      %4255 = vmatpush1.bf16.msra.mxu0 %v4234
      %4256 = vmatprep.subr.bf16.mxu0 0
      %4257 = vmatpush1.bf16.msra.mxu0 %v4235
      %4258 = vmatprep.subr.bf16.mxu0 0
      %4259 = vmatpush1.bf16.msra.mxu0 %v4236
      %4260 = vmatprep.subr.bf16.mxu0 0
      %4261 = vmatpush1.bf16.msra.mxu0 %v4237
      %4262 = vmatprep.subr.bf16.mxu0 0
      %4263 = vmatpush1.bf16.msra.mxu0 0
      %4264 = vmatprep.subr.bf16.mxu0 0
      %4265 = vmatpush1.bf16.msra.mxu0 0
      %4266 = vmatprep.subr.bf16.mxu0 0
      %4267 = vmatpush1.bf16.msra.mxu0 0
      %4268 = vmatprep.subr.bf16.mxu0 0
      %4269 = vmatpush1.bf16.msra.mxu0 0
      %4270 = vmatprep.subr.bf16.mxu0 0
      %4271 = vmatpush1.bf16.msra.mxu0 0
      %4272 = vmatprep.subr.bf16.mxu0 0
      %4273 = vmatpush1.bf16.msra.mxu0 0
      %4274 = vmatprep.subr.bf16.mxu0 0
      %4275 = vmatpush1.bf16.msra.mxu0 0
      %4276 = vmatprep.subr.bf16.mxu0 0
      %4277 = vmatpush1.bf16.msra.mxu0 0
      %4278 = vmatprep.mubr.bf16.mxu0 0
      %4279 = vmatmul.mubr.bf16.gmra.mrb[0].mxu0 %v4177
      %v4280 = vpop.f32.mrb[0].mxu0
      %v4281 = vadd.f32 0.0, %v4280
      %v4282 = vpop.f32.mrb[0].mxu0
      %v4283 = vpop.f32.mrb[0].mxu0
      %v4284 = vadd.f32 0.0, %v4283
      %v4285 = vpop.f32.mrb[0].mxu0
      %4286 = vmatprep.mubr.bf16.mxu0 0
      %4287 = vmatmul.mubr.bf16.gmra.mrb[0].mxu0 %v4178
      %v4288 = vpop.f32.mrb[0].mxu0
      %v4289 = vadd.f32 0.0, %v4288
      %v4290 = vpop.f32.mrb[0].mxu0
      %v4291 = vpop.f32.mrb[0].mxu0
      %v4292 = vadd.f32 0.0, %v4291
      %v4293 = vpop.f32.mrb[0].mxu0
      %4294 = vmatprep.mubr.bf16.mxu0 0
      %4295 = vmatmul.mubr.bf16.gmra.mrb[0].mxu0 %v4179
      %v4296 = vpop.f32.mrb[0].mxu0
      %v4297 = vadd.f32 0.0, %v4296
      %v4298 = vpop.f32.mrb[0].mxu0
      %v4299 = vpop.f32.mrb[0].mxu0
      %v4300 = vadd.f32 0.0, %v4299
      %v4301 = vpop.f32.mrb[0].mxu0
      %4302 = vmatprep.mubr.bf16.mxu0 0
      %4303 = vmatmul.mubr.bf16.gmra.mrb[0].mxu0 %v4180
      %v4304 = vpop.f32.mrb[0].mxu0
      %v4305 = vadd.f32 0.0, %v4304
      %v4306 = vpop.f32.mrb[0].mxu0
      %v4307 = vpop.f32.mrb[0].mxu0
      %v4308 = vadd.f32 0.0, %v4307
      %v4309 = vpop.f32.mrb[0].mxu0
      %4310 = vdwg.mxu0
      %v4311 = vadd.f32 %v4161, %v4281
      %v4312 = vadd.f32 %v4162, %v4284
      %v4313 = vadd.f32 %v4163, %v4289
      %v4314 = vadd.f32 %v4164, %v4292
      %v4315 = vadd.f32 %v4165, %v4297
      %v4316 = vadd.f32 %v4166, %v4300
      %v4317 = vadd.f32 %v4167, %v4305
      %v4318 = vadd.f32 %v4168, %v4308
      %s4319 = scalar_lea.vmem %s246, 1728
      %v4320 = vld [vmem:[%s4319] sm:$0xff]
      %v4321 = vld [vmem:[%s4319 + $0x30] sm:$0xff]
      %v4322 = vld [vmem:[%s4319 + $0x60] sm:$0xff]
      %v4323 = vld [vmem:[%s4319 + $0x90] sm:$0xff]
      %v4324 = vld [vmem:[%s4319 + $0xc0] sm:$0xff]
      %v4325 = vld [vmem:[%s4319 + $0xf0] sm:$0xff]
      %v4326 = vld [vmem:[%s4319 + $0x120] sm:$0xff]
      %v4327 = vld [vmem:[%s4319 + $0x150] sm:$0xff]
      %v4328 = vpack.c.bf16 %v4321, %v4320
      %v4329 = vpack.c.bf16 %v4323, %v4322
      %v4330 = vpack.c.bf16 %v4325, %v4324
      %v4331 = vpack.c.bf16 %v4327, %v4326
      %s4332 = scalar_lea.vmem %s2, 1536
      %v4333 = vld [vmem:[%s4332] sm:$0xf]
      %v4334 = vld [vmem:[%s4332 + $0x4] sm:$0xf]
      %v4335 = vld [vmem:[%s4332 + $0x8] sm:$0xf]
      %v4336 = vld [vmem:[%s4332 + $0xc] sm:$0xf]
      %v4337 = vld [vmem:[%s4332 + $0x10] sm:$0xf]
      %v4338 = vld [vmem:[%s4332 + $0x14] sm:$0xf]
      %v4339 = vld [vmem:[%s4332 + $0x18] sm:$0xf]
      %v4340 = vld [vmem:[%s4332 + $0x1c] sm:$0xf]
      %v4341 = vld [vmem:[%s4332 + $0x20] sm:$0xf]
      %v4342 = vld [vmem:[%s4332 + $0x24] sm:$0xf]
      %v4343 = vld [vmem:[%s4332 + $0x28] sm:$0xf]
      %v4344 = vld [vmem:[%s4332 + $0x2c] sm:$0xf]
      %v4345 = vld [vmem:[%s4332 + $0x30] sm:$0xf]
      %v4346 = vld [vmem:[%s4332 + $0x34] sm:$0xf]
      %v4347 = vld [vmem:[%s4332 + $0x38] sm:$0xf]
      %v4348 = vld [vmem:[%s4332 + $0x3c] sm:$0xf]
      %v4365 = vunpack.c.l.b16 %v4333
      %v4366 = vunpack.c.l.b16 %v4334
      %v4367 = vunpack.c.l.b16 %v4335
      %v4368 = vunpack.c.l.b16 %v4336
      %v4369 = vunpack.c.l.b16 %v4337
      %v4370 = vunpack.c.l.b16 %v4338
      %v4371 = vunpack.c.l.b16 %v4339
      %v4372 = vunpack.c.l.b16 %v4340
      %v4373 = vunpack.c.l.b16 %v4341
      %v4374 = vunpack.c.l.b16 %v4342
      %v4375 = vunpack.c.l.b16 %v4343
      %v4376 = vunpack.c.l.b16 %v4344
      %v4377 = vunpack.c.l.b16 %v4345
      %v4378 = vunpack.c.l.b16 %v4346
      %v4379 = vunpack.c.l.b16 %v4347
      %v4380 = vunpack.c.l.b16 %v4348
      %v4381 = vpack.c.b16 %v4366, %v4365
      %v4382 = vpack.c.b16 %v4368, %v4367
      %v4383 = vpack.c.b16 %v4370, %v4369
      %v4384 = vpack.c.b16 %v4372, %v4371
      %v4385 = vpack.c.b16 %v4374, %v4373
      %v4386 = vpack.c.b16 %v4376, %v4375
      %v4387 = vpack.c.b16 %v4378, %v4377
      %v4388 = vpack.c.b16 %v4380, %v4379
      %4397 = vmatprep.subr.bf16.mxu0 0
      %4398 = vmatpush1.bf16.msra.mxu0 %v4381
      %4399 = vmatprep.subr.bf16.mxu0 0
      %4400 = vmatpush1.bf16.msra.mxu0 %v4382
      %4401 = vmatprep.subr.bf16.mxu0 0
      %4402 = vmatpush1.bf16.msra.mxu0 %v4383
      %4403 = vmatprep.subr.bf16.mxu0 0
      %4404 = vmatpush1.bf16.msra.mxu0 %v4384
      %4405 = vmatprep.subr.bf16.mxu0 0
      %4406 = vmatpush1.bf16.msra.mxu0 %v4385
      %4407 = vmatprep.subr.bf16.mxu0 0
      %4408 = vmatpush1.bf16.msra.mxu0 %v4386
      %4409 = vmatprep.subr.bf16.mxu0 0
      %4410 = vmatpush1.bf16.msra.mxu0 %v4387
      %4411 = vmatprep.subr.bf16.mxu0 0
      %4412 = vmatpush1.bf16.msra.mxu0 %v4388
      %4413 = vmatprep.subr.bf16.mxu0 0
      %4414 = vmatpush1.bf16.msra.mxu0 0
      %4415 = vmatprep.subr.bf16.mxu0 0
      %4416 = vmatpush1.bf16.msra.mxu0 0
      %4417 = vmatprep.subr.bf16.mxu0 0
      %4418 = vmatpush1.bf16.msra.mxu0 0
      %4419 = vmatprep.subr.bf16.mxu0 0
      %4420 = vmatpush1.bf16.msra.mxu0 0
      %4421 = vmatprep.subr.bf16.mxu0 0
      %4422 = vmatpush1.bf16.msra.mxu0 0
      %4423 = vmatprep.subr.bf16.mxu0 0
      %4424 = vmatpush1.bf16.msra.mxu0 0
      %4425 = vmatprep.subr.bf16.mxu0 0
      %4426 = vmatpush1.bf16.msra.mxu0 0
      %4427 = vmatprep.subr.bf16.mxu0 0
      %4428 = vmatpush1.bf16.msra.mxu0 0
      %4429 = vmatprep.mubr.bf16.mxu0 0
      %4430 = vmatmul.mubr.bf16.gmra.mrb[0].mxu0 %v4328
      %v4431 = vpop.f32.mrb[0].mxu0
      %v4432 = vadd.f32 0.0, %v4431
      %v4433 = vpop.f32.mrb[0].mxu0
      %v4434 = vpop.f32.mrb[0].mxu0
      %v4435 = vadd.f32 0.0, %v4434
      %v4436 = vpop.f32.mrb[0].mxu0
      %4437 = vmatprep.mubr.bf16.mxu0 0
      %4438 = vmatmul.mubr.bf16.gmra.mrb[0].mxu0 %v4329
      %v4439 = vpop.f32.mrb[0].mxu0
      %v4440 = vadd.f32 0.0, %v4439
      %v4441 = vpop.f32.mrb[0].mxu0
      %v4442 = vpop.f32.mrb[0].mxu0
      %v4443 = vadd.f32 0.0, %v4442
      %v4444 = vpop.f32.mrb[0].mxu0
      %4445 = vmatprep.mubr.bf16.mxu0 0
      %4446 = vmatmul.mubr.bf16.gmra.mrb[0].mxu0 %v4330
      %v4447 = vpop.f32.mrb[0].mxu0
      %v4448 = vadd.f32 0.0, %v4447
      %v4449 = vpop.f32.mrb[0].mxu0
      %v4450 = vpop.f32.mrb[0].mxu0
      %v4451 = vadd.f32 0.0, %v4450
      %v4452 = vpop.f32.mrb[0].mxu0
      %4453 = vmatprep.mubr.bf16.mxu0 0
      %4454 = vmatmul.mubr.bf16.gmra.mrb[0].mxu0 %v4331
      %v4455 = vpop.f32.mrb[0].mxu0
      %v4456 = vadd.f32 0.0, %v4455
      %v4457 = vpop.f32.mrb[0].mxu0
      %v4458 = vpop.f32.mrb[0].mxu0
      %v4459 = vadd.f32 0.0, %v4458
      %v4460 = vpop.f32.mrb[0].mxu0
      %4461 = vdwg.mxu0
      %v4462 = vadd.f32 %v4311, %v4432
      %v4463 = vadd.f32 %v4312, %v4435
      %v4464 = vadd.f32 %v4313, %v4440
      %v4465 = vadd.f32 %v4314, %v4443
      %v4466 = vadd.f32 %v4315, %v4448
      %v4467 = vadd.f32 %v4316, %v4451
      %v4468 = vadd.f32 %v4317, %v4456
      %v4469 = vadd.f32 %v4318, %v4459
      %v4470 = vld [vmem:[%s4319 + $0x12] sm:$0xff]
      %v4471 = vld [vmem:[%s4319 + $0x42] sm:$0xff]
      %v4472 = vld [vmem:[%s4319 + $0x72] sm:$0xff]
      %v4473 = vld [vmem:[%s4319 + $0xa2] sm:$0xff]
      %v4474 = vld [vmem:[%s4319 + $0xd2] sm:$0xff]
      %v4475 = vld [vmem:[%s4319 + $0x102] sm:$0xff]
      %v4476 = vld [vmem:[%s4319 + $0x132] sm:$0xff]
      %v4477 = vld [vmem:[%s4319 + $0x162] sm:$0xff]
      %v4478 = vpack.c.bf16 %v4471, %v4470
      %v4479 = vpack.c.bf16 %v4473, %v4472
      %v4480 = vpack.c.bf16 %v4475, %v4474
      %v4481 = vpack.c.bf16 %v4477, %v4476
      %s4482 = scalar_lea.vmem %s2, 1600
      %v4483 = vld [vmem:[%s4482] sm:$0xf]
      %v4484 = vld [vmem:[%s4482 + $0x4] sm:$0xf]
      %v4485 = vld [vmem:[%s4482 + $0x8] sm:$0xf]
      %v4486 = vld [vmem:[%s4482 + $0xc] sm:$0xf]
      %v4487 = vld [vmem:[%s4482 + $0x10] sm:$0xf]
      %v4488 = vld [vmem:[%s4482 + $0x14] sm:$0xf]
      %v4489 = vld [vmem:[%s4482 + $0x18] sm:$0xf]
      %v4490 = vld [vmem:[%s4482 + $0x1c] sm:$0xf]
      %v4491 = vld [vmem:[%s4482 + $0x20] sm:$0xf]
      %v4492 = vld [vmem:[%s4482 + $0x24] sm:$0xf]
      %v4493 = vld [vmem:[%s4482 + $0x28] sm:$0xf]
      %v4494 = vld [vmem:[%s4482 + $0x2c] sm:$0xf]
      %v4495 = vld [vmem:[%s4482 + $0x30] sm:$0xf]
      %v4496 = vld [vmem:[%s4482 + $0x34] sm:$0xf]
      %v4497 = vld [vmem:[%s4482 + $0x38] sm:$0xf]
      %v4498 = vld [vmem:[%s4482 + $0x3c] sm:$0xf]
      %v4515 = vunpack.c.l.b16 %v4483
      %v4516 = vunpack.c.l.b16 %v4484
      %v4517 = vunpack.c.l.b16 %v4485
      %v4518 = vunpack.c.l.b16 %v4486
      %v4519 = vunpack.c.l.b16 %v4487
      %v4520 = vunpack.c.l.b16 %v4488
      %v4521 = vunpack.c.l.b16 %v4489
      %v4522 = vunpack.c.l.b16 %v4490
      %v4523 = vunpack.c.l.b16 %v4491
      %v4524 = vunpack.c.l.b16 %v4492
      %v4525 = vunpack.c.l.b16 %v4493
      %v4526 = vunpack.c.l.b16 %v4494
      %v4527 = vunpack.c.l.b16 %v4495
      %v4528 = vunpack.c.l.b16 %v4496
      %v4529 = vunpack.c.l.b16 %v4497
      %v4530 = vunpack.c.l.b16 %v4498
      %v4531 = vpack.c.b16 %v4516, %v4515
      %v4532 = vpack.c.b16 %v4518, %v4517
      %v4533 = vpack.c.b16 %v4520, %v4519
      %v4534 = vpack.c.b16 %v4522, %v4521
      %v4535 = vpack.c.b16 %v4524, %v4523
      %v4536 = vpack.c.b16 %v4526, %v4525
      %v4537 = vpack.c.b16 %v4528, %v4527
      %v4538 = vpack.c.b16 %v4530, %v4529
      %4547 = vmatprep.subr.bf16.mxu0 0
      %4548 = vmatpush1.bf16.msra.mxu0 %v4531
      %4549 = vmatprep.subr.bf16.mxu0 0
      %4550 = vmatpush1.bf16.msra.mxu0 %v4532
      %4551 = vmatprep.subr.bf16.mxu0 0
      %4552 = vmatpush1.bf16.msra.mxu0 %v4533
      %4553 = vmatprep.subr.bf16.mxu0 0
      %4554 = vmatpush1.bf16.msra.mxu0 %v4534
      %4555 = vmatprep.subr.bf16.mxu0 0
      %4556 = vmatpush1.bf16.msra.mxu0 %v4535
      %4557 = vmatprep.subr.bf16.mxu0 0
      %4558 = vmatpush1.bf16.msra.mxu0 %v4536
      %4559 = vmatprep.subr.bf16.mxu0 0
      %4560 = vmatpush1.bf16.msra.mxu0 %v4537
      %4561 = vmatprep.subr.bf16.mxu0 0
      %4562 = vmatpush1.bf16.msra.mxu0 %v4538
      %4563 = vmatprep.subr.bf16.mxu0 0
      %4564 = vmatpush1.bf16.msra.mxu0 0
      %4565 = vmatprep.subr.bf16.mxu0 0
      %4566 = vmatpush1.bf16.msra.mxu0 0
      %4567 = vmatprep.subr.bf16.mxu0 0
      %4568 = vmatpush1.bf16.msra.mxu0 0
      %4569 = vmatprep.subr.bf16.mxu0 0
      %4570 = vmatpush1.bf16.msra.mxu0 0
      %4571 = vmatprep.subr.bf16.mxu0 0
      %4572 = vmatpush1.bf16.msra.mxu0 0
      %4573 = vmatprep.subr.bf16.mxu0 0
      %4574 = vmatpush1.bf16.msra.mxu0 0
      %4575 = vmatprep.subr.bf16.mxu0 0
      %4576 = vmatpush1.bf16.msra.mxu0 0
      %4577 = vmatprep.subr.bf16.mxu0 0
      %4578 = vmatpush1.bf16.msra.mxu0 0
      %4579 = vmatprep.mubr.bf16.mxu0 0
      %4580 = vmatmul.mubr.bf16.gmra.mrb[0].mxu0 %v4478
      %v4581 = vpop.f32.mrb[0].mxu0
      %v4582 = vadd.f32 0.0, %v4581
      %v4583 = vpop.f32.mrb[0].mxu0
      %v4584 = vpop.f32.mrb[0].mxu0
      %v4585 = vadd.f32 0.0, %v4584
      %v4586 = vpop.f32.mrb[0].mxu0
      %4587 = vmatprep.mubr.bf16.mxu0 0
      %4588 = vmatmul.mubr.bf16.gmra.mrb[0].mxu0 %v4479
      %v4589 = vpop.f32.mrb[0].mxu0
      %v4590 = vadd.f32 0.0, %v4589
      %v4591 = vpop.f32.mrb[0].mxu0
      %v4592 = vpop.f32.mrb[0].mxu0
      %v4593 = vadd.f32 0.0, %v4592
      %v4594 = vpop.f32.mrb[0].mxu0
      %4595 = vmatprep.mubr.bf16.mxu0 0
      %4596 = vmatmul.mubr.bf16.gmra.mrb[0].mxu0 %v4480
      %v4597 = vpop.f32.mrb[0].mxu0
      %v4598 = vadd.f32 0.0, %v4597
      %v4599 = vpop.f32.mrb[0].mxu0
      %v4600 = vpop.f32.mrb[0].mxu0
      %v4601 = vadd.f32 0.0, %v4600
      %v4602 = vpop.f32.mrb[0].mxu0
      %4603 = vmatprep.mubr.bf16.mxu0 0
      %4604 = vmatmul.mubr.bf16.gmra.mrb[0].mxu0 %v4481
      %v4605 = vpop.f32.mrb[0].mxu0
      %v4606 = vadd.f32 0.0, %v4605
      %v4607 = vpop.f32.mrb[0].mxu0
      %v4608 = vpop.f32.mrb[0].mxu0
      %v4609 = vadd.f32 0.0, %v4608
      %v4610 = vpop.f32.mrb[0].mxu0
      %4611 = vdwg.mxu0
      %v4612 = vadd.f32 %v4462, %v4582
      %v4613 = vadd.f32 %v4463, %v4585
      %v4614 = vadd.f32 %v4464, %v4590
      %v4615 = vadd.f32 %v4465, %v4593
      %v4616 = vadd.f32 %v4466, %v4598
      %v4617 = vadd.f32 %v4467, %v4601
      %v4618 = vadd.f32 %v4468, %v4606
      %v4619 = vadd.f32 %v4469, %v4609
      %v4620 = vld [vmem:[%s4319 + $0x24] sm:$0xff]
      %v4621 = vld [vmem:[%s4319 + $0x54] sm:$0xff]
      %v4622 = vld [vmem:[%s4319 + $0x84] sm:$0xff]
      %v4623 = vld [vmem:[%s4319 + $0xb4] sm:$0xff]
      %v4624 = vld [vmem:[%s4319 + $0xe4] sm:$0xff]
      %v4625 = vld [vmem:[%s4319 + $0x114] sm:$0xff]
      %v4626 = vld [vmem:[%s4319 + $0x144] sm:$0xff]
      %v4627 = vld [vmem:[%s4319 + $0x174] sm:$0xff]
      %v4628 = vpack.c.bf16 %v4621, %v4620
      %v4629 = vpack.c.bf16 %v4623, %v4622
      %v4630 = vpack.c.bf16 %v4625, %v4624
      %v4631 = vpack.c.bf16 %v4627, %v4626
      %s4632 = scalar_lea.vmem %s2, 1664
      %v4633 = vld [vmem:[%s4632] sm:$0xf]
      %v4634 = vld [vmem:[%s4632 + $0x4] sm:$0xf]
      %v4635 = vld [vmem:[%s4632 + $0x8] sm:$0xf]
      %v4636 = vld [vmem:[%s4632 + $0xc] sm:$0xf]
      %v4637 = vld [vmem:[%s4632 + $0x10] sm:$0xf]
      %v4638 = vld [vmem:[%s4632 + $0x14] sm:$0xf]
      %v4639 = vld [vmem:[%s4632 + $0x18] sm:$0xf]
      %v4640 = vld [vmem:[%s4632 + $0x1c] sm:$0xf]
      %v4641 = vld [vmem:[%s4632 + $0x20] sm:$0xf]
      %v4642 = vld [vmem:[%s4632 + $0x24] sm:$0xf]
      %v4643 = vld [vmem:[%s4632 + $0x28] sm:$0xf]
      %v4644 = vld [vmem:[%s4632 + $0x2c] sm:$0xf]
      %v4645 = vld [vmem:[%s4632 + $0x30] sm:$0xf]
      %v4646 = vld [vmem:[%s4632 + $0x34] sm:$0xf]
      %v4647 = vld [vmem:[%s4632 + $0x38] sm:$0xf]
      %v4648 = vld [vmem:[%s4632 + $0x3c] sm:$0xf]
      %v4665 = vunpack.c.l.b16 %v4633
      %v4666 = vunpack.c.l.b16 %v4634
      %v4667 = vunpack.c.l.b16 %v4635
      %v4668 = vunpack.c.l.b16 %v4636
      %v4669 = vunpack.c.l.b16 %v4637
      %v4670 = vunpack.c.l.b16 %v4638
      %v4671 = vunpack.c.l.b16 %v4639
      %v4672 = vunpack.c.l.b16 %v4640
      %v4673 = vunpack.c.l.b16 %v4641
      %v4674 = vunpack.c.l.b16 %v4642
      %v4675 = vunpack.c.l.b16 %v4643
      %v4676 = vunpack.c.l.b16 %v4644
      %v4677 = vunpack.c.l.b16 %v4645
      %v4678 = vunpack.c.l.b16 %v4646
      %v4679 = vunpack.c.l.b16 %v4647
      %v4680 = vunpack.c.l.b16 %v4648
      %v4681 = vpack.c.b16 %v4666, %v4665
      %v4682 = vpack.c.b16 %v4668, %v4667
      %v4683 = vpack.c.b16 %v4670, %v4669
      %v4684 = vpack.c.b16 %v4672, %v4671
      %v4685 = vpack.c.b16 %v4674, %v4673
      %v4686 = vpack.c.b16 %v4676, %v4675
      %v4687 = vpack.c.b16 %v4678, %v4677
      %v4688 = vpack.c.b16 %v4680, %v4679
      %4697 = vmatprep.subr.bf16.mxu0 0
      %4698 = vmatpush1.bf16.msra.mxu0 %v4681
      %4699 = vmatprep.subr.bf16.mxu0 0
      %4700 = vmatpush1.bf16.msra.mxu0 %v4682
      %4701 = vmatprep.subr.bf16.mxu0 0
      %4702 = vmatpush1.bf16.msra.mxu0 %v4683
      %4703 = vmatprep.subr.bf16.mxu0 0
      %4704 = vmatpush1.bf16.msra.mxu0 %v4684
      %4705 = vmatprep.subr.bf16.mxu0 0
      %4706 = vmatpush1.bf16.msra.mxu0 %v4685
      %4707 = vmatprep.subr.bf16.mxu0 0
      %4708 = vmatpush1.bf16.msra.mxu0 %v4686
      %4709 = vmatprep.subr.bf16.mxu0 0
      %4710 = vmatpush1.bf16.msra.mxu0 %v4687
      %4711 = vmatprep.subr.bf16.mxu0 0
      %4712 = vmatpush1.bf16.msra.mxu0 %v4688
      %4713 = vmatprep.subr.bf16.mxu0 0
      %4714 = vmatpush1.bf16.msra.mxu0 0
      %4715 = vmatprep.subr.bf16.mxu0 0
      %4716 = vmatpush1.bf16.msra.mxu0 0
      %4717 = vmatprep.subr.bf16.mxu0 0
      %4718 = vmatpush1.bf16.msra.mxu0 0
      %4719 = vmatprep.subr.bf16.mxu0 0
      %4720 = vmatpush1.bf16.msra.mxu0 0
      %4721 = vmatprep.subr.bf16.mxu0 0
      %4722 = vmatpush1.bf16.msra.mxu0 0
      %4723 = vmatprep.subr.bf16.mxu0 0
      %4724 = vmatpush1.bf16.msra.mxu0 0
      %4725 = vmatprep.subr.bf16.mxu0 0
      %4726 = vmatpush1.bf16.msra.mxu0 0
      %4727 = vmatprep.subr.bf16.mxu0 0
      %4728 = vmatpush1.bf16.msra.mxu0 0
      %4729 = vmatprep.mubr.bf16.mxu0 0
      %4730 = vmatmul.mubr.bf16.gmra.mrb[0].mxu0 %v4628
      %v4731 = vpop.f32.mrb[0].mxu0
      %v4732 = vadd.f32 0.0, %v4731
      %v4733 = vpop.f32.mrb[0].mxu0
      %v4734 = vpop.f32.mrb[0].mxu0
      %v4735 = vadd.f32 0.0, %v4734
      %v4736 = vpop.f32.mrb[0].mxu0
      %4737 = vmatprep.mubr.bf16.mxu0 0
      %4738 = vmatmul.mubr.bf16.gmra.mrb[0].mxu0 %v4629
      %v4739 = vpop.f32.mrb[0].mxu0
      %v4740 = vadd.f32 0.0, %v4739
      %v4741 = vpop.f32.mrb[0].mxu0
      %v4742 = vpop.f32.mrb[0].mxu0
      %v4743 = vadd.f32 0.0, %v4742
      %v4744 = vpop.f32.mrb[0].mxu0
      %4745 = vmatprep.mubr.bf16.mxu0 0
      %4746 = vmatmul.mubr.bf16.gmra.mrb[0].mxu0 %v4630
      %v4747 = vpop.f32.mrb[0].mxu0
      %v4748 = vadd.f32 0.0, %v4747
      %v4749 = vpop.f32.mrb[0].mxu0
      %v4750 = vpop.f32.mrb[0].mxu0
      %v4751 = vadd.f32 0.0, %v4750
      %v4752 = vpop.f32.mrb[0].mxu0
      %4753 = vmatprep.mubr.bf16.mxu0 0
      %4754 = vmatmul.mubr.bf16.gmra.mrb[0].mxu0 %v4631
      %v4755 = vpop.f32.mrb[0].mxu0
      %v4756 = vadd.f32 0.0, %v4755
      %v4757 = vpop.f32.mrb[0].mxu0
      %v4758 = vpop.f32.mrb[0].mxu0
      %v4759 = vadd.f32 0.0, %v4758
      %v4760 = vpop.f32.mrb[0].mxu0
      %4761 = vdwg.mxu0
      %v4762 = vadd.f32 %v4612, %v4732
      %v4763 = vadd.f32 %v4613, %v4735
      %v4764 = vadd.f32 %v4614, %v4740
      %v4765 = vadd.f32 %v4615, %v4743
      %v4766 = vadd.f32 %v4616, %v4748
      %v4767 = vadd.f32 %v4617, %v4751
      %v4768 = vadd.f32 %v4618, %v4756
      %v4769 = vadd.f32 %v4619, %v4759
      %v4770 = vld [vmem:[%s3 + $0x3] sm:$0x1]
      %v4771 = vlaneseq
      %v4772 = vshrl.u32 %v4771, 7
      %v4773 = vsub.s32 0, %v4772
      %v4774 = vrot.slane %v4770, %v4773
      %v4775 = vadd.f32 %v4762, %v4774
      %v4776 = vadd.f32 %v4763, %v4774
      %v4777 = vadd.f32 %v4764, %v4774
      %v4778 = vadd.f32 %v4765, %v4774
      %v4779 = vadd.f32 %v4766, %v4774
      %v4780 = vadd.f32 %v4767, %v4774
      %v4781 = vadd.f32 %v4768, %v4774
      %v4782 = vadd.f32 %v4769, %v4774
      %v4783 = vmax.f32 %v4775, 0.0
      %v4784 = vmax.f32 %v4776, 0.0
      %v4785 = vmax.f32 %v4777, 0.0
      %v4786 = vmax.f32 %v4778, 0.0
      %v4787 = vmax.f32 %v4779, 0.0
      %v4788 = vmax.f32 %v4780, 0.0
      %v4789 = vmax.f32 %v4781, 0.0
      %v4790 = vmax.f32 %v4782, 0.0
      %v4791 = vpack.c.bf16 %v4784, %v4783
      %v4792 = vpack.c.bf16 %v4786, %v4785
      %v4793 = vpack.c.bf16 %v4788, %v4787
      %v4794 = vpack.c.bf16 %v4790, %v4789
      %s4795 = scalar_lea.vmem %s4, 96
      %v4796 = vld [vmem:[%s4795] sm:$0xf]
      %v4797 = vld [vmem:[%s4795 + $0x4] sm:$0xf]
      %v4798 = vld [vmem:[%s4795 + $0x8] sm:$0xf]
      %v4799 = vld [vmem:[%s4795 + $0xc] sm:$0xf]
      %v4800 = vld [vmem:[%s4795 + $0x10] sm:$0xf]
      %v4801 = vld [vmem:[%s4795 + $0x14] sm:$0xf]
      %v4802 = vld [vmem:[%s4795 + $0x18] sm:$0xf]
      %v4803 = vld [vmem:[%s4795 + $0x1c] sm:$0xf]
      %v4812 = vunpack.c.l.b16 %v4796
      %v4813 = vunpack.c.l.b16 %v4797
      %v4814 = vunpack.c.l.b16 %v4798
      %v4815 = vunpack.c.l.b16 %v4799
      %v4816 = vunpack.c.l.b16 %v4800
      %v4817 = vunpack.c.l.b16 %v4801
      %v4818 = vunpack.c.l.b16 %v4802
      %v4819 = vunpack.c.l.b16 %v4803
      %v4820 = vpack.c.b16 %v4813, %v4812
      %v4821 = vpack.c.b16 %v4815, %v4814
      %v4822 = vpack.c.b16 %v4817, %v4816
      %v4823 = vpack.c.b16 %v4819, %v4818
      %v4829 = vsel %vm1801, %v4791, 0
      %v4832 = vsel %vm1801, %v4792, 0
      %v4835 = vsel %vm1801, %v4793, 0
      %v4838 = vsel %vm1801, %v4794, 0
      %4840 = vmatprep.subr.bf16.mxu0 0
      %4841 = vmatpush1.bf16.msra.mxu0 %v4820
      %4842 = vmatprep.subr.bf16.mxu0 0
      %4843 = vmatpush1.bf16.msra.mxu0 %v4821
      %4844 = vmatprep.subr.bf16.mxu0 0
      %4845 = vmatpush1.bf16.msra.mxu0 %v4822
      %4846 = vmatprep.subr.bf16.mxu0 0
      %4847 = vmatpush1.bf16.msra.mxu0 %v4823
      %4848 = vmatprep.subr.bf16.mxu0 0
      %4849 = vmatpush1.bf16.msra.mxu0 0
      %4850 = vmatprep.subr.bf16.mxu0 0
      %4851 = vmatpush1.bf16.msra.mxu0 0
      %4852 = vmatprep.subr.bf16.mxu0 0
      %4853 = vmatpush1.bf16.msra.mxu0 0
      %4854 = vmatprep.subr.bf16.mxu0 0
      %4855 = vmatpush1.bf16.msra.mxu0 0
      %4856 = vmatprep.subr.bf16.mxu0 0
      %4857 = vmatpush1.bf16.msra.mxu0 0
      %4858 = vmatprep.subr.bf16.mxu0 0
      %4859 = vmatpush1.bf16.msra.mxu0 0
      %4860 = vmatprep.subr.bf16.mxu0 0
      %4861 = vmatpush1.bf16.msra.mxu0 0
      %4862 = vmatprep.subr.bf16.mxu0 0
      %4863 = vmatpush1.bf16.msra.mxu0 0
      %4864 = vmatprep.subr.bf16.mxu0 0
      %4865 = vmatpush1.bf16.msra.mxu0 0
      %4866 = vmatprep.subr.bf16.mxu0 0
      %4867 = vmatpush1.bf16.msra.mxu0 0
      %4868 = vmatprep.subr.bf16.mxu0 0
      %4869 = vmatpush1.bf16.msra.mxu0 0
      %4870 = vmatprep.subr.bf16.mxu0 0
      %4871 = vmatpush1.bf16.msra.mxu0 0
      %4872 = vmatprep.mubr.bf16.mxu0 0
      %4873 = vmatmul.mubr.bf16.gmra.mrb[0].mxu0 %v4829
      %v4874 = vpop.f32.mrb[0].mxu0
      %v4875 = vadd.f32 0.0, %v4874
      %v4876 = vpop.f32.mrb[0].mxu0
      %v4877 = vpop.f32.mrb[0].mxu0
      %v4878 = vadd.f32 0.0, %v4877
      %v4879 = vpop.f32.mrb[0].mxu0
      %4880 = vmatprep.mubr.bf16.mxu0 0
      %4881 = vmatmul.mubr.bf16.gmra.mrb[0].mxu0 %v4832
      %v4882 = vpop.f32.mrb[0].mxu0
      %v4883 = vadd.f32 0.0, %v4882
      %v4884 = vpop.f32.mrb[0].mxu0
      %v4885 = vpop.f32.mrb[0].mxu0
      %v4886 = vadd.f32 0.0, %v4885
      %v4887 = vpop.f32.mrb[0].mxu0
      %4888 = vmatprep.mubr.bf16.mxu0 0
      %4889 = vmatmul.mubr.bf16.gmra.mrb[0].mxu0 %v4835
      %v4890 = vpop.f32.mrb[0].mxu0
      %v4891 = vadd.f32 0.0, %v4890
      %v4892 = vpop.f32.mrb[0].mxu0
      %v4893 = vpop.f32.mrb[0].mxu0
      %v4894 = vadd.f32 0.0, %v4893
      %v4895 = vpop.f32.mrb[0].mxu0
      %4896 = vmatprep.mubr.bf16.mxu0 0
      %4897 = vmatmul.mubr.bf16.gmra.mrb[0].mxu0 %v4838
      %v4898 = vpop.f32.mrb[0].mxu0
      %v4899 = vadd.f32 0.0, %v4898
      %v4900 = vpop.f32.mrb[0].mxu0
      %v4901 = vpop.f32.mrb[0].mxu0
      %v4902 = vadd.f32 0.0, %v4901
      %v4903 = vpop.f32.mrb[0].mxu0
      %4904 = vdwg.mxu0
      %v4905 = vadd.f32 %v3439, %v4875
      %v4906 = vadd.f32 %v3440, %v4878
      %v4907 = vadd.f32 %v3441, %v4883
      %v4908 = vadd.f32 %v3442, %v4886
      %v4909 = vadd.f32 %v3443, %v4891
      %v4910 = vadd.f32 %v3444, %v4894
      %v4911 = vadd.f32 %v3445, %v4899
      %v4912 = vadd.f32 %v3446, %v4902
      %v4913 = vadd.f32 %v254, %v255
      %v4914 = vadd.f32 %v4913, %v256
      %v4915 = vadd.f32 %v4914, %v257
      %v4916 = vadd.f32 %v4915, %v258
      %v4917 = vadd.f32 %v4916, %v259
      %v4918 = vadd.f32 %v4917, %v260
      %v4919 = vadd.f32 %v4918, %v261
      %v4920 = vrot.slane %v4919, 4
      %v4921 = vadd.f32 %v4919, %v4920
      %v4922 = vrot.slane %v4921, 2
      %v4923 = vadd.f32 %v4921, %v4922
      %v4924 = vrot.slane %v4923, 1
      %v4925 = vadd.f32 %v4923, %v4924
      %v4926 = vrcp.pop 64.0
      %v4927 = vmul.f32 %v4925, %v4926
      %v4928 = vpack.c.bf16 %v4927, %v4927
      %s4929 = scalar_lea.vmem %s1, 64
      %v4930 = vld [vmem:[%s4929] sm:$0xf]
      %v4931 = vld [vmem:[%s4929 + $0x4] sm:$0xf]
      %v4932 = vld [vmem:[%s4929 + $0x8] sm:$0xf]
      %v4933 = vld [vmem:[%s4929 + $0xc] sm:$0xf]
      %v4934 = vld [vmem:[%s4929 + $0x10] sm:$0xf]
      %v4935 = vld [vmem:[%s4929 + $0x14] sm:$0xf]
      %v4936 = vld [vmem:[%s4929 + $0x18] sm:$0xf]
      %v4937 = vld [vmem:[%s4929 + $0x1c] sm:$0xf]
      %v4938 = vld [vmem:[%s4929 + $0x20] sm:$0xf]
      %v4939 = vld [vmem:[%s4929 + $0x24] sm:$0xf]
      %v4940 = vld [vmem:[%s4929 + $0x28] sm:$0xf]
      %v4941 = vld [vmem:[%s4929 + $0x2c] sm:$0xf]
      %v4942 = vld [vmem:[%s4929 + $0x30] sm:$0xf]
      %v4943 = vld [vmem:[%s4929 + $0x34] sm:$0xf]
      %v4944 = vld [vmem:[%s4929 + $0x38] sm:$0xf]
      %v4945 = vld [vmem:[%s4929 + $0x3c] sm:$0xf]
      %v4946 = vld [vmem:[%s3 + $0x4] sm:$0x1]
      %v4963 = vunpack.c.l.b16 %v4930
      %v4964 = vunpack.c.l.b16 %v4931
      %v4965 = vunpack.c.l.b16 %v4932
      %v4966 = vunpack.c.l.b16 %v4933
      %v4967 = vunpack.c.l.b16 %v4934
      %v4968 = vunpack.c.l.b16 %v4935
      %v4969 = vunpack.c.l.b16 %v4936
      %v4970 = vunpack.c.l.b16 %v4937
      %v4971 = vunpack.c.l.b16 %v4938
      %v4972 = vunpack.c.l.b16 %v4939
      %v4973 = vunpack.c.l.b16 %v4940
      %v4974 = vunpack.c.l.b16 %v4941
      %v4975 = vunpack.c.l.b16 %v4942
      %v4976 = vunpack.c.l.b16 %v4943
      %v4977 = vunpack.c.l.b16 %v4944
      %v4978 = vunpack.c.l.b16 %v4945
      %v4979 = vpack.c.b16 %v4964, %v4963
      %v4980 = vpack.c.b16 %v4966, %v4965
      %v4981 = vpack.c.b16 %v4968, %v4967
      %v4982 = vpack.c.b16 %v4970, %v4969
      %v4983 = vpack.c.b16 %v4972, %v4971
      %v4984 = vpack.c.b16 %v4974, %v4973
      %v4985 = vpack.c.b16 %v4976, %v4975
      %v4986 = vpack.c.b16 %v4978, %v4977
      %4995 = vmatprep.subr.bf16.mxu0 0
      %4996 = vmatpush1.bf16.msra.mxu0 %v4979
      %4997 = vmatprep.subr.bf16.mxu0 0
      %4998 = vmatpush1.bf16.msra.mxu0 %v4980
      %4999 = vmatprep.subr.bf16.mxu0 0
      %5000 = vmatpush1.bf16.msra.mxu0 %v4981
      %5001 = vmatprep.subr.bf16.mxu0 0
      %5002 = vmatpush1.bf16.msra.mxu0 %v4982
      %5003 = vmatprep.subr.bf16.mxu0 0
      %5004 = vmatpush1.bf16.msra.mxu0 %v4983
      %5005 = vmatprep.subr.bf16.mxu0 0
      %5006 = vmatpush1.bf16.msra.mxu0 %v4984
      %5007 = vmatprep.subr.bf16.mxu0 0
      %5008 = vmatpush1.bf16.msra.mxu0 %v4985
      %5009 = vmatprep.subr.bf16.mxu0 0
      %5010 = vmatpush1.bf16.msra.mxu0 %v4986
      %5011 = vmatprep.subr.bf16.mxu0 0
      %5012 = vmatpush1.bf16.msra.mxu0 0
      %5013 = vmatprep.subr.bf16.mxu0 0
      %5014 = vmatpush1.bf16.msra.mxu0 0
      %5015 = vmatprep.subr.bf16.mxu0 0
      %5016 = vmatpush1.bf16.msra.mxu0 0
      %5017 = vmatprep.subr.bf16.mxu0 0
      %5018 = vmatpush1.bf16.msra.mxu0 0
      %5019 = vmatprep.subr.bf16.mxu0 0
      %5020 = vmatpush1.bf16.msra.mxu0 0
      %5021 = vmatprep.subr.bf16.mxu0 0
      %5022 = vmatpush1.bf16.msra.mxu0 0
      %5023 = vmatprep.subr.bf16.mxu0 0
      %5024 = vmatpush1.bf16.msra.mxu0 0
      %5025 = vmatprep.subr.bf16.mxu0 0
      %5026 = vmatpush1.bf16.msra.mxu0 0
      %5027 = vmatprep.mubr.bf16.mxu0 0
      %5028 = vmatmul.mubr.bf16.gmra.mrb[0].mxu0 %v4928
      %v5029 = vpop.f32.mrb[0].mxu0
      %v5030 = vadd.f32 %v4946, %v5029
      %v5031 = vpop.f32.mrb[0].mxu0
      %v5032 = vpop.f32.mrb[0].mxu0
      %v5033 = vpop.f32.mrb[0].mxu0
      %5034 = vdwg.mxu0
      %v5035 = vmax.f32 %v5030, 0.0
      %v5036 = vpack.c.bf16 %v5035, %v5035
      %s5037 = scalar_lea.vmem %s4, 128
      %v5038 = vld [vmem:[%s5037] sm:$0xf]
      %v5039 = vld [vmem:[%s5037 + $0x4] sm:$0xf]
      %v5040 = vld [vmem:[%s5037 + $0x8] sm:$0xf]
      %v5041 = vld [vmem:[%s5037 + $0xc] sm:$0xf]
      %v5042 = vld [vmem:[%s5037 + $0x10] sm:$0xf]
      %v5043 = vld [vmem:[%s5037 + $0x14] sm:$0xf]
      %v5044 = vld [vmem:[%s5037 + $0x18] sm:$0xf]
      %v5045 = vld [vmem:[%s5037 + $0x1c] sm:$0xf]
      %v5054 = vunpack.c.l.b16 %v5038
      %v5055 = vunpack.c.l.b16 %v5039
      %v5056 = vunpack.c.l.b16 %v5040
      %v5057 = vunpack.c.l.b16 %v5041
      %v5058 = vunpack.c.l.b16 %v5042
      %v5059 = vunpack.c.l.b16 %v5043
      %v5060 = vunpack.c.l.b16 %v5044
      %v5061 = vunpack.c.l.b16 %v5045
      %v5062 = vpack.c.b16 %v5055, %v5054
      %v5063 = vpack.c.b16 %v5057, %v5056
      %v5064 = vpack.c.b16 %v5059, %v5058
      %v5065 = vpack.c.b16 %v5061, %v5060
      %v5071 = vsel %vm1801, %v5036, 0
      %5073 = vmatprep.subr.bf16.mxu0 0
      %5074 = vmatpush1.bf16.msra.mxu0 %v5062
      %5075 = vmatprep.subr.bf16.mxu0 0
      %5076 = vmatpush1.bf16.msra.mxu0 %v5063
      %5077 = vmatprep.subr.bf16.mxu0 0
      %5078 = vmatpush1.bf16.msra.mxu0 %v5064
      %5079 = vmatprep.subr.bf16.mxu0 0
      %5080 = vmatpush1.bf16.msra.mxu0 %v5065
      %5081 = vmatprep.subr.bf16.mxu0 0
      %5082 = vmatpush1.bf16.msra.mxu0 0
      %5083 = vmatprep.subr.bf16.mxu0 0
      %5084 = vmatpush1.bf16.msra.mxu0 0
      %5085 = vmatprep.subr.bf16.mxu0 0
      %5086 = vmatpush1.bf16.msra.mxu0 0
      %5087 = vmatprep.subr.bf16.mxu0 0
      %5088 = vmatpush1.bf16.msra.mxu0 0
      %5089 = vmatprep.subr.bf16.mxu0 0
      %5090 = vmatpush1.bf16.msra.mxu0 0
      %5091 = vmatprep.subr.bf16.mxu0 0
      %5092 = vmatpush1.bf16.msra.mxu0 0
      %5093 = vmatprep.subr.bf16.mxu0 0
      %5094 = vmatpush1.bf16.msra.mxu0 0
      %5095 = vmatprep.subr.bf16.mxu0 0
      %5096 = vmatpush1.bf16.msra.mxu0 0
      %5097 = vmatprep.subr.bf16.mxu0 0
      %5098 = vmatpush1.bf16.msra.mxu0 0
      %5099 = vmatprep.subr.bf16.mxu0 0
      %5100 = vmatpush1.bf16.msra.mxu0 0
      %5101 = vmatprep.subr.bf16.mxu0 0
      %5102 = vmatpush1.bf16.msra.mxu0 0
      %5103 = vmatprep.subr.bf16.mxu0 0
      %5104 = vmatpush1.bf16.msra.mxu0 0
      %5105 = vmatprep.mubr.bf16.mxu0 0
      %5106 = vmatmul.mubr.bf16.gmra.mrb[0].mxu0 %v5071
      %v5107 = vpop.f32.mrb[0].mxu0
      %v5108 = vadd.f32 0.0, %v5107
      %v5109 = vpop.f32.mrb[0].mxu0
      %v5110 = vpop.f32.mrb[0].mxu0
      %v5111 = vpop.f32.mrb[0].mxu0
      %5112 = vdwg.mxu0
      %v5113 = vlaneseq
      %v5114 = vshrl.u32 %v5113, 7
      %v5115 = vsub.s32 0, %v5114
      %v5116 = vrot.slane %v5108, %v5115
      %v5117 = vadd.f32 %v4905, %v5116
      %v5118 = vadd.f32 %v4906, %v5116
      %v5119 = vadd.f32 %v4907, %v5116
      %v5120 = vadd.f32 %v4908, %v5116
      %v5121 = vadd.f32 %v4909, %v5116
      %v5122 = vadd.f32 %v4910, %v5116
      %v5123 = vadd.f32 %v4911, %v5116
      %v5124 = vadd.f32 %v4912, %v5116
      %v5125 = vld [vmem:[%s5] sm:$0x1]
      %v5127 = vlaneseq
      %v5128 = vshrl.u32 %v5127, 7
      %v5129 = vsub.s32 0, %v5128
      %v5130 = vrot.slane %v5125, %v5129
      %v5132 = vadd.f32 %v5117, %v5130
      %v5133 = vadd.f32 %v5118, %v5130
      %v5134 = vadd.f32 %v5119, %v5130
      %v5135 = vadd.f32 %v5120, %v5130
      %v5136 = vadd.f32 %v5121, %v5130
      %v5137 = vadd.f32 %v5122, %v5130
      %v5138 = vadd.f32 %v5123, %v5130
      %v5139 = vadd.f32 %v5124, %v5130
      %v5140 = vmax.f32 %v5132, 0.0
      %v5141 = vmax.f32 %v5133, 0.0
      %v5142 = vmax.f32 %v5134, 0.0
      %v5143 = vmax.f32 %v5135, 0.0
      %v5144 = vmax.f32 %v5136, 0.0
      %v5145 = vmax.f32 %v5137, 0.0
      %v5146 = vmax.f32 %v5138, 0.0
      %v5147 = vmax.f32 %v5139, 0.0
      %v5148 = vpack.c.bf16 %v5141, %v5140
      %v5149 = vpack.c.bf16 %v5143, %v5142
      %v5150 = vpack.c.bf16 %v5145, %v5144
      %v5151 = vpack.c.bf16 %v5147, %v5146
      %v5156 = vunpack.c.l.b16 %v5148
      %v5157 = vunpack.c.h.b16 %v5148
      %v5158 = vunpack.c.l.b16 %v5149
      %v5159 = vunpack.c.h.b16 %v5149
      %v5160 = vunpack.c.l.b16 %v5150
      %v5161 = vunpack.c.h.b16 %v5150
      %v5162 = vunpack.c.l.b16 %v5151
      %v5163 = vunpack.c.h.b16 %v5151
      %v5164 = vpack.c.b16 %v5156, %v5156
      %v5165 = vpack.c.b16 %v5157, %v5157
      %v5166 = vpack.c.b16 %v5158, %v5158
      %v5167 = vpack.c.b16 %v5159, %v5159
      %v5168 = vpack.c.b16 %v5160, %v5160
      %v5169 = vpack.c.b16 %v5161, %v5161
      %v5170 = vpack.c.b16 %v5162, %v5162
      %v5171 = vpack.c.b16 %v5163, %v5163
      %5180 = vst [vmem:[%s251] sm:$0xf] %v5164
      %5181 = vst [vmem:[%s251 + $0x4] sm:$0xf] %v5165
      %5182 = vst [vmem:[%s251 + $0x8] sm:$0xf] %v5166
      %5183 = vst [vmem:[%s251 + $0xc] sm:$0xf] %v5167
      %5184 = vst [vmem:[%s251 + $0x10] sm:$0xf] %v5168
      %5185 = vst [vmem:[%s251 + $0x14] sm:$0xf] %v5169
      %5186 = vst [vmem:[%s251 + $0x18] sm:$0xf] %v5170
      %5187 = vst [vmem:[%s251 + $0x1c] sm:$0xf] %v5171
      %p5188 = scmp.lt.s32.totalorder %s17, 1
      %s5189 = scalar_select %p5188, %s17, 1
      %s5190 = smul.addr %s5189, 8
      %s5191 = smul.addr %s5190, 4
      %s5192 = scalar_lea.vmem %s6, %s5191
      // Predicated region
      $region45: #{deeplab_forward.6} parent=43 // pred_check
        %p5193 = pneg %p166
      $region46: #{deeplab_forward.6} parent=43 // pred_check_branch
        %5195 = sbr.rel (%p5193) target = $region48
      $region47: #{deeplab_forward.6} parent=43 // pred_region
        _
      $region48: #{deeplab_forward.6} parent=43 // pred_fallthru
        _
    $region44: #{deeplab_forward.6} parent=5 // pred_fallthru
      _
    %p5196 = scmp.le.s32.totalorder 2, %s12
    // Predicated region
    $region49: #{deeplab_forward.6} parent=5 // pred_check
      %p5197 = pneg %p5196
    $region50: #{deeplab_forward.6} parent=5 // pred_check_branch
      %5199 = sbr.rel (%p5197) target = $region52
    $region51: #{deeplab_forward.6} parent=5 // pred_region
      %s5200 = ssub.s32 %s12, 2
      // Predicated region
      $region53: #{deeplab_forward.6} parent=51 // pred_check
        %p5201 = pneg %p172
      $region54: #{deeplab_forward.6} parent=51 // pred_check_branch
        %5203 = sbr.rel (%p5201) target = $region56
      $region55: #{deeplab_forward.6} parent=51 // pred_region
        %p5204 = scmp.lt.s32.totalorder %s18, 1
        %s5205 = scalar_select %p5204, %s18, 1
        %s5206 = smul.addr %s5205, 8
        %s5207 = smul.addr %s5206, 4
        %s5208 = scalar_lea.vmem %s6, %s5207
      $region56: #{deeplab_forward.6} parent=51 // pred_fallthru
        _
    $region52: #{deeplab_forward.6} parent=5 // pred_fallthru
      _
  $region6: #{deeplab_forward.6} parent=0 // loop_footer
    %s16 = sadd.s32 1, %s12
  $region7: #{deeplab_forward.6} parent=0 // loop_footer_branch
    %11 = sbr.rel target = $region3
  $region8: #{deeplab_forward.6} parent=0 // loop_exit
    _

</llo_original>
